<compile_context>
chip_gen: v5e
topology: v5e:2x2
jax: 0.10.0
libtpu: 0.0.40
codegen_flags: <defaults>
</compile_context>

<pallas_src>
import jax
import jax.numpy as jnp
from jax.experimental import pallas as pl
from jax.experimental.pallas import tpu as pltpu

# Model hyper-parameters (consistent with the module's __init__ args).
INPUT_DIM = 16
HIDDEN = 32
OUTPUT_DIM = 8
NUM_LAYERS = 2
NUM_HEADS = 4          # must divide HIDDEN
FFN = 2048             # PyTorch TransformerEncoderLayer default dim_feedforward
EPS = 1e-5             # PyTorch LayerNorm default eps
BATCH = 8

# FFN inner-dim chunking (keeps the live intermediate at (TB, FFN_CHUNK)).
FFN_CHUNK = 256
N_CHUNKS = FFN // FFN_CHUNK

# ---- static packing layout -------------------------------------------------
# mats (f32, (MATS_ROWS, HIDDEN)):
#   [0:16)                      input-embedding weight  (INPUT_DIM, HIDDEN)
#   [16 + l*32 : 16+(l+1)*32)   folded attention weight (HIDDEN, HIDDEN)
#   [80 : 112)                  output weight padded to (HIDDEN, HIDDEN)
MATS_WIN = 0
MATS_ATTN = INPUT_DIM
MATS_WOUT = INPUT_DIM + NUM_LAYERS * HIDDEN
MATS_ROWS = MATS_WOUT + HIDDEN

# vecs (f32, (VEC_ROWS, HIDDEN)): every 32-wide vector parameter, one per row.
#   row 0: b_in; per layer l (base 1+6*l): attn_b, ln1_g, ln1_b, l2_b, ln2_g,
#   ln2_b; last row: b_out (zero-padded to HIDDEN).
VEC_BIN = 0
VEC_LAYER = 1
VEC_STRIDE = 6
VEC_BOUT = VEC_LAYER + VEC_STRIDE * NUM_LAYERS
VEC_ROWS = VEC_BOUT + 1


def _layer_norm(x, gamma, beta):
    mean = jnp.mean(x, axis=-1, keepdims=True)
    var = jnp.mean(jnp.square(x - mean), axis=-1, keepdims=True)
    return (x - mean) * jax.lax.rsqrt(var + EPS) * gamma + beta


def transformer_kernel(x_ref, mats_ref, vecs_ref, l1b_ref, l1w_ref, l2w_ref,
                       o_ref):
    x = x_ref[...]                                          # (TB, INPUT_DIM) f32
    # Hoisted bulk load of every small vector parameter (one vld, 2 vregs).
    vecs = vecs_ref[...]                                    # (VEC_ROWS, 32) f32

    w_in = mats_ref[pl.ds(MATS_WIN, INPUT_DIM), :]          # (16, 32)
    b_in = vecs[VEC_BIN:VEC_BIN + 1, :]                     # (1, 32)
    h = jnp.dot(x, w_in, preferred_element_type=jnp.float32) + b_in

    for l in range(NUM_LAYERS):                             # static unroll
        r0 = MATS_ATTN + l * HIDDEN
        v0 = VEC_LAYER + l * VEC_STRIDE
        w_attn = mats_ref[pl.ds(r0, HIDDEN), :]             # folded V @ out_proj
        b_attn = vecs[v0 + 0:v0 + 1, :]
        ln1_g = vecs[v0 + 1:v0 + 2, :]
        ln1_b = vecs[v0 + 2:v0 + 3, :]
        l2_b = vecs[v0 + 3:v0 + 4, :]
        ln2_g = vecs[v0 + 4:v0 + 5, :]
        ln2_b = vecs[v0 + 5:v0 + 6, :]

        # --- self-attention (seq_len == 1 => softmax == 1 => out_proj(V)) ---
        attn = jnp.dot(h, w_attn, preferred_element_type=jnp.float32) + b_attn
        h = _layer_norm(h + attn, ln1_g, ln1_b)

        # --- feed-forward, chunked over the 2048-wide inner dim -------------
        # Weights are pre-split so chunk r lives at leading index row0 + c:
        #   l1w_ref: (L*NC, H, CH) bf16, l2w_ref: (L*NC, CH, H) bf16,
        #   l1b_ref: (L*NC, 1, CH) f32.
        # Only a (TB, CH) intermediate and a (TB, H) f32 accumulator are live,
        # so nothing spills to VMEM and the store slot stays free.
        h_bf = h.astype(jnp.bfloat16)
        row0 = l * N_CHUNKS

        def ffn_chunk(c, acc):
            r = row0 + c
            t = jnp.dot(h_bf, l1w_ref[r],
                        preferred_element_type=jnp.float32) + l1b_ref[r]
            t = jnp.maximum(t, 0.0)
            return acc + jnp.dot(t.astype(jnp.bfloat16), l2w_ref[r],
                                 preferred_element_type=jnp.float32)

        ff = jax.lax.fori_loop(0, N_CHUNKS, ffn_chunk, jnp.zeros_like(h),
                               unroll=True)
        h = _layer_norm(h + (ff + l2_b), ln2_g, ln2_b)

    # x = x[-1, :, :] (seq dim of size 1) then output Linear.  w_out columns
    # >= OUTPUT_DIM are zero, so the full 32-wide store stays lane-dense; the
    # narrow OUTPUT_DIM slice happens in the wrapper.
    w_out = mats_ref[pl.ds(MATS_WOUT, HIDDEN), :]           # (32, 32)
    b_out = vecs[VEC_BOUT:VEC_BOUT + 1, :]
    out = jnp.dot(h, w_out, preferred_element_type=jnp.float32) + b_out
    o_ref[...] = out.astype(o_ref.dtype)


def _pick_tile(B):
    # With FFN chunking the per-tile live set is small, so bigger tiles simply
    # amortize the ~0.35us per-grid-step overhead.  Keep >=2 grid steps for
    # large batches so the "parallel" batch axis can shard across v7x's 2 TCs.
    if B <= 128:
        return min(pl.cdiv(B, 8) * 8, 128)
    if B <= 512:
        return 128
    return 256


def _build_call(TB, Bp, kp, single_buffer_weights):
    # Weights have constant index maps and are never re-fetched across batch
    # tiles -> single buffering halves their VMEM footprint and skips a
    # useless second prefetch.
    wkw = {"pipeline_mode": pl.Buffered(1)} if single_buffer_weights else {}

    def wspec(shape):
        n = len(shape)
        return pl.BlockSpec(shape, lambda i, n=n: (0,) * n, **wkw)

    return pl.pallas_call(
        transformer_kernel,
        out_shape=jax.ShapeDtypeStruct((Bp, HIDDEN), jnp.float32),
        grid_spec=pltpu.PrefetchScalarGridSpec(
            num_scalar_prefetch=0,
            grid=(Bp // TB,),
            in_specs=[
                pl.BlockSpec((TB, INPUT_DIM), lambda i: (i, 0)),
                wspec(kp["mats"].shape),
                wspec(kp["vecs"].shape),
                wspec(kp["l1_b"].shape),
                wspec(kp["l1_w"].shape),
                wspec(kp["l2_w"].shape),
            ],
            out_specs=pl.BlockSpec((TB, HIDDEN), lambda i: (i, 0)),
        ),
        compiler_params=pltpu.CompilerParams(
            dimension_semantics=("parallel",)),
    )


def transformer_forward(x, kp):
    B = x.shape[0]
    TB = _pick_tile(B)
    Bp = pl.cdiv(B, TB) * TB
    xp = jnp.pad(x, ((0, Bp - B), (0, 0))) if Bp != B else x
    args = (xp, kp["mats"], kp["vecs"], kp["l1_b"], kp["l1_w"], kp["l2_w"])

    try:
        out = jax.block_until_ready(
            _build_call(TB, Bp, kp, single_buffer_weights=True)(*args))
    except Exception:
        # pipeline_mode=pl.Buffered(1) not supported on this jax/libtpu combo;
        # fall back to default double-buffered weight windows.
        out = _build_call(TB, Bp, kp, single_buffer_weights=False)(*args)
    return out[:B, :OUTPUT_DIM]


def init_params(key):
    """Raw parameters in PyTorch-equivalent form (weights pre-transposed)."""
    ks = jax.random.split(key, 12)
    scale = 0.05

    def w(k, shape):
        return (scale * jax.random.normal(k, shape)).astype(jnp.float32)

    return {
        "w_in": w(ks[0], (INPUT_DIM, HIDDEN)),
        "b_in": w(ks[1], (1, HIDDEN)),
        "qkv_w": w(ks[2], (NUM_LAYERS, HIDDEN, 3 * HIDDEN)),   # in_proj_weight.T
        "qkv_b": w(ks[3], (NUM_LAYERS, 3 * HIDDEN)),
        "op_w": w(ks[4], (NUM_LAYERS, HIDDEN, HIDDEN)),        # out_proj.weight.T
        "op_b": w(ks[5], (NUM_LAYERS, HIDDEN)),
        "ln1_g": jnp.ones((NUM_LAYERS, HIDDEN), jnp.float32),
        "ln1_b": jnp.zeros((NUM_LAYERS, HIDDEN), jnp.float32),
        "l1_w": w(ks[6], (NUM_LAYERS, HIDDEN, FFN)),           # linear1.weight.T
        "l1_b": w(ks[7], (NUM_LAYERS, FFN)),
        "l2_w": w(ks[8], (NUM_LAYERS, FFN, HIDDEN)),           # linear2.weight.T
        "l2_b": w(ks[9], (NUM_LAYERS, HIDDEN)),
        "ln2_g": jnp.ones((NUM_LAYERS, HIDDEN), jnp.float32),
        "ln2_b": jnp.zeros((NUM_LAYERS, HIDDEN), jnp.float32),
        "w_out": w(ks[10], (HIDDEN, OUTPUT_DIM)),
        "b_out": w(ks[11], (1, OUTPUT_DIM)),
    }


def prepare_params(p):
    """Offline (static) param prep: fold attention, pack small params,
    bf16 + chunk-split FFN weights."""
    L, H = NUM_LAYERS, HIDDEN

    # Fold V-projection + out-projection: attn(h) = (h @ v_w + v_b) @ op_w + op_b
    v_w = p["qkv_w"][:, :, 2 * H:]                                  # (L, H, H)
    v_b = p["qkv_b"][:, 2 * H:]                                     # (L, H)
    attn_w = jnp.einsum("lij,ljk->lik", v_w, p["op_w"])             # (L, H, H)
    attn_b = jnp.einsum("lj,ljk->lk", v_b, p["op_w"]) + p["op_b"]   # (L, H)

    w_out_pad = jnp.zeros((H, H), jnp.float32).at[:, :OUTPUT_DIM].set(p["w_out"])
    mats = jnp.concatenate(
        [p["w_in"], attn_w.reshape(L * H, H), w_out_pad], axis=0)   # (112, 32)

    def row(v):
        v = jnp.asarray(v, jnp.float32).reshape(1, -1)
        return jnp.pad(v, ((0, 0), (0, H - v.shape[1])))

    rows = [row(p["b_in"])]
    for l in range(L):
        rows += [row(attn_b[l]), row(p["ln1_g"][l]), row(p["ln1_b"][l]),
                 row(p["l2_b"][l]), row(p["ln2_g"][l]), row(p["ln2_b"][l])]
    rows.append(row(p["b_out"]))
    vecs = jnp.concatenate(rows, axis=0)                            # (14, 32)

    # FFN weights: bf16, pre-split so chunk c of layer l lives at leading row
    # l*N_CHUNKS + c (the kernel only ever indexes an untiled leading dim).
    l1w = p["l1_w"].astype(jnp.bfloat16)                            # (L, H, FFN)
    l1w = l1w.reshape(L, H, N_CHUNKS, FFN_CHUNK)
    l1w = l1w.transpose(0, 2, 1, 3).reshape(L * N_CHUNKS, H, FFN_CHUNK)
    l2w = p["l2_w"].astype(jnp.bfloat16)                            # (L, FFN, H)
    l2w = l2w.reshape(L * N_CHUNKS, FFN_CHUNK, H)
    l1b = p["l1_b"].astype(jnp.float32).reshape(L * N_CHUNKS, 1, FFN_CHUNK)

    return {
        "mats": mats,                      # (112, 32)  f32
        "vecs": vecs,                      # (14, 32)   f32
        "l1_b": l1b,                       # (16, 1, 256) f32
        "l1_w": l1w,                       # (16, 32, 256) bf16
        "l2_w": l2w,                       # (16, 256, 32) bf16
    }


def reference_forward(x, p):
    """Pure-JAX f32 reference with FULL multi-head attention (seq_len == 1)."""
    H, L, NH = HIDDEN, NUM_LAYERS, NUM_HEADS
    hd = H // NH
    B = x.shape[0]
    h = x @ p["w_in"] + p["b_in"]
    for l in range(L):
        qkv = h @ p["qkv_w"][l] + p["qkv_b"][l][None, :]
        q, k, v = qkv[:, :H], qkv[:, H:2 * H], qkv[:, 2 * H:]
        qh = q.reshape(B, NH, hd)
        kh = k.reshape(B, NH, hd)
        vh = v.reshape(B, NH, hd)
        scores = jnp.sum(qh * kh, axis=-1, keepdims=True) / jnp.sqrt(float(hd))
        attn_w = jax.nn.softmax(scores, axis=-1)        # seq_len == 1 -> 1.0
        ctx = (attn_w * vh).reshape(B, H)
        attn = ctx @ p["op_w"][l] + p["op_b"][l][None, :]
        h = _layer_norm(h + attn, p["ln1_g"][l], p["ln1_b"][l])
        ff = jnp.maximum(h @ p["l1_w"][l] + p["l1_b"][l][None, :], 0.0)
        ff = ff @ p["l2_w"][l] + p["l2_b"][l][None, :]
        h = _layer_norm(h + ff, p["ln2_g"][l], p["ln2_b"][l])
    return h @ p["w_out"] + p["b_out"]


if __name__ == "__main__":
    key = jax.random.PRNGKey(0)
    k_x, k_p = jax.random.split(key)
    x = jax.random.normal(k_x, (BATCH, INPUT_DIM), dtype=jnp.float32)
    params = init_params(k_p)
    kparams = prepare_params(params)

    out = transformer_forward(x, kparams)
    out = jax.block_until_ready(out)

    ref = reference_forward(x, params)
    assert out.shape == (BATCH, OUTPUT_DIM)
    # bf16 FFN weights -> loosened tolerance vs. the pure-f32 reference.
    assert jnp.allclose(out, ref, atol=3e-2, rtol=3e-2), "mismatch vs. JAX reference"

    print("KERNEL_OK")
</pallas_src>

<mosaic_0001>
module attributes {stable_mosaic.version = 11 : i64} {
  func.func @transformer_kernel(%arg0: i32, %arg1: memref<8x16xf32, #tpu.memory_space<vmem>>, %arg2: memref<112x32xf32, #tpu.memory_space<vmem>>, %arg3: memref<14x32xf32, #tpu.memory_space<vmem>>, %arg4: memref<16x1x256xf32, #tpu.memory_space<vmem>>, %arg5: memref<16x32x256xbf16, #tpu.memory_space<vmem>>, %arg6: memref<16x256x32xbf16, #tpu.memory_space<vmem>>, %arg7: memref<8x32xf32, #tpu.memory_space<vmem>>) attributes {dimension_semantics = [#tpu.dimension_semantics<parallel>], iteration_bounds = array<i64: 1>, scalar_prefetch = 0 : i64, scratch_operands = 0 : i64, tpu.core_type = #tpu.core_type<tc>, window_params = [{transform_indices = @transform_0, window_bounds = array<i64: 8, 16>}, {pipeline_mode = #tpu.pipeline_mode<synchronous>, transform_indices = @transform_1, window_bounds = array<i64: 112, 32>}, {pipeline_mode = #tpu.pipeline_mode<synchronous>, transform_indices = @transform_2, window_bounds = array<i64: 14, 32>}, {pipeline_mode = #tpu.pipeline_mode<synchronous>, transform_indices = @transform_3, window_bounds = array<i64: 16, 1, 256>}, {pipeline_mode = #tpu.pipeline_mode<synchronous>, transform_indices = @transform_4, window_bounds = array<i64: 16, 32, 256>}, {pipeline_mode = #tpu.pipeline_mode<synchronous>, transform_indices = @transform_5, window_bounds = array<i64: 16, 256, 32>}, {transform_indices = @transform_6, window_bounds = array<i64: 8, 32>}]} {
    %c0 = arith.constant 0 : index
    %c0_0 = arith.constant 0 : index
    %0 = vector.load %arg1[%c0, %c0_0] : memref<8x16xf32, #tpu.memory_space<vmem>>, vector<8x16xf32>
    %c0_1 = arith.constant 0 : index
    %c0_2 = arith.constant 0 : index
    %1 = vector.load %arg3[%c0_1, %c0_2] : memref<14x32xf32, #tpu.memory_space<vmem>>, vector<14x32xf32>
    %c0_3 = arith.constant 0 : index
    %c0_4 = arith.constant 0 : index
    %2 = vector.load %arg2[%c0_3, %c0_4] : memref<112x32xf32, #tpu.memory_space<vmem>>, vector<16x32xf32>
    %3 = vector.extract_strided_slice %1 {offsets = [0, 0], sizes = [1, 32], strides = [1, 1]} : vector<14x32xf32> to vector<1x32xf32>
    %cst = arith.constant dense<0.000000e+00> : vector<8x32xf32>
    %4 = tpu.matmul %0, %2, %cst {dimension_numbers = #tpu.dot_dimension_numbers<[1], [0], [0], [1], [0, 0, 1, 1], [], []>} : vector<8x16xf32>, vector<16x32xf32>, vector<8x32xf32> -> vector<8x32xf32>
    %5 = vector.broadcast %3 : vector<1x32xf32> to vector<8x32xf32>
    %6 = arith.addf %4, %5 : vector<8x32xf32>
    %c16 = arith.constant 16 : index
    %c0_5 = arith.constant 0 : index
    %7 = vector.load %arg2[%c16, %c0_5] : memref<112x32xf32, #tpu.memory_space<vmem>>, vector<32x32xf32>
    %8 = vector.extract_strided_slice %1 {offsets = [1, 0], sizes = [1, 32], strides = [1, 1]} : vector<14x32xf32> to vector<1x32xf32>
    %9 = vector.extract_strided_slice %1 {offsets = [2, 0], sizes = [1, 32], strides = [1, 1]} : vector<14x32xf32> to vector<1x32xf32>
    %10 = vector.extract_strided_slice %1 {offsets = [3, 0], sizes = [1, 32], strides = [1, 1]} : vector<14x32xf32> to vector<1x32xf32>
    %11 = vector.extract_strided_slice %1 {offsets = [4, 0], sizes = [1, 32], strides = [1, 1]} : vector<14x32xf32> to vector<1x32xf32>
    %12 = vector.extract_strided_slice %1 {offsets = [5, 0], sizes = [1, 32], strides = [1, 1]} : vector<14x32xf32> to vector<1x32xf32>
    %13 = vector.extract_strided_slice %1 {offsets = [6, 0], sizes = [1, 32], strides = [1, 1]} : vector<14x32xf32> to vector<1x32xf32>
    %cst_6 = arith.constant dense<0.000000e+00> : vector<8x32xf32>
    %14 = tpu.matmul %6, %7, %cst_6 {dimension_numbers = #tpu.dot_dimension_numbers<[1], [0], [0], [1], [0, 0, 1, 1], [], []>} : vector<8x32xf32>, vector<32x32xf32>, vector<8x32xf32> -> vector<8x32xf32>
    %15 = vector.broadcast %8 : vector<1x32xf32> to vector<8x32xf32>
    %16 = arith.addf %14, %15 : vector<8x32xf32>
    %17 = arith.addf %6, %16 : vector<8x32xf32>
    %cst_7 = arith.constant dense<0.000000e+00> : vector<8xf32>
    %18 = vector.multi_reduction <add>, %17, %cst_7 [1] : vector<8x32xf32> to vector<8xf32>
    %19 = vector.shape_cast %18 : vector<8xf32> to vector<8x1xf32>
    %cst_8 = arith.constant 3.200000e+01 : f32
    %20 = vector.broadcast %cst_8 : f32 to vector<8x1xf32>
    %21 = arith.divf %19, %20 : vector<8x1xf32>
    %22 = vector.broadcast %21 : vector<8x1xf32> to vector<8x32xf32>
    %23 = arith.subf %17, %22 : vector<8x32xf32>
    %24 = arith.mulf %23, %23 : vector<8x32xf32>
    %cst_9 = arith.constant dense<0.000000e+00> : vector<8xf32>
    %25 = vector.multi_reduction <add>, %24, %cst_9 [1] : vector<8x32xf32> to vector<8xf32>
    %26 = vector.shape_cast %25 : vector<8xf32> to vector<8x1xf32>
    %cst_10 = arith.constant 3.200000e+01 : f32
    %27 = vector.broadcast %cst_10 : f32 to vector<8x1xf32>
    %28 = arith.divf %26, %27 : vector<8x1xf32>
    %29 = vector.broadcast %21 : vector<8x1xf32> to vector<8x32xf32>
    %30 = arith.subf %17, %29 : vector<8x32xf32>
    %cst_11 = arith.constant 9.99999974E-6 : f32
    %31 = vector.broadcast %cst_11 : f32 to vector<8x1xf32>
    %32 = arith.addf %28, %31 : vector<8x1xf32>
    %33 = math.rsqrt %32 : vector<8x1xf32>
    %34 = vector.broadcast %33 : vector<8x1xf32> to vector<8x32xf32>
    %35 = arith.mulf %30, %34 : vector<8x32xf32>
    %36 = vector.broadcast %9 : vector<1x32xf32> to vector<8x32xf32>
    %37 = arith.mulf %35, %36 : vector<8x32xf32>
    %38 = vector.broadcast %10 : vector<1x32xf32> to vector<8x32xf32>
    %39 = arith.addf %37, %38 : vector<8x32xf32>
    %40 = arith.truncf %39 : vector<8x32xf32> to vector<8x32xbf16>
    %cst_12 = arith.constant 0.000000e+00 : f32
    %41 = vector.broadcast %cst_12 : f32 to vector<8x32xf32>
    %c0_i32 = arith.constant 0 : i32
    %c0_i32_13 = arith.constant 0 : i32
    %42 = arith.addi %c0_i32_13, %c0_i32 : i32
    %43 = arith.index_cast %42 : i32 to index
    %c0_14 = arith.constant 0 : index
    %c0_15 = arith.constant 0 : index
    %44 = vector.load %arg5[%43, %c0_14, %c0_15] : memref<16x32x256xbf16, #tpu.memory_space<vmem>>, vector<1x32x256xbf16>
    %45 = vector.shape_cast %44 : vector<1x32x256xbf16> to vector<32x256xbf16>
    %cst_16 = arith.constant dense<0.000000e+00> : vector<8x256xf32>
    %46 = tpu.matmul %40, %45, %cst_16 {dimension_numbers = #tpu.dot_dimension_numbers<[1], [0], [0], [1], [0, 0, 1, 1], [], []>} : vector<8x32xbf16>, vector<32x256xbf16>, vector<8x256xf32> -> vector<8x256xf32>
    %47 = arith.index_cast %42 : i32 to index
    %c0_17 = arith.constant 0 : index
    %c0_18 = arith.constant 0 : index
    %48 = vector.load %arg4[%47, %c0_17, %c0_18] : memref<16x1x256xf32, #tpu.memory_space<vmem>>, vector<1x1x256xf32>
    %49 = vector.shape_cast %48 : vector<1x1x256xf32> to vector<1x256xf32>
    %50 = vector.broadcast %49 : vector<1x256xf32> to vector<8x256xf32>
    %51 = arith.addf %46, %50 : vector<8x256xf32>
    %cst_19 = arith.constant 0.000000e+00 : f32
    %52 = vector.broadcast %cst_19 : f32 to vector<8x256xf32>
    %53 = arith.maximumf %51, %52 : vector<8x256xf32>
    %54 = arith.truncf %53 : vector<8x256xf32> to vector<8x256xbf16>
    %55 = arith.index_cast %42 : i32 to index
    %c0_20 = arith.constant 0 : index
    %c0_21 = arith.constant 0 : index
    %56 = vector.load %arg6[%55, %c0_20, %c0_21] : memref<16x256x32xbf16, #tpu.memory_space<vmem>>, vector<1x256x32xbf16>
    %57 = vector.shape_cast %56 : vector<1x256x32xbf16> to vector<256x32xbf16>
    %cst_22 = arith.constant dense<0.000000e+00> : vector<8x32xf32>
    %58 = tpu.matmul %54, %57, %cst_22 {dimension_numbers = #tpu.dot_dimension_numbers<[1], [0], [0], [1], [0, 0, 1, 1], [], []>} : vector<8x256xbf16>, vector<256x32xbf16>, vector<8x32xf32> -> vector<8x32xf32>
    %59 = arith.addf %41, %58 : vector<8x32xf32>
    %c1_i32 = arith.constant 1 : i32
    %c0_i32_23 = arith.constant 0 : i32
    %60 = arith.addi %c0_i32_23, %c1_i32 : i32
    %61 = arith.index_cast %60 : i32 to index
    %c0_24 = arith.constant 0 : index
    %c0_25 = arith.constant 0 : index
    %62 = vector.load %arg5[%61, %c0_24, %c0_25] : memref<16x32x256xbf16, #tpu.memory_space<vmem>>, vector<1x32x256xbf16>
    %63 = vector.shape_cast %62 : vector<1x32x256xbf16> to vector<32x256xbf16>
    %cst_26 = arith.constant dense<0.000000e+00> : vector<8x256xf32>
    %64 = tpu.matmul %40, %63, %cst_26 {dimension_numbers = #tpu.dot_dimension_numbers<[1], [0], [0], [1], [0, 0, 1, 1], [], []>} : vector<8x32xbf16>, vector<32x256xbf16>, vector<8x256xf32> -> vector<8x256xf32>
    %65 = arith.index_cast %60 : i32 to index
    %c0_27 = arith.constant 0 : index
    %c0_28 = arith.constant 0 : index
    %66 = vector.load %arg4[%65, %c0_27, %c0_28] : memref<16x1x256xf32, #tpu.memory_space<vmem>>, vector<1x1x256xf32>
    %67 = vector.shape_cast %66 : vector<1x1x256xf32> to vector<1x256xf32>
    %68 = vector.broadcast %67 : vector<1x256xf32> to vector<8x256xf32>
    %69 = arith.addf %64, %68 : vector<8x256xf32>
    %cst_29 = arith.constant 0.000000e+00 : f32
    %70 = vector.broadcast %cst_29 : f32 to vector<8x256xf32>
    %71 = arith.maximumf %69, %70 : vector<8x256xf32>
    %72 = arith.truncf %71 : vector<8x256xf32> to vector<8x256xbf16>
    %73 = arith.index_cast %60 : i32 to index
    %c0_30 = arith.constant 0 : index
    %c0_31 = arith.constant 0 : index
    %74 = vector.load %arg6[%73, %c0_30, %c0_31] : memref<16x256x32xbf16, #tpu.memory_space<vmem>>, vector<1x256x32xbf16>
    %75 = vector.shape_cast %74 : vector<1x256x32xbf16> to vector<256x32xbf16>
    %cst_32 = arith.constant dense<0.000000e+00> : vector<8x32xf32>
    %76 = tpu.matmul %72, %75, %cst_32 {dimension_numbers = #tpu.dot_dimension_numbers<[1], [0], [0], [1], [0, 0, 1, 1], [], []>} : vector<8x256xbf16>, vector<256x32xbf16>, vector<8x32xf32> -> vector<8x32xf32>
    %77 = arith.addf %59, %76 : vector<8x32xf32>
    %c2_i32 = arith.constant 2 : i32
    %c0_i32_33 = arith.constant 0 : i32
    %78 = arith.addi %c0_i32_33, %c2_i32 : i32
    %79 = arith.index_cast %78 : i32 to index
    %c0_34 = arith.constant 0 : index
    %c0_35 = arith.constant 0 : index
    %80 = vector.load %arg5[%79, %c0_34, %c0_35] : memref<16x32x256xbf16, #tpu.memory_space<vmem>>, vector<1x32x256xbf16>
    %81 = vector.shape_cast %80 : vector<1x32x256xbf16> to vector<32x256xbf16>
    %cst_36 = arith.constant dense<0.000000e+00> : vector<8x256xf32>
    %82 = tpu.matmul %40, %81, %cst_36 {dimension_numbers = #tpu.dot_dimension_numbers<[1], [0], [0], [1], [0, 0, 1, 1], [], []>} : vector<8x32xbf16>, vector<32x256xbf16>, vector<8x256xf32> -> vector<8x256xf32>
    %83 = arith.index_cast %78 : i32 to index
    %c0_37 = arith.constant 0 : index
    %c0_38 = arith.constant 0 : index
    %84 = vector.load %arg4[%83, %c0_37, %c0_38] : memref<16x1x256xf32, #tpu.memory_space<vmem>>, vector<1x1x256xf32>
    %85 = vector.shape_cast %84 : vector<1x1x256xf32> to vector<1x256xf32>
    %86 = vector.broadcast %85 : vector<1x256xf32> to vector<8x256xf32>
    %87 = arith.addf %82, %86 : vector<8x256xf32>
    %cst_39 = arith.constant 0.000000e+00 : f32
    %88 = vector.broadcast %cst_39 : f32 to vector<8x256xf32>
    %89 = arith.maximumf %87, %88 : vector<8x256xf32>
    %90 = arith.truncf %89 : vector<8x256xf32> to vector<8x256xbf16>
    %91 = arith.index_cast %78 : i32 to index
    %c0_40 = arith.constant 0 : index
    %c0_41 = arith.constant 0 : index
    %92 = vector.load %arg6[%91, %c0_40, %c0_41] : memref<16x256x32xbf16, #tpu.memory_space<vmem>>, vector<1x256x32xbf16>
    %93 = vector.shape_cast %92 : vector<1x256x32xbf16> to vector<256x32xbf16>
    %cst_42 = arith.constant dense<0.000000e+00> : vector<8x32xf32>
    %94 = tpu.matmul %90, %93, %cst_42 {dimension_numbers = #tpu.dot_dimension_numbers<[1], [0], [0], [1], [0, 0, 1, 1], [], []>} : vector<8x256xbf16>, vector<256x32xbf16>, vector<8x32xf32> -> vector<8x32xf32>
    %95 = arith.addf %77, %94 : vector<8x32xf32>
    %c3_i32 = arith.constant 3 : i32
    %c0_i32_43 = arith.constant 0 : i32
    %96 = arith.addi %c0_i32_43, %c3_i32 : i32
    %97 = arith.index_cast %96 : i32 to index
    %c0_44 = arith.constant 0 : index
    %c0_45 = arith.constant 0 : index
    %98 = vector.load %arg5[%97, %c0_44, %c0_45] : memref<16x32x256xbf16, #tpu.memory_space<vmem>>, vector<1x32x256xbf16>
    %99 = vector.shape_cast %98 : vector<1x32x256xbf16> to vector<32x256xbf16>
    %cst_46 = arith.constant dense<0.000000e+00> : vector<8x256xf32>
    %100 = tpu.matmul %40, %99, %cst_46 {dimension_numbers = #tpu.dot_dimension_numbers<[1], [0], [0], [1], [0, 0, 1, 1], [], []>} : vector<8x32xbf16>, vector<32x256xbf16>, vector<8x256xf32> -> vector<8x256xf32>
    %101 = arith.index_cast %96 : i32 to index
    %c0_47 = arith.constant 0 : index
    %c0_48 = arith.constant 0 : index
    %102 = vector.load %arg4[%101, %c0_47, %c0_48] : memref<16x1x256xf32, #tpu.memory_space<vmem>>, vector<1x1x256xf32>
    %103 = vector.shape_cast %102 : vector<1x1x256xf32> to vector<1x256xf32>
    %104 = vector.broadcast %103 : vector<1x256xf32> to vector<8x256xf32>
    %105 = arith.addf %100, %104 : vector<8x256xf32>
    %cst_49 = arith.constant 0.000000e+00 : f32
    %106 = vector.broadcast %cst_49 : f32 to vector<8x256xf32>
    %107 = arith.maximumf %105, %106 : vector<8x256xf32>
    %108 = arith.truncf %107 : vector<8x256xf32> to vector<8x256xbf16>
    %109 = arith.index_cast %96 : i32 to index
    %c0_50 = arith.constant 0 : index
    %c0_51 = arith.constant 0 : index
    %110 = vector.load %arg6[%109, %c0_50, %c0_51] : memref<16x256x32xbf16, #tpu.memory_space<vmem>>, vector<1x256x32xbf16>
    %111 = vector.shape_cast %110 : vector<1x256x32xbf16> to vector<256x32xbf16>
    %cst_52 = arith.constant dense<0.000000e+00> : vector<8x32xf32>
    %112 = tpu.matmul %108, %111, %cst_52 {dimension_numbers = #tpu.dot_dimension_numbers<[1], [0], [0], [1], [0, 0, 1, 1], [], []>} : vector<8x256xbf16>, vector<256x32xbf16>, vector<8x32xf32> -> vector<8x32xf32>
    %113 = arith.addf %95, %112 : vector<8x32xf32>
    %c4_i32 = arith.constant 4 : i32
    %c0_i32_53 = arith.constant 0 : i32
    %114 = arith.addi %c0_i32_53, %c4_i32 : i32
    %115 = arith.index_cast %114 : i32 to index
    %c0_54 = arith.constant 0 : index
    %c0_55 = arith.constant 0 : index
    %116 = vector.load %arg5[%115, %c0_54, %c0_55] : memref<16x32x256xbf16, #tpu.memory_space<vmem>>, vector<1x32x256xbf16>
    %117 = vector.shape_cast %116 : vector<1x32x256xbf16> to vector<32x256xbf16>
    %cst_56 = arith.constant dense<0.000000e+00> : vector<8x256xf32>
    %118 = tpu.matmul %40, %117, %cst_56 {dimension_numbers = #tpu.dot_dimension_numbers<[1], [0], [0], [1], [0, 0, 1, 1], [], []>} : vector<8x32xbf16>, vector<32x256xbf16>, vector<8x256xf32> -> vector<8x256xf32>
    %119 = arith.index_cast %114 : i32 to index
    %c0_57 = arith.constant 0 : index
    %c0_58 = arith.constant 0 : index
    %120 = vector.load %arg4[%119, %c0_57, %c0_58] : memref<16x1x256xf32, #tpu.memory_space<vmem>>, vector<1x1x256xf32>
    %121 = vector.shape_cast %120 : vector<1x1x256xf32> to vector<1x256xf32>
    %122 = vector.broadcast %121 : vector<1x256xf32> to vector<8x256xf32>
    %123 = arith.addf %118, %122 : vector<8x256xf32>
    %cst_59 = arith.constant 0.000000e+00 : f32
    %124 = vector.broadcast %cst_59 : f32 to vector<8x256xf32>
    %125 = arith.maximumf %123, %124 : vector<8x256xf32>
    %126 = arith.truncf %125 : vector<8x256xf32> to vector<8x256xbf16>
    %127 = arith.index_cast %114 : i32 to index
    %c0_60 = arith.constant 0 : index
    %c0_61 = arith.constant 0 : index
    %128 = vector.load %arg6[%127, %c0_60, %c0_61] : memref<16x256x32xbf16, #tpu.memory_space<vmem>>, vector<1x256x32xbf16>
    %129 = vector.shape_cast %128 : vector<1x256x32xbf16> to vector<256x32xbf16>
    %cst_62 = arith.constant dense<0.000000e+00> : vector<8x32xf32>
    %130 = tpu.matmul %126, %129, %cst_62 {dimension_numbers = #tpu.dot_dimension_numbers<[1], [0], [0], [1], [0, 0, 1, 1], [], []>} : vector<8x256xbf16>, vector<256x32xbf16>, vector<8x32xf32> -> vector<8x32xf32>
    %131 = arith.addf %113, %130 : vector<8x32xf32>
    %c5_i32 = arith.constant 5 : i32
    %c0_i32_63 = arith.constant 0 : i32
    %132 = arith.addi %c0_i32_63, %c5_i32 : i32
    %133 = arith.index_cast %132 : i32 to index
    %c0_64 = arith.constant 0 : index
    %c0_65 = arith.constant 0 : index
    %134 = vector.load %arg5[%133, %c0_64, %c0_65] : memref<16x32x256xbf16, #tpu.memory_space<vmem>>, vector<1x32x256xbf16>
    %135 = vector.shape_cast %134 : vector<1x32x256xbf16> to vector<32x256xbf16>
    %cst_66 = arith.constant dense<0.000000e+00> : vector<8x256xf32>
    %136 = tpu.matmul %40, %135, %cst_66 {dimension_numbers = #tpu.dot_dimension_numbers<[1], [0], [0], [1], [0, 0, 1, 1], [], []>} : vector<8x32xbf16>, vector<32x256xbf16>, vector<8x256xf32> -> vector<8x256xf32>
    %137 = arith.index_cast %132 : i32 to index
    %c0_67 = arith.constant 0 : index
    %c0_68 = arith.constant 0 : index
    %138 = vector.load %arg4[%137, %c0_67, %c0_68] : memref<16x1x256xf32, #tpu.memory_space<vmem>>, vector<1x1x256xf32>
    %139 = vector.shape_cast %138 : vector<1x1x256xf32> to vector<1x256xf32>
    %140 = vector.broadcast %139 : vector<1x256xf32> to vector<8x256xf32>
    %141 = arith.addf %136, %140 : vector<8x256xf32>
    %cst_69 = arith.constant 0.000000e+00 : f32
    %142 = vector.broadcast %cst_69 : f32 to vector<8x256xf32>
    %143 = arith.maximumf %141, %142 : vector<8x256xf32>
    %144 = arith.truncf %143 : vector<8x256xf32> to vector<8x256xbf16>
    %145 = arith.index_cast %132 : i32 to index
    %c0_70 = arith.constant 0 : index
    %c0_71 = arith.constant 0 : index
    %146 = vector.load %arg6[%145, %c0_70, %c0_71] : memref<16x256x32xbf16, #tpu.memory_space<vmem>>, vector<1x256x32xbf16>
    %147 = vector.shape_cast %146 : vector<1x256x32xbf16> to vector<256x32xbf16>
    %cst_72 = arith.constant dense<0.000000e+00> : vector<8x32xf32>
    %148 = tpu.matmul %144, %147, %cst_72 {dimension_numbers = #tpu.dot_dimension_numbers<[1], [0], [0], [1], [0, 0, 1, 1], [], []>} : vector<8x256xbf16>, vector<256x32xbf16>, vector<8x32xf32> -> vector<8x32xf32>
    %149 = arith.addf %131, %148 : vector<8x32xf32>
    %c6_i32 = arith.constant 6 : i32
    %c0_i32_73 = arith.constant 0 : i32
    %150 = arith.addi %c0_i32_73, %c6_i32 : i32
    %151 = arith.index_cast %150 : i32 to index
    %c0_74 = arith.constant 0 : index
    %c0_75 = arith.constant 0 : index
    %152 = vector.load %arg5[%151, %c0_74, %c0_75] : memref<16x32x256xbf16, #tpu.memory_space<vmem>>, vector<1x32x256xbf16>
    %153 = vector.shape_cast %152 : vector<1x32x256xbf16> to vector<32x256xbf16>
    %cst_76 = arith.constant dense<0.000000e+00> : vector<8x256xf32>
    %154 = tpu.matmul %40, %153, %cst_76 {dimension_numbers = #tpu.dot_dimension_numbers<[1], [0], [0], [1], [0, 0, 1, 1], [], []>} : vector<8x32xbf16>, vector<32x256xbf16>, vector<8x256xf32> -> vector<8x256xf32>
    %155 = arith.index_cast %150 : i32 to index
    %c0_77 = arith.constant 0 : index
    %c0_78 = arith.constant 0 : index
    %156 = vector.load %arg4[%155, %c0_77, %c0_78] : memref<16x1x256xf32, #tpu.memory_space<vmem>>, vector<1x1x256xf32>
    %157 = vector.shape_cast %156 : vector<1x1x256xf32> to vector<1x256xf32>
    %158 = vector.broadcast %157 : vector<1x256xf32> to vector<8x256xf32>
    %159 = arith.addf %154, %158 : vector<8x256xf32>
    %cst_79 = arith.constant 0.000000e+00 : f32
    %160 = vector.broadcast %cst_79 : f32 to vector<8x256xf32>
    %161 = arith.maximumf %159, %160 : vector<8x256xf32>
    %162 = arith.truncf %161 : vector<8x256xf32> to vector<8x256xbf16>
    %163 = arith.index_cast %150 : i32 to index
    %c0_80 = arith.constant 0 : index
    %c0_81 = arith.constant 0 : index
    %164 = vector.load %arg6[%163, %c0_80, %c0_81] : memref<16x256x32xbf16, #tpu.memory_space<vmem>>, vector<1x256x32xbf16>
    %165 = vector.shape_cast %164 : vector<1x256x32xbf16> to vector<256x32xbf16>
    %cst_82 = arith.constant dense<0.000000e+00> : vector<8x32xf32>
    %166 = tpu.matmul %162, %165, %cst_82 {dimension_numbers = #tpu.dot_dimension_numbers<[1], [0], [0], [1], [0, 0, 1, 1], [], []>} : vector<8x256xbf16>, vector<256x32xbf16>, vector<8x32xf32> -> vector<8x32xf32>
    %167 = arith.addf %149, %166 : vector<8x32xf32>
    %c7_i32 = arith.constant 7 : i32
    %c0_i32_83 = arith.constant 0 : i32
    %168 = arith.addi %c0_i32_83, %c7_i32 : i32
    %169 = arith.index_cast %168 : i32 to index
    %c0_84 = arith.constant 0 : index
    %c0_85 = arith.constant 0 : index
    %170 = vector.load %arg5[%169, %c0_84, %c0_85] : memref<16x32x256xbf16, #tpu.memory_space<vmem>>, vector<1x32x256xbf16>
    %171 = vector.shape_cast %170 : vector<1x32x256xbf16> to vector<32x256xbf16>
    %cst_86 = arith.constant dense<0.000000e+00> : vector<8x256xf32>
    %172 = tpu.matmul %40, %171, %cst_86 {dimension_numbers = #tpu.dot_dimension_numbers<[1], [0], [0], [1], [0, 0, 1, 1], [], []>} : vector<8x32xbf16>, vector<32x256xbf16>, vector<8x256xf32> -> vector<8x256xf32>
    %173 = arith.index_cast %168 : i32 to index
    %c0_87 = arith.constant 0 : index
    %c0_88 = arith.constant 0 : index
    %174 = vector.load %arg4[%173, %c0_87, %c0_88] : memref<16x1x256xf32, #tpu.memory_space<vmem>>, vector<1x1x256xf32>
    %175 = vector.shape_cast %174 : vector<1x1x256xf32> to vector<1x256xf32>
    %176 = vector.broadcast %175 : vector<1x256xf32> to vector<8x256xf32>
    %177 = arith.addf %172, %176 : vector<8x256xf32>
    %cst_89 = arith.constant 0.000000e+00 : f32
    %178 = vector.broadcast %cst_89 : f32 to vector<8x256xf32>
    %179 = arith.maximumf %177, %178 : vector<8x256xf32>
    %180 = arith.truncf %179 : vector<8x256xf32> to vector<8x256xbf16>
    %181 = arith.index_cast %168 : i32 to index
    %c0_90 = arith.constant 0 : index
    %c0_91 = arith.constant 0 : index
    %182 = vector.load %arg6[%181, %c0_90, %c0_91] : memref<16x256x32xbf16, #tpu.memory_space<vmem>>, vector<1x256x32xbf16>
    %183 = vector.shape_cast %182 : vector<1x256x32xbf16> to vector<256x32xbf16>
    %cst_92 = arith.constant dense<0.000000e+00> : vector<8x32xf32>
    %184 = tpu.matmul %180, %183, %cst_92 {dimension_numbers = #tpu.dot_dimension_numbers<[1], [0], [0], [1], [0, 0, 1, 1], [], []>} : vector<8x256xbf16>, vector<256x32xbf16>, vector<8x32xf32> -> vector<8x32xf32>
    %185 = arith.addf %167, %184 : vector<8x32xf32>
    %c8_i32 = arith.constant 8 : i32
    %186 = vector.broadcast %11 : vector<1x32xf32> to vector<8x32xf32>
    %187 = arith.addf %185, %186 : vector<8x32xf32>
    %188 = arith.addf %39, %187 : vector<8x32xf32>
    %cst_93 = arith.constant dense<0.000000e+00> : vector<8xf32>
    %189 = vector.multi_reduction <add>, %188, %cst_93 [1] : vector<8x32xf32> to vector<8xf32>
    %190 = vector.shape_cast %189 : vector<8xf32> to vector<8x1xf32>
    %cst_94 = arith.constant 3.200000e+01 : f32
    %191 = vector.broadcast %cst_94 : f32 to vector<8x1xf32>
    %192 = arith.divf %190, %191 : vector<8x1xf32>
    %193 = vector.broadcast %192 : vector<8x1xf32> to vector<8x32xf32>
    %194 = arith.subf %188, %193 : vector<8x32xf32>
    %195 = arith.mulf %194, %194 : vector<8x32xf32>
    %cst_95 = arith.constant dense<0.000000e+00> : vector<8xf32>
    %196 = vector.multi_reduction <add>, %195, %cst_95 [1] : vector<8x32xf32> to vector<8xf32>
    %197 = vector.shape_cast %196 : vector<8xf32> to vector<8x1xf32>
    %cst_96 = arith.constant 3.200000e+01 : f32
    %198 = vector.broadcast %cst_96 : f32 to vector<8x1xf32>
    %199 = arith.divf %197, %198 : vector<8x1xf32>
    %200 = vector.broadcast %192 : vector<8x1xf32> to vector<8x32xf32>
    %201 = arith.subf %188, %200 : vector<8x32xf32>
    %cst_97 = arith.constant 9.99999974E-6 : f32
    %202 = vector.broadcast %cst_97 : f32 to vector<8x1xf32>
    %203 = arith.addf %199, %202 : vector<8x1xf32>
    %204 = math.rsqrt %203 : vector<8x1xf32>
    %205 = vector.broadcast %204 : vector<8x1xf32> to vector<8x32xf32>
    %206 = arith.mulf %201, %205 : vector<8x32xf32>
    %207 = vector.broadcast %12 : vector<1x32xf32> to vector<8x32xf32>
    %208 = arith.mulf %206, %207 : vector<8x32xf32>
    %209 = vector.broadcast %13 : vector<1x32xf32> to vector<8x32xf32>
    %210 = arith.addf %208, %209 : vector<8x32xf32>
    %c48 = arith.constant 48 : index
    %c0_98 = arith.constant 0 : index
    %211 = vector.load %arg2[%c48, %c0_98] : memref<112x32xf32, #tpu.memory_space<vmem>>, vector<32x32xf32>
    %212 = vector.extract_strided_slice %1 {offsets = [7, 0], sizes = [1, 32], strides = [1, 1]} : vector<14x32xf32> to vector<1x32xf32>
    %213 = vector.extract_strided_slice %1 {offsets = [8, 0], sizes = [1, 32], strides = [1, 1]} : vector<14x32xf32> to vector<1x32xf32>
    %214 = vector.extract_strided_slice %1 {offsets = [9, 0], sizes = [1, 32], strides = [1, 1]} : vector<14x32xf32> to vector<1x32xf32>
    %215 = vector.extract_strided_slice %1 {offsets = [10, 0], sizes = [1, 32], strides = [1, 1]} : vector<14x32xf32> to vector<1x32xf32>
    %216 = vector.extract_strided_slice %1 {offsets = [11, 0], sizes = [1, 32], strides = [1, 1]} : vector<14x32xf32> to vector<1x32xf32>
    %217 = vector.extract_strided_slice %1 {offsets = [12, 0], sizes = [1, 32], strides = [1, 1]} : vector<14x32xf32> to vector<1x32xf32>
    %cst_99 = arith.constant dense<0.000000e+00> : vector<8x32xf32>
    %218 = tpu.matmul %210, %211, %cst_99 {dimension_numbers = #tpu.dot_dimension_numbers<[1], [0], [0], [1], [0, 0, 1, 1], [], []>} : vector<8x32xf32>, vector<32x32xf32>, vector<8x32xf32> -> vector<8x32xf32>
    %219 = vector.broadcast %212 : vector<1x32xf32> to vector<8x32xf32>
    %220 = arith.addf %218, %219 : vector<8x32xf32>
    %221 = arith.addf %210, %220 : vector<8x32xf32>
    %cst_100 = arith.constant dense<0.000000e+00> : vector<8xf32>
    %222 = vector.multi_reduction <add>, %221, %cst_100 [1] : vector<8x32xf32> to vector<8xf32>
    %223 = vector.shape_cast %222 : vector<8xf32> to vector<8x1xf32>
    %cst_101 = arith.constant 3.200000e+01 : f32
    %224 = vector.broadcast %cst_101 : f32 to vector<8x1xf32>
    %225 = arith.divf %223, %224 : vector<8x1xf32>
    %226 = vector.broadcast %225 : vector<8x1xf32> to vector<8x32xf32>
    %227 = arith.subf %221, %226 : vector<8x32xf32>
    %228 = arith.mulf %227, %227 : vector<8x32xf32>
    %cst_102 = arith.constant dense<0.000000e+00> : vector<8xf32>
    %229 = vector.multi_reduction <add>, %228, %cst_102 [1] : vector<8x32xf32> to vector<8xf32>
    %230 = vector.shape_cast %229 : vector<8xf32> to vector<8x1xf32>
    %cst_103 = arith.constant 3.200000e+01 : f32
    %231 = vector.broadcast %cst_103 : f32 to vector<8x1xf32>
    %232 = arith.divf %230, %231 : vector<8x1xf32>
    %233 = vector.broadcast %225 : vector<8x1xf32> to vector<8x32xf32>
    %234 = arith.subf %221, %233 : vector<8x32xf32>
    %cst_104 = arith.constant 9.99999974E-6 : f32
    %235 = vector.broadcast %cst_104 : f32 to vector<8x1xf32>
    %236 = arith.addf %232, %235 : vector<8x1xf32>
    %237 = math.rsqrt %236 : vector<8x1xf32>
    %238 = vector.broadcast %237 : vector<8x1xf32> to vector<8x32xf32>
    %239 = arith.mulf %234, %238 : vector<8x32xf32>
    %240 = vector.broadcast %213 : vector<1x32xf32> to vector<8x32xf32>
    %241 = arith.mulf %239, %240 : vector<8x32xf32>
    %242 = vector.broadcast %214 : vector<1x32xf32> to vector<8x32xf32>
    %243 = arith.addf %241, %242 : vector<8x32xf32>
    %244 = arith.truncf %243 : vector<8x32xf32> to vector<8x32xbf16>
    %cst_105 = arith.constant 0.000000e+00 : f32
    %245 = vector.broadcast %cst_105 : f32 to vector<8x32xf32>
    %c0_i32_106 = arith.constant 0 : i32
    %c8_i32_107 = arith.constant 8 : i32
    %246 = arith.addi %c8_i32_107, %c0_i32_106 : i32
    %247 = arith.index_cast %246 : i32 to index
    %c0_108 = arith.constant 0 : index
    %c0_109 = arith.constant 0 : index
    %248 = vector.load %arg5[%247, %c0_108, %c0_109] : memref<16x32x256xbf16, #tpu.memory_space<vmem>>, vector<1x32x256xbf16>
    %249 = vector.shape_cast %248 : vector<1x32x256xbf16> to vector<32x256xbf16>
    %cst_110 = arith.constant dense<0.000000e+00> : vector<8x256xf32>
    %250 = tpu.matmul %244, %249, %cst_110 {dimension_numbers = #tpu.dot_dimension_numbers<[1], [0], [0], [1], [0, 0, 1, 1], [], []>} : vector<8x32xbf16>, vector<32x256xbf16>, vector<8x256xf32> -> vector<8x256xf32>
    %251 = arith.index_cast %246 : i32 to index
    %c0_111 = arith.constant 0 : index
    %c0_112 = arith.constant 0 : index
    %252 = vector.load %arg4[%251, %c0_111, %c0_112] : memref<16x1x256xf32, #tpu.memory_space<vmem>>, vector<1x1x256xf32>
    %253 = vector.shape_cast %252 : vector<1x1x256xf32> to vector<1x256xf32>
    %254 = vector.broadcast %253 : vector<1x256xf32> to vector<8x256xf32>
    %255 = arith.addf %250, %254 : vector<8x256xf32>
    %cst_113 = arith.constant 0.000000e+00 : f32
    %256 = vector.broadcast %cst_113 : f32 to vector<8x256xf32>
    %257 = arith.maximumf %255, %256 : vector<8x256xf32>
    %258 = arith.truncf %257 : vector<8x256xf32> to vector<8x256xbf16>
    %259 = arith.index_cast %246 : i32 to index
    %c0_114 = arith.constant 0 : index
    %c0_115 = arith.constant 0 : index
    %260 = vector.load %arg6[%259, %c0_114, %c0_115] : memref<16x256x32xbf16, #tpu.memory_space<vmem>>, vector<1x256x32xbf16>
    %261 = vector.shape_cast %260 : vector<1x256x32xbf16> to vector<256x32xbf16>
    %cst_116 = arith.constant dense<0.000000e+00> : vector<8x32xf32>
    %262 = tpu.matmul %258, %261, %cst_116 {dimension_numbers = #tpu.dot_dimension_numbers<[1], [0], [0], [1], [0, 0, 1, 1], [], []>} : vector<8x256xbf16>, vector<256x32xbf16>, vector<8x32xf32> -> vector<8x32xf32>
    %263 = arith.addf %245, %262 : vector<8x32xf32>
    %c1_i32_117 = arith.constant 1 : i32
    %c8_i32_118 = arith.constant 8 : i32
    %264 = arith.addi %c8_i32_118, %c1_i32_117 : i32
    %265 = arith.index_cast %264 : i32 to index
    %c0_119 = arith.constant 0 : index
    %c0_120 = arith.constant 0 : index
    %266 = vector.load %arg5[%265, %c0_119, %c0_120] : memref<16x32x256xbf16, #tpu.memory_space<vmem>>, vector<1x32x256xbf16>
    %267 = vector.shape_cast %266 : vector<1x32x256xbf16> to vector<32x256xbf16>
    %cst_121 = arith.constant dense<0.000000e+00> : vector<8x256xf32>
    %268 = tpu.matmul %244, %267, %cst_121 {dimension_numbers = #tpu.dot_dimension_numbers<[1], [0], [0], [1], [0, 0, 1, 1], [], []>} : vector<8x32xbf16>, vector<32x256xbf16>, vector<8x256xf32> -> vector<8x256xf32>
    %269 = arith.index_cast %264 : i32 to index
    %c0_122 = arith.constant 0 : index
    %c0_123 = arith.constant 0 : index
    %270 = vector.load %arg4[%269, %c0_122, %c0_123] : memref<16x1x256xf32, #tpu.memory_space<vmem>>, vector<1x1x256xf32>
    %271 = vector.shape_cast %270 : vector<1x1x256xf32> to vector<1x256xf32>
    %272 = vector.broadcast %271 : vector<1x256xf32> to vector<8x256xf32>
    %273 = arith.addf %268, %272 : vector<8x256xf32>
    %cst_124 = arith.constant 0.000000e+00 : f32
    %274 = vector.broadcast %cst_124 : f32 to vector<8x256xf32>
    %275 = arith.maximumf %273, %274 : vector<8x256xf32>
    %276 = arith.truncf %275 : vector<8x256xf32> to vector<8x256xbf16>
    %277 = arith.index_cast %264 : i32 to index
    %c0_125 = arith.constant 0 : index
    %c0_126 = arith.constant 0 : index
    %278 = vector.load %arg6[%277, %c0_125, %c0_126] : memref<16x256x32xbf16, #tpu.memory_space<vmem>>, vector<1x256x32xbf16>
    %279 = vector.shape_cast %278 : vector<1x256x32xbf16> to vector<256x32xbf16>
    %cst_127 = arith.constant dense<0.000000e+00> : vector<8x32xf32>
    %280 = tpu.matmul %276, %279, %cst_127 {dimension_numbers = #tpu.dot_dimension_numbers<[1], [0], [0], [1], [0, 0, 1, 1], [], []>} : vector<8x256xbf16>, vector<256x32xbf16>, vector<8x32xf32> -> vector<8x32xf32>
    %281 = arith.addf %263, %280 : vector<8x32xf32>
    %c2_i32_128 = arith.constant 2 : i32
    %c8_i32_129 = arith.constant 8 : i32
    %282 = arith.addi %c8_i32_129, %c2_i32_128 : i32
    %283 = arith.index_cast %282 : i32 to index
    %c0_130 = arith.constant 0 : index
    %c0_131 = arith.constant 0 : index
    %284 = vector.load %arg5[%283, %c0_130, %c0_131] : memref<16x32x256xbf16, #tpu.memory_space<vmem>>, vector<1x32x256xbf16>
    %285 = vector.shape_cast %284 : vector<1x32x256xbf16> to vector<32x256xbf16>
    %cst_132 = arith.constant dense<0.000000e+00> : vector<8x256xf32>
    %286 = tpu.matmul %244, %285, %cst_132 {dimension_numbers = #tpu.dot_dimension_numbers<[1], [0], [0], [1], [0, 0, 1, 1], [], []>} : vector<8x32xbf16>, vector<32x256xbf16>, vector<8x256xf32> -> vector<8x256xf32>
    %287 = arith.index_cast %282 : i32 to index
    %c0_133 = arith.constant 0 : index
    %c0_134 = arith.constant 0 : index
    %288 = vector.load %arg4[%287, %c0_133, %c0_134] : memref<16x1x256xf32, #tpu.memory_space<vmem>>, vector<1x1x256xf32>
    %289 = vector.shape_cast %288 : vector<1x1x256xf32> to vector<1x256xf32>
    %290 = vector.broadcast %289 : vector<1x256xf32> to vector<8x256xf32>
    %291 = arith.addf %286, %290 : vector<8x256xf32>
    %cst_135 = arith.constant 0.000000e+00 : f32
    %292 = vector.broadcast %cst_135 : f32 to vector<8x256xf32>
    %293 = arith.maximumf %291, %292 : vector<8x256xf32>
    %294 = arith.truncf %293 : vector<8x256xf32> to vector<8x256xbf16>
    %295 = arith.index_cast %282 : i32 to index
    %c0_136 = arith.constant 0 : index
    %c0_137 = arith.constant 0 : index
    %296 = vector.load %arg6[%295, %c0_136, %c0_137] : memref<16x256x32xbf16, #tpu.memory_space<vmem>>, vector<1x256x32xbf16>
    %297 = vector.shape_cast %296 : vector<1x256x32xbf16> to vector<256x32xbf16>
    %cst_138 = arith.constant dense<0.000000e+00> : vector<8x32xf32>
    %298 = tpu.matmul %294, %297, %cst_138 {dimension_numbers = #tpu.dot_dimension_numbers<[1], [0], [0], [1], [0, 0, 1, 1], [], []>} : vector<8x256xbf16>, vector<256x32xbf16>, vector<8x32xf32> -> vector<8x32xf32>
    %299 = arith.addf %281, %298 : vector<8x32xf32>
    %c3_i32_139 = arith.constant 3 : i32
    %c8_i32_140 = arith.constant 8 : i32
    %300 = arith.addi %c8_i32_140, %c3_i32_139 : i32
    %301 = arith.index_cast %300 : i32 to index
    %c0_141 = arith.constant 0 : index
    %c0_142 = arith.constant 0 : index
    %302 = vector.load %arg5[%301, %c0_141, %c0_142] : memref<16x32x256xbf16, #tpu.memory_space<vmem>>, vector<1x32x256xbf16>
    %303 = vector.shape_cast %302 : vector<1x32x256xbf16> to vector<32x256xbf16>
    %cst_143 = arith.constant dense<0.000000e+00> : vector<8x256xf32>
    %304 = tpu.matmul %244, %303, %cst_143 {dimension_numbers = #tpu.dot_dimension_numbers<[1], [0], [0], [1], [0, 0, 1, 1], [], []>} : vector<8x32xbf16>, vector<32x256xbf16>, vector<8x256xf32> -> vector<8x256xf32>
    %305 = arith.index_cast %300 : i32 to index
    %c0_144 = arith.constant 0 : index
    %c0_145 = arith.constant 0 : index
    %306 = vector.load %arg4[%305, %c0_144, %c0_145] : memref<16x1x256xf32, #tpu.memory_space<vmem>>, vector<1x1x256xf32>
    %307 = vector.shape_cast %306 : vector<1x1x256xf32> to vector<1x256xf32>
    %308 = vector.broadcast %307 : vector<1x256xf32> to vector<8x256xf32>
    %309 = arith.addf %304, %308 : vector<8x256xf32>
    %cst_146 = arith.constant 0.000000e+00 : f32
    %310 = vector.broadcast %cst_146 : f32 to vector<8x256xf32>
    %311 = arith.maximumf %309, %310 : vector<8x256xf32>
    %312 = arith.truncf %311 : vector<8x256xf32> to vector<8x256xbf16>
    %313 = arith.index_cast %300 : i32 to index
    %c0_147 = arith.constant 0 : index
    %c0_148 = arith.constant 0 : index
    %314 = vector.load %arg6[%313, %c0_147, %c0_148] : memref<16x256x32xbf16, #tpu.memory_space<vmem>>, vector<1x256x32xbf16>
    %315 = vector.shape_cast %314 : vector<1x256x32xbf16> to vector<256x32xbf16>
    %cst_149 = arith.constant dense<0.000000e+00> : vector<8x32xf32>
    %316 = tpu.matmul %312, %315, %cst_149 {dimension_numbers = #tpu.dot_dimension_numbers<[1], [0], [0], [1], [0, 0, 1, 1], [], []>} : vector<8x256xbf16>, vector<256x32xbf16>, vector<8x32xf32> -> vector<8x32xf32>
    %317 = arith.addf %299, %316 : vector<8x32xf32>
    %c4_i32_150 = arith.constant 4 : i32
    %c8_i32_151 = arith.constant 8 : i32
    %318 = arith.addi %c8_i32_151, %c4_i32_150 : i32
    %319 = arith.index_cast %318 : i32 to index
    %c0_152 = arith.constant 0 : index
    %c0_153 = arith.constant 0 : index
    %320 = vector.load %arg5[%319, %c0_152, %c0_153] : memref<16x32x256xbf16, #tpu.memory_space<vmem>>, vector<1x32x256xbf16>
    %321 = vector.shape_cast %320 : vector<1x32x256xbf16> to vector<32x256xbf16>
    %cst_154 = arith.constant dense<0.000000e+00> : vector<8x256xf32>
    %322 = tpu.matmul %244, %321, %cst_154 {dimension_numbers = #tpu.dot_dimension_numbers<[1], [0], [0], [1], [0, 0, 1, 1], [], []>} : vector<8x32xbf16>, vector<32x256xbf16>, vector<8x256xf32> -> vector<8x256xf32>
    %323 = arith.index_cast %318 : i32 to index
    %c0_155 = arith.constant 0 : index
    %c0_156 = arith.constant 0 : index
    %324 = vector.load %arg4[%323, %c0_155, %c0_156] : memref<16x1x256xf32, #tpu.memory_space<vmem>>, vector<1x1x256xf32>
    %325 = vector.shape_cast %324 : vector<1x1x256xf32> to vector<1x256xf32>
    %326 = vector.broadcast %325 : vector<1x256xf32> to vector<8x256xf32>
    %327 = arith.addf %322, %326 : vector<8x256xf32>
    %cst_157 = arith.constant 0.000000e+00 : f32
    %328 = vector.broadcast %cst_157 : f32 to vector<8x256xf32>
    %329 = arith.maximumf %327, %328 : vector<8x256xf32>
    %330 = arith.truncf %329 : vector<8x256xf32> to vector<8x256xbf16>
    %331 = arith.index_cast %318 : i32 to index
    %c0_158 = arith.constant 0 : index
    %c0_159 = arith.constant 0 : index
    %332 = vector.load %arg6[%331, %c0_158, %c0_159] : memref<16x256x32xbf16, #tpu.memory_space<vmem>>, vector<1x256x32xbf16>
    %333 = vector.shape_cast %332 : vector<1x256x32xbf16> to vector<256x32xbf16>
    %cst_160 = arith.constant dense<0.000000e+00> : vector<8x32xf32>
    %334 = tpu.matmul %330, %333, %cst_160 {dimension_numbers = #tpu.dot_dimension_numbers<[1], [0], [0], [1], [0, 0, 1, 1], [], []>} : vector<8x256xbf16>, vector<256x32xbf16>, vector<8x32xf32> -> vector<8x32xf32>
    %335 = arith.addf %317, %334 : vector<8x32xf32>
    %c5_i32_161 = arith.constant 5 : i32
    %c8_i32_162 = arith.constant 8 : i32
    %336 = arith.addi %c8_i32_162, %c5_i32_161 : i32
    %337 = arith.index_cast %336 : i32 to index
    %c0_163 = arith.constant 0 : index
    %c0_164 = arith.constant 0 : index
    %338 = vector.load %arg5[%337, %c0_163, %c0_164] : memref<16x32x256xbf16, #tpu.memory_space<vmem>>, vector<1x32x256xbf16>
    %339 = vector.shape_cast %338 : vector<1x32x256xbf16> to vector<32x256xbf16>
    %cst_165 = arith.constant dense<0.000000e+00> : vector<8x256xf32>
    %340 = tpu.matmul %244, %339, %cst_165 {dimension_numbers = #tpu.dot_dimension_numbers<[1], [0], [0], [1], [0, 0, 1, 1], [], []>} : vector<8x32xbf16>, vector<32x256xbf16>, vector<8x256xf32> -> vector<8x256xf32>
    %341 = arith.index_cast %336 : i32 to index
    %c0_166 = arith.constant 0 : index
    %c0_167 = arith.constant 0 : index
    %342 = vector.load %arg4[%341, %c0_166, %c0_167] : memref<16x1x256xf32, #tpu.memory_space<vmem>>, vector<1x1x256xf32>
    %343 = vector.shape_cast %342 : vector<1x1x256xf32> to vector<1x256xf32>
    %344 = vector.broadcast %343 : vector<1x256xf32> to vector<8x256xf32>
    %345 = arith.addf %340, %344 : vector<8x256xf32>
    %cst_168 = arith.constant 0.000000e+00 : f32
    %346 = vector.broadcast %cst_168 : f32 to vector<8x256xf32>
    %347 = arith.maximumf %345, %346 : vector<8x256xf32>
    %348 = arith.truncf %347 : vector<8x256xf32> to vector<8x256xbf16>
    %349 = arith.index_cast %336 : i32 to index
    %c0_169 = arith.constant 0 : index
    %c0_170 = arith.constant 0 : index
    %350 = vector.load %arg6[%349, %c0_169, %c0_170] : memref<16x256x32xbf16, #tpu.memory_space<vmem>>, vector<1x256x32xbf16>
    %351 = vector.shape_cast %350 : vector<1x256x32xbf16> to vector<256x32xbf16>
    %cst_171 = arith.constant dense<0.000000e+00> : vector<8x32xf32>
    %352 = tpu.matmul %348, %351, %cst_171 {dimension_numbers = #tpu.dot_dimension_numbers<[1], [0], [0], [1], [0, 0, 1, 1], [], []>} : vector<8x256xbf16>, vector<256x32xbf16>, vector<8x32xf32> -> vector<8x32xf32>
    %353 = arith.addf %335, %352 : vector<8x32xf32>
    %c6_i32_172 = arith.constant 6 : i32
    %c8_i32_173 = arith.constant 8 : i32
    %354 = arith.addi %c8_i32_173, %c6_i32_172 : i32
    %355 = arith.index_cast %354 : i32 to index
    %c0_174 = arith.constant 0 : index
    %c0_175 = arith.constant 0 : index
    %356 = vector.load %arg5[%355, %c0_174, %c0_175] : memref<16x32x256xbf16, #tpu.memory_space<vmem>>, vector<1x32x256xbf16>
    %357 = vector.shape_cast %356 : vector<1x32x256xbf16> to vector<32x256xbf16>
    %cst_176 = arith.constant dense<0.000000e+00> : vector<8x256xf32>
    %358 = tpu.matmul %244, %357, %cst_176 {dimension_numbers = #tpu.dot_dimension_numbers<[1], [0], [0], [1], [0, 0, 1, 1], [], []>} : vector<8x32xbf16>, vector<32x256xbf16>, vector<8x256xf32> -> vector<8x256xf32>
    %359 = arith.index_cast %354 : i32 to index
    %c0_177 = arith.constant 0 : index
    %c0_178 = arith.constant 0 : index
    %360 = vector.load %arg4[%359, %c0_177, %c0_178] : memref<16x1x256xf32, #tpu.memory_space<vmem>>, vector<1x1x256xf32>
    %361 = vector.shape_cast %360 : vector<1x1x256xf32> to vector<1x256xf32>
    %362 = vector.broadcast %361 : vector<1x256xf32> to vector<8x256xf32>
    %363 = arith.addf %358, %362 : vector<8x256xf32>
    %cst_179 = arith.constant 0.000000e+00 : f32
    %364 = vector.broadcast %cst_179 : f32 to vector<8x256xf32>
    %365 = arith.maximumf %363, %364 : vector<8x256xf32>
    %366 = arith.truncf %365 : vector<8x256xf32> to vector<8x256xbf16>
    %367 = arith.index_cast %354 : i32 to index
    %c0_180 = arith.constant 0 : index
    %c0_181 = arith.constant 0 : index
    %368 = vector.load %arg6[%367, %c0_180, %c0_181] : memref<16x256x32xbf16, #tpu.memory_space<vmem>>, vector<1x256x32xbf16>
    %369 = vector.shape_cast %368 : vector<1x256x32xbf16> to vector<256x32xbf16>
    %cst_182 = arith.constant dense<0.000000e+00> : vector<8x32xf32>
    %370 = tpu.matmul %366, %369, %cst_182 {dimension_numbers = #tpu.dot_dimension_numbers<[1], [0], [0], [1], [0, 0, 1, 1], [], []>} : vector<8x256xbf16>, vector<256x32xbf16>, vector<8x32xf32> -> vector<8x32xf32>
    %371 = arith.addf %353, %370 : vector<8x32xf32>
    %c7_i32_183 = arith.constant 7 : i32
    %c8_i32_184 = arith.constant 8 : i32
    %372 = arith.addi %c8_i32_184, %c7_i32_183 : i32
    %373 = arith.index_cast %372 : i32 to index
    %c0_185 = arith.constant 0 : index
    %c0_186 = arith.constant 0 : index
    %374 = vector.load %arg5[%373, %c0_185, %c0_186] : memref<16x32x256xbf16, #tpu.memory_space<vmem>>, vector<1x32x256xbf16>
    %375 = vector.shape_cast %374 : vector<1x32x256xbf16> to vector<32x256xbf16>
    %cst_187 = arith.constant dense<0.000000e+00> : vector<8x256xf32>
    %376 = tpu.matmul %244, %375, %cst_187 {dimension_numbers = #tpu.dot_dimension_numbers<[1], [0], [0], [1], [0, 0, 1, 1], [], []>} : vector<8x32xbf16>, vector<32x256xbf16>, vector<8x256xf32> -> vector<8x256xf32>
    %377 = arith.index_cast %372 : i32 to index
    %c0_188 = arith.constant 0 : index
    %c0_189 = arith.constant 0 : index
    %378 = vector.load %arg4[%377, %c0_188, %c0_189] : memref<16x1x256xf32, #tpu.memory_space<vmem>>, vector<1x1x256xf32>
    %379 = vector.shape_cast %378 : vector<1x1x256xf32> to vector<1x256xf32>
    %380 = vector.broadcast %379 : vector<1x256xf32> to vector<8x256xf32>
    %381 = arith.addf %376, %380 : vector<8x256xf32>
    %cst_190 = arith.constant 0.000000e+00 : f32
    %382 = vector.broadcast %cst_190 : f32 to vector<8x256xf32>
    %383 = arith.maximumf %381, %382 : vector<8x256xf32>
    %384 = arith.truncf %383 : vector<8x256xf32> to vector<8x256xbf16>
    %385 = arith.index_cast %372 : i32 to index
    %c0_191 = arith.constant 0 : index
    %c0_192 = arith.constant 0 : index
    %386 = vector.load %arg6[%385, %c0_191, %c0_192] : memref<16x256x32xbf16, #tpu.memory_space<vmem>>, vector<1x256x32xbf16>
    %387 = vector.shape_cast %386 : vector<1x256x32xbf16> to vector<256x32xbf16>
    %cst_193 = arith.constant dense<0.000000e+00> : vector<8x32xf32>
    %388 = tpu.matmul %384, %387, %cst_193 {dimension_numbers = #tpu.dot_dimension_numbers<[1], [0], [0], [1], [0, 0, 1, 1], [], []>} : vector<8x256xbf16>, vector<256x32xbf16>, vector<8x32xf32> -> vector<8x32xf32>
    %389 = arith.addf %371, %388 : vector<8x32xf32>
    %c8_i32_194 = arith.constant 8 : i32
    %390 = vector.broadcast %215 : vector<1x32xf32> to vector<8x32xf32>
    %391 = arith.addf %389, %390 : vector<8x32xf32>
    %392 = arith.addf %243, %391 : vector<8x32xf32>
    %cst_195 = arith.constant dense<0.000000e+00> : vector<8xf32>
    %393 = vector.multi_reduction <add>, %392, %cst_195 [1] : vector<8x32xf32> to vector<8xf32>
    %394 = vector.shape_cast %393 : vector<8xf32> to vector<8x1xf32>
    %cst_196 = arith.constant 3.200000e+01 : f32
    %395 = vector.broadcast %cst_196 : f32 to vector<8x1xf32>
    %396 = arith.divf %394, %395 : vector<8x1xf32>
    %397 = vector.broadcast %396 : vector<8x1xf32> to vector<8x32xf32>
    %398 = arith.subf %392, %397 : vector<8x32xf32>
    %399 = arith.mulf %398, %398 : vector<8x32xf32>
    %cst_197 = arith.constant dense<0.000000e+00> : vector<8xf32>
    %400 = vector.multi_reduction <add>, %399, %cst_197 [1] : vector<8x32xf32> to vector<8xf32>
    %401 = vector.shape_cast %400 : vector<8xf32> to vector<8x1xf32>
    %cst_198 = arith.constant 3.200000e+01 : f32
    %402 = vector.broadcast %cst_198 : f32 to vector<8x1xf32>
    %403 = arith.divf %401, %402 : vector<8x1xf32>
    %404 = vector.broadcast %396 : vector<8x1xf32> to vector<8x32xf32>
    %405 = arith.subf %392, %404 : vector<8x32xf32>
    %cst_199 = arith.constant 9.99999974E-6 : f32
    %406 = vector.broadcast %cst_199 : f32 to vector<8x1xf32>
    %407 = arith.addf %403, %406 : vector<8x1xf32>
    %408 = math.rsqrt %407 : vector<8x1xf32>
    %409 = vector.broadcast %408 : vector<8x1xf32> to vector<8x32xf32>
    %410 = arith.mulf %405, %409 : vector<8x32xf32>
    %411 = vector.broadcast %216 : vector<1x32xf32> to vector<8x32xf32>
    %412 = arith.mulf %410, %411 : vector<8x32xf32>
    %413 = vector.broadcast %217 : vector<1x32xf32> to vector<8x32xf32>
    %414 = arith.addf %412, %413 : vector<8x32xf32>
    %c80 = arith.constant 80 : index
    %c0_200 = arith.constant 0 : index
    %415 = vector.load %arg2[%c80, %c0_200] : memref<112x32xf32, #tpu.memory_space<vmem>>, vector<32x32xf32>
    %416 = vector.extract_strided_slice %1 {offsets = [13, 0], sizes = [1, 32], strides = [1, 1]} : vector<14x32xf32> to vector<1x32xf32>
    %cst_201 = arith.constant dense<0.000000e+00> : vector<8x32xf32>
    %417 = tpu.matmul %414, %415, %cst_201 {dimension_numbers = #tpu.dot_dimension_numbers<[1], [0], [0], [1], [0, 0, 1, 1], [], []>} : vector<8x32xf32>, vector<32x32xf32>, vector<8x32xf32> -> vector<8x32xf32>
    %418 = vector.broadcast %416 : vector<1x32xf32> to vector<8x32xf32>
    %419 = arith.addf %417, %418 : vector<8x32xf32>
    %c0_202 = arith.constant 0 : index
    %c0_203 = arith.constant 0 : index
    %420 = vector.load %arg7[%c0_202, %c0_203] : memref<8x32xf32, #tpu.memory_space<vmem>>, vector<8x32xf32>
    tpu.vector_store %arg7[%c0_202, %c0_203], %419 {strides = array<i32>} : memref<8x32xf32, #tpu.memory_space<vmem>>, vector<8x32xf32>,
    return
  }
  func.func @transform_0(%arg0: i32) -> (i32, i32) {
    %c0_i32 = arith.constant 0 : i32
    %c0_i32_0 = arith.constant 0 : i32
    return %arg0, %c0_i32 : i32, i32
  }
  func.func @transform_1(%arg0: i32) -> (i32, i32) {
    %c0_i32 = arith.constant 0 : i32
    %c0_i32_0 = arith.constant 0 : i32
    %c0_i32_1 = arith.constant 0 : i32
    return %c0_i32, %c0_i32_0 : i32, i32
  }
  func.func @transform_2(%arg0: i32) -> (i32, i32) {
    %c0_i32 = arith.constant 0 : i32
    %c0_i32_0 = arith.constant 0 : i32
    %c0_i32_1 = arith.constant 0 : i32
    return %c0_i32, %c0_i32_0 : i32, i32
  }
  func.func @transform_3(%arg0: i32) -> (i32, i32, i32) {
    %c0_i32 = arith.constant 0 : i32
    %c0_i32_0 = arith.constant 0 : i32
    %c0_i32_1 = arith.constant 0 : i32
    %c0_i32_2 = arith.constant 0 : i32
    return %c0_i32, %c0_i32_0, %c0_i32_1 : i32, i32, i32
  }
  func.func @transform_4(%arg0: i32) -> (i32, i32, i32) {
    %c0_i32 = arith.constant 0 : i32
    %c0_i32_0 = arith.constant 0 : i32
    %c0_i32_1 = arith.constant 0 : i32
    %c0_i32_2 = arith.constant 0 : i32
    return %c0_i32, %c0_i32_0, %c0_i32_1 : i32, i32, i32
  }
  func.func @transform_5(%arg0: i32) -> (i32, i32, i32) {
    %c0_i32 = arith.constant 0 : i32
    %c0_i32_0 = arith.constant 0 : i32
    %c0_i32_1 = arith.constant 0 : i32
    %c0_i32_2 = arith.constant 0 : i32
    return %c0_i32, %c0_i32_0, %c0_i32_1 : i32, i32, i32
  }
  func.func @transform_6(%arg0: i32) -> (i32, i32) {
    %c0_i32 = arith.constant 0 : i32
    %c0_i32_0 = arith.constant 0 : i32
    return %arg0, %c0_i32 : i32, i32
  }
}

module attributes {stable_mosaic.version = 11 : i64} {
  func.func @transformer_kernel(%arg0: i32, %arg1: memref<8x16xf32, #tpu.memory_space<vmem>>, %arg2: memref<112x32xf32, #tpu.memory_space<vmem>>, %arg3: memref<14x32xf32, #tpu.memory_space<vmem>>, %arg4: memref<16x1x256xf32, #tpu.memory_space<vmem>>, %arg5: memref<16x32x256xbf16, #tpu.memory_space<vmem>>, %arg6: memref<16x256x32xbf16, #tpu.memory_space<vmem>>, %arg7: memref<8x32xf32, #tpu.memory_space<vmem>>) attributes {dimension_semantics = [#tpu.dimension_semantics<parallel>], iteration_bounds = array<i64: 1>, scalar_prefetch = 0 : i64, scratch_operands = 0 : i64, tpu.core_type = #tpu.core_type<tc>, window_params = [{transform_indices = @transform_0, window_bounds = array<i64: 8, 16>}, {pipeline_mode = #tpu.pipeline_mode<synchronous>, transform_indices = @transform_1, window_bounds = array<i64: 112, 32>}, {pipeline_mode = #tpu.pipeline_mode<synchronous>, transform_indices = @transform_2, window_bounds = array<i64: 14, 32>}, {pipeline_mode = #tpu.pipeline_mode<synchronous>, transform_indices = @transform_3, window_bounds = array<i64: 16, 1, 256>}, {pipeline_mode = #tpu.pipeline_mode<synchronous>, transform_indices = @transform_4, window_bounds = array<i64: 16, 32, 256>}, {pipeline_mode = #tpu.pipeline_mode<synchronous>, transform_indices = @transform_5, window_bounds = array<i64: 16, 256, 32>}, {transform_indices = @transform_6, window_bounds = array<i64: 8, 32>}]} {
    %c0 = arith.constant 0 : index
    %c0_0 = arith.constant 0 : index
    %0 = vector.load %arg1[%c0, %c0_0] : memref<8x16xf32, #tpu.memory_space<vmem>>, vector<8x16xf32>
    %c0_1 = arith.constant 0 : index
    %c0_2 = arith.constant 0 : index
    %1 = vector.load %arg3[%c0_1, %c0_2] : memref<14x32xf32, #tpu.memory_space<vmem>>, vector<14x32xf32>
    %c0_3 = arith.constant 0 : index
    %c0_4 = arith.constant 0 : index
    %2 = vector.load %arg2[%c0_3, %c0_4] : memref<112x32xf32, #tpu.memory_space<vmem>>, vector<16x32xf32>
    %3 = vector.extract_strided_slice %1 {offsets = [0, 0], sizes = [1, 32], strides = [1, 1]} : vector<14x32xf32> to vector<1x32xf32>
    %cst = arith.constant dense<0.000000e+00> : vector<8x32xf32>
    %4 = tpu.matmul %0, %2, %cst {dimension_numbers = #tpu.dot_dimension_numbers<[1], [0], [0], [1], [0, 0, 1, 1], [], []>} : vector<8x16xf32>, vector<16x32xf32>, vector<8x32xf32> -> vector<8x32xf32>
    %5 = vector.broadcast %3 : vector<1x32xf32> to vector<8x32xf32>
    %6 = arith.addf %4, %5 : vector<8x32xf32>
    %c16 = arith.constant 16 : index
    %c0_5 = arith.constant 0 : index
    %7 = vector.load %arg2[%c16, %c0_5] : memref<112x32xf32, #tpu.memory_space<vmem>>, vector<32x32xf32>
    %8 = vector.extract_strided_slice %1 {offsets = [1, 0], sizes = [1, 32], strides = [1, 1]} : vector<14x32xf32> to vector<1x32xf32>
    %9 = vector.extract_strided_slice %1 {offsets = [2, 0], sizes = [1, 32], strides = [1, 1]} : vector<14x32xf32> to vector<1x32xf32>
    %10 = vector.extract_strided_slice %1 {offsets = [3, 0], sizes = [1, 32], strides = [1, 1]} : vector<14x32xf32> to vector<1x32xf32>
    %11 = vector.extract_strided_slice %1 {offsets = [4, 0], sizes = [1, 32], strides = [1, 1]} : vector<14x32xf32> to vector<1x32xf32>
    %12 = vector.extract_strided_slice %1 {offsets = [5, 0], sizes = [1, 32], strides = [1, 1]} : vector<14x32xf32> to vector<1x32xf32>
    %13 = vector.extract_strided_slice %1 {offsets = [6, 0], sizes = [1, 32], strides = [1, 1]} : vector<14x32xf32> to vector<1x32xf32>
    %cst_6 = arith.constant dense<0.000000e+00> : vector<8x32xf32>
    %14 = tpu.matmul %6, %7, %cst_6 {dimension_numbers = #tpu.dot_dimension_numbers<[1], [0], [0], [1], [0, 0, 1, 1], [], []>} : vector<8x32xf32>, vector<32x32xf32>, vector<8x32xf32> -> vector<8x32xf32>
    %15 = vector.broadcast %8 : vector<1x32xf32> to vector<8x32xf32>
    %16 = arith.addf %14, %15 : vector<8x32xf32>
    %17 = arith.addf %6, %16 : vector<8x32xf32>
    %cst_7 = arith.constant dense<0.000000e+00> : vector<8xf32>
    %18 = vector.multi_reduction <add>, %17, %cst_7 [1] : vector<8x32xf32> to vector<8xf32>
    %19 = vector.shape_cast %18 : vector<8xf32> to vector<8x1xf32>
    %cst_8 = arith.constant 3.200000e+01 : f32
    %20 = vector.broadcast %cst_8 : f32 to vector<8x1xf32>
    %21 = arith.divf %19, %20 : vector<8x1xf32>
    %22 = vector.broadcast %21 : vector<8x1xf32> to vector<8x32xf32>
    %23 = arith.subf %17, %22 : vector<8x32xf32>
    %24 = arith.mulf %23, %23 : vector<8x32xf32>
    %cst_9 = arith.constant dense<0.000000e+00> : vector<8xf32>
    %25 = vector.multi_reduction <add>, %24, %cst_9 [1] : vector<8x32xf32> to vector<8xf32>
    %26 = vector.shape_cast %25 : vector<8xf32> to vector<8x1xf32>
    %cst_10 = arith.constant 3.200000e+01 : f32
    %27 = vector.broadcast %cst_10 : f32 to vector<8x1xf32>
    %28 = arith.divf %26, %27 : vector<8x1xf32>
    %29 = vector.broadcast %21 : vector<8x1xf32> to vector<8x32xf32>
    %30 = arith.subf %17, %29 : vector<8x32xf32>
    %cst_11 = arith.constant 9.99999974E-6 : f32
    %31 = vector.broadcast %cst_11 : f32 to vector<8x1xf32>
    %32 = arith.addf %28, %31 : vector<8x1xf32>
    %33 = math.rsqrt %32 : vector<8x1xf32>
    %34 = vector.broadcast %33 : vector<8x1xf32> to vector<8x32xf32>
    %35 = arith.mulf %30, %34 : vector<8x32xf32>
    %36 = vector.broadcast %9 : vector<1x32xf32> to vector<8x32xf32>
    %37 = arith.mulf %35, %36 : vector<8x32xf32>
    %38 = vector.broadcast %10 : vector<1x32xf32> to vector<8x32xf32>
    %39 = arith.addf %37, %38 : vector<8x32xf32>
    %40 = arith.truncf %39 : vector<8x32xf32> to vector<8x32xbf16>
    %cst_12 = arith.constant 0.000000e+00 : f32
    %41 = vector.broadcast %cst_12 : f32 to vector<8x32xf32>
    %c0_i32 = arith.constant 0 : i32
    %c0_i32_13 = arith.constant 0 : i32
    %42 = arith.addi %c0_i32_13, %c0_i32 : i32
    %43 = arith.index_cast %42 : i32 to index
    %c0_14 = arith.constant 0 : index
    %c0_15 = arith.constant 0 : index
    %44 = vector.load %arg5[%43, %c0_14, %c0_15] : memref<16x32x256xbf16, #tpu.memory_space<vmem>>, vector<1x32x256xbf16>
    %45 = vector.shape_cast %44 : vector<1x32x256xbf16> to vector<32x256xbf16>
    %cst_16 = arith.constant dense<0.000000e+00> : vector<8x256xf32>
    %46 = tpu.matmul %40, %45, %cst_16 {dimension_numbers = #tpu.dot_dimension_numbers<[1], [0], [0], [1], [0, 0, 1, 1], [], []>} : vector<8x32xbf16>, vector<32x256xbf16>, vector<8x256xf32> -> vector<8x256xf32>
    %47 = arith.index_cast %42 : i32 to index
    %c0_17 = arith.constant 0 : index
    %c0_18 = arith.constant 0 : index
    %48 = vector.load %arg4[%47, %c0_17, %c0_18] : memref<16x1x256xf32, #tpu.memory_space<vmem>>, vector<1x1x256xf32>
    %49 = vector.shape_cast %48 : vector<1x1x256xf32> to vector<1x256xf32>
    %50 = vector.broadcast %49 : vector<1x256xf32> to vector<8x256xf32>
    %51 = arith.addf %46, %50 : vector<8x256xf32>
    %cst_19 = arith.constant 0.000000e+00 : f32
    %52 = vector.broadcast %cst_19 : f32 to vector<8x256xf32>
    %53 = arith.maximumf %51, %52 : vector<8x256xf32>
    %54 = arith.truncf %53 : vector<8x256xf32> to vector<8x256xbf16>
    %55 = arith.index_cast %42 : i32 to index
    %c0_20 = arith.constant 0 : index
    %c0_21 = arith.constant 0 : index
    %56 = vector.load %arg6[%55, %c0_20, %c0_21] : memref<16x256x32xbf16, #tpu.memory_space<vmem>>, vector<1x256x32xbf16>
    %57 = vector.shape_cast %56 : vector<1x256x32xbf16> to vector<256x32xbf16>
    %cst_22 = arith.constant dense<0.000000e+00> : vector<8x32xf32>
    %58 = tpu.matmul %54, %57, %cst_22 {dimension_numbers = #tpu.dot_dimension_numbers<[1], [0], [0], [1], [0, 0, 1, 1], [], []>} : vector<8x256xbf16>, vector<256x32xbf16>, vector<8x32xf32> -> vector<8x32xf32>
    %59 = arith.addf %41, %58 : vector<8x32xf32>
    %c1_i32 = arith.constant 1 : i32
    %c0_i32_23 = arith.constant 0 : i32
    %60 = arith.addi %c0_i32_23, %c1_i32 : i32
    %61 = arith.index_cast %60 : i32 to index
    %c0_24 = arith.constant 0 : index
    %c0_25 = arith.constant 0 : index
    %62 = vector.load %arg5[%61, %c0_24, %c0_25] : memref<16x32x256xbf16, #tpu.memory_space<vmem>>, vector<1x32x256xbf16>
    %63 = vector.shape_cast %62 : vector<1x32x256xbf16> to vector<32x256xbf16>
    %cst_26 = arith.constant dense<0.000000e+00> : vector<8x256xf32>
    %64 = tpu.matmul %40, %63, %cst_26 {dimension_numbers = #tpu.dot_dimension_numbers<[1], [0], [0], [1], [0, 0, 1, 1], [], []>} : vector<8x32xbf16>, vector<32x256xbf16>, vector<8x256xf32> -> vector<8x256xf32>
    %65 = arith.index_cast %60 : i32 to index
    %c0_27 = arith.constant 0 : index
    %c0_28 = arith.constant 0 : index
    %66 = vector.load %arg4[%65, %c0_27, %c0_28] : memref<16x1x256xf32, #tpu.memory_space<vmem>>, vector<1x1x256xf32>
    %67 = vector.shape_cast %66 : vector<1x1x256xf32> to vector<1x256xf32>
    %68 = vector.broadcast %67 : vector<1x256xf32> to vector<8x256xf32>
    %69 = arith.addf %64, %68 : vector<8x256xf32>
    %cst_29 = arith.constant 0.000000e+00 : f32
    %70 = vector.broadcast %cst_29 : f32 to vector<8x256xf32>
    %71 = arith.maximumf %69, %70 : vector<8x256xf32>
    %72 = arith.truncf %71 : vector<8x256xf32> to vector<8x256xbf16>
    %73 = arith.index_cast %60 : i32 to index
    %c0_30 = arith.constant 0 : index
    %c0_31 = arith.constant 0 : index
    %74 = vector.load %arg6[%73, %c0_30, %c0_31] : memref<16x256x32xbf16, #tpu.memory_space<vmem>>, vector<1x256x32xbf16>
    %75 = vector.shape_cast %74 : vector<1x256x32xbf16> to vector<256x32xbf16>
    %cst_32 = arith.constant dense<0.000000e+00> : vector<8x32xf32>
    %76 = tpu.matmul %72, %75, %cst_32 {dimension_numbers = #tpu.dot_dimension_numbers<[1], [0], [0], [1], [0, 0, 1, 1], [], []>} : vector<8x256xbf16>, vector<256x32xbf16>, vector<8x32xf32> -> vector<8x32xf32>
    %77 = arith.addf %59, %76 : vector<8x32xf32>
    %c2_i32 = arith.constant 2 : i32
    %c0_i32_33 = arith.constant 0 : i32
    %78 = arith.addi %c0_i32_33, %c2_i32 : i32
    %79 = arith.index_cast %78 : i32 to index
    %c0_34 = arith.constant 0 : index
    %c0_35 = arith.constant 0 : index
    %80 = vector.load %arg5[%79, %c0_34, %c0_35] : memref<16x32x256xbf16, #tpu.memory_space<vmem>>, vector<1x32x256xbf16>
    %81 = vector.shape_cast %80 : vector<1x32x256xbf16> to vector<32x256xbf16>
    %cst_36 = arith.constant dense<0.000000e+00> : vector<8x256xf32>
    %82 = tpu.matmul %40, %81, %cst_36 {dimension_numbers = #tpu.dot_dimension_numbers<[1], [0], [0], [1], [0, 0, 1, 1], [], []>} : vector<8x32xbf16>, vector<32x256xbf16>, vector<8x256xf32> -> vector<8x256xf32>
    %83 = arith.index_cast %78 : i32 to index
    %c0_37 = arith.constant 0 : index
    %c0_38 = arith.constant 0 : index
    %84 = vector.load %arg4[%83, %c0_37, %c0_38] : memref<16x1x256xf32, #tpu.memory_space<vmem>>, vector<1x1x256xf32>
    %85 = vector.shape_cast %84 : vector<1x1x256xf32> to vector<1x256xf32>
    %86 = vector.broadcast %85 : vector<1x256xf32> to vector<8x256xf32>
    %87 = arith.addf %82, %86 : vector<8x256xf32>
    %cst_39 = arith.constant 0.000000e+00 : f32
    %88 = vector.broadcast %cst_39 : f32 to vector<8x256xf32>
    %89 = arith.maximumf %87, %88 : vector<8x256xf32>
    %90 = arith.truncf %89 : vector<8x256xf32> to vector<8x256xbf16>
    %91 = arith.index_cast %78 : i32 to index
    %c0_40 = arith.constant 0 : index
    %c0_41 = arith.constant 0 : index
    %92 = vector.load %arg6[%91, %c0_40, %c0_41] : memref<16x256x32xbf16, #tpu.memory_space<vmem>>, vector<1x256x32xbf16>
    %93 = vector.shape_cast %92 : vector<1x256x32xbf16> to vector<256x32xbf16>
    %cst_42 = arith.constant dense<0.000000e+00> : vector<8x32xf32>
    %94 = tpu.matmul %90, %93, %cst_42 {dimension_numbers = #tpu.dot_dimension_numbers<[1], [0], [0], [1], [0, 0, 1, 1], [], []>} : vector<8x256xbf16>, vector<256x32xbf16>, vector<8x32xf32> -> vector<8x32xf32>
    %95 = arith.addf %77, %94 : vector<8x32xf32>
    %c3_i32 = arith.constant 3 : i32
    %c0_i32_43 = arith.constant 0 : i32
    %96 = arith.addi %c0_i32_43, %c3_i32 : i32
    %97 = arith.index_cast %96 : i32 to index
    %c0_44 = arith.constant 0 : index
    %c0_45 = arith.constant 0 : index
    %98 = vector.load %arg5[%97, %c0_44, %c0_45] : memref<16x32x256xbf16, #tpu.memory_space<vmem>>, vector<1x32x256xbf16>
    %99 = vector.shape_cast %98 : vector<1x32x256xbf16> to vector<32x256xbf16>
    %cst_46 = arith.constant dense<0.000000e+00> : vector<8x256xf32>
    %100 = tpu.matmul %40, %99, %cst_46 {dimension_numbers = #tpu.dot_dimension_numbers<[1], [0], [0], [1], [0, 0, 1, 1], [], []>} : vector<8x32xbf16>, vector<32x256xbf16>, vector<8x256xf32> -> vector<8x256xf32>
    %101 = arith.index_cast %96 : i32 to index
    %c0_47 = arith.constant 0 : index
    %c0_48 = arith.constant 0 : index
    %102 = vector.load %arg4[%101, %c0_47, %c0_48] : memref<16x1x256xf32, #tpu.memory_space<vmem>>, vector<1x1x256xf32>
    %103 = vector.shape_cast %102 : vector<1x1x256xf32> to vector<1x256xf32>
    %104 = vector.broadcast %103 : vector<1x256xf32> to vector<8x256xf32>
    %105 = arith.addf %100, %104 : vector<8x256xf32>
    %cst_49 = arith.constant 0.000000e+00 : f32
    %106 = vector.broadcast %cst_49 : f32 to vector<8x256xf32>
    %107 = arith.maximumf %105, %106 : vector<8x256xf32>
    %108 = arith.truncf %107 : vector<8x256xf32> to vector<8x256xbf16>
    %109 = arith.index_cast %96 : i32 to index
    %c0_50 = arith.constant 0 : index
    %c0_51 = arith.constant 0 : index
    %110 = vector.load %arg6[%109, %c0_50, %c0_51] : memref<16x256x32xbf16, #tpu.memory_space<vmem>>, vector<1x256x32xbf16>
    %111 = vector.shape_cast %110 : vector<1x256x32xbf16> to vector<256x32xbf16>
    %cst_52 = arith.constant dense<0.000000e+00> : vector<8x32xf32>
    %112 = tpu.matmul %108, %111, %cst_52 {dimension_numbers = #tpu.dot_dimension_numbers<[1], [0], [0], [1], [0, 0, 1, 1], [], []>} : vector<8x256xbf16>, vector<256x32xbf16>, vector<8x32xf32> -> vector<8x32xf32>
    %113 = arith.addf %95, %112 : vector<8x32xf32>
    %c4_i32 = arith.constant 4 : i32
    %c0_i32_53 = arith.constant 0 : i32
    %114 = arith.addi %c0_i32_53, %c4_i32 : i32
    %115 = arith.index_cast %114 : i32 to index
    %c0_54 = arith.constant 0 : index
    %c0_55 = arith.constant 0 : index
    %116 = vector.load %arg5[%115, %c0_54, %c0_55] : memref<16x32x256xbf16, #tpu.memory_space<vmem>>, vector<1x32x256xbf16>
    %117 = vector.shape_cast %116 : vector<1x32x256xbf16> to vector<32x256xbf16>
    %cst_56 = arith.constant dense<0.000000e+00> : vector<8x256xf32>
    %118 = tpu.matmul %40, %117, %cst_56 {dimension_numbers = #tpu.dot_dimension_numbers<[1], [0], [0], [1], [0, 0, 1, 1], [], []>} : vector<8x32xbf16>, vector<32x256xbf16>, vector<8x256xf32> -> vector<8x256xf32>
    %119 = arith.index_cast %114 : i32 to index
    %c0_57 = arith.constant 0 : index
    %c0_58 = arith.constant 0 : index
    %120 = vector.load %arg4[%119, %c0_57, %c0_58] : memref<16x1x256xf32, #tpu.memory_space<vmem>>, vector<1x1x256xf32>
    %121 = vector.shape_cast %120 : vector<1x1x256xf32> to vector<1x256xf32>
    %122 = vector.broadcast %121 : vector<1x256xf32> to vector<8x256xf32>
    %123 = arith.addf %118, %122 : vector<8x256xf32>
    %cst_59 = arith.constant 0.000000e+00 : f32
    %124 = vector.broadcast %cst_59 : f32 to vector<8x256xf32>
    %125 = arith.maximumf %123, %124 : vector<8x256xf32>
    %126 = arith.truncf %125 : vector<8x256xf32> to vector<8x256xbf16>
    %127 = arith.index_cast %114 : i32 to index
    %c0_60 = arith.constant 0 : index
    %c0_61 = arith.constant 0 : index
    %128 = vector.load %arg6[%127, %c0_60, %c0_61] : memref<16x256x32xbf16, #tpu.memory_space<vmem>>, vector<1x256x32xbf16>
    %129 = vector.shape_cast %128 : vector<1x256x32xbf16> to vector<256x32xbf16>
    %cst_62 = arith.constant dense<0.000000e+00> : vector<8x32xf32>
    %130 = tpu.matmul %126, %129, %cst_62 {dimension_numbers = #tpu.dot_dimension_numbers<[1], [0], [0], [1], [0, 0, 1, 1], [], []>} : vector<8x256xbf16>, vector<256x32xbf16>, vector<8x32xf32> -> vector<8x32xf32>
    %131 = arith.addf %113, %130 : vector<8x32xf32>
    %c5_i32 = arith.constant 5 : i32
    %c0_i32_63 = arith.constant 0 : i32
    %132 = arith.addi %c0_i32_63, %c5_i32 : i32
    %133 = arith.index_cast %132 : i32 to index
    %c0_64 = arith.constant 0 : index
    %c0_65 = arith.constant 0 : index
    %134 = vector.load %arg5[%133, %c0_64, %c0_65] : memref<16x32x256xbf16, #tpu.memory_space<vmem>>, vector<1x32x256xbf16>
    %135 = vector.shape_cast %134 : vector<1x32x256xbf16> to vector<32x256xbf16>
    %cst_66 = arith.constant dense<0.000000e+00> : vector<8x256xf32>
    %136 = tpu.matmul %40, %135, %cst_66 {dimension_numbers = #tpu.dot_dimension_numbers<[1], [0], [0], [1], [0, 0, 1, 1], [], []>} : vector<8x32xbf16>, vector<32x256xbf16>, vector<8x256xf32> -> vector<8x256xf32>
    %137 = arith.index_cast %132 : i32 to index
    %c0_67 = arith.constant 0 : index
    %c0_68 = arith.constant 0 : index
    %138 = vector.load %arg4[%137, %c0_67, %c0_68] : memref<16x1x256xf32, #tpu.memory_space<vmem>>, vector<1x1x256xf32>
    %139 = vector.shape_cast %138 : vector<1x1x256xf32> to vector<1x256xf32>
    %140 = vector.broadcast %139 : vector<1x256xf32> to vector<8x256xf32>
    %141 = arith.addf %136, %140 : vector<8x256xf32>
    %cst_69 = arith.constant 0.000000e+00 : f32
    %142 = vector.broadcast %cst_69 : f32 to vector<8x256xf32>
    %143 = arith.maximumf %141, %142 : vector<8x256xf32>
    %144 = arith.truncf %143 : vector<8x256xf32> to vector<8x256xbf16>
    %145 = arith.index_cast %132 : i32 to index
    %c0_70 = arith.constant 0 : index
    %c0_71 = arith.constant 0 : index
    %146 = vector.load %arg6[%145, %c0_70, %c0_71] : memref<16x256x32xbf16, #tpu.memory_space<vmem>>, vector<1x256x32xbf16>
    %147 = vector.shape_cast %146 : vector<1x256x32xbf16> to vector<256x32xbf16>
    %cst_72 = arith.constant dense<0.000000e+00> : vector<8x32xf32>
    %148 = tpu.matmul %144, %147, %cst_72 {dimension_numbers = #tpu.dot_dimension_numbers<[1], [0], [0], [1], [0, 0, 1, 1], [], []>} : vector<8x256xbf16>, vector<256x32xbf16>, vector<8x32xf32> -> vector<8x32xf32>
    %149 = arith.addf %131, %148 : vector<8x32xf32>
    %c6_i32 = arith.constant 6 : i32
    %c0_i32_73 = arith.constant 0 : i32
    %150 = arith.addi %c0_i32_73, %c6_i32 : i32
    %151 = arith.index_cast %150 : i32 to index
    %c0_74 = arith.constant 0 : index
    %c0_75 = arith.constant 0 : index
    %152 = vector.load %arg5[%151, %c0_74, %c0_75] : memref<16x32x256xbf16, #tpu.memory_space<vmem>>, vector<1x32x256xbf16>
    %153 = vector.shape_cast %152 : vector<1x32x256xbf16> to vector<32x256xbf16>
    %cst_76 = arith.constant dense<0.000000e+00> : vector<8x256xf32>
    %154 = tpu.matmul %40, %153, %cst_76 {dimension_numbers = #tpu.dot_dimension_numbers<[1], [0], [0], [1], [0, 0, 1, 1], [], []>} : vector<8x32xbf16>, vector<32x256xbf16>, vector<8x256xf32> -> vector<8x256xf32>
    %155 = arith.index_cast %150 : i32 to index
    %c0_77 = arith.constant 0 : index
    %c0_78 = arith.constant 0 : index
    %156 = vector.load %arg4[%155, %c0_77, %c0_78] : memref<16x1x256xf32, #tpu.memory_space<vmem>>, vector<1x1x256xf32>
    %157 = vector.shape_cast %156 : vector<1x1x256xf32> to vector<1x256xf32>
    %158 = vector.broadcast %157 : vector<1x256xf32> to vector<8x256xf32>
    %159 = arith.addf %154, %158 : vector<8x256xf32>
    %cst_79 = arith.constant 0.000000e+00 : f32
    %160 = vector.broadcast %cst_79 : f32 to vector<8x256xf32>
    %161 = arith.maximumf %159, %160 : vector<8x256xf32>
    %162 = arith.truncf %161 : vector<8x256xf32> to vector<8x256xbf16>
    %163 = arith.index_cast %150 : i32 to index
    %c0_80 = arith.constant 0 : index
    %c0_81 = arith.constant 0 : index
    %164 = vector.load %arg6[%163, %c0_80, %c0_81] : memref<16x256x32xbf16, #tpu.memory_space<vmem>>, vector<1x256x32xbf16>
    %165 = vector.shape_cast %164 : vector<1x256x32xbf16> to vector<256x32xbf16>
    %cst_82 = arith.constant dense<0.000000e+00> : vector<8x32xf32>
    %166 = tpu.matmul %162, %165, %cst_82 {dimension_numbers = #tpu.dot_dimension_numbers<[1], [0], [0], [1], [0, 0, 1, 1], [], []>} : vector<8x256xbf16>, vector<256x32xbf16>, vector<8x32xf32> -> vector<8x32xf32>
    %167 = arith.addf %149, %166 : vector<8x32xf32>
    %c7_i32 = arith.constant 7 : i32
    %c0_i32_83 = arith.constant 0 : i32
    %168 = arith.addi %c0_i32_83, %c7_i32 : i32
    %169 = arith.index_cast %168 : i32 to index
    %c0_84 = arith.constant 0 : index
    %c0_85 = arith.constant 0 : index
    %170 = vector.load %arg5[%169, %c0_84, %c0_85] : memref<16x32x256xbf16, #tpu.memory_space<vmem>>, vector<1x32x256xbf16>
    %171 = vector.shape_cast %170 : vector<1x32x256xbf16> to vector<32x256xbf16>
    %cst_86 = arith.constant dense<0.000000e+00> : vector<8x256xf32>
    %172 = tpu.matmul %40, %171, %cst_86 {dimension_numbers = #tpu.dot_dimension_numbers<[1], [0], [0], [1], [0, 0, 1, 1], [], []>} : vector<8x32xbf16>, vector<32x256xbf16>, vector<8x256xf32> -> vector<8x256xf32>
    %173 = arith.index_cast %168 : i32 to index
    %c0_87 = arith.constant 0 : index
    %c0_88 = arith.constant 0 : index
    %174 = vector.load %arg4[%173, %c0_87, %c0_88] : memref<16x1x256xf32, #tpu.memory_space<vmem>>, vector<1x1x256xf32>
    %175 = vector.shape_cast %174 : vector<1x1x256xf32> to vector<1x256xf32>
    %176 = vector.broadcast %175 : vector<1x256xf32> to vector<8x256xf32>
    %177 = arith.addf %172, %176 : vector<8x256xf32>
    %cst_89 = arith.constant 0.000000e+00 : f32
    %178 = vector.broadcast %cst_89 : f32 to vector<8x256xf32>
    %179 = arith.maximumf %177, %178 : vector<8x256xf32>
    %180 = arith.truncf %179 : vector<8x256xf32> to vector<8x256xbf16>
    %181 = arith.index_cast %168 : i32 to index
    %c0_90 = arith.constant 0 : index
    %c0_91 = arith.constant 0 : index
    %182 = vector.load %arg6[%181, %c0_90, %c0_91] : memref<16x256x32xbf16, #tpu.memory_space<vmem>>, vector<1x256x32xbf16>
    %183 = vector.shape_cast %182 : vector<1x256x32xbf16> to vector<256x32xbf16>
    %cst_92 = arith.constant dense<0.000000e+00> : vector<8x32xf32>
    %184 = tpu.matmul %180, %183, %cst_92 {dimension_numbers = #tpu.dot_dimension_numbers<[1], [0], [0], [1], [0, 0, 1, 1], [], []>} : vector<8x256xbf16>, vector<256x32xbf16>, vector<8x32xf32> -> vector<8x32xf32>
    %185 = arith.addf %167, %184 : vector<8x32xf32>
    %c8_i32 = arith.constant 8 : i32
    %186 = vector.broadcast %11 : vector<1x32xf32> to vector<8x32xf32>
    %187 = arith.addf %185, %186 : vector<8x32xf32>
    %188 = arith.addf %39, %187 : vector<8x32xf32>
    %cst_93 = arith.constant dense<0.000000e+00> : vector<8xf32>
    %189 = vector.multi_reduction <add>, %188, %cst_93 [1] : vector<8x32xf32> to vector<8xf32>
    %190 = vector.shape_cast %189 : vector<8xf32> to vector<8x1xf32>
    %cst_94 = arith.constant 3.200000e+01 : f32
    %191 = vector.broadcast %cst_94 : f32 to vector<8x1xf32>
    %192 = arith.divf %190, %191 : vector<8x1xf32>
    %193 = vector.broadcast %192 : vector<8x1xf32> to vector<8x32xf32>
    %194 = arith.subf %188, %193 : vector<8x32xf32>
    %195 = arith.mulf %194, %194 : vector<8x32xf32>
    %cst_95 = arith.constant dense<0.000000e+00> : vector<8xf32>
    %196 = vector.multi_reduction <add>, %195, %cst_95 [1] : vector<8x32xf32> to vector<8xf32>
    %197 = vector.shape_cast %196 : vector<8xf32> to vector<8x1xf32>
    %cst_96 = arith.constant 3.200000e+01 : f32
    %198 = vector.broadcast %cst_96 : f32 to vector<8x1xf32>
    %199 = arith.divf %197, %198 : vector<8x1xf32>
    %200 = vector.broadcast %192 : vector<8x1xf32> to vector<8x32xf32>
    %201 = arith.subf %188, %200 : vector<8x32xf32>
    %cst_97 = arith.constant 9.99999974E-6 : f32
    %202 = vector.broadcast %cst_97 : f32 to vector<8x1xf32>
    %203 = arith.addf %199, %202 : vector<8x1xf32>
    %204 = math.rsqrt %203 : vector<8x1xf32>
    %205 = vector.broadcast %204 : vector<8x1xf32> to vector<8x32xf32>
    %206 = arith.mulf %201, %205 : vector<8x32xf32>
    %207 = vector.broadcast %12 : vector<1x32xf32> to vector<8x32xf32>
    %208 = arith.mulf %206, %207 : vector<8x32xf32>
    %209 = vector.broadcast %13 : vector<1x32xf32> to vector<8x32xf32>
    %210 = arith.addf %208, %209 : vector<8x32xf32>
    %c48 = arith.constant 48 : index
    %c0_98 = arith.constant 0 : index
    %211 = vector.load %arg2[%c48, %c0_98] : memref<112x32xf32, #tpu.memory_space<vmem>>, vector<32x32xf32>
    %212 = vector.extract_strided_slice %1 {offsets = [7, 0], sizes = [1, 32], strides = [1, 1]} : vector<14x32xf32> to vector<1x32xf32>
    %213 = vector.extract_strided_slice %1 {offsets = [8, 0], sizes = [1, 32], strides = [1, 1]} : vector<14x32xf32> to vector<1x32xf32>
    %214 = vector.extract_strided_slice %1 {offsets = [9, 0], sizes = [1, 32], strides = [1, 1]} : vector<14x32xf32> to vector<1x32xf32>
    %215 = vector.extract_strided_slice %1 {offsets = [10, 0], sizes = [1, 32], strides = [1, 1]} : vector<14x32xf32> to vector<1x32xf32>
    %216 = vector.extract_strided_slice %1 {offsets = [11, 0], sizes = [1, 32], strides = [1, 1]} : vector<14x32xf32> to vector<1x32xf32>
    %217 = vector.extract_strided_slice %1 {offsets = [12, 0], sizes = [1, 32], strides = [1, 1]} : vector<14x32xf32> to vector<1x32xf32>
    %cst_99 = arith.constant dense<0.000000e+00> : vector<8x32xf32>
    %218 = tpu.matmul %210, %211, %cst_99 {dimension_numbers = #tpu.dot_dimension_numbers<[1], [0], [0], [1], [0, 0, 1, 1], [], []>} : vector<8x32xf32>, vector<32x32xf32>, vector<8x32xf32> -> vector<8x32xf32>
    %219 = vector.broadcast %212 : vector<1x32xf32> to vector<8x32xf32>
    %220 = arith.addf %218, %219 : vector<8x32xf32>
    %221 = arith.addf %210, %220 : vector<8x32xf32>
    %cst_100 = arith.constant dense<0.000000e+00> : vector<8xf32>
    %222 = vector.multi_reduction <add>, %221, %cst_100 [1] : vector<8x32xf32> to vector<8xf32>
    %223 = vector.shape_cast %222 : vector<8xf32> to vector<8x1xf32>
    %cst_101 = arith.constant 3.200000e+01 : f32
    %224 = vector.broadcast %cst_101 : f32 to vector<8x1xf32>
    %225 = arith.divf %223, %224 : vector<8x1xf32>
    %226 = vector.broadcast %225 : vector<8x1xf32> to vector<8x32xf32>
    %227 = arith.subf %221, %226 : vector<8x32xf32>
    %228 = arith.mulf %227, %227 : vector<8x32xf32>
    %cst_102 = arith.constant dense<0.000000e+00> : vector<8xf32>
    %229 = vector.multi_reduction <add>, %228, %cst_102 [1] : vector<8x32xf32> to vector<8xf32>
    %230 = vector.shape_cast %229 : vector<8xf32> to vector<8x1xf32>
    %cst_103 = arith.constant 3.200000e+01 : f32
    %231 = vector.broadcast %cst_103 : f32 to vector<8x1xf32>
    %232 = arith.divf %230, %231 : vector<8x1xf32>
    %233 = vector.broadcast %225 : vector<8x1xf32> to vector<8x32xf32>
    %234 = arith.subf %221, %233 : vector<8x32xf32>
    %cst_104 = arith.constant 9.99999974E-6 : f32
    %235 = vector.broadcast %cst_104 : f32 to vector<8x1xf32>
    %236 = arith.addf %232, %235 : vector<8x1xf32>
    %237 = math.rsqrt %236 : vector<8x1xf32>
    %238 = vector.broadcast %237 : vector<8x1xf32> to vector<8x32xf32>
    %239 = arith.mulf %234, %238 : vector<8x32xf32>
    %240 = vector.broadcast %213 : vector<1x32xf32> to vector<8x32xf32>
    %241 = arith.mulf %239, %240 : vector<8x32xf32>
    %242 = vector.broadcast %214 : vector<1x32xf32> to vector<8x32xf32>
    %243 = arith.addf %241, %242 : vector<8x32xf32>
    %244 = arith.truncf %243 : vector<8x32xf32> to vector<8x32xbf16>
    %cst_105 = arith.constant 0.000000e+00 : f32
    %245 = vector.broadcast %cst_105 : f32 to vector<8x32xf32>
    %c0_i32_106 = arith.constant 0 : i32
    %c8_i32_107 = arith.constant 8 : i32
    %246 = arith.addi %c8_i32_107, %c0_i32_106 : i32
    %247 = arith.index_cast %246 : i32 to index
    %c0_108 = arith.constant 0 : index
    %c0_109 = arith.constant 0 : index
    %248 = vector.load %arg5[%247, %c0_108, %c0_109] : memref<16x32x256xbf16, #tpu.memory_space<vmem>>, vector<1x32x256xbf16>
    %249 = vector.shape_cast %248 : vector<1x32x256xbf16> to vector<32x256xbf16>
    %cst_110 = arith.constant dense<0.000000e+00> : vector<8x256xf32>
    %250 = tpu.matmul %244, %249, %cst_110 {dimension_numbers = #tpu.dot_dimension_numbers<[1], [0], [0], [1], [0, 0, 1, 1], [], []>} : vector<8x32xbf16>, vector<32x256xbf16>, vector<8x256xf32> -> vector<8x256xf32>
    %251 = arith.index_cast %246 : i32 to index
    %c0_111 = arith.constant 0 : index
    %c0_112 = arith.constant 0 : index
    %252 = vector.load %arg4[%251, %c0_111, %c0_112] : memref<16x1x256xf32, #tpu.memory_space<vmem>>, vector<1x1x256xf32>
    %253 = vector.shape_cast %252 : vector<1x1x256xf32> to vector<1x256xf32>
    %254 = vector.broadcast %253 : vector<1x256xf32> to vector<8x256xf32>
    %255 = arith.addf %250, %254 : vector<8x256xf32>
    %cst_113 = arith.constant 0.000000e+00 : f32
    %256 = vector.broadcast %cst_113 : f32 to vector<8x256xf32>
    %257 = arith.maximumf %255, %256 : vector<8x256xf32>
    %258 = arith.truncf %257 : vector<8x256xf32> to vector<8x256xbf16>
    %259 = arith.index_cast %246 : i32 to index
    %c0_114 = arith.constant 0 : index
    %c0_115 = arith.constant 0 : index
    %260 = vector.load %arg6[%259, %c0_114, %c0_115] : memref<16x256x32xbf16, #tpu.memory_space<vmem>>, vector<1x256x32xbf16>
    %261 = vector.shape_cast %260 : vector<1x256x32xbf16> to vector<256x32xbf16>
    %cst_116 = arith.constant dense<0.000000e+00> : vector<8x32xf32>
    %262 = tpu.matmul %258, %261, %cst_116 {dimension_numbers = #tpu.dot_dimension_numbers<[1], [0], [0], [1], [0, 0, 1, 1], [], []>} : vector<8x256xbf16>, vector<256x32xbf16>, vector<8x32xf32> -> vector<8x32xf32>
    %263 = arith.addf %245, %262 : vector<8x32xf32>
    %c1_i32_117 = arith.constant 1 : i32
    %c8_i32_118 = arith.constant 8 : i32
    %264 = arith.addi %c8_i32_118, %c1_i32_117 : i32
    %265 = arith.index_cast %264 : i32 to index
    %c0_119 = arith.constant 0 : index
    %c0_120 = arith.constant 0 : index
    %266 = vector.load %arg5[%265, %c0_119, %c0_120] : memref<16x32x256xbf16, #tpu.memory_space<vmem>>, vector<1x32x256xbf16>
    %267 = vector.shape_cast %266 : vector<1x32x256xbf16> to vector<32x256xbf16>
    %cst_121 = arith.constant dense<0.000000e+00> : vector<8x256xf32>
    %268 = tpu.matmul %244, %267, %cst_121 {dimension_numbers = #tpu.dot_dimension_numbers<[1], [0], [0], [1], [0, 0, 1, 1], [], []>} : vector<8x32xbf16>, vector<32x256xbf16>, vector<8x256xf32> -> vector<8x256xf32>
    %269 = arith.index_cast %264 : i32 to index
    %c0_122 = arith.constant 0 : index
    %c0_123 = arith.constant 0 : index
    %270 = vector.load %arg4[%269, %c0_122, %c0_123] : memref<16x1x256xf32, #tpu.memory_space<vmem>>, vector<1x1x256xf32>
    %271 = vector.shape_cast %270 : vector<1x1x256xf32> to vector<1x256xf32>
    %272 = vector.broadcast %271 : vector<1x256xf32> to vector<8x256xf32>
    %273 = arith.addf %268, %272 : vector<8x256xf32>
    %cst_124 = arith.constant 0.000000e+00 : f32
    %274 = vector.broadcast %cst_124 : f32 to vector<8x256xf32>
    %275 = arith.maximumf %273, %274 : vector<8x256xf32>
    %276 = arith.truncf %275 : vector<8x256xf32> to vector<8x256xbf16>
    %277 = arith.index_cast %264 : i32 to index
    %c0_125 = arith.constant 0 : index
    %c0_126 = arith.constant 0 : index
    %278 = vector.load %arg6[%277, %c0_125, %c0_126] : memref<16x256x32xbf16, #tpu.memory_space<vmem>>, vector<1x256x32xbf16>
    %279 = vector.shape_cast %278 : vector<1x256x32xbf16> to vector<256x32xbf16>
    %cst_127 = arith.constant dense<0.000000e+00> : vector<8x32xf32>
    %280 = tpu.matmul %276, %279, %cst_127 {dimension_numbers = #tpu.dot_dimension_numbers<[1], [0], [0], [1], [0, 0, 1, 1], [], []>} : vector<8x256xbf16>, vector<256x32xbf16>, vector<8x32xf32> -> vector<8x32xf32>
    %281 = arith.addf %263, %280 : vector<8x32xf32>
    %c2_i32_128 = arith.constant 2 : i32
    %c8_i32_129 = arith.constant 8 : i32
    %282 = arith.addi %c8_i32_129, %c2_i32_128 : i32
    %283 = arith.index_cast %282 : i32 to index
    %c0_130 = arith.constant 0 : index
    %c0_131 = arith.constant 0 : index
    %284 = vector.load %arg5[%283, %c0_130, %c0_131] : memref<16x32x256xbf16, #tpu.memory_space<vmem>>, vector<1x32x256xbf16>
    %285 = vector.shape_cast %284 : vector<1x32x256xbf16> to vector<32x256xbf16>
    %cst_132 = arith.constant dense<0.000000e+00> : vector<8x256xf32>
    %286 = tpu.matmul %244, %285, %cst_132 {dimension_numbers = #tpu.dot_dimension_numbers<[1], [0], [0], [1], [0, 0, 1, 1], [], []>} : vector<8x32xbf16>, vector<32x256xbf16>, vector<8x256xf32> -> vector<8x256xf32>
    %287 = arith.index_cast %282 : i32 to index
    %c0_133 = arith.constant 0 : index
    %c0_134 = arith.constant 0 : index
    %288 = vector.load %arg4[%287, %c0_133, %c0_134] : memref<16x1x256xf32, #tpu.memory_space<vmem>>, vector<1x1x256xf32>
    %289 = vector.shape_cast %288 : vector<1x1x256xf32> to vector<1x256xf32>
    %290 = vector.broadcast %289 : vector<1x256xf32> to vector<8x256xf32>
    %291 = arith.addf %286, %290 : vector<8x256xf32>
    %cst_135 = arith.constant 0.000000e+00 : f32
    %292 = vector.broadcast %cst_135 : f32 to vector<8x256xf32>
    %293 = arith.maximumf %291, %292 : vector<8x256xf32>
    %294 = arith.truncf %293 : vector<8x256xf32> to vector<8x256xbf16>
    %295 = arith.index_cast %282 : i32 to index
    %c0_136 = arith.constant 0 : index
    %c0_137 = arith.constant 0 : index
    %296 = vector.load %arg6[%295, %c0_136, %c0_137] : memref<16x256x32xbf16, #tpu.memory_space<vmem>>, vector<1x256x32xbf16>
    %297 = vector.shape_cast %296 : vector<1x256x32xbf16> to vector<256x32xbf16>
    %cst_138 = arith.constant dense<0.000000e+00> : vector<8x32xf32>
    %298 = tpu.matmul %294, %297, %cst_138 {dimension_numbers = #tpu.dot_dimension_numbers<[1], [0], [0], [1], [0, 0, 1, 1], [], []>} : vector<8x256xbf16>, vector<256x32xbf16>, vector<8x32xf32> -> vector<8x32xf32>
    %299 = arith.addf %281, %298 : vector<8x32xf32>
    %c3_i32_139 = arith.constant 3 : i32
    %c8_i32_140 = arith.constant 8 : i32
    %300 = arith.addi %c8_i32_140, %c3_i32_139 : i32
    %301 = arith.index_cast %300 : i32 to index
    %c0_141 = arith.constant 0 : index
    %c0_142 = arith.constant 0 : index
    %302 = vector.load %arg5[%301, %c0_141, %c0_142] : memref<16x32x256xbf16, #tpu.memory_space<vmem>>, vector<1x32x256xbf16>
    %303 = vector.shape_cast %302 : vector<1x32x256xbf16> to vector<32x256xbf16>
    %cst_143 = arith.constant dense<0.000000e+00> : vector<8x256xf32>
    %304 = tpu.matmul %244, %303, %cst_143 {dimension_numbers = #tpu.dot_dimension_numbers<[1], [0], [0], [1], [0, 0, 1, 1], [], []>} : vector<8x32xbf16>, vector<32x256xbf16>, vector<8x256xf32> -> vector<8x256xf32>
    %305 = arith.index_cast %300 : i32 to index
    %c0_144 = arith.constant 0 : index
    %c0_145 = arith.constant 0 : index
    %306 = vector.load %arg4[%305, %c0_144, %c0_145] : memref<16x1x256xf32, #tpu.memory_space<vmem>>, vector<1x1x256xf32>
    %307 = vector.shape_cast %306 : vector<1x1x256xf32> to vector<1x256xf32>
    %308 = vector.broadcast %307 : vector<1x256xf32> to vector<8x256xf32>
    %309 = arith.addf %304, %308 : vector<8x256xf32>
    %cst_146 = arith.constant 0.000000e+00 : f32
    %310 = vector.broadcast %cst_146 : f32 to vector<8x256xf32>
    %311 = arith.maximumf %309, %310 : vector<8x256xf32>
    %312 = arith.truncf %311 : vector<8x256xf32> to vector<8x256xbf16>
    %313 = arith.index_cast %300 : i32 to index
    %c0_147 = arith.constant 0 : index
    %c0_148 = arith.constant 0 : index
    %314 = vector.load %arg6[%313, %c0_147, %c0_148] : memref<16x256x32xbf16, #tpu.memory_space<vmem>>, vector<1x256x32xbf16>
    %315 = vector.shape_cast %314 : vector<1x256x32xbf16> to vector<256x32xbf16>
    %cst_149 = arith.constant dense<0.000000e+00> : vector<8x32xf32>
    %316 = tpu.matmul %312, %315, %cst_149 {dimension_numbers = #tpu.dot_dimension_numbers<[1], [0], [0], [1], [0, 0, 1, 1], [], []>} : vector<8x256xbf16>, vector<256x32xbf16>, vector<8x32xf32> -> vector<8x32xf32>
    %317 = arith.addf %299, %316 : vector<8x32xf32>
    %c4_i32_150 = arith.constant 4 : i32
    %c8_i32_151 = arith.constant 8 : i32
    %318 = arith.addi %c8_i32_151, %c4_i32_150 : i32
    %319 = arith.index_cast %318 : i32 to index
    %c0_152 = arith.constant 0 : index
    %c0_153 = arith.constant 0 : index
    %320 = vector.load %arg5[%319, %c0_152, %c0_153] : memref<16x32x256xbf16, #tpu.memory_space<vmem>>, vector<1x32x256xbf16>
    %321 = vector.shape_cast %320 : vector<1x32x256xbf16> to vector<32x256xbf16>
    %cst_154 = arith.constant dense<0.000000e+00> : vector<8x256xf32>
    %322 = tpu.matmul %244, %321, %cst_154 {dimension_numbers = #tpu.dot_dimension_numbers<[1], [0], [0], [1], [0, 0, 1, 1], [], []>} : vector<8x32xbf16>, vector<32x256xbf16>, vector<8x256xf32> -> vector<8x256xf32>
    %323 = arith.index_cast %318 : i32 to index
    %c0_155 = arith.constant 0 : index
    %c0_156 = arith.constant 0 : index
    %324 = vector.load %arg4[%323, %c0_155, %c0_156] : memref<16x1x256xf32, #tpu.memory_space<vmem>>, vector<1x1x256xf32>
    %325 = vector.shape_cast %324 : vector<1x1x256xf32> to vector<1x256xf32>
    %326 = vector.broadcast %325 : vector<1x256xf32> to vector<8x256xf32>
    %327 = arith.addf %322, %326 : vector<8x256xf32>
    %cst_157 = arith.constant 0.000000e+00 : f32
    %328 = vector.broadcast %cst_157 : f32 to vector<8x256xf32>
    %329 = arith.maximumf %327, %328 : vector<8x256xf32>
    %330 = arith.truncf %329 : vector<8x256xf32> to vector<8x256xbf16>
    %331 = arith.index_cast %318 : i32 to index
    %c0_158 = arith.constant 0 : index
    %c0_159 = arith.constant 0 : index
    %332 = vector.load %arg6[%331, %c0_158, %c0_159] : memref<16x256x32xbf16, #tpu.memory_space<vmem>>, vector<1x256x32xbf16>
    %333 = vector.shape_cast %332 : vector<1x256x32xbf16> to vector<256x32xbf16>
    %cst_160 = arith.constant dense<0.000000e+00> : vector<8x32xf32>
    %334 = tpu.matmul %330, %333, %cst_160 {dimension_numbers = #tpu.dot_dimension_numbers<[1], [0], [0], [1], [0, 0, 1, 1], [], []>} : vector<8x256xbf16>, vector<256x32xbf16>, vector<8x32xf32> -> vector<8x32xf32>
    %335 = arith.addf %317, %334 : vector<8x32xf32>
    %c5_i32_161 = arith.constant 5 : i32
    %c8_i32_162 = arith.constant 8 : i32
    %336 = arith.addi %c8_i32_162, %c5_i32_161 : i32
    %337 = arith.index_cast %336 : i32 to index
    %c0_163 = arith.constant 0 : index
    %c0_164 = arith.constant 0 : index
    %338 = vector.load %arg5[%337, %c0_163, %c0_164] : memref<16x32x256xbf16, #tpu.memory_space<vmem>>, vector<1x32x256xbf16>
    %339 = vector.shape_cast %338 : vector<1x32x256xbf16> to vector<32x256xbf16>
    %cst_165 = arith.constant dense<0.000000e+00> : vector<8x256xf32>
    %340 = tpu.matmul %244, %339, %cst_165 {dimension_numbers = #tpu.dot_dimension_numbers<[1], [0], [0], [1], [0, 0, 1, 1], [], []>} : vector<8x32xbf16>, vector<32x256xbf16>, vector<8x256xf32> -> vector<8x256xf32>
    %341 = arith.index_cast %336 : i32 to index
    %c0_166 = arith.constant 0 : index
    %c0_167 = arith.constant 0 : index
    %342 = vector.load %arg4[%341, %c0_166, %c0_167] : memref<16x1x256xf32, #tpu.memory_space<vmem>>, vector<1x1x256xf32>
    %343 = vector.shape_cast %342 : vector<1x1x256xf32> to vector<1x256xf32>
    %344 = vector.broadcast %343 : vector<1x256xf32> to vector<8x256xf32>
    %345 = arith.addf %340, %344 : vector<8x256xf32>
    %cst_168 = arith.constant 0.000000e+00 : f32
    %346 = vector.broadcast %cst_168 : f32 to vector<8x256xf32>
    %347 = arith.maximumf %345, %346 : vector<8x256xf32>
    %348 = arith.truncf %347 : vector<8x256xf32> to vector<8x256xbf16>
    %349 = arith.index_cast %336 : i32 to index
    %c0_169 = arith.constant 0 : index
    %c0_170 = arith.constant 0 : index
    %350 = vector.load %arg6[%349, %c0_169, %c0_170] : memref<16x256x32xbf16, #tpu.memory_space<vmem>>, vector<1x256x32xbf16>
    %351 = vector.shape_cast %350 : vector<1x256x32xbf16> to vector<256x32xbf16>
    %cst_171 = arith.constant dense<0.000000e+00> : vector<8x32xf32>
    %352 = tpu.matmul %348, %351, %cst_171 {dimension_numbers = #tpu.dot_dimension_numbers<[1], [0], [0], [1], [0, 0, 1, 1], [], []>} : vector<8x256xbf16>, vector<256x32xbf16>, vector<8x32xf32> -> vector<8x32xf32>
    %353 = arith.addf %335, %352 : vector<8x32xf32>
    %c6_i32_172 = arith.constant 6 : i32
    %c8_i32_173 = arith.constant 8 : i32
    %354 = arith.addi %c8_i32_173, %c6_i32_172 : i32
    %355 = arith.index_cast %354 : i32 to index
    %c0_174 = arith.constant 0 : index
    %c0_175 = arith.constant 0 : index
    %356 = vector.load %arg5[%355, %c0_174, %c0_175] : memref<16x32x256xbf16, #tpu.memory_space<vmem>>, vector<1x32x256xbf16>
    %357 = vector.shape_cast %356 : vector<1x32x256xbf16> to vector<32x256xbf16>
    %cst_176 = arith.constant dense<0.000000e+00> : vector<8x256xf32>
    %358 = tpu.matmul %244, %357, %cst_176 {dimension_numbers = #tpu.dot_dimension_numbers<[1], [0], [0], [1], [0, 0, 1, 1], [], []>} : vector<8x32xbf16>, vector<32x256xbf16>, vector<8x256xf32> -> vector<8x256xf32>
    %359 = arith.index_cast %354 : i32 to index
    %c0_177 = arith.constant 0 : index
    %c0_178 = arith.constant 0 : index
    %360 = vector.load %arg4[%359, %c0_177, %c0_178] : memref<16x1x256xf32, #tpu.memory_space<vmem>>, vector<1x1x256xf32>
    %361 = vector.shape_cast %360 : vector<1x1x256xf32> to vector<1x256xf32>
    %362 = vector.broadcast %361 : vector<1x256xf32> to vector<8x256xf32>
    %363 = arith.addf %358, %362 : vector<8x256xf32>
    %cst_179 = arith.constant 0.000000e+00 : f32
    %364 = vector.broadcast %cst_179 : f32 to vector<8x256xf32>
    %365 = arith.maximumf %363, %364 : vector<8x256xf32>
    %366 = arith.truncf %365 : vector<8x256xf32> to vector<8x256xbf16>
    %367 = arith.index_cast %354 : i32 to index
    %c0_180 = arith.constant 0 : index
    %c0_181 = arith.constant 0 : index
    %368 = vector.load %arg6[%367, %c0_180, %c0_181] : memref<16x256x32xbf16, #tpu.memory_space<vmem>>, vector<1x256x32xbf16>
    %369 = vector.shape_cast %368 : vector<1x256x32xbf16> to vector<256x32xbf16>
    %cst_182 = arith.constant dense<0.000000e+00> : vector<8x32xf32>
    %370 = tpu.matmul %366, %369, %cst_182 {dimension_numbers = #tpu.dot_dimension_numbers<[1], [0], [0], [1], [0, 0, 1, 1], [], []>} : vector<8x256xbf16>, vector<256x32xbf16>, vector<8x32xf32> -> vector<8x32xf32>
    %371 = arith.addf %353, %370 : vector<8x32xf32>
    %c7_i32_183 = arith.constant 7 : i32
    %c8_i32_184 = arith.constant 8 : i32
    %372 = arith.addi %c8_i32_184, %c7_i32_183 : i32
    %373 = arith.index_cast %372 : i32 to index
    %c0_185 = arith.constant 0 : index
    %c0_186 = arith.constant 0 : index
    %374 = vector.load %arg5[%373, %c0_185, %c0_186] : memref<16x32x256xbf16, #tpu.memory_space<vmem>>, vector<1x32x256xbf16>
    %375 = vector.shape_cast %374 : vector<1x32x256xbf16> to vector<32x256xbf16>
    %cst_187 = arith.constant dense<0.000000e+00> : vector<8x256xf32>
    %376 = tpu.matmul %244, %375, %cst_187 {dimension_numbers = #tpu.dot_dimension_numbers<[1], [0], [0], [1], [0, 0, 1, 1], [], []>} : vector<8x32xbf16>, vector<32x256xbf16>, vector<8x256xf32> -> vector<8x256xf32>
    %377 = arith.index_cast %372 : i32 to index
    %c0_188 = arith.constant 0 : index
    %c0_189 = arith.constant 0 : index
    %378 = vector.load %arg4[%377, %c0_188, %c0_189] : memref<16x1x256xf32, #tpu.memory_space<vmem>>, vector<1x1x256xf32>
    %379 = vector.shape_cast %378 : vector<1x1x256xf32> to vector<1x256xf32>
    %380 = vector.broadcast %379 : vector<1x256xf32> to vector<8x256xf32>
    %381 = arith.addf %376, %380 : vector<8x256xf32>
    %cst_190 = arith.constant 0.000000e+00 : f32
    %382 = vector.broadcast %cst_190 : f32 to vector<8x256xf32>
    %383 = arith.maximumf %381, %382 : vector<8x256xf32>
    %384 = arith.truncf %383 : vector<8x256xf32> to vector<8x256xbf16>
    %385 = arith.index_cast %372 : i32 to index
    %c0_191 = arith.constant 0 : index
    %c0_192 = arith.constant 0 : index
    %386 = vector.load %arg6[%385, %c0_191, %c0_192] : memref<16x256x32xbf16, #tpu.memory_space<vmem>>, vector<1x256x32xbf16>
    %387 = vector.shape_cast %386 : vector<1x256x32xbf16> to vector<256x32xbf16>
    %cst_193 = arith.constant dense<0.000000e+00> : vector<8x32xf32>
    %388 = tpu.matmul %384, %387, %cst_193 {dimension_numbers = #tpu.dot_dimension_numbers<[1], [0], [0], [1], [0, 0, 1, 1], [], []>} : vector<8x256xbf16>, vector<256x32xbf16>, vector<8x32xf32> -> vector<8x32xf32>
    %389 = arith.addf %371, %388 : vector<8x32xf32>
    %c8_i32_194 = arith.constant 8 : i32
    %390 = vector.broadcast %215 : vector<1x32xf32> to vector<8x32xf32>
    %391 = arith.addf %389, %390 : vector<8x32xf32>
    %392 = arith.addf %243, %391 : vector<8x32xf32>
    %cst_195 = arith.constant dense<0.000000e+00> : vector<8xf32>
    %393 = vector.multi_reduction <add>, %392, %cst_195 [1] : vector<8x32xf32> to vector<8xf32>
    %394 = vector.shape_cast %393 : vector<8xf32> to vector<8x1xf32>
    %cst_196 = arith.constant 3.200000e+01 : f32
    %395 = vector.broadcast %cst_196 : f32 to vector<8x1xf32>
    %396 = arith.divf %394, %395 : vector<8x1xf32>
    %397 = vector.broadcast %396 : vector<8x1xf32> to vector<8x32xf32>
    %398 = arith.subf %392, %397 : vector<8x32xf32>
    %399 = arith.mulf %398, %398 : vector<8x32xf32>
    %cst_197 = arith.constant dense<0.000000e+00> : vector<8xf32>
    %400 = vector.multi_reduction <add>, %399, %cst_197 [1] : vector<8x32xf32> to vector<8xf32>
    %401 = vector.shape_cast %400 : vector<8xf32> to vector<8x1xf32>
    %cst_198 = arith.constant 3.200000e+01 : f32
    %402 = vector.broadcast %cst_198 : f32 to vector<8x1xf32>
    %403 = arith.divf %401, %402 : vector<8x1xf32>
    %404 = vector.broadcast %396 : vector<8x1xf32> to vector<8x32xf32>
    %405 = arith.subf %392, %404 : vector<8x32xf32>
    %cst_199 = arith.constant 9.99999974E-6 : f32
    %406 = vector.broadcast %cst_199 : f32 to vector<8x1xf32>
    %407 = arith.addf %403, %406 : vector<8x1xf32>
    %408 = math.rsqrt %407 : vector<8x1xf32>
    %409 = vector.broadcast %408 : vector<8x1xf32> to vector<8x32xf32>
    %410 = arith.mulf %405, %409 : vector<8x32xf32>
    %411 = vector.broadcast %216 : vector<1x32xf32> to vector<8x32xf32>
    %412 = arith.mulf %410, %411 : vector<8x32xf32>
    %413 = vector.broadcast %217 : vector<1x32xf32> to vector<8x32xf32>
    %414 = arith.addf %412, %413 : vector<8x32xf32>
    %c80 = arith.constant 80 : index
    %c0_200 = arith.constant 0 : index
    %415 = vector.load %arg2[%c80, %c0_200] : memref<112x32xf32, #tpu.memory_space<vmem>>, vector<32x32xf32>
    %416 = vector.extract_strided_slice %1 {offsets = [13, 0], sizes = [1, 32], strides = [1, 1]} : vector<14x32xf32> to vector<1x32xf32>
    %cst_201 = arith.constant dense<0.000000e+00> : vector<8x32xf32>
    %417 = tpu.matmul %414, %415, %cst_201 {dimension_numbers = #tpu.dot_dimension_numbers<[1], [0], [0], [1], [0, 0, 1, 1], [], []>} : vector<8x32xf32>, vector<32x32xf32>, vector<8x32xf32> -> vector<8x32xf32>
    %418 = vector.broadcast %416 : vector<1x32xf32> to vector<8x32xf32>
    %419 = arith.addf %417, %418 : vector<8x32xf32>
    %c0_202 = arith.constant 0 : index
    %c0_203 = arith.constant 0 : index
    %420 = vector.load %arg7[%c0_202, %c0_203] : memref<8x32xf32, #tpu.memory_space<vmem>>, vector<8x32xf32>
    tpu.vector_store %arg7[%c0_202, %c0_203], %419 {strides = array<i32>} : memref<8x32xf32, #tpu.memory_space<vmem>>, vector<8x32xf32>,
    return
  }
  func.func @transform_0(%arg0: i32) -> (i32, i32) {
    %c0_i32 = arith.constant 0 : i32
    %c0_i32_0 = arith.constant 0 : i32
    return %arg0, %c0_i32 : i32, i32
  }
  func.func @transform_1(%arg0: i32) -> (i32, i32) {
    %c0_i32 = arith.constant 0 : i32
    %c0_i32_0 = arith.constant 0 : i32
    %c0_i32_1 = arith.constant 0 : i32
    return %c0_i32, %c0_i32_0 : i32, i32
  }
  func.func @transform_2(%arg0: i32) -> (i32, i32) {
    %c0_i32 = arith.constant 0 : i32
    %c0_i32_0 = arith.constant 0 : i32
    %c0_i32_1 = arith.constant 0 : i32
    return %c0_i32, %c0_i32_0 : i32, i32
  }
  func.func @transform_3(%arg0: i32) -> (i32, i32, i32) {
    %c0_i32 = arith.constant 0 : i32
    %c0_i32_0 = arith.constant 0 : i32
    %c0_i32_1 = arith.constant 0 : i32
    %c0_i32_2 = arith.constant 0 : i32
    return %c0_i32, %c0_i32_0, %c0_i32_1 : i32, i32, i32
  }
  func.func @transform_4(%arg0: i32) -> (i32, i32, i32) {
    %c0_i32 = arith.constant 0 : i32
    %c0_i32_0 = arith.constant 0 : i32
    %c0_i32_1 = arith.constant 0 : i32
    %c0_i32_2 = arith.constant 0 : i32
    return %c0_i32, %c0_i32_0, %c0_i32_1 : i32, i32, i32
  }
  func.func @transform_5(%arg0: i32) -> (i32, i32, i32) {
    %c0_i32 = arith.constant 0 : i32
    %c0_i32_0 = arith.constant 0 : i32
    %c0_i32_1 = arith.constant 0 : i32
    %c0_i32_2 = arith.constant 0 : i32
    return %c0_i32, %c0_i32_0, %c0_i32_1 : i32, i32, i32
  }
  func.func @transform_6(%arg0: i32) -> (i32, i32) {
    %c0_i32 = arith.constant 0 : i32
    %c0_i32_0 = arith.constant 0 : i32
    return %arg0, %c0_i32 : i32, i32
  }
}

</mosaic_0001>

<llo_original>
// kernel: tpu_custom_call.1
$region0: #{tpu_custom_call.1}
  #allocation0 [shape = 'u32[]', space=smem, size = 0x4, offset = 0x4, fixed_abs, tag = 'smem constant byte address 0x4 - core index']
  #allocation1 [shape = 'u32[72,128]{1,0:T(1,128)}', space=vmem, size = 0x9000, scoped, tag = 'internal scratch']
  %s0 = inlined_call_operand.vmem [shape: f32[8,16], index: 0, kind: input, shape index: {}]
  %s1 = inlined_call_operand.vmem [shape: f32[112,32], index: 1, kind: input, shape index: {}]
  %s2 = inlined_call_operand.vmem [shape: f32[14,32], index: 2, kind: input, shape index: {}]
  %s3 = inlined_call_operand.vmem [shape: f32[16,1,256], index: 3, kind: input, shape index: {}]
  %s4 = inlined_call_operand.vmem [shape: bf16[16,32,256], index: 4, kind: input, shape index: {}]
  %s5 = inlined_call_operand.vmem [shape: bf16[16,256,32], index: 5, kind: input, shape index: {}]
  %s6 = inlined_call_operand.hbm [shape: f32[8,32], index: 6, kind: output, shape index: {}]
  %s7 = sld [smem:[#allocation0]]
  $region34: #{tpu_custom_call.1} parent=0
    _
  %s9 = ssub.s32 1, %s7
  %s10 = scalar_select 0, %s9, %s7
  $region1: #{tpu_custom_call.1} parent=0
    #allocation2 [shape = 'u8[4096]{0}', space=vmem, size = 0x1000, scoped, tag = 'output window, operand 0, single buffered']
    #allocation3 [shape = 's32[1]{0}', space=sflag, size = 0x4, scoped, tag = 'scoped memory for tpu_custom_call.1']
    %11 = vsyncpa [#allocation3], 0
    // Predicated region
    $region2: #{tpu_custom_call.1} parent=1 // pred_check
      _
    $region3: #{tpu_custom_call.1} parent=1 // pred_check_branch
      %13 = sbr.rel (0) target = $region5
    $region4: #{tpu_custom_call.1} parent=1 // pred_region
      _
    $region5: #{tpu_custom_call.1} parent=1 // pred_fallthru
      _
    // Predicated region
    $region6: #{tpu_custom_call.1} parent=1 // pred_check
      _
    $region7: #{tpu_custom_call.1} parent=1 // pred_check_branch
      %15 = sbr.rel (0) target = $region9
    $region8: #{tpu_custom_call.1} parent=1 // pred_region
      _
    $region9: #{tpu_custom_call.1} parent=1 // pred_fallthru
      _
    // Predicated region
    $region10: #{tpu_custom_call.1} parent=1 // pred_check
      _
    $region11: #{tpu_custom_call.1} parent=1 // pred_check_branch
      %17 = sbr.rel (0) target = $region13
    $region12: #{tpu_custom_call.1} parent=1 // pred_region
      _
    $region13: #{tpu_custom_call.1} parent=1 // pred_fallthru
      _
    // Predicated region
    $region14: #{tpu_custom_call.1} parent=1 // pred_check
      _
    $region15: #{tpu_custom_call.1} parent=1 // pred_check_branch
      %19 = sbr.rel (0) target = $region17
    $region16: #{tpu_custom_call.1} parent=1 // pred_region
      _
    $region17: #{tpu_custom_call.1} parent=1 // pred_fallthru
      _
    // Predicated region
    $region18: #{tpu_custom_call.1} parent=1 // pred_check
      _
    $region19: #{tpu_custom_call.1} parent=1 // pred_check_branch
      %21 = sbr.rel (0) target = $region21
    $region20: #{tpu_custom_call.1} parent=1 // pred_region
      _
    $region21: #{tpu_custom_call.1} parent=1 // pred_fallthru
      _
    // Predicated region
    $region22: #{tpu_custom_call.1} parent=1 // pred_check
      _
    $region23: #{tpu_custom_call.1} parent=1 // pred_check_branch
      %23 = sbr.rel (0) target = $region25
    $region24: #{tpu_custom_call.1} parent=1 // pred_region
      _
    $region25: #{tpu_custom_call.1} parent=1 // pred_fallthru
      _
    %v25 = vld [vmem:[%s0] sm:$0xff]
    %v26 = vld [vmem:[%s2] sm:$0xff]
    %v27 = vld [vmem:[%s2 + $0x8] sm:$0x3f]
    %v28 = vld [vmem:[%s1] sm:$0xff]
    %v29 = vld [vmem:[%s1 + $0x8] sm:$0xff]
    %v30 = vperm.slane %v26, 0
    %vm31 = vcmask 130048
    %v33 = vsel %vm31, %v25, 0
    %35 = vmatpush.msra.mxu0 0.0
    %36 = vmatpush.msra.mxu0 0.0
    %37 = vmatpush.msra.mxu0 0.0
    %38 = vmatpush.msra.mxu0 0.0
    %39 = vmatpush.msra.mxu0 0.0
    %40 = vmatpush.msra.mxu0 0.0
    %41 = vmatpush.msra.mxu0 0.0
    %42 = vmatpush.msra.mxu0 0.0
    %43 = vmatpush.msra.mxu0 0.0
    %44 = vmatpush.msra.mxu0 0.0
    %45 = vmatpush.msra.mxu0 0.0
    %46 = vmatpush.msra.mxu0 0.0
    %47 = vmatpush.msra.mxu0 0.0
    %48 = vmatpush.msra.mxu0 0.0
    %49 = vmatpush.msra.mxu0 %v29
    %50 = vmatpush.msra.mxu0 %v28
    %51 = vmatmul.f32.gmra.mxu0 %v33
    %v52 = vpop.f32.mrf.mxu0
    %v53 = vadd.f32 %v30, %v52
    %54 = vdwg.mxu0
    %v55 = vld [vmem:[%s1 + $0x10] sm:$0xff]
    %v56 = vld [vmem:[%s1 + $0x18] sm:$0xff]
    %v57 = vld [vmem:[%s1 + $0x20] sm:$0xff]
    %v58 = vld [vmem:[%s1 + $0x28] sm:$0xff]
    %v59 = vperm.slane %v26, 1
    %vm60 = vcmask 261120
    %v62 = vsel %vm60, %v53, 0
    %64 = vmatpush.msra.mxu0 0.0
    %65 = vmatpush.msra.mxu0 0.0
    %66 = vmatpush.msra.mxu0 0.0
    %67 = vmatpush.msra.mxu0 0.0
    %68 = vmatpush.msra.mxu0 0.0
    %69 = vmatpush.msra.mxu0 0.0
    %70 = vmatpush.msra.mxu0 0.0
    %71 = vmatpush.msra.mxu0 0.0
    %72 = vmatpush.msra.mxu0 0.0
    %73 = vmatpush.msra.mxu0 0.0
    %74 = vmatpush.msra.mxu0 0.0
    %75 = vmatpush.msra.mxu0 0.0
    %76 = vmatpush.msra.mxu0 %v58
    %77 = vmatpush.msra.mxu0 %v57
    %78 = vmatpush.msra.mxu0 %v56
    %79 = vmatpush.msra.mxu0 %v55
    %80 = vmatmul.f32.gmra.mxu0 %v62
    %v81 = vpop.f32.mrf.mxu0
    %v82 = vadd.f32 %v59, %v81
    %83 = vdwg.mxu0
    %v84 = vadd.f32 %v53, %v82
    %v85 = vsel %vm60, %v84, 0.0
    %86 = vadd.xlane.f32.xlu0 %v85
    %v87 = vpop.xlane.xlu0 %86
    %v88 = vrcp.pop 32.0
    %v89 = vmul.f32 32.0, %v88
    %v90 = vsub.f32 1.0, %v89
    %v91 = vmul.f32 %v88, %v90
    %v92 = vadd.f32 %v88, %v91
    %vm93 = vweird.f32 %v88
    %v94 = vsel %vm93, %v88, %v92
    %v95 = vmul.f32 %v87, %v94
    %v96 = vsub.f32 %v84, %v95
    %v97 = vmul.f32 %v96, %v96
    %v98 = vsel %vm60, %v97, 0.0
    %99 = vadd.xlane.f32.xlu0 %v98
    %v100 = vpop.xlane.xlu0 %99
    %v101 = vmul.f32 %v100, %v94
    %v102 = vadd.f32 %v101, 1e-05
    %v103 = vrsqrt.pop %v102
    %v104 = vmul.f32 %v103, %v102
    %v105 = vmul.f32 %v104, %v103
    %v106 = vmul.f32 0.5, %v105
    %v107 = vsub.f32 1.5, %v106
    %v108 = vmul.f32 %v103, %v107
    %vm109 = vweird.f32 %v102
    %vm110 = vweird.f32 %v103
    %vm111 = vmor %vm109, %vm110
    %v112 = vsel %vm111, %v103, %v108
    %v113 = vmul.f32 %v96, %v112
    %v114 = vperm.slane %v26, 2
    %v115 = vmul.f32 %v113, %v114
    %v116 = vperm.slane %v26, 3
    %v117 = vadd.f32 %v115, %v116
    %v118 = vpack.c.bf16 %v117, %v117
    %v119 = vld [vmem:[%s4] sm:$0xff]
    %v120 = vld [vmem:[%s4 + $0x8] sm:$0xff]
    %v121 = vld [vmem:[%s4 + $0x10] sm:$0xff]
    %v122 = vld [vmem:[%s4 + $0x18] sm:$0xff]
    %v123 = vld [vmem:[%s3] sm:$0x3]
    %v125 = vperm.slane %v123, 0
    %v126 = vperm.slane %v123, 1
    %v133 = vunpack.c.l.b16 %v119
    %v134 = vunpack.c.h.b16 %v119
    %v135 = vunpack.c.l.b16 %v120
    %v136 = vunpack.c.h.b16 %v120
    %v137 = vunpack.c.l.b16 %v121
    %v138 = vunpack.c.h.b16 %v121
    %v139 = vunpack.c.l.b16 %v122
    %v140 = vunpack.c.h.b16 %v122
    %v141 = vpack.c.b16 %v135, %v133
    %v142 = vpack.c.b16 %v136, %v134
    %v143 = vpack.c.b16 %v139, %v137
    %v144 = vpack.c.b16 %v140, %v138
    %v150 = vsel %vm60, %v118, 0
    %152 = vmatpush.bf16.msra.mxu0 0
    %153 = vmatpush.bf16.msra.mxu0 0
    %154 = vmatpush.bf16.msra.mxu0 0
    %155 = vmatpush.bf16.msra.mxu0 0
    %156 = vmatpush.bf16.msra.mxu0 0
    %157 = vmatpush.bf16.msra.mxu0 0
    %158 = vmatpush.bf16.msra.mxu0 %v143
    %159 = vmatpush.bf16.msra.mxu0 %v141
    %160 = vmatmul.bf16.gmra.mxu0 %v150
    %v161 = vpop.f32.mrf.mxu0
    %v162 = vadd.f32 %v125, %v161
    %v163 = vpop.f32.mrf.mxu0
    %164 = vdwg.mxu0
    %165 = vmatpush.bf16.msra.mxu0 0
    %166 = vmatpush.bf16.msra.mxu0 0
    %167 = vmatpush.bf16.msra.mxu0 0
    %168 = vmatpush.bf16.msra.mxu0 0
    %169 = vmatpush.bf16.msra.mxu0 0
    %170 = vmatpush.bf16.msra.mxu0 0
    %171 = vmatpush.bf16.msra.mxu0 %v144
    %172 = vmatpush.bf16.msra.mxu0 %v142
    %173 = vmatmul.bf16.gmra.mxu0 %v150
    %v174 = vpop.f32.mrf.mxu0
    %v175 = vadd.f32 %v126, %v174
    %v176 = vpop.f32.mrf.mxu0
    %177 = vdwg.mxu0
    %v178 = vmax.f32 %v162, 0.0
    %v179 = vmax.f32 %v175, 0.0
    %v180 = vpack.c.bf16 %v178, %v178
    %v181 = vpack.c.bf16 %v179, %v179
    %v182 = vld [vmem:[%s5] sm:$0xf]
    %v183 = vld [vmem:[%s5 + $0x4] sm:$0xf]
    %v184 = vld [vmem:[%s5 + $0x8] sm:$0xf]
    %v185 = vld [vmem:[%s5 + $0xc] sm:$0xf]
    %v186 = vld [vmem:[%s5 + $0x10] sm:$0xf]
    %v187 = vld [vmem:[%s5 + $0x14] sm:$0xf]
    %v188 = vld [vmem:[%s5 + $0x18] sm:$0xf]
    %v189 = vld [vmem:[%s5 + $0x1c] sm:$0xf]
    %v190 = vld [vmem:[%s5 + $0x20] sm:$0xf]
    %v191 = vld [vmem:[%s5 + $0x24] sm:$0xf]
    %v192 = vld [vmem:[%s5 + $0x28] sm:$0xf]
    %v193 = vld [vmem:[%s5 + $0x2c] sm:$0xf]
    %v194 = vld [vmem:[%s5 + $0x30] sm:$0xf]
    %v195 = vld [vmem:[%s5 + $0x34] sm:$0xf]
    %v196 = vld [vmem:[%s5 + $0x38] sm:$0xf]
    %v197 = vld [vmem:[%s5 + $0x3c] sm:$0xf]
    %v198 = vld [vmem:[%s5 + $0x40] sm:$0xf]
    %v199 = vld [vmem:[%s5 + $0x44] sm:$0xf]
    %v200 = vld [vmem:[%s5 + $0x48] sm:$0xf]
    %v201 = vld [vmem:[%s5 + $0x4c] sm:$0xf]
    %v202 = vld [vmem:[%s5 + $0x50] sm:$0xf]
    %v203 = vld [vmem:[%s5 + $0x54] sm:$0xf]
    %v204 = vld [vmem:[%s5 + $0x58] sm:$0xf]
    %v205 = vld [vmem:[%s5 + $0x5c] sm:$0xf]
    %v206 = vld [vmem:[%s5 + $0x60] sm:$0xf]
    %v207 = vld [vmem:[%s5 + $0x64] sm:$0xf]
    %v208 = vld [vmem:[%s5 + $0x68] sm:$0xf]
    %v209 = vld [vmem:[%s5 + $0x6c] sm:$0xf]
    %v210 = vld [vmem:[%s5 + $0x70] sm:$0xf]
    %v211 = vld [vmem:[%s5 + $0x74] sm:$0xf]
    %v212 = vld [vmem:[%s5 + $0x78] sm:$0xf]
    %v213 = vld [vmem:[%s5 + $0x7c] sm:$0xf]
    %s214 = scalar_lea.vmem %s4, 32
    %v215 = vld [vmem:[%s214] sm:$0xff]
    %v216 = vld [vmem:[%s214 + $0x8] sm:$0xff]
    %v217 = vld [vmem:[%s214 + $0x10] sm:$0xff]
    %v218 = vld [vmem:[%s214 + $0x18] sm:$0xff]
    %s219 = scalar_lea.vmem %s3, 2
    %v220 = vld [vmem:[%s219] sm:$0x3]
    %v222 = vperm.slane %v220, 0
    %v223 = vperm.slane %v220, 1
    %v230 = vunpack.c.l.b16 %v215
    %v231 = vunpack.c.h.b16 %v215
    %v232 = vunpack.c.l.b16 %v216
    %v233 = vunpack.c.h.b16 %v216
    %v234 = vunpack.c.l.b16 %v217
    %v235 = vunpack.c.h.b16 %v217
    %v236 = vunpack.c.l.b16 %v218
    %v237 = vunpack.c.h.b16 %v218
    %v238 = vpack.c.b16 %v232, %v230
    %v239 = vpack.c.b16 %v233, %v231
    %v240 = vpack.c.b16 %v236, %v234
    %v241 = vpack.c.b16 %v237, %v235
    %246 = vmatpush.bf16.msra.mxu0 0
    %247 = vmatpush.bf16.msra.mxu0 0
    %248 = vmatpush.bf16.msra.mxu0 0
    %249 = vmatpush.bf16.msra.mxu0 0
    %250 = vmatpush.bf16.msra.mxu0 0
    %251 = vmatpush.bf16.msra.mxu0 0
    %252 = vmatpush.bf16.msra.mxu0 %v240
    %253 = vmatpush.bf16.msra.mxu0 %v238
    %254 = vmatmul.bf16.gmra.mxu0 %v150
    %v255 = vpop.f32.mrf.mxu0
    %v256 = vadd.f32 %v222, %v255
    %v257 = vpop.f32.mrf.mxu0
    %258 = vdwg.mxu0
    %259 = vmatpush.bf16.msra.mxu0 0
    %260 = vmatpush.bf16.msra.mxu0 0
    %261 = vmatpush.bf16.msra.mxu0 0
    %262 = vmatpush.bf16.msra.mxu0 0
    %263 = vmatpush.bf16.msra.mxu0 0
    %264 = vmatpush.bf16.msra.mxu0 0
    %265 = vmatpush.bf16.msra.mxu0 %v241
    %266 = vmatpush.bf16.msra.mxu0 %v239
    %267 = vmatmul.bf16.gmra.mxu0 %v150
    %v268 = vpop.f32.mrf.mxu0
    %v269 = vadd.f32 %v223, %v268
    %v270 = vpop.f32.mrf.mxu0
    %271 = vdwg.mxu0
    %v272 = vmax.f32 %v256, 0.0
    %v273 = vmax.f32 %v269, 0.0
    %v274 = vpack.c.bf16 %v272, %v272
    %v275 = vpack.c.bf16 %v273, %v273
    %s276 = scalar_lea.vmem %s5, 128
    %v277 = vld [vmem:[%s276] sm:$0xf]
    %v278 = vld [vmem:[%s276 + $0x4] sm:$0xf]
    %v279 = vld [vmem:[%s276 + $0x8] sm:$0xf]
    %v280 = vld [vmem:[%s276 + $0xc] sm:$0xf]
    %v281 = vld [vmem:[%s276 + $0x10] sm:$0xf]
    %v282 = vld [vmem:[%s276 + $0x14] sm:$0xf]
    %v283 = vld [vmem:[%s276 + $0x18] sm:$0xf]
    %v284 = vld [vmem:[%s276 + $0x1c] sm:$0xf]
    %v285 = vld [vmem:[%s276 + $0x20] sm:$0xf]
    %v286 = vld [vmem:[%s276 + $0x24] sm:$0xf]
    %v287 = vld [vmem:[%s276 + $0x28] sm:$0xf]
    %v288 = vld [vmem:[%s276 + $0x2c] sm:$0xf]
    %v289 = vld [vmem:[%s276 + $0x30] sm:$0xf]
    %v290 = vld [vmem:[%s276 + $0x34] sm:$0xf]
    %v291 = vld [vmem:[%s276 + $0x38] sm:$0xf]
    %v292 = vld [vmem:[%s276 + $0x3c] sm:$0xf]
    %v293 = vld [vmem:[%s276 + $0x40] sm:$0xf]
    %v294 = vld [vmem:[%s276 + $0x44] sm:$0xf]
    %v295 = vld [vmem:[%s276 + $0x48] sm:$0xf]
    %v296 = vld [vmem:[%s276 + $0x4c] sm:$0xf]
    %v297 = vld [vmem:[%s276 + $0x50] sm:$0xf]
    %v298 = vld [vmem:[%s276 + $0x54] sm:$0xf]
    %v299 = vld [vmem:[%s276 + $0x58] sm:$0xf]
    %v300 = vld [vmem:[%s276 + $0x5c] sm:$0xf]
    %v301 = vld [vmem:[%s276 + $0x60] sm:$0xf]
    %v302 = vld [vmem:[%s276 + $0x64] sm:$0xf]
    %v303 = vld [vmem:[%s276 + $0x68] sm:$0xf]
    %v304 = vld [vmem:[%s276 + $0x6c] sm:$0xf]
    %v305 = vld [vmem:[%s276 + $0x70] sm:$0xf]
    %v306 = vld [vmem:[%s276 + $0x74] sm:$0xf]
    %v307 = vld [vmem:[%s276 + $0x78] sm:$0xf]
    %v308 = vld [vmem:[%s276 + $0x7c] sm:$0xf]
    %v341 = vunpack.c.l.b16 %v277
    %v342 = vunpack.c.l.b16 %v278
    %v343 = vunpack.c.l.b16 %v279
    %v344 = vunpack.c.l.b16 %v280
    %v345 = vunpack.c.l.b16 %v281
    %v346 = vunpack.c.l.b16 %v282
    %v347 = vunpack.c.l.b16 %v283
    %v348 = vunpack.c.l.b16 %v284
    %v349 = vunpack.c.l.b16 %v285
    %v350 = vunpack.c.l.b16 %v286
    %v351 = vunpack.c.l.b16 %v287
    %v352 = vunpack.c.l.b16 %v288
    %v353 = vunpack.c.l.b16 %v289
    %v354 = vunpack.c.l.b16 %v290
    %v355 = vunpack.c.l.b16 %v291
    %v356 = vunpack.c.l.b16 %v292
    %v357 = vunpack.c.l.b16 %v293
    %v358 = vunpack.c.l.b16 %v294
    %v359 = vunpack.c.l.b16 %v295
    %v360 = vunpack.c.l.b16 %v296
    %v361 = vunpack.c.l.b16 %v297
    %v362 = vunpack.c.l.b16 %v298
    %v363 = vunpack.c.l.b16 %v299
    %v364 = vunpack.c.l.b16 %v300
    %v365 = vunpack.c.l.b16 %v301
    %v366 = vunpack.c.l.b16 %v302
    %v367 = vunpack.c.l.b16 %v303
    %v368 = vunpack.c.l.b16 %v304
    %v369 = vunpack.c.l.b16 %v305
    %v370 = vunpack.c.l.b16 %v306
    %v371 = vunpack.c.l.b16 %v307
    %v372 = vunpack.c.l.b16 %v308
    %v373 = vpack.c.b16 %v342, %v341
    %v374 = vpack.c.b16 %v344, %v343
    %v375 = vpack.c.b16 %v346, %v345
    %v376 = vpack.c.b16 %v348, %v347
    %v377 = vpack.c.b16 %v350, %v349
    %v378 = vpack.c.b16 %v352, %v351
    %v379 = vpack.c.b16 %v354, %v353
    %v380 = vpack.c.b16 %v356, %v355
    %v381 = vpack.c.b16 %v358, %v357
    %v382 = vpack.c.b16 %v360, %v359
    %v383 = vpack.c.b16 %v362, %v361
    %v384 = vpack.c.b16 %v364, %v363
    %v385 = vpack.c.b16 %v366, %v365
    %v386 = vpack.c.b16 %v368, %v367
    %v387 = vpack.c.b16 %v370, %v369
    %v388 = vpack.c.b16 %v372, %v371
    %405 = vmatpush.bf16.msra.mxu0 %v380
    %406 = vmatpush.bf16.msra.mxu0 %v379
    %407 = vmatpush.bf16.msra.mxu0 %v378
    %408 = vmatpush.bf16.msra.mxu0 %v377
    %409 = vmatpush.bf16.msra.mxu0 %v376
    %410 = vmatpush.bf16.msra.mxu0 %v375
    %411 = vmatpush.bf16.msra.mxu0 %v374
    %412 = vmatpush.bf16.msra.mxu0 %v373
    %413 = vmatmul.bf16.gmra.mxu0 %v274
    %v414 = vpop.f32.mrf.mxu0
    %v415 = vadd.f32 0.0, %v414
    %v416 = vpop.f32.mrf.mxu0
    %417 = vdwg.mxu0
    %418 = vmatpush.bf16.msra.mxu0 %v388
    %419 = vmatpush.bf16.msra.mxu0 %v387
    %420 = vmatpush.bf16.msra.mxu0 %v386
    %421 = vmatpush.bf16.msra.mxu0 %v385
    %422 = vmatpush.bf16.msra.mxu0 %v384
    %423 = vmatpush.bf16.msra.mxu0 %v383
    %424 = vmatpush.bf16.msra.mxu0 %v382
    %425 = vmatpush.bf16.msra.mxu0 %v381
    %426 = vmatmul.bf16.gmra.mxu0 %v275
    %v427 = vpop.f32.mrf.mxu0
    %v428 = vadd.f32 %v415, %v427
    %v429 = vpop.f32.mrf.mxu0
    %430 = vdwg.mxu0
    %v463 = vunpack.c.l.b16 %v182
    %v464 = vunpack.c.l.b16 %v183
    %v465 = vunpack.c.l.b16 %v184
    %v466 = vunpack.c.l.b16 %v185
    %v467 = vunpack.c.l.b16 %v186
    %v468 = vunpack.c.l.b16 %v187
    %v469 = vunpack.c.l.b16 %v188
    %v470 = vunpack.c.l.b16 %v189
    %v471 = vunpack.c.l.b16 %v190
    %v472 = vunpack.c.l.b16 %v191
    %v473 = vunpack.c.l.b16 %v192
    %v474 = vunpack.c.l.b16 %v193
    %v475 = vunpack.c.l.b16 %v194
    %v476 = vunpack.c.l.b16 %v195
    %v477 = vunpack.c.l.b16 %v196
    %v478 = vunpack.c.l.b16 %v197
    %v479 = vunpack.c.l.b16 %v198
    %v480 = vunpack.c.l.b16 %v199
    %v481 = vunpack.c.l.b16 %v200
    %v482 = vunpack.c.l.b16 %v201
    %v483 = vunpack.c.l.b16 %v202
    %v484 = vunpack.c.l.b16 %v203
    %v485 = vunpack.c.l.b16 %v204
    %v486 = vunpack.c.l.b16 %v205
    %v487 = vunpack.c.l.b16 %v206
    %v488 = vunpack.c.l.b16 %v207
    %v489 = vunpack.c.l.b16 %v208
    %v490 = vunpack.c.l.b16 %v209
    %v491 = vunpack.c.l.b16 %v210
    %v492 = vunpack.c.l.b16 %v211
    %v493 = vunpack.c.l.b16 %v212
    %v494 = vunpack.c.l.b16 %v213
    %v495 = vpack.c.b16 %v464, %v463
    %v496 = vpack.c.b16 %v466, %v465
    %v497 = vpack.c.b16 %v468, %v467
    %v498 = vpack.c.b16 %v470, %v469
    %v499 = vpack.c.b16 %v472, %v471
    %v500 = vpack.c.b16 %v474, %v473
    %v501 = vpack.c.b16 %v476, %v475
    %v502 = vpack.c.b16 %v478, %v477
    %v503 = vpack.c.b16 %v480, %v479
    %v504 = vpack.c.b16 %v482, %v481
    %v505 = vpack.c.b16 %v484, %v483
    %v506 = vpack.c.b16 %v486, %v485
    %v507 = vpack.c.b16 %v488, %v487
    %v508 = vpack.c.b16 %v490, %v489
    %v509 = vpack.c.b16 %v492, %v491
    %v510 = vpack.c.b16 %v494, %v493
    %527 = vmatpush.bf16.msra.mxu0 %v502
    %528 = vmatpush.bf16.msra.mxu0 %v501
    %529 = vmatpush.bf16.msra.mxu0 %v500
    %530 = vmatpush.bf16.msra.mxu0 %v499
    %531 = vmatpush.bf16.msra.mxu0 %v498
    %532 = vmatpush.bf16.msra.mxu0 %v497
    %533 = vmatpush.bf16.msra.mxu0 %v496
    %534 = vmatpush.bf16.msra.mxu0 %v495
    %535 = vmatmul.bf16.gmra.mxu0 %v180
    %v536 = vpop.f32.mrf.mxu0
    %v537 = vadd.f32 %v428, %v536
    %v538 = vpop.f32.mrf.mxu0
    %539 = vdwg.mxu0
    %540 = vmatpush.bf16.msra.mxu0 %v510
    %541 = vmatpush.bf16.msra.mxu0 %v509
    %542 = vmatpush.bf16.msra.mxu0 %v508
    %543 = vmatpush.bf16.msra.mxu0 %v507
    %544 = vmatpush.bf16.msra.mxu0 %v506
    %545 = vmatpush.bf16.msra.mxu0 %v505
    %546 = vmatpush.bf16.msra.mxu0 %v504
    %547 = vmatpush.bf16.msra.mxu0 %v503
    %548 = vmatmul.bf16.gmra.mxu0 %v181
    %v549 = vpop.f32.mrf.mxu0
    %v550 = vadd.f32 %v537, %v549
    %v551 = vpop.f32.mrf.mxu0
    %552 = vdwg.mxu0
    %s553 = scalar_lea.vmem %s4, 64
    %v554 = vld [vmem:[%s553] sm:$0xff]
    %v555 = vld [vmem:[%s553 + $0x8] sm:$0xff]
    %v556 = vld [vmem:[%s553 + $0x10] sm:$0xff]
    %v557 = vld [vmem:[%s553 + $0x18] sm:$0xff]
    %s558 = scalar_lea.vmem %s3, 4
    %v559 = vld [vmem:[%s558] sm:$0x3]
    %v561 = vperm.slane %v559, 0
    %v562 = vperm.slane %v559, 1
    %v569 = vunpack.c.l.b16 %v554
    %v570 = vunpack.c.h.b16 %v554
    %v571 = vunpack.c.l.b16 %v555
    %v572 = vunpack.c.h.b16 %v555
    %v573 = vunpack.c.l.b16 %v556
    %v574 = vunpack.c.h.b16 %v556
    %v575 = vunpack.c.l.b16 %v557
    %v576 = vunpack.c.h.b16 %v557
    %v577 = vpack.c.b16 %v571, %v569
    %v578 = vpack.c.b16 %v572, %v570
    %v579 = vpack.c.b16 %v575, %v573
    %v580 = vpack.c.b16 %v576, %v574
    %585 = vmatpush.bf16.msra.mxu0 0
    %586 = vmatpush.bf16.msra.mxu0 0
    %587 = vmatpush.bf16.msra.mxu0 0
    %588 = vmatpush.bf16.msra.mxu0 0
    %589 = vmatpush.bf16.msra.mxu0 0
    %590 = vmatpush.bf16.msra.mxu0 0
    %591 = vmatpush.bf16.msra.mxu0 %v579
    %592 = vmatpush.bf16.msra.mxu0 %v577
    %593 = vmatmul.bf16.gmra.mxu0 %v150
    %v594 = vpop.f32.mrf.mxu0
    %v595 = vadd.f32 %v561, %v594
    %v596 = vpop.f32.mrf.mxu0
    %597 = vdwg.mxu0
    %598 = vmatpush.bf16.msra.mxu0 0
    %599 = vmatpush.bf16.msra.mxu0 0
    %600 = vmatpush.bf16.msra.mxu0 0
    %601 = vmatpush.bf16.msra.mxu0 0
    %602 = vmatpush.bf16.msra.mxu0 0
    %603 = vmatpush.bf16.msra.mxu0 0
    %604 = vmatpush.bf16.msra.mxu0 %v580
    %605 = vmatpush.bf16.msra.mxu0 %v578
    %606 = vmatmul.bf16.gmra.mxu0 %v150
    %v607 = vpop.f32.mrf.mxu0
    %v608 = vadd.f32 %v562, %v607
    %v609 = vpop.f32.mrf.mxu0
    %610 = vdwg.mxu0
    %v611 = vmax.f32 %v595, 0.0
    %v612 = vmax.f32 %v608, 0.0
    %v613 = vpack.c.bf16 %v611, %v611
    %v614 = vpack.c.bf16 %v612, %v612
    %s615 = scalar_lea.vmem %s5, 256
    %v616 = vld [vmem:[%s615] sm:$0xf]
    %v617 = vld [vmem:[%s615 + $0x4] sm:$0xf]
    %v618 = vld [vmem:[%s615 + $0x8] sm:$0xf]
    %v619 = vld [vmem:[%s615 + $0xc] sm:$0xf]
    %v620 = vld [vmem:[%s615 + $0x10] sm:$0xf]
    %v621 = vld [vmem:[%s615 + $0x14] sm:$0xf]
    %v622 = vld [vmem:[%s615 + $0x18] sm:$0xf]
    %v623 = vld [vmem:[%s615 + $0x1c] sm:$0xf]
    %v624 = vld [vmem:[%s615 + $0x20] sm:$0xf]
    %v625 = vld [vmem:[%s615 + $0x24] sm:$0xf]
    %v626 = vld [vmem:[%s615 + $0x28] sm:$0xf]
    %v627 = vld [vmem:[%s615 + $0x2c] sm:$0xf]
    %v628 = vld [vmem:[%s615 + $0x30] sm:$0xf]
    %v629 = vld [vmem:[%s615 + $0x34] sm:$0xf]
    %v630 = vld [vmem:[%s615 + $0x38] sm:$0xf]
    %v631 = vld [vmem:[%s615 + $0x3c] sm:$0xf]
    %v632 = vld [vmem:[%s615 + $0x40] sm:$0xf]
    %v633 = vld [vmem:[%s615 + $0x44] sm:$0xf]
    %v634 = vld [vmem:[%s615 + $0x48] sm:$0xf]
    %v635 = vld [vmem:[%s615 + $0x4c] sm:$0xf]
    %v636 = vld [vmem:[%s615 + $0x50] sm:$0xf]
    %v637 = vld [vmem:[%s615 + $0x54] sm:$0xf]
    %v638 = vld [vmem:[%s615 + $0x58] sm:$0xf]
    %v639 = vld [vmem:[%s615 + $0x5c] sm:$0xf]
    %v640 = vld [vmem:[%s615 + $0x60] sm:$0xf]
    %v641 = vld [vmem:[%s615 + $0x64] sm:$0xf]
    %v642 = vld [vmem:[%s615 + $0x68] sm:$0xf]
    %v643 = vld [vmem:[%s615 + $0x6c] sm:$0xf]
    %v644 = vld [vmem:[%s615 + $0x70] sm:$0xf]
    %v645 = vld [vmem:[%s615 + $0x74] sm:$0xf]
    %v646 = vld [vmem:[%s615 + $0x78] sm:$0xf]
    %v647 = vld [vmem:[%s615 + $0x7c] sm:$0xf]
    %v680 = vunpack.c.l.b16 %v616
    %v681 = vunpack.c.l.b16 %v617
    %v682 = vunpack.c.l.b16 %v618
    %v683 = vunpack.c.l.b16 %v619
    %v684 = vunpack.c.l.b16 %v620
    %v685 = vunpack.c.l.b16 %v621
    %v686 = vunpack.c.l.b16 %v622
    %v687 = vunpack.c.l.b16 %v623
    %v688 = vunpack.c.l.b16 %v624
    %v689 = vunpack.c.l.b16 %v625
    %v690 = vunpack.c.l.b16 %v626
    %v691 = vunpack.c.l.b16 %v627
    %v692 = vunpack.c.l.b16 %v628
    %v693 = vunpack.c.l.b16 %v629
    %v694 = vunpack.c.l.b16 %v630
    %v695 = vunpack.c.l.b16 %v631
    %v696 = vunpack.c.l.b16 %v632
    %v697 = vunpack.c.l.b16 %v633
    %v698 = vunpack.c.l.b16 %v634
    %v699 = vunpack.c.l.b16 %v635
    %v700 = vunpack.c.l.b16 %v636
    %v701 = vunpack.c.l.b16 %v637
    %v702 = vunpack.c.l.b16 %v638
    %v703 = vunpack.c.l.b16 %v639
    %v704 = vunpack.c.l.b16 %v640
    %v705 = vunpack.c.l.b16 %v641
    %v706 = vunpack.c.l.b16 %v642
    %v707 = vunpack.c.l.b16 %v643
    %v708 = vunpack.c.l.b16 %v644
    %v709 = vunpack.c.l.b16 %v645
    %v710 = vunpack.c.l.b16 %v646
    %v711 = vunpack.c.l.b16 %v647
    %v712 = vpack.c.b16 %v681, %v680
    %v713 = vpack.c.b16 %v683, %v682
    %v714 = vpack.c.b16 %v685, %v684
    %v715 = vpack.c.b16 %v687, %v686
    %v716 = vpack.c.b16 %v689, %v688
    %v717 = vpack.c.b16 %v691, %v690
    %v718 = vpack.c.b16 %v693, %v692
    %v719 = vpack.c.b16 %v695, %v694
    %v720 = vpack.c.b16 %v697, %v696
    %v721 = vpack.c.b16 %v699, %v698
    %v722 = vpack.c.b16 %v701, %v700
    %v723 = vpack.c.b16 %v703, %v702
    %v724 = vpack.c.b16 %v705, %v704
    %v725 = vpack.c.b16 %v707, %v706
    %v726 = vpack.c.b16 %v709, %v708
    %v727 = vpack.c.b16 %v711, %v710
    %744 = vmatpush.bf16.msra.mxu0 %v719
    %745 = vmatpush.bf16.msra.mxu0 %v718
    %746 = vmatpush.bf16.msra.mxu0 %v717
    %747 = vmatpush.bf16.msra.mxu0 %v716
    %748 = vmatpush.bf16.msra.mxu0 %v715
    %749 = vmatpush.bf16.msra.mxu0 %v714
    %750 = vmatpush.bf16.msra.mxu0 %v713
    %751 = vmatpush.bf16.msra.mxu0 %v712
    %752 = vmatmul.bf16.gmra.mxu0 %v613
    %v753 = vpop.f32.mrf.mxu0
    %v754 = vadd.f32 0.0, %v753
    %v755 = vpop.f32.mrf.mxu0
    %756 = vdwg.mxu0
    %757 = vmatpush.bf16.msra.mxu0 %v727
    %758 = vmatpush.bf16.msra.mxu0 %v726
    %759 = vmatpush.bf16.msra.mxu0 %v725
    %760 = vmatpush.bf16.msra.mxu0 %v724
    %761 = vmatpush.bf16.msra.mxu0 %v723
    %762 = vmatpush.bf16.msra.mxu0 %v722
    %763 = vmatpush.bf16.msra.mxu0 %v721
    %764 = vmatpush.bf16.msra.mxu0 %v720
    %765 = vmatmul.bf16.gmra.mxu0 %v614
    %v766 = vpop.f32.mrf.mxu0
    %v767 = vadd.f32 %v754, %v766
    %v768 = vpop.f32.mrf.mxu0
    %769 = vdwg.mxu0
    %v770 = vadd.f32 %v550, %v767
    %s771 = scalar_lea.vmem %s4, 96
    %v772 = vld [vmem:[%s771] sm:$0xff]
    %v773 = vld [vmem:[%s771 + $0x8] sm:$0xff]
    %v774 = vld [vmem:[%s771 + $0x10] sm:$0xff]
    %v775 = vld [vmem:[%s771 + $0x18] sm:$0xff]
    %s776 = scalar_lea.vmem %s3, 6
    %v777 = vld [vmem:[%s776] sm:$0x3]
    %v779 = vperm.slane %v777, 0
    %v780 = vperm.slane %v777, 1
    %v787 = vunpack.c.l.b16 %v772
    %v788 = vunpack.c.h.b16 %v772
    %v789 = vunpack.c.l.b16 %v773
    %v790 = vunpack.c.h.b16 %v773
    %v791 = vunpack.c.l.b16 %v774
    %v792 = vunpack.c.h.b16 %v774
    %v793 = vunpack.c.l.b16 %v775
    %v794 = vunpack.c.h.b16 %v775
    %v795 = vpack.c.b16 %v789, %v787
    %v796 = vpack.c.b16 %v790, %v788
    %v797 = vpack.c.b16 %v793, %v791
    %v798 = vpack.c.b16 %v794, %v792
    %803 = vmatpush.bf16.msra.mxu0 0
    %804 = vmatpush.bf16.msra.mxu0 0
    %805 = vmatpush.bf16.msra.mxu0 0
    %806 = vmatpush.bf16.msra.mxu0 0
    %807 = vmatpush.bf16.msra.mxu0 0
    %808 = vmatpush.bf16.msra.mxu0 0
    %809 = vmatpush.bf16.msra.mxu0 %v797
    %810 = vmatpush.bf16.msra.mxu0 %v795
    %811 = vmatmul.bf16.gmra.mxu0 %v150
    %v812 = vpop.f32.mrf.mxu0
    %v813 = vadd.f32 %v779, %v812
    %v814 = vpop.f32.mrf.mxu0
    %815 = vdwg.mxu0
    %816 = vmatpush.bf16.msra.mxu0 0
    %817 = vmatpush.bf16.msra.mxu0 0
    %818 = vmatpush.bf16.msra.mxu0 0
    %819 = vmatpush.bf16.msra.mxu0 0
    %820 = vmatpush.bf16.msra.mxu0 0
    %821 = vmatpush.bf16.msra.mxu0 0
    %822 = vmatpush.bf16.msra.mxu0 %v798
    %823 = vmatpush.bf16.msra.mxu0 %v796
    %824 = vmatmul.bf16.gmra.mxu0 %v150
    %v825 = vpop.f32.mrf.mxu0
    %v826 = vadd.f32 %v780, %v825
    %v827 = vpop.f32.mrf.mxu0
    %828 = vdwg.mxu0
    %v829 = vmax.f32 %v813, 0.0
    %v830 = vmax.f32 %v826, 0.0
    %v831 = vpack.c.bf16 %v829, %v829
    %v832 = vpack.c.bf16 %v830, %v830
    %s833 = scalar_lea.vmem %s5, 384
    %v834 = vld [vmem:[%s833] sm:$0xf]
    %v835 = vld [vmem:[%s833 + $0x4] sm:$0xf]
    %v836 = vld [vmem:[%s833 + $0x8] sm:$0xf]
    %v837 = vld [vmem:[%s833 + $0xc] sm:$0xf]
    %v838 = vld [vmem:[%s833 + $0x10] sm:$0xf]
    %v839 = vld [vmem:[%s833 + $0x14] sm:$0xf]
    %v840 = vld [vmem:[%s833 + $0x18] sm:$0xf]
    %v841 = vld [vmem:[%s833 + $0x1c] sm:$0xf]
    %v842 = vld [vmem:[%s833 + $0x20] sm:$0xf]
    %v843 = vld [vmem:[%s833 + $0x24] sm:$0xf]
    %v844 = vld [vmem:[%s833 + $0x28] sm:$0xf]
    %v845 = vld [vmem:[%s833 + $0x2c] sm:$0xf]
    %v846 = vld [vmem:[%s833 + $0x30] sm:$0xf]
    %v847 = vld [vmem:[%s833 + $0x34] sm:$0xf]
    %v848 = vld [vmem:[%s833 + $0x38] sm:$0xf]
    %v849 = vld [vmem:[%s833 + $0x3c] sm:$0xf]
    %v850 = vld [vmem:[%s833 + $0x40] sm:$0xf]
    %v851 = vld [vmem:[%s833 + $0x44] sm:$0xf]
    %v852 = vld [vmem:[%s833 + $0x48] sm:$0xf]
    %v853 = vld [vmem:[%s833 + $0x4c] sm:$0xf]
    %v854 = vld [vmem:[%s833 + $0x50] sm:$0xf]
    %v855 = vld [vmem:[%s833 + $0x54] sm:$0xf]
    %v856 = vld [vmem:[%s833 + $0x58] sm:$0xf]
    %v857 = vld [vmem:[%s833 + $0x5c] sm:$0xf]
    %v858 = vld [vmem:[%s833 + $0x60] sm:$0xf]
    %v859 = vld [vmem:[%s833 + $0x64] sm:$0xf]
    %v860 = vld [vmem:[%s833 + $0x68] sm:$0xf]
    %v861 = vld [vmem:[%s833 + $0x6c] sm:$0xf]
    %v862 = vld [vmem:[%s833 + $0x70] sm:$0xf]
    %v863 = vld [vmem:[%s833 + $0x74] sm:$0xf]
    %v864 = vld [vmem:[%s833 + $0x78] sm:$0xf]
    %v865 = vld [vmem:[%s833 + $0x7c] sm:$0xf]
    %v898 = vunpack.c.l.b16 %v834
    %v899 = vunpack.c.l.b16 %v835
    %v900 = vunpack.c.l.b16 %v836
    %v901 = vunpack.c.l.b16 %v837
    %v902 = vunpack.c.l.b16 %v838
    %v903 = vunpack.c.l.b16 %v839
    %v904 = vunpack.c.l.b16 %v840
    %v905 = vunpack.c.l.b16 %v841
    %v906 = vunpack.c.l.b16 %v842
    %v907 = vunpack.c.l.b16 %v843
    %v908 = vunpack.c.l.b16 %v844
    %v909 = vunpack.c.l.b16 %v845
    %v910 = vunpack.c.l.b16 %v846
    %v911 = vunpack.c.l.b16 %v847
    %v912 = vunpack.c.l.b16 %v848
    %v913 = vunpack.c.l.b16 %v849
    %v914 = vunpack.c.l.b16 %v850
    %v915 = vunpack.c.l.b16 %v851
    %v916 = vunpack.c.l.b16 %v852
    %v917 = vunpack.c.l.b16 %v853
    %v918 = vunpack.c.l.b16 %v854
    %v919 = vunpack.c.l.b16 %v855
    %v920 = vunpack.c.l.b16 %v856
    %v921 = vunpack.c.l.b16 %v857
    %v922 = vunpack.c.l.b16 %v858
    %v923 = vunpack.c.l.b16 %v859
    %v924 = vunpack.c.l.b16 %v860
    %v925 = vunpack.c.l.b16 %v861
    %v926 = vunpack.c.l.b16 %v862
    %v927 = vunpack.c.l.b16 %v863
    %v928 = vunpack.c.l.b16 %v864
    %v929 = vunpack.c.l.b16 %v865
    %v930 = vpack.c.b16 %v899, %v898
    %v931 = vpack.c.b16 %v901, %v900
    %v932 = vpack.c.b16 %v903, %v902
    %v933 = vpack.c.b16 %v905, %v904
    %v934 = vpack.c.b16 %v907, %v906
    %v935 = vpack.c.b16 %v909, %v908
    %v936 = vpack.c.b16 %v911, %v910
    %v937 = vpack.c.b16 %v913, %v912
    %v938 = vpack.c.b16 %v915, %v914
    %v939 = vpack.c.b16 %v917, %v916
    %v940 = vpack.c.b16 %v919, %v918
    %v941 = vpack.c.b16 %v921, %v920
    %v942 = vpack.c.b16 %v923, %v922
    %v943 = vpack.c.b16 %v925, %v924
    %v944 = vpack.c.b16 %v927, %v926
    %v945 = vpack.c.b16 %v929, %v928
    %962 = vmatpush.bf16.msra.mxu0 %v937
    %963 = vmatpush.bf16.msra.mxu0 %v936
    %964 = vmatpush.bf16.msra.mxu0 %v935
    %965 = vmatpush.bf16.msra.mxu0 %v934
    %966 = vmatpush.bf16.msra.mxu0 %v933
    %967 = vmatpush.bf16.msra.mxu0 %v932
    %968 = vmatpush.bf16.msra.mxu0 %v931
    %969 = vmatpush.bf16.msra.mxu0 %v930
    %970 = vmatmul.bf16.gmra.mxu0 %v831
    %v971 = vpop.f32.mrf.mxu0
    %v972 = vadd.f32 0.0, %v971
    %v973 = vpop.f32.mrf.mxu0
    %974 = vdwg.mxu0
    %975 = vmatpush.bf16.msra.mxu0 %v945
    %976 = vmatpush.bf16.msra.mxu0 %v944
    %977 = vmatpush.bf16.msra.mxu0 %v943
    %978 = vmatpush.bf16.msra.mxu0 %v942
    %979 = vmatpush.bf16.msra.mxu0 %v941
    %980 = vmatpush.bf16.msra.mxu0 %v940
    %981 = vmatpush.bf16.msra.mxu0 %v939
    %982 = vmatpush.bf16.msra.mxu0 %v938
    %983 = vmatmul.bf16.gmra.mxu0 %v832
    %v984 = vpop.f32.mrf.mxu0
    %v985 = vadd.f32 %v972, %v984
    %v986 = vpop.f32.mrf.mxu0
    %987 = vdwg.mxu0
    %v988 = vadd.f32 %v770, %v985
    %s989 = scalar_lea.vmem %s4, 128
    %v990 = vld [vmem:[%s989] sm:$0xff]
    %v991 = vld [vmem:[%s989 + $0x8] sm:$0xff]
    %v992 = vld [vmem:[%s989 + $0x10] sm:$0xff]
    %v993 = vld [vmem:[%s989 + $0x18] sm:$0xff]
    %s994 = scalar_lea.vmem %s3, 8
    %v995 = vld [vmem:[%s994] sm:$0x3]
    %v997 = vperm.slane %v995, 0
    %v998 = vperm.slane %v995, 1
    %v1005 = vunpack.c.l.b16 %v990
    %v1006 = vunpack.c.h.b16 %v990
    %v1007 = vunpack.c.l.b16 %v991
    %v1008 = vunpack.c.h.b16 %v991
    %v1009 = vunpack.c.l.b16 %v992
    %v1010 = vunpack.c.h.b16 %v992
    %v1011 = vunpack.c.l.b16 %v993
    %v1012 = vunpack.c.h.b16 %v993
    %v1013 = vpack.c.b16 %v1007, %v1005
    %v1014 = vpack.c.b16 %v1008, %v1006
    %v1015 = vpack.c.b16 %v1011, %v1009
    %v1016 = vpack.c.b16 %v1012, %v1010
    %1021 = vmatpush.bf16.msra.mxu0 0
    %1022 = vmatpush.bf16.msra.mxu0 0
    %1023 = vmatpush.bf16.msra.mxu0 0
    %1024 = vmatpush.bf16.msra.mxu0 0
    %1025 = vmatpush.bf16.msra.mxu0 0
    %1026 = vmatpush.bf16.msra.mxu0 0
    %1027 = vmatpush.bf16.msra.mxu0 %v1015
    %1028 = vmatpush.bf16.msra.mxu0 %v1013
    %1029 = vmatmul.bf16.gmra.mxu0 %v150
    %v1030 = vpop.f32.mrf.mxu0
    %v1031 = vadd.f32 %v997, %v1030
    %v1032 = vpop.f32.mrf.mxu0
    %1033 = vdwg.mxu0
    %1034 = vmatpush.bf16.msra.mxu0 0
    %1035 = vmatpush.bf16.msra.mxu0 0
    %1036 = vmatpush.bf16.msra.mxu0 0
    %1037 = vmatpush.bf16.msra.mxu0 0
    %1038 = vmatpush.bf16.msra.mxu0 0
    %1039 = vmatpush.bf16.msra.mxu0 0
    %1040 = vmatpush.bf16.msra.mxu0 %v1016
    %1041 = vmatpush.bf16.msra.mxu0 %v1014
    %1042 = vmatmul.bf16.gmra.mxu0 %v150
    %v1043 = vpop.f32.mrf.mxu0
    %v1044 = vadd.f32 %v998, %v1043
    %v1045 = vpop.f32.mrf.mxu0
    %1046 = vdwg.mxu0
    %v1047 = vmax.f32 %v1031, 0.0
    %v1048 = vmax.f32 %v1044, 0.0
    %v1049 = vpack.c.bf16 %v1047, %v1047
    %v1050 = vpack.c.bf16 %v1048, %v1048
    %s1051 = scalar_lea.vmem %s5, 512
    %v1052 = vld [vmem:[%s1051] sm:$0xf]
    %v1053 = vld [vmem:[%s1051 + $0x4] sm:$0xf]
    %v1054 = vld [vmem:[%s1051 + $0x8] sm:$0xf]
    %v1055 = vld [vmem:[%s1051 + $0xc] sm:$0xf]
    %v1056 = vld [vmem:[%s1051 + $0x10] sm:$0xf]
    %v1057 = vld [vmem:[%s1051 + $0x14] sm:$0xf]
    %v1058 = vld [vmem:[%s1051 + $0x18] sm:$0xf]
    %v1059 = vld [vmem:[%s1051 + $0x1c] sm:$0xf]
    %v1060 = vld [vmem:[%s1051 + $0x20] sm:$0xf]
    %v1061 = vld [vmem:[%s1051 + $0x24] sm:$0xf]
    %v1062 = vld [vmem:[%s1051 + $0x28] sm:$0xf]
    %v1063 = vld [vmem:[%s1051 + $0x2c] sm:$0xf]
    %v1064 = vld [vmem:[%s1051 + $0x30] sm:$0xf]
    %v1065 = vld [vmem:[%s1051 + $0x34] sm:$0xf]
    %v1066 = vld [vmem:[%s1051 + $0x38] sm:$0xf]
    %v1067 = vld [vmem:[%s1051 + $0x3c] sm:$0xf]
    %v1068 = vld [vmem:[%s1051 + $0x40] sm:$0xf]
    %v1069 = vld [vmem:[%s1051 + $0x44] sm:$0xf]
    %v1070 = vld [vmem:[%s1051 + $0x48] sm:$0xf]
    %v1071 = vld [vmem:[%s1051 + $0x4c] sm:$0xf]
    %v1072 = vld [vmem:[%s1051 + $0x50] sm:$0xf]
    %v1073 = vld [vmem:[%s1051 + $0x54] sm:$0xf]
    %v1074 = vld [vmem:[%s1051 + $0x58] sm:$0xf]
    %v1075 = vld [vmem:[%s1051 + $0x5c] sm:$0xf]
    %v1076 = vld [vmem:[%s1051 + $0x60] sm:$0xf]
    %v1077 = vld [vmem:[%s1051 + $0x64] sm:$0xf]
    %v1078 = vld [vmem:[%s1051 + $0x68] sm:$0xf]
    %v1079 = vld [vmem:[%s1051 + $0x6c] sm:$0xf]
    %v1080 = vld [vmem:[%s1051 + $0x70] sm:$0xf]
    %v1081 = vld [vmem:[%s1051 + $0x74] sm:$0xf]
    %v1082 = vld [vmem:[%s1051 + $0x78] sm:$0xf]
    %v1083 = vld [vmem:[%s1051 + $0x7c] sm:$0xf]
    %v1116 = vunpack.c.l.b16 %v1052
    %v1117 = vunpack.c.l.b16 %v1053
    %v1118 = vunpack.c.l.b16 %v1054
    %v1119 = vunpack.c.l.b16 %v1055
    %v1120 = vunpack.c.l.b16 %v1056
    %v1121 = vunpack.c.l.b16 %v1057
    %v1122 = vunpack.c.l.b16 %v1058
    %v1123 = vunpack.c.l.b16 %v1059
    %v1124 = vunpack.c.l.b16 %v1060
    %v1125 = vunpack.c.l.b16 %v1061
    %v1126 = vunpack.c.l.b16 %v1062
    %v1127 = vunpack.c.l.b16 %v1063
    %v1128 = vunpack.c.l.b16 %v1064
    %v1129 = vunpack.c.l.b16 %v1065
    %v1130 = vunpack.c.l.b16 %v1066
    %v1131 = vunpack.c.l.b16 %v1067
    %v1132 = vunpack.c.l.b16 %v1068
    %v1133 = vunpack.c.l.b16 %v1069
    %v1134 = vunpack.c.l.b16 %v1070
    %v1135 = vunpack.c.l.b16 %v1071
    %v1136 = vunpack.c.l.b16 %v1072
    %v1137 = vunpack.c.l.b16 %v1073
    %v1138 = vunpack.c.l.b16 %v1074
    %v1139 = vunpack.c.l.b16 %v1075
    %v1140 = vunpack.c.l.b16 %v1076
    %v1141 = vunpack.c.l.b16 %v1077
    %v1142 = vunpack.c.l.b16 %v1078
    %v1143 = vunpack.c.l.b16 %v1079
    %v1144 = vunpack.c.l.b16 %v1080
    %v1145 = vunpack.c.l.b16 %v1081
    %v1146 = vunpack.c.l.b16 %v1082
    %v1147 = vunpack.c.l.b16 %v1083
    %v1148 = vpack.c.b16 %v1117, %v1116
    %v1149 = vpack.c.b16 %v1119, %v1118
    %v1150 = vpack.c.b16 %v1121, %v1120
    %v1151 = vpack.c.b16 %v1123, %v1122
    %v1152 = vpack.c.b16 %v1125, %v1124
    %v1153 = vpack.c.b16 %v1127, %v1126
    %v1154 = vpack.c.b16 %v1129, %v1128
    %v1155 = vpack.c.b16 %v1131, %v1130
    %v1156 = vpack.c.b16 %v1133, %v1132
    %v1157 = vpack.c.b16 %v1135, %v1134
    %v1158 = vpack.c.b16 %v1137, %v1136
    %v1159 = vpack.c.b16 %v1139, %v1138
    %v1160 = vpack.c.b16 %v1141, %v1140
    %v1161 = vpack.c.b16 %v1143, %v1142
    %v1162 = vpack.c.b16 %v1145, %v1144
    %v1163 = vpack.c.b16 %v1147, %v1146
    %1180 = vmatpush.bf16.msra.mxu0 %v1155
    %1181 = vmatpush.bf16.msra.mxu0 %v1154
    %1182 = vmatpush.bf16.msra.mxu0 %v1153
    %1183 = vmatpush.bf16.msra.mxu0 %v1152
    %1184 = vmatpush.bf16.msra.mxu0 %v1151
    %1185 = vmatpush.bf16.msra.mxu0 %v1150
    %1186 = vmatpush.bf16.msra.mxu0 %v1149
    %1187 = vmatpush.bf16.msra.mxu0 %v1148
    %1188 = vmatmul.bf16.gmra.mxu0 %v1049
    %v1189 = vpop.f32.mrf.mxu0
    %v1190 = vadd.f32 0.0, %v1189
    %v1191 = vpop.f32.mrf.mxu0
    %1192 = vdwg.mxu0
    %1193 = vmatpush.bf16.msra.mxu0 %v1163
    %1194 = vmatpush.bf16.msra.mxu0 %v1162
    %1195 = vmatpush.bf16.msra.mxu0 %v1161
    %1196 = vmatpush.bf16.msra.mxu0 %v1160
    %1197 = vmatpush.bf16.msra.mxu0 %v1159
    %1198 = vmatpush.bf16.msra.mxu0 %v1158
    %1199 = vmatpush.bf16.msra.mxu0 %v1157
    %1200 = vmatpush.bf16.msra.mxu0 %v1156
    %1201 = vmatmul.bf16.gmra.mxu0 %v1050
    %v1202 = vpop.f32.mrf.mxu0
    %v1203 = vadd.f32 %v1190, %v1202
    %v1204 = vpop.f32.mrf.mxu0
    %1205 = vdwg.mxu0
    %v1206 = vadd.f32 %v988, %v1203
    %s1207 = scalar_lea.vmem %s4, 160
    %v1208 = vld [vmem:[%s1207] sm:$0xff]
    %v1209 = vld [vmem:[%s1207 + $0x8] sm:$0xff]
    %v1210 = vld [vmem:[%s1207 + $0x10] sm:$0xff]
    %v1211 = vld [vmem:[%s1207 + $0x18] sm:$0xff]
    %s1212 = scalar_lea.vmem %s3, 10
    %v1213 = vld [vmem:[%s1212] sm:$0x3]
    %v1215 = vperm.slane %v1213, 0
    %v1216 = vperm.slane %v1213, 1
    %v1223 = vunpack.c.l.b16 %v1208
    %v1224 = vunpack.c.h.b16 %v1208
    %v1225 = vunpack.c.l.b16 %v1209
    %v1226 = vunpack.c.h.b16 %v1209
    %v1227 = vunpack.c.l.b16 %v1210
    %v1228 = vunpack.c.h.b16 %v1210
    %v1229 = vunpack.c.l.b16 %v1211
    %v1230 = vunpack.c.h.b16 %v1211
    %v1231 = vpack.c.b16 %v1225, %v1223
    %v1232 = vpack.c.b16 %v1226, %v1224
    %v1233 = vpack.c.b16 %v1229, %v1227
    %v1234 = vpack.c.b16 %v1230, %v1228
    %1239 = vmatpush.bf16.msra.mxu0 0
    %1240 = vmatpush.bf16.msra.mxu0 0
    %1241 = vmatpush.bf16.msra.mxu0 0
    %1242 = vmatpush.bf16.msra.mxu0 0
    %1243 = vmatpush.bf16.msra.mxu0 0
    %1244 = vmatpush.bf16.msra.mxu0 0
    %1245 = vmatpush.bf16.msra.mxu0 %v1233
    %1246 = vmatpush.bf16.msra.mxu0 %v1231
    %1247 = vmatmul.bf16.gmra.mxu0 %v150
    %v1248 = vpop.f32.mrf.mxu0
    %v1249 = vadd.f32 %v1215, %v1248
    %v1250 = vpop.f32.mrf.mxu0
    %1251 = vdwg.mxu0
    %1252 = vmatpush.bf16.msra.mxu0 0
    %1253 = vmatpush.bf16.msra.mxu0 0
    %1254 = vmatpush.bf16.msra.mxu0 0
    %1255 = vmatpush.bf16.msra.mxu0 0
    %1256 = vmatpush.bf16.msra.mxu0 0
    %1257 = vmatpush.bf16.msra.mxu0 0
    %1258 = vmatpush.bf16.msra.mxu0 %v1234
    %1259 = vmatpush.bf16.msra.mxu0 %v1232
    %1260 = vmatmul.bf16.gmra.mxu0 %v150
    %v1261 = vpop.f32.mrf.mxu0
    %v1262 = vadd.f32 %v1216, %v1261
    %v1263 = vpop.f32.mrf.mxu0
    %1264 = vdwg.mxu0
    %v1265 = vmax.f32 %v1249, 0.0
    %v1266 = vmax.f32 %v1262, 0.0
    %v1267 = vpack.c.bf16 %v1265, %v1265
    %v1268 = vpack.c.bf16 %v1266, %v1266
    %s1269 = scalar_lea.vmem %s5, 640
    %v1270 = vld [vmem:[%s1269] sm:$0xf]
    %v1271 = vld [vmem:[%s1269 + $0x4] sm:$0xf]
    %v1272 = vld [vmem:[%s1269 + $0x8] sm:$0xf]
    %v1273 = vld [vmem:[%s1269 + $0xc] sm:$0xf]
    %v1274 = vld [vmem:[%s1269 + $0x10] sm:$0xf]
    %v1275 = vld [vmem:[%s1269 + $0x14] sm:$0xf]
    %v1276 = vld [vmem:[%s1269 + $0x18] sm:$0xf]
    %v1277 = vld [vmem:[%s1269 + $0x1c] sm:$0xf]
    %v1278 = vld [vmem:[%s1269 + $0x20] sm:$0xf]
    %v1279 = vld [vmem:[%s1269 + $0x24] sm:$0xf]
    %v1280 = vld [vmem:[%s1269 + $0x28] sm:$0xf]
    %v1281 = vld [vmem:[%s1269 + $0x2c] sm:$0xf]
    %v1282 = vld [vmem:[%s1269 + $0x30] sm:$0xf]
    %v1283 = vld [vmem:[%s1269 + $0x34] sm:$0xf]
    %v1284 = vld [vmem:[%s1269 + $0x38] sm:$0xf]
    %v1285 = vld [vmem:[%s1269 + $0x3c] sm:$0xf]
    %v1286 = vld [vmem:[%s1269 + $0x40] sm:$0xf]
    %v1287 = vld [vmem:[%s1269 + $0x44] sm:$0xf]
    %v1288 = vld [vmem:[%s1269 + $0x48] sm:$0xf]
    %v1289 = vld [vmem:[%s1269 + $0x4c] sm:$0xf]
    %v1290 = vld [vmem:[%s1269 + $0x50] sm:$0xf]
    %v1291 = vld [vmem:[%s1269 + $0x54] sm:$0xf]
    %v1292 = vld [vmem:[%s1269 + $0x58] sm:$0xf]
    %v1293 = vld [vmem:[%s1269 + $0x5c] sm:$0xf]
    %v1294 = vld [vmem:[%s1269 + $0x60] sm:$0xf]
    %v1295 = vld [vmem:[%s1269 + $0x64] sm:$0xf]
    %v1296 = vld [vmem:[%s1269 + $0x68] sm:$0xf]
    %v1297 = vld [vmem:[%s1269 + $0x6c] sm:$0xf]
    %v1298 = vld [vmem:[%s1269 + $0x70] sm:$0xf]
    %v1299 = vld [vmem:[%s1269 + $0x74] sm:$0xf]
    %v1300 = vld [vmem:[%s1269 + $0x78] sm:$0xf]
    %v1301 = vld [vmem:[%s1269 + $0x7c] sm:$0xf]
    %v1334 = vunpack.c.l.b16 %v1270
    %v1335 = vunpack.c.l.b16 %v1271
    %v1336 = vunpack.c.l.b16 %v1272
    %v1337 = vunpack.c.l.b16 %v1273
    %v1338 = vunpack.c.l.b16 %v1274
    %v1339 = vunpack.c.l.b16 %v1275
    %v1340 = vunpack.c.l.b16 %v1276
    %v1341 = vunpack.c.l.b16 %v1277
    %v1342 = vunpack.c.l.b16 %v1278
    %v1343 = vunpack.c.l.b16 %v1279
    %v1344 = vunpack.c.l.b16 %v1280
    %v1345 = vunpack.c.l.b16 %v1281
    %v1346 = vunpack.c.l.b16 %v1282
    %v1347 = vunpack.c.l.b16 %v1283
    %v1348 = vunpack.c.l.b16 %v1284
    %v1349 = vunpack.c.l.b16 %v1285
    %v1350 = vunpack.c.l.b16 %v1286
    %v1351 = vunpack.c.l.b16 %v1287
    %v1352 = vunpack.c.l.b16 %v1288
    %v1353 = vunpack.c.l.b16 %v1289
    %v1354 = vunpack.c.l.b16 %v1290
    %v1355 = vunpack.c.l.b16 %v1291
    %v1356 = vunpack.c.l.b16 %v1292
    %v1357 = vunpack.c.l.b16 %v1293
    %v1358 = vunpack.c.l.b16 %v1294
    %v1359 = vunpack.c.l.b16 %v1295
    %v1360 = vunpack.c.l.b16 %v1296
    %v1361 = vunpack.c.l.b16 %v1297
    %v1362 = vunpack.c.l.b16 %v1298
    %v1363 = vunpack.c.l.b16 %v1299
    %v1364 = vunpack.c.l.b16 %v1300
    %v1365 = vunpack.c.l.b16 %v1301
    %v1366 = vpack.c.b16 %v1335, %v1334
    %v1367 = vpack.c.b16 %v1337, %v1336
    %v1368 = vpack.c.b16 %v1339, %v1338
    %v1369 = vpack.c.b16 %v1341, %v1340
    %v1370 = vpack.c.b16 %v1343, %v1342
    %v1371 = vpack.c.b16 %v1345, %v1344
    %v1372 = vpack.c.b16 %v1347, %v1346
    %v1373 = vpack.c.b16 %v1349, %v1348
    %v1374 = vpack.c.b16 %v1351, %v1350
    %v1375 = vpack.c.b16 %v1353, %v1352
    %v1376 = vpack.c.b16 %v1355, %v1354
    %v1377 = vpack.c.b16 %v1357, %v1356
    %v1378 = vpack.c.b16 %v1359, %v1358
    %v1379 = vpack.c.b16 %v1361, %v1360
    %v1380 = vpack.c.b16 %v1363, %v1362
    %v1381 = vpack.c.b16 %v1365, %v1364
    %1398 = vmatpush.bf16.msra.mxu0 %v1373
    %1399 = vmatpush.bf16.msra.mxu0 %v1372
    %1400 = vmatpush.bf16.msra.mxu0 %v1371
    %1401 = vmatpush.bf16.msra.mxu0 %v1370
    %1402 = vmatpush.bf16.msra.mxu0 %v1369
    %1403 = vmatpush.bf16.msra.mxu0 %v1368
    %1404 = vmatpush.bf16.msra.mxu0 %v1367
    %1405 = vmatpush.bf16.msra.mxu0 %v1366
    %1406 = vmatmul.bf16.gmra.mxu0 %v1267
    %v1407 = vpop.f32.mrf.mxu0
    %v1408 = vadd.f32 0.0, %v1407
    %v1409 = vpop.f32.mrf.mxu0
    %1410 = vdwg.mxu0
    %1411 = vmatpush.bf16.msra.mxu0 %v1381
    %1412 = vmatpush.bf16.msra.mxu0 %v1380
    %1413 = vmatpush.bf16.msra.mxu0 %v1379
    %1414 = vmatpush.bf16.msra.mxu0 %v1378
    %1415 = vmatpush.bf16.msra.mxu0 %v1377
    %1416 = vmatpush.bf16.msra.mxu0 %v1376
    %1417 = vmatpush.bf16.msra.mxu0 %v1375
    %1418 = vmatpush.bf16.msra.mxu0 %v1374
    %1419 = vmatmul.bf16.gmra.mxu0 %v1268
    %v1420 = vpop.f32.mrf.mxu0
    %v1421 = vadd.f32 %v1408, %v1420
    %v1422 = vpop.f32.mrf.mxu0
    %1423 = vdwg.mxu0
    %v1424 = vadd.f32 %v1206, %v1421
    %s1425 = scalar_lea.vmem %s4, 192
    %v1426 = vld [vmem:[%s1425] sm:$0xff]
    %v1427 = vld [vmem:[%s1425 + $0x8] sm:$0xff]
    %v1428 = vld [vmem:[%s1425 + $0x10] sm:$0xff]
    %v1429 = vld [vmem:[%s1425 + $0x18] sm:$0xff]
    %s1430 = scalar_lea.vmem %s3, 12
    %v1431 = vld [vmem:[%s1430] sm:$0x3]
    %v1433 = vperm.slane %v1431, 0
    %v1434 = vperm.slane %v1431, 1
    %v1441 = vunpack.c.l.b16 %v1426
    %v1442 = vunpack.c.h.b16 %v1426
    %v1443 = vunpack.c.l.b16 %v1427
    %v1444 = vunpack.c.h.b16 %v1427
    %v1445 = vunpack.c.l.b16 %v1428
    %v1446 = vunpack.c.h.b16 %v1428
    %v1447 = vunpack.c.l.b16 %v1429
    %v1448 = vunpack.c.h.b16 %v1429
    %v1449 = vpack.c.b16 %v1443, %v1441
    %v1450 = vpack.c.b16 %v1444, %v1442
    %v1451 = vpack.c.b16 %v1447, %v1445
    %v1452 = vpack.c.b16 %v1448, %v1446
    %1457 = vmatpush.bf16.msra.mxu0 0
    %1458 = vmatpush.bf16.msra.mxu0 0
    %1459 = vmatpush.bf16.msra.mxu0 0
    %1460 = vmatpush.bf16.msra.mxu0 0
    %1461 = vmatpush.bf16.msra.mxu0 0
    %1462 = vmatpush.bf16.msra.mxu0 0
    %1463 = vmatpush.bf16.msra.mxu0 %v1451
    %1464 = vmatpush.bf16.msra.mxu0 %v1449
    %1465 = vmatmul.bf16.gmra.mxu0 %v150
    %v1466 = vpop.f32.mrf.mxu0
    %v1467 = vadd.f32 %v1433, %v1466
    %v1468 = vpop.f32.mrf.mxu0
    %1469 = vdwg.mxu0
    %1470 = vmatpush.bf16.msra.mxu0 0
    %1471 = vmatpush.bf16.msra.mxu0 0
    %1472 = vmatpush.bf16.msra.mxu0 0
    %1473 = vmatpush.bf16.msra.mxu0 0
    %1474 = vmatpush.bf16.msra.mxu0 0
    %1475 = vmatpush.bf16.msra.mxu0 0
    %1476 = vmatpush.bf16.msra.mxu0 %v1452
    %1477 = vmatpush.bf16.msra.mxu0 %v1450
    %1478 = vmatmul.bf16.gmra.mxu0 %v150
    %v1479 = vpop.f32.mrf.mxu0
    %v1480 = vadd.f32 %v1434, %v1479
    %v1481 = vpop.f32.mrf.mxu0
    %1482 = vdwg.mxu0
    %v1483 = vmax.f32 %v1467, 0.0
    %v1484 = vmax.f32 %v1480, 0.0
    %v1485 = vpack.c.bf16 %v1483, %v1483
    %v1486 = vpack.c.bf16 %v1484, %v1484
    %s1487 = scalar_lea.vmem %s5, 768
    %v1488 = vld [vmem:[%s1487] sm:$0xf]
    %v1489 = vld [vmem:[%s1487 + $0x4] sm:$0xf]
    %v1490 = vld [vmem:[%s1487 + $0x8] sm:$0xf]
    %v1491 = vld [vmem:[%s1487 + $0xc] sm:$0xf]
    %v1492 = vld [vmem:[%s1487 + $0x10] sm:$0xf]
    %v1493 = vld [vmem:[%s1487 + $0x14] sm:$0xf]
    %v1494 = vld [vmem:[%s1487 + $0x18] sm:$0xf]
    %v1495 = vld [vmem:[%s1487 + $0x1c] sm:$0xf]
    %v1496 = vld [vmem:[%s1487 + $0x20] sm:$0xf]
    %v1497 = vld [vmem:[%s1487 + $0x24] sm:$0xf]
    %v1498 = vld [vmem:[%s1487 + $0x28] sm:$0xf]
    %v1499 = vld [vmem:[%s1487 + $0x2c] sm:$0xf]
    %v1500 = vld [vmem:[%s1487 + $0x30] sm:$0xf]
    %v1501 = vld [vmem:[%s1487 + $0x34] sm:$0xf]
    %v1502 = vld [vmem:[%s1487 + $0x38] sm:$0xf]
    %v1503 = vld [vmem:[%s1487 + $0x3c] sm:$0xf]
    %v1504 = vld [vmem:[%s1487 + $0x40] sm:$0xf]
    %v1505 = vld [vmem:[%s1487 + $0x44] sm:$0xf]
    %v1506 = vld [vmem:[%s1487 + $0x48] sm:$0xf]
    %v1507 = vld [vmem:[%s1487 + $0x4c] sm:$0xf]
    %v1508 = vld [vmem:[%s1487 + $0x50] sm:$0xf]
    %v1509 = vld [vmem:[%s1487 + $0x54] sm:$0xf]
    %v1510 = vld [vmem:[%s1487 + $0x58] sm:$0xf]
    %v1511 = vld [vmem:[%s1487 + $0x5c] sm:$0xf]
    %v1512 = vld [vmem:[%s1487 + $0x60] sm:$0xf]
    %v1513 = vld [vmem:[%s1487 + $0x64] sm:$0xf]
    %v1514 = vld [vmem:[%s1487 + $0x68] sm:$0xf]
    %v1515 = vld [vmem:[%s1487 + $0x6c] sm:$0xf]
    %v1516 = vld [vmem:[%s1487 + $0x70] sm:$0xf]
    %v1517 = vld [vmem:[%s1487 + $0x74] sm:$0xf]
    %v1518 = vld [vmem:[%s1487 + $0x78] sm:$0xf]
    %v1519 = vld [vmem:[%s1487 + $0x7c] sm:$0xf]
    %v1552 = vunpack.c.l.b16 %v1488
    %v1553 = vunpack.c.l.b16 %v1489
    %v1554 = vunpack.c.l.b16 %v1490
    %v1555 = vunpack.c.l.b16 %v1491
    %v1556 = vunpack.c.l.b16 %v1492
    %v1557 = vunpack.c.l.b16 %v1493
    %v1558 = vunpack.c.l.b16 %v1494
    %v1559 = vunpack.c.l.b16 %v1495
    %v1560 = vunpack.c.l.b16 %v1496
    %v1561 = vunpack.c.l.b16 %v1497
    %v1562 = vunpack.c.l.b16 %v1498
    %v1563 = vunpack.c.l.b16 %v1499
    %v1564 = vunpack.c.l.b16 %v1500
    %v1565 = vunpack.c.l.b16 %v1501
    %v1566 = vunpack.c.l.b16 %v1502
    %v1567 = vunpack.c.l.b16 %v1503
    %v1568 = vunpack.c.l.b16 %v1504
    %v1569 = vunpack.c.l.b16 %v1505
    %v1570 = vunpack.c.l.b16 %v1506
    %v1571 = vunpack.c.l.b16 %v1507
    %v1572 = vunpack.c.l.b16 %v1508
    %v1573 = vunpack.c.l.b16 %v1509
    %v1574 = vunpack.c.l.b16 %v1510
    %v1575 = vunpack.c.l.b16 %v1511
    %v1576 = vunpack.c.l.b16 %v1512
    %v1577 = vunpack.c.l.b16 %v1513
    %v1578 = vunpack.c.l.b16 %v1514
    %v1579 = vunpack.c.l.b16 %v1515
    %v1580 = vunpack.c.l.b16 %v1516
    %v1581 = vunpack.c.l.b16 %v1517
    %v1582 = vunpack.c.l.b16 %v1518
    %v1583 = vunpack.c.l.b16 %v1519
    %v1584 = vpack.c.b16 %v1553, %v1552
    %v1585 = vpack.c.b16 %v1555, %v1554
    %v1586 = vpack.c.b16 %v1557, %v1556
    %v1587 = vpack.c.b16 %v1559, %v1558
    %v1588 = vpack.c.b16 %v1561, %v1560
    %v1589 = vpack.c.b16 %v1563, %v1562
    %v1590 = vpack.c.b16 %v1565, %v1564
    %v1591 = vpack.c.b16 %v1567, %v1566
    %v1592 = vpack.c.b16 %v1569, %v1568
    %v1593 = vpack.c.b16 %v1571, %v1570
    %v1594 = vpack.c.b16 %v1573, %v1572
    %v1595 = vpack.c.b16 %v1575, %v1574
    %v1596 = vpack.c.b16 %v1577, %v1576
    %v1597 = vpack.c.b16 %v1579, %v1578
    %v1598 = vpack.c.b16 %v1581, %v1580
    %v1599 = vpack.c.b16 %v1583, %v1582
    %1616 = vmatpush.bf16.msra.mxu0 %v1591
    %1617 = vmatpush.bf16.msra.mxu0 %v1590
    %1618 = vmatpush.bf16.msra.mxu0 %v1589
    %1619 = vmatpush.bf16.msra.mxu0 %v1588
    %1620 = vmatpush.bf16.msra.mxu0 %v1587
    %1621 = vmatpush.bf16.msra.mxu0 %v1586
    %1622 = vmatpush.bf16.msra.mxu0 %v1585
    %1623 = vmatpush.bf16.msra.mxu0 %v1584
    %1624 = vmatmul.bf16.gmra.mxu0 %v1485
    %v1625 = vpop.f32.mrf.mxu0
    %v1626 = vadd.f32 0.0, %v1625
    %v1627 = vpop.f32.mrf.mxu0
    %1628 = vdwg.mxu0
    %1629 = vmatpush.bf16.msra.mxu0 %v1599
    %1630 = vmatpush.bf16.msra.mxu0 %v1598
    %1631 = vmatpush.bf16.msra.mxu0 %v1597
    %1632 = vmatpush.bf16.msra.mxu0 %v1596
    %1633 = vmatpush.bf16.msra.mxu0 %v1595
    %1634 = vmatpush.bf16.msra.mxu0 %v1594
    %1635 = vmatpush.bf16.msra.mxu0 %v1593
    %1636 = vmatpush.bf16.msra.mxu0 %v1592
    %1637 = vmatmul.bf16.gmra.mxu0 %v1486
    %v1638 = vpop.f32.mrf.mxu0
    %v1639 = vadd.f32 %v1626, %v1638
    %v1640 = vpop.f32.mrf.mxu0
    %1641 = vdwg.mxu0
    %v1642 = vadd.f32 %v1424, %v1639
    %s1643 = scalar_lea.vmem %s4, 224
    %v1644 = vld [vmem:[%s1643] sm:$0xff]
    %v1645 = vld [vmem:[%s1643 + $0x8] sm:$0xff]
    %v1646 = vld [vmem:[%s1643 + $0x10] sm:$0xff]
    %v1647 = vld [vmem:[%s1643 + $0x18] sm:$0xff]
    %s1648 = scalar_lea.vmem %s3, 14
    %v1649 = vld [vmem:[%s1648] sm:$0x3]
    %v1651 = vperm.slane %v1649, 0
    %v1652 = vperm.slane %v1649, 1
    %v1659 = vunpack.c.l.b16 %v1644
    %v1660 = vunpack.c.h.b16 %v1644
    %v1661 = vunpack.c.l.b16 %v1645
    %v1662 = vunpack.c.h.b16 %v1645
    %v1663 = vunpack.c.l.b16 %v1646
    %v1664 = vunpack.c.h.b16 %v1646
    %v1665 = vunpack.c.l.b16 %v1647
    %v1666 = vunpack.c.h.b16 %v1647
    %v1667 = vpack.c.b16 %v1661, %v1659
    %v1668 = vpack.c.b16 %v1662, %v1660
    %v1669 = vpack.c.b16 %v1665, %v1663
    %v1670 = vpack.c.b16 %v1666, %v1664
    %1675 = vmatpush.bf16.msra.mxu0 0
    %1676 = vmatpush.bf16.msra.mxu0 0
    %1677 = vmatpush.bf16.msra.mxu0 0
    %1678 = vmatpush.bf16.msra.mxu0 0
    %1679 = vmatpush.bf16.msra.mxu0 0
    %1680 = vmatpush.bf16.msra.mxu0 0
    %1681 = vmatpush.bf16.msra.mxu0 %v1669
    %1682 = vmatpush.bf16.msra.mxu0 %v1667
    %1683 = vmatmul.bf16.gmra.mxu0 %v150
    %v1684 = vpop.f32.mrf.mxu0
    %v1685 = vadd.f32 %v1651, %v1684
    %v1686 = vpop.f32.mrf.mxu0
    %1687 = vdwg.mxu0
    %1688 = vmatpush.bf16.msra.mxu0 0
    %1689 = vmatpush.bf16.msra.mxu0 0
    %1690 = vmatpush.bf16.msra.mxu0 0
    %1691 = vmatpush.bf16.msra.mxu0 0
    %1692 = vmatpush.bf16.msra.mxu0 0
    %1693 = vmatpush.bf16.msra.mxu0 0
    %1694 = vmatpush.bf16.msra.mxu0 %v1670
    %1695 = vmatpush.bf16.msra.mxu0 %v1668
    %1696 = vmatmul.bf16.gmra.mxu0 %v150
    %v1697 = vpop.f32.mrf.mxu0
    %v1698 = vadd.f32 %v1652, %v1697
    %v1699 = vpop.f32.mrf.mxu0
    %1700 = vdwg.mxu0
    %v1701 = vmax.f32 %v1685, 0.0
    %v1702 = vmax.f32 %v1698, 0.0
    %v1703 = vpack.c.bf16 %v1701, %v1701
    %v1704 = vpack.c.bf16 %v1702, %v1702
    %s1705 = scalar_lea.vmem %s5, 896
    %v1706 = vld [vmem:[%s1705] sm:$0xf]
    %v1707 = vld [vmem:[%s1705 + $0x4] sm:$0xf]
    %v1708 = vld [vmem:[%s1705 + $0x8] sm:$0xf]
    %v1709 = vld [vmem:[%s1705 + $0xc] sm:$0xf]
    %v1710 = vld [vmem:[%s1705 + $0x10] sm:$0xf]
    %v1711 = vld [vmem:[%s1705 + $0x14] sm:$0xf]
    %v1712 = vld [vmem:[%s1705 + $0x18] sm:$0xf]
    %v1713 = vld [vmem:[%s1705 + $0x1c] sm:$0xf]
    %v1714 = vld [vmem:[%s1705 + $0x20] sm:$0xf]
    %v1715 = vld [vmem:[%s1705 + $0x24] sm:$0xf]
    %v1716 = vld [vmem:[%s1705 + $0x28] sm:$0xf]
    %v1717 = vld [vmem:[%s1705 + $0x2c] sm:$0xf]
    %v1718 = vld [vmem:[%s1705 + $0x30] sm:$0xf]
    %v1719 = vld [vmem:[%s1705 + $0x34] sm:$0xf]
    %v1720 = vld [vmem:[%s1705 + $0x38] sm:$0xf]
    %v1721 = vld [vmem:[%s1705 + $0x3c] sm:$0xf]
    %v1722 = vld [vmem:[%s1705 + $0x40] sm:$0xf]
    %v1723 = vld [vmem:[%s1705 + $0x44] sm:$0xf]
    %v1724 = vld [vmem:[%s1705 + $0x48] sm:$0xf]
    %v1725 = vld [vmem:[%s1705 + $0x4c] sm:$0xf]
    %v1726 = vld [vmem:[%s1705 + $0x50] sm:$0xf]
    %v1727 = vld [vmem:[%s1705 + $0x54] sm:$0xf]
    %v1728 = vld [vmem:[%s1705 + $0x58] sm:$0xf]
    %v1729 = vld [vmem:[%s1705 + $0x5c] sm:$0xf]
    %v1730 = vld [vmem:[%s1705 + $0x60] sm:$0xf]
    %v1731 = vld [vmem:[%s1705 + $0x64] sm:$0xf]
    %v1732 = vld [vmem:[%s1705 + $0x68] sm:$0xf]
    %v1733 = vld [vmem:[%s1705 + $0x6c] sm:$0xf]
    %v1734 = vld [vmem:[%s1705 + $0x70] sm:$0xf]
    %v1735 = vld [vmem:[%s1705 + $0x74] sm:$0xf]
    %v1736 = vld [vmem:[%s1705 + $0x78] sm:$0xf]
    %v1737 = vld [vmem:[%s1705 + $0x7c] sm:$0xf]
    %v1770 = vunpack.c.l.b16 %v1706
    %v1771 = vunpack.c.l.b16 %v1707
    %v1772 = vunpack.c.l.b16 %v1708
    %v1773 = vunpack.c.l.b16 %v1709
    %v1774 = vunpack.c.l.b16 %v1710
    %v1775 = vunpack.c.l.b16 %v1711
    %v1776 = vunpack.c.l.b16 %v1712
    %v1777 = vunpack.c.l.b16 %v1713
    %v1778 = vunpack.c.l.b16 %v1714
    %v1779 = vunpack.c.l.b16 %v1715
    %v1780 = vunpack.c.l.b16 %v1716
    %v1781 = vunpack.c.l.b16 %v1717
    %v1782 = vunpack.c.l.b16 %v1718
    %v1783 = vunpack.c.l.b16 %v1719
    %v1784 = vunpack.c.l.b16 %v1720
    %v1785 = vunpack.c.l.b16 %v1721
    %v1786 = vunpack.c.l.b16 %v1722
    %v1787 = vunpack.c.l.b16 %v1723
    %v1788 = vunpack.c.l.b16 %v1724
    %v1789 = vunpack.c.l.b16 %v1725
    %v1790 = vunpack.c.l.b16 %v1726
    %v1791 = vunpack.c.l.b16 %v1727
    %v1792 = vunpack.c.l.b16 %v1728
    %v1793 = vunpack.c.l.b16 %v1729
    %v1794 = vunpack.c.l.b16 %v1730
    %v1795 = vunpack.c.l.b16 %v1731
    %v1796 = vunpack.c.l.b16 %v1732
    %v1797 = vunpack.c.l.b16 %v1733
    %v1798 = vunpack.c.l.b16 %v1734
    %v1799 = vunpack.c.l.b16 %v1735
    %v1800 = vunpack.c.l.b16 %v1736
    %v1801 = vunpack.c.l.b16 %v1737
    %v1802 = vpack.c.b16 %v1771, %v1770
    %v1803 = vpack.c.b16 %v1773, %v1772
    %v1804 = vpack.c.b16 %v1775, %v1774
    %v1805 = vpack.c.b16 %v1777, %v1776
    %v1806 = vpack.c.b16 %v1779, %v1778
    %v1807 = vpack.c.b16 %v1781, %v1780
    %v1808 = vpack.c.b16 %v1783, %v1782
    %v1809 = vpack.c.b16 %v1785, %v1784
    %v1810 = vpack.c.b16 %v1787, %v1786
    %v1811 = vpack.c.b16 %v1789, %v1788
    %v1812 = vpack.c.b16 %v1791, %v1790
    %v1813 = vpack.c.b16 %v1793, %v1792
    %v1814 = vpack.c.b16 %v1795, %v1794
    %v1815 = vpack.c.b16 %v1797, %v1796
    %v1816 = vpack.c.b16 %v1799, %v1798
    %v1817 = vpack.c.b16 %v1801, %v1800
    %1834 = vmatpush.bf16.msra.mxu0 %v1809
    %1835 = vmatpush.bf16.msra.mxu0 %v1808
    %1836 = vmatpush.bf16.msra.mxu0 %v1807
    %1837 = vmatpush.bf16.msra.mxu0 %v1806
    %1838 = vmatpush.bf16.msra.mxu0 %v1805
    %1839 = vmatpush.bf16.msra.mxu0 %v1804
    %1840 = vmatpush.bf16.msra.mxu0 %v1803
    %1841 = vmatpush.bf16.msra.mxu0 %v1802
    %1842 = vmatmul.bf16.gmra.mxu0 %v1703
    %v1843 = vpop.f32.mrf.mxu0
    %v1844 = vadd.f32 0.0, %v1843
    %v1845 = vpop.f32.mrf.mxu0
    %1846 = vdwg.mxu0
    %1847 = vmatpush.bf16.msra.mxu0 %v1817
    %1848 = vmatpush.bf16.msra.mxu0 %v1816
    %1849 = vmatpush.bf16.msra.mxu0 %v1815
    %1850 = vmatpush.bf16.msra.mxu0 %v1814
    %1851 = vmatpush.bf16.msra.mxu0 %v1813
    %1852 = vmatpush.bf16.msra.mxu0 %v1812
    %1853 = vmatpush.bf16.msra.mxu0 %v1811
    %1854 = vmatpush.bf16.msra.mxu0 %v1810
    %1855 = vmatmul.bf16.gmra.mxu0 %v1704
    %v1856 = vpop.f32.mrf.mxu0
    %v1857 = vadd.f32 %v1844, %v1856
    %v1858 = vpop.f32.mrf.mxu0
    %1859 = vdwg.mxu0
    %v1860 = vadd.f32 %v1642, %v1857
    %v1861 = vperm.slane %v26, 4
    %v1862 = vadd.f32 %v1860, %v1861
    %v1863 = vadd.f32 %v117, %v1862
    %v1864 = vsel %vm60, %v1863, 0.0
    %1865 = vadd.xlane.f32.xlu0 %v1864
    %v1866 = vpop.xlane.xlu0 %1865
    %v1867 = vmul.f32 %v1866, %v94
    %v1868 = vsub.f32 %v1863, %v1867
    %v1869 = vmul.f32 %v1868, %v1868
    %v1870 = vsel %vm60, %v1869, 0.0
    %1871 = vadd.xlane.f32.xlu0 %v1870
    %v1872 = vpop.xlane.xlu0 %1871
    %v1873 = vmul.f32 %v1872, %v94
    %v1874 = vadd.f32 %v1873, 1e-05
    %v1875 = vrsqrt.pop %v1874
    %v1876 = vmul.f32 %v1875, %v1874
    %v1877 = vmul.f32 %v1876, %v1875
    %v1878 = vmul.f32 0.5, %v1877
    %v1879 = vsub.f32 1.5, %v1878
    %v1880 = vmul.f32 %v1875, %v1879
    %vm1881 = vweird.f32 %v1874
    %vm1882 = vweird.f32 %v1875
    %vm1883 = vmor %vm1881, %vm1882
    %v1884 = vsel %vm1883, %v1875, %v1880
    %v1885 = vmul.f32 %v1868, %v1884
    %v1886 = vperm.slane %v26, 5
    %v1887 = vmul.f32 %v1885, %v1886
    %v1888 = vperm.slane %v26, 6
    %v1889 = vadd.f32 %v1887, %v1888
    %v1890 = vld [vmem:[%s1 + $0x30] sm:$0xff]
    %v1891 = vld [vmem:[%s1 + $0x38] sm:$0xff]
    %v1892 = vld [vmem:[%s1 + $0x40] sm:$0xff]
    %v1893 = vld [vmem:[%s1 + $0x48] sm:$0xff]
    %v1894 = vperm.slane %v26, 7
    %v1896 = vsel %vm60, %v1889, 0
    %1898 = vmatpush.msra.mxu0 0.0
    %1899 = vmatpush.msra.mxu0 0.0
    %1900 = vmatpush.msra.mxu0 0.0
    %1901 = vmatpush.msra.mxu0 0.0
    %1902 = vmatpush.msra.mxu0 0.0
    %1903 = vmatpush.msra.mxu0 0.0
    %1904 = vmatpush.msra.mxu0 0.0
    %1905 = vmatpush.msra.mxu0 0.0
    %1906 = vmatpush.msra.mxu0 0.0
    %1907 = vmatpush.msra.mxu0 0.0
    %1908 = vmatpush.msra.mxu0 0.0
    %1909 = vmatpush.msra.mxu0 0.0
    %1910 = vmatpush.msra.mxu0 %v1893
    %1911 = vmatpush.msra.mxu0 %v1892
    %1912 = vmatpush.msra.mxu0 %v1891
    %1913 = vmatpush.msra.mxu0 %v1890
    %1914 = vmatmul.f32.gmra.mxu0 %v1896
    %v1915 = vpop.f32.mrf.mxu0
    %v1916 = vadd.f32 %v1894, %v1915
    %1917 = vdwg.mxu0
    %v1918 = vadd.f32 %v1889, %v1916
    %v1919 = vsel %vm60, %v1918, 0.0
    %1920 = vadd.xlane.f32.xlu0 %v1919
    %v1921 = vpop.xlane.xlu0 %1920
    %v1922 = vmul.f32 %v1921, %v94
    %v1923 = vsub.f32 %v1918, %v1922
    %v1924 = vmul.f32 %v1923, %v1923
    %v1925 = vsel %vm60, %v1924, 0.0
    %1926 = vadd.xlane.f32.xlu0 %v1925
    %v1927 = vpop.xlane.xlu0 %1926
    %v1928 = vmul.f32 %v1927, %v94
    %v1929 = vadd.f32 %v1928, 1e-05
    %v1930 = vrsqrt.pop %v1929
    %v1931 = vmul.f32 %v1930, %v1929
    %v1932 = vmul.f32 %v1931, %v1930
    %v1933 = vmul.f32 0.5, %v1932
    %v1934 = vsub.f32 1.5, %v1933
    %v1935 = vmul.f32 %v1930, %v1934
    %vm1936 = vweird.f32 %v1929
    %vm1937 = vweird.f32 %v1930
    %vm1938 = vmor %vm1936, %vm1937
    %v1939 = vsel %vm1938, %v1930, %v1935
    %v1940 = vmul.f32 %v1923, %v1939
    %v1941 = vperm.slane %v27, 0
    %v1942 = vmul.f32 %v1940, %v1941
    %v1943 = vperm.slane %v27, 1
    %v1944 = vadd.f32 %v1942, %v1943
    %v1945 = vpack.c.bf16 %v1944, %v1944
    %s1946 = scalar_lea.vmem %s4, 256
    %v1947 = vld [vmem:[%s1946] sm:$0xff]
    %v1948 = vld [vmem:[%s1946 + $0x8] sm:$0xff]
    %v1949 = vld [vmem:[%s1946 + $0x10] sm:$0xff]
    %v1950 = vld [vmem:[%s1946 + $0x18] sm:$0xff]
    %s1951 = scalar_lea.vmem %s3, 16
    %v1952 = vld [vmem:[%s1951] sm:$0x3]
    %v1954 = vperm.slane %v1952, 0
    %v1955 = vperm.slane %v1952, 1
    %v1962 = vunpack.c.l.b16 %v1947
    %v1963 = vunpack.c.h.b16 %v1947
    %v1964 = vunpack.c.l.b16 %v1948
    %v1965 = vunpack.c.h.b16 %v1948
    %v1966 = vunpack.c.l.b16 %v1949
    %v1967 = vunpack.c.h.b16 %v1949
    %v1968 = vunpack.c.l.b16 %v1950
    %v1969 = vunpack.c.h.b16 %v1950
    %v1970 = vpack.c.b16 %v1964, %v1962
    %v1971 = vpack.c.b16 %v1965, %v1963
    %v1972 = vpack.c.b16 %v1968, %v1966
    %v1973 = vpack.c.b16 %v1969, %v1967
    %v1979 = vsel %vm60, %v1945, 0
    %1981 = vmatpush.bf16.msra.mxu0 0
    %1982 = vmatpush.bf16.msra.mxu0 0
    %1983 = vmatpush.bf16.msra.mxu0 0
    %1984 = vmatpush.bf16.msra.mxu0 0
    %1985 = vmatpush.bf16.msra.mxu0 0
    %1986 = vmatpush.bf16.msra.mxu0 0
    %1987 = vmatpush.bf16.msra.mxu0 %v1972
    %1988 = vmatpush.bf16.msra.mxu0 %v1970
    %1989 = vmatmul.bf16.gmra.mxu0 %v1979
    %v1990 = vpop.f32.mrf.mxu0
    %v1991 = vadd.f32 %v1954, %v1990
    %v1992 = vpop.f32.mrf.mxu0
    %1993 = vdwg.mxu0
    %1994 = vmatpush.bf16.msra.mxu0 0
    %1995 = vmatpush.bf16.msra.mxu0 0
    %1996 = vmatpush.bf16.msra.mxu0 0
    %1997 = vmatpush.bf16.msra.mxu0 0
    %1998 = vmatpush.bf16.msra.mxu0 0
    %1999 = vmatpush.bf16.msra.mxu0 0
    %2000 = vmatpush.bf16.msra.mxu0 %v1973
    %2001 = vmatpush.bf16.msra.mxu0 %v1971
    %2002 = vmatmul.bf16.gmra.mxu0 %v1979
    %v2003 = vpop.f32.mrf.mxu0
    %v2004 = vadd.f32 %v1955, %v2003
    %v2005 = vpop.f32.mrf.mxu0
    %2006 = vdwg.mxu0
    %v2007 = vmax.f32 %v1991, 0.0
    %v2008 = vmax.f32 %v2004, 0.0
    %v2009 = vpack.c.bf16 %v2007, %v2007
    %v2010 = vpack.c.bf16 %v2008, %v2008
    %s2011 = scalar_lea.vmem %s5, 1024
    %v2012 = vld [vmem:[%s2011] sm:$0xf]
    %v2013 = vld [vmem:[%s2011 + $0x4] sm:$0xf]
    %v2014 = vld [vmem:[%s2011 + $0x8] sm:$0xf]
    %v2015 = vld [vmem:[%s2011 + $0xc] sm:$0xf]
    %v2016 = vld [vmem:[%s2011 + $0x10] sm:$0xf]
    %v2017 = vld [vmem:[%s2011 + $0x14] sm:$0xf]
    %v2018 = vld [vmem:[%s2011 + $0x18] sm:$0xf]
    %v2019 = vld [vmem:[%s2011 + $0x1c] sm:$0xf]
    %v2020 = vld [vmem:[%s2011 + $0x20] sm:$0xf]
    %v2021 = vld [vmem:[%s2011 + $0x24] sm:$0xf]
    %v2022 = vld [vmem:[%s2011 + $0x28] sm:$0xf]
    %v2023 = vld [vmem:[%s2011 + $0x2c] sm:$0xf]
    %v2024 = vld [vmem:[%s2011 + $0x30] sm:$0xf]
    %v2025 = vld [vmem:[%s2011 + $0x34] sm:$0xf]
    %v2026 = vld [vmem:[%s2011 + $0x38] sm:$0xf]
    %v2027 = vld [vmem:[%s2011 + $0x3c] sm:$0xf]
    %v2028 = vld [vmem:[%s2011 + $0x40] sm:$0xf]
    %v2029 = vld [vmem:[%s2011 + $0x44] sm:$0xf]
    %v2030 = vld [vmem:[%s2011 + $0x48] sm:$0xf]
    %v2031 = vld [vmem:[%s2011 + $0x4c] sm:$0xf]
    %v2032 = vld [vmem:[%s2011 + $0x50] sm:$0xf]
    %v2033 = vld [vmem:[%s2011 + $0x54] sm:$0xf]
    %v2034 = vld [vmem:[%s2011 + $0x58] sm:$0xf]
    %v2035 = vld [vmem:[%s2011 + $0x5c] sm:$0xf]
    %v2036 = vld [vmem:[%s2011 + $0x60] sm:$0xf]
    %v2037 = vld [vmem:[%s2011 + $0x64] sm:$0xf]
    %v2038 = vld [vmem:[%s2011 + $0x68] sm:$0xf]
    %v2039 = vld [vmem:[%s2011 + $0x6c] sm:$0xf]
    %v2040 = vld [vmem:[%s2011 + $0x70] sm:$0xf]
    %v2041 = vld [vmem:[%s2011 + $0x74] sm:$0xf]
    %v2042 = vld [vmem:[%s2011 + $0x78] sm:$0xf]
    %v2043 = vld [vmem:[%s2011 + $0x7c] sm:$0xf]
    %s2044 = scalar_lea.vmem %s4, 288
    %v2045 = vld [vmem:[%s2044] sm:$0xff]
    %v2046 = vld [vmem:[%s2044 + $0x8] sm:$0xff]
    %v2047 = vld [vmem:[%s2044 + $0x10] sm:$0xff]
    %v2048 = vld [vmem:[%s2044 + $0x18] sm:$0xff]
    %s2049 = scalar_lea.vmem %s3, 18
    %v2050 = vld [vmem:[%s2049] sm:$0x3]
    %v2052 = vperm.slane %v2050, 0
    %v2053 = vperm.slane %v2050, 1
    %v2060 = vunpack.c.l.b16 %v2045
    %v2061 = vunpack.c.h.b16 %v2045
    %v2062 = vunpack.c.l.b16 %v2046
    %v2063 = vunpack.c.h.b16 %v2046
    %v2064 = vunpack.c.l.b16 %v2047
    %v2065 = vunpack.c.h.b16 %v2047
    %v2066 = vunpack.c.l.b16 %v2048
    %v2067 = vunpack.c.h.b16 %v2048
    %v2068 = vpack.c.b16 %v2062, %v2060
    %v2069 = vpack.c.b16 %v2063, %v2061
    %v2070 = vpack.c.b16 %v2066, %v2064
    %v2071 = vpack.c.b16 %v2067, %v2065
    %2076 = vmatpush.bf16.msra.mxu0 0
    %2077 = vmatpush.bf16.msra.mxu0 0
    %2078 = vmatpush.bf16.msra.mxu0 0
    %2079 = vmatpush.bf16.msra.mxu0 0
    %2080 = vmatpush.bf16.msra.mxu0 0
    %2081 = vmatpush.bf16.msra.mxu0 0
    %2082 = vmatpush.bf16.msra.mxu0 %v2070
    %2083 = vmatpush.bf16.msra.mxu0 %v2068
    %2084 = vmatmul.bf16.gmra.mxu0 %v1979
    %v2085 = vpop.f32.mrf.mxu0
    %v2086 = vadd.f32 %v2052, %v2085
    %v2087 = vpop.f32.mrf.mxu0
    %2088 = vdwg.mxu0
    %2089 = vmatpush.bf16.msra.mxu0 0
    %2090 = vmatpush.bf16.msra.mxu0 0
    %2091 = vmatpush.bf16.msra.mxu0 0
    %2092 = vmatpush.bf16.msra.mxu0 0
    %2093 = vmatpush.bf16.msra.mxu0 0
    %2094 = vmatpush.bf16.msra.mxu0 0
    %2095 = vmatpush.bf16.msra.mxu0 %v2071
    %2096 = vmatpush.bf16.msra.mxu0 %v2069
    %2097 = vmatmul.bf16.gmra.mxu0 %v1979
    %v2098 = vpop.f32.mrf.mxu0
    %v2099 = vadd.f32 %v2053, %v2098
    %v2100 = vpop.f32.mrf.mxu0
    %2101 = vdwg.mxu0
    %v2102 = vmax.f32 %v2086, 0.0
    %v2103 = vmax.f32 %v2099, 0.0
    %v2104 = vpack.c.bf16 %v2102, %v2102
    %v2105 = vpack.c.bf16 %v2103, %v2103
    %s2106 = scalar_lea.vmem %s5, 1152
    %v2107 = vld [vmem:[%s2106] sm:$0xf]
    %v2108 = vld [vmem:[%s2106 + $0x4] sm:$0xf]
    %v2109 = vld [vmem:[%s2106 + $0x8] sm:$0xf]
    %v2110 = vld [vmem:[%s2106 + $0xc] sm:$0xf]
    %v2111 = vld [vmem:[%s2106 + $0x10] sm:$0xf]
    %v2112 = vld [vmem:[%s2106 + $0x14] sm:$0xf]
    %v2113 = vld [vmem:[%s2106 + $0x18] sm:$0xf]
    %v2114 = vld [vmem:[%s2106 + $0x1c] sm:$0xf]
    %v2115 = vld [vmem:[%s2106 + $0x20] sm:$0xf]
    %v2116 = vld [vmem:[%s2106 + $0x24] sm:$0xf]
    %v2117 = vld [vmem:[%s2106 + $0x28] sm:$0xf]
    %v2118 = vld [vmem:[%s2106 + $0x2c] sm:$0xf]
    %v2119 = vld [vmem:[%s2106 + $0x30] sm:$0xf]
    %v2120 = vld [vmem:[%s2106 + $0x34] sm:$0xf]
    %v2121 = vld [vmem:[%s2106 + $0x38] sm:$0xf]
    %v2122 = vld [vmem:[%s2106 + $0x3c] sm:$0xf]
    %v2123 = vld [vmem:[%s2106 + $0x40] sm:$0xf]
    %v2124 = vld [vmem:[%s2106 + $0x44] sm:$0xf]
    %v2125 = vld [vmem:[%s2106 + $0x48] sm:$0xf]
    %v2126 = vld [vmem:[%s2106 + $0x4c] sm:$0xf]
    %v2127 = vld [vmem:[%s2106 + $0x50] sm:$0xf]
    %v2128 = vld [vmem:[%s2106 + $0x54] sm:$0xf]
    %v2129 = vld [vmem:[%s2106 + $0x58] sm:$0xf]
    %v2130 = vld [vmem:[%s2106 + $0x5c] sm:$0xf]
    %v2131 = vld [vmem:[%s2106 + $0x60] sm:$0xf]
    %v2132 = vld [vmem:[%s2106 + $0x64] sm:$0xf]
    %v2133 = vld [vmem:[%s2106 + $0x68] sm:$0xf]
    %v2134 = vld [vmem:[%s2106 + $0x6c] sm:$0xf]
    %v2135 = vld [vmem:[%s2106 + $0x70] sm:$0xf]
    %v2136 = vld [vmem:[%s2106 + $0x74] sm:$0xf]
    %v2137 = vld [vmem:[%s2106 + $0x78] sm:$0xf]
    %v2138 = vld [vmem:[%s2106 + $0x7c] sm:$0xf]
    %v2171 = vunpack.c.l.b16 %v2107
    %v2172 = vunpack.c.l.b16 %v2108
    %v2173 = vunpack.c.l.b16 %v2109
    %v2174 = vunpack.c.l.b16 %v2110
    %v2175 = vunpack.c.l.b16 %v2111
    %v2176 = vunpack.c.l.b16 %v2112
    %v2177 = vunpack.c.l.b16 %v2113
    %v2178 = vunpack.c.l.b16 %v2114
    %v2179 = vunpack.c.l.b16 %v2115
    %v2180 = vunpack.c.l.b16 %v2116
    %v2181 = vunpack.c.l.b16 %v2117
    %v2182 = vunpack.c.l.b16 %v2118
    %v2183 = vunpack.c.l.b16 %v2119
    %v2184 = vunpack.c.l.b16 %v2120
    %v2185 = vunpack.c.l.b16 %v2121
    %v2186 = vunpack.c.l.b16 %v2122
    %v2187 = vunpack.c.l.b16 %v2123
    %v2188 = vunpack.c.l.b16 %v2124
    %v2189 = vunpack.c.l.b16 %v2125
    %v2190 = vunpack.c.l.b16 %v2126
    %v2191 = vunpack.c.l.b16 %v2127
    %v2192 = vunpack.c.l.b16 %v2128
    %v2193 = vunpack.c.l.b16 %v2129
    %v2194 = vunpack.c.l.b16 %v2130
    %v2195 = vunpack.c.l.b16 %v2131
    %v2196 = vunpack.c.l.b16 %v2132
    %v2197 = vunpack.c.l.b16 %v2133
    %v2198 = vunpack.c.l.b16 %v2134
    %v2199 = vunpack.c.l.b16 %v2135
    %v2200 = vunpack.c.l.b16 %v2136
    %v2201 = vunpack.c.l.b16 %v2137
    %v2202 = vunpack.c.l.b16 %v2138
    %v2203 = vpack.c.b16 %v2172, %v2171
    %v2204 = vpack.c.b16 %v2174, %v2173
    %v2205 = vpack.c.b16 %v2176, %v2175
    %v2206 = vpack.c.b16 %v2178, %v2177
    %v2207 = vpack.c.b16 %v2180, %v2179
    %v2208 = vpack.c.b16 %v2182, %v2181
    %v2209 = vpack.c.b16 %v2184, %v2183
    %v2210 = vpack.c.b16 %v2186, %v2185
    %v2211 = vpack.c.b16 %v2188, %v2187
    %v2212 = vpack.c.b16 %v2190, %v2189
    %v2213 = vpack.c.b16 %v2192, %v2191
    %v2214 = vpack.c.b16 %v2194, %v2193
    %v2215 = vpack.c.b16 %v2196, %v2195
    %v2216 = vpack.c.b16 %v2198, %v2197
    %v2217 = vpack.c.b16 %v2200, %v2199
    %v2218 = vpack.c.b16 %v2202, %v2201
    %2235 = vmatpush.bf16.msra.mxu0 %v2210
    %2236 = vmatpush.bf16.msra.mxu0 %v2209
    %2237 = vmatpush.bf16.msra.mxu0 %v2208
    %2238 = vmatpush.bf16.msra.mxu0 %v2207
    %2239 = vmatpush.bf16.msra.mxu0 %v2206
    %2240 = vmatpush.bf16.msra.mxu0 %v2205
    %2241 = vmatpush.bf16.msra.mxu0 %v2204
    %2242 = vmatpush.bf16.msra.mxu0 %v2203
    %2243 = vmatmul.bf16.gmra.mxu0 %v2104
    %v2244 = vpop.f32.mrf.mxu0
    %v2245 = vadd.f32 0.0, %v2244
    %v2246 = vpop.f32.mrf.mxu0
    %2247 = vdwg.mxu0
    %2248 = vmatpush.bf16.msra.mxu0 %v2218
    %2249 = vmatpush.bf16.msra.mxu0 %v2217
    %2250 = vmatpush.bf16.msra.mxu0 %v2216
    %2251 = vmatpush.bf16.msra.mxu0 %v2215
    %2252 = vmatpush.bf16.msra.mxu0 %v2214
    %2253 = vmatpush.bf16.msra.mxu0 %v2213
    %2254 = vmatpush.bf16.msra.mxu0 %v2212
    %2255 = vmatpush.bf16.msra.mxu0 %v2211
    %2256 = vmatmul.bf16.gmra.mxu0 %v2105
    %v2257 = vpop.f32.mrf.mxu0
    %v2258 = vadd.f32 %v2245, %v2257
    %v2259 = vpop.f32.mrf.mxu0
    %2260 = vdwg.mxu0
    %v2293 = vunpack.c.l.b16 %v2012
    %v2294 = vunpack.c.l.b16 %v2013
    %v2295 = vunpack.c.l.b16 %v2014
    %v2296 = vunpack.c.l.b16 %v2015
    %v2297 = vunpack.c.l.b16 %v2016
    %v2298 = vunpack.c.l.b16 %v2017
    %v2299 = vunpack.c.l.b16 %v2018
    %v2300 = vunpack.c.l.b16 %v2019
    %v2301 = vunpack.c.l.b16 %v2020
    %v2302 = vunpack.c.l.b16 %v2021
    %v2303 = vunpack.c.l.b16 %v2022
    %v2304 = vunpack.c.l.b16 %v2023
    %v2305 = vunpack.c.l.b16 %v2024
    %v2306 = vunpack.c.l.b16 %v2025
    %v2307 = vunpack.c.l.b16 %v2026
    %v2308 = vunpack.c.l.b16 %v2027
    %v2309 = vunpack.c.l.b16 %v2028
    %v2310 = vunpack.c.l.b16 %v2029
    %v2311 = vunpack.c.l.b16 %v2030
    %v2312 = vunpack.c.l.b16 %v2031
    %v2313 = vunpack.c.l.b16 %v2032
    %v2314 = vunpack.c.l.b16 %v2033
    %v2315 = vunpack.c.l.b16 %v2034
    %v2316 = vunpack.c.l.b16 %v2035
    %v2317 = vunpack.c.l.b16 %v2036
    %v2318 = vunpack.c.l.b16 %v2037
    %v2319 = vunpack.c.l.b16 %v2038
    %v2320 = vunpack.c.l.b16 %v2039
    %v2321 = vunpack.c.l.b16 %v2040
    %v2322 = vunpack.c.l.b16 %v2041
    %v2323 = vunpack.c.l.b16 %v2042
    %v2324 = vunpack.c.l.b16 %v2043
    %v2325 = vpack.c.b16 %v2294, %v2293
    %v2326 = vpack.c.b16 %v2296, %v2295
    %v2327 = vpack.c.b16 %v2298, %v2297
    %v2328 = vpack.c.b16 %v2300, %v2299
    %v2329 = vpack.c.b16 %v2302, %v2301
    %v2330 = vpack.c.b16 %v2304, %v2303
    %v2331 = vpack.c.b16 %v2306, %v2305
    %v2332 = vpack.c.b16 %v2308, %v2307
    %v2333 = vpack.c.b16 %v2310, %v2309
    %v2334 = vpack.c.b16 %v2312, %v2311
    %v2335 = vpack.c.b16 %v2314, %v2313
    %v2336 = vpack.c.b16 %v2316, %v2315
    %v2337 = vpack.c.b16 %v2318, %v2317
    %v2338 = vpack.c.b16 %v2320, %v2319
    %v2339 = vpack.c.b16 %v2322, %v2321
    %v2340 = vpack.c.b16 %v2324, %v2323
    %2357 = vmatpush.bf16.msra.mxu0 %v2332
    %2358 = vmatpush.bf16.msra.mxu0 %v2331
    %2359 = vmatpush.bf16.msra.mxu0 %v2330
    %2360 = vmatpush.bf16.msra.mxu0 %v2329
    %2361 = vmatpush.bf16.msra.mxu0 %v2328
    %2362 = vmatpush.bf16.msra.mxu0 %v2327
    %2363 = vmatpush.bf16.msra.mxu0 %v2326
    %2364 = vmatpush.bf16.msra.mxu0 %v2325
    %2365 = vmatmul.bf16.gmra.mxu0 %v2009
    %v2366 = vpop.f32.mrf.mxu0
    %v2367 = vadd.f32 %v2258, %v2366
    %v2368 = vpop.f32.mrf.mxu0
    %2369 = vdwg.mxu0
    %2370 = vmatpush.bf16.msra.mxu0 %v2340
    %2371 = vmatpush.bf16.msra.mxu0 %v2339
    %2372 = vmatpush.bf16.msra.mxu0 %v2338
    %2373 = vmatpush.bf16.msra.mxu0 %v2337
    %2374 = vmatpush.bf16.msra.mxu0 %v2336
    %2375 = vmatpush.bf16.msra.mxu0 %v2335
    %2376 = vmatpush.bf16.msra.mxu0 %v2334
    %2377 = vmatpush.bf16.msra.mxu0 %v2333
    %2378 = vmatmul.bf16.gmra.mxu0 %v2010
    %v2379 = vpop.f32.mrf.mxu0
    %v2380 = vadd.f32 %v2367, %v2379
    %v2381 = vpop.f32.mrf.mxu0
    %2382 = vdwg.mxu0
    %s2383 = scalar_lea.vmem %s4, 320
    %v2384 = vld [vmem:[%s2383] sm:$0xff]
    %v2385 = vld [vmem:[%s2383 + $0x8] sm:$0xff]
    %v2386 = vld [vmem:[%s2383 + $0x10] sm:$0xff]
    %v2387 = vld [vmem:[%s2383 + $0x18] sm:$0xff]
    %s2388 = scalar_lea.vmem %s3, 20
    %v2389 = vld [vmem:[%s2388] sm:$0x3]
    %v2391 = vperm.slane %v2389, 0
    %v2392 = vperm.slane %v2389, 1
    %v2399 = vunpack.c.l.b16 %v2384
    %v2400 = vunpack.c.h.b16 %v2384
    %v2401 = vunpack.c.l.b16 %v2385
    %v2402 = vunpack.c.h.b16 %v2385
    %v2403 = vunpack.c.l.b16 %v2386
    %v2404 = vunpack.c.h.b16 %v2386
    %v2405 = vunpack.c.l.b16 %v2387
    %v2406 = vunpack.c.h.b16 %v2387
    %v2407 = vpack.c.b16 %v2401, %v2399
    %v2408 = vpack.c.b16 %v2402, %v2400
    %v2409 = vpack.c.b16 %v2405, %v2403
    %v2410 = vpack.c.b16 %v2406, %v2404
    %2415 = vmatpush.bf16.msra.mxu0 0
    %2416 = vmatpush.bf16.msra.mxu0 0
    %2417 = vmatpush.bf16.msra.mxu0 0
    %2418 = vmatpush.bf16.msra.mxu0 0
    %2419 = vmatpush.bf16.msra.mxu0 0
    %2420 = vmatpush.bf16.msra.mxu0 0
    %2421 = vmatpush.bf16.msra.mxu0 %v2409
    %2422 = vmatpush.bf16.msra.mxu0 %v2407
    %2423 = vmatmul.bf16.gmra.mxu0 %v1979
    %v2424 = vpop.f32.mrf.mxu0
    %v2425 = vadd.f32 %v2391, %v2424
    %v2426 = vpop.f32.mrf.mxu0
    %2427 = vdwg.mxu0
    %2428 = vmatpush.bf16.msra.mxu0 0
    %2429 = vmatpush.bf16.msra.mxu0 0
    %2430 = vmatpush.bf16.msra.mxu0 0
    %2431 = vmatpush.bf16.msra.mxu0 0
    %2432 = vmatpush.bf16.msra.mxu0 0
    %2433 = vmatpush.bf16.msra.mxu0 0
    %2434 = vmatpush.bf16.msra.mxu0 %v2410
    %2435 = vmatpush.bf16.msra.mxu0 %v2408
    %2436 = vmatmul.bf16.gmra.mxu0 %v1979
    %v2437 = vpop.f32.mrf.mxu0
    %v2438 = vadd.f32 %v2392, %v2437
    %v2439 = vpop.f32.mrf.mxu0
    %2440 = vdwg.mxu0
    %v2441 = vmax.f32 %v2425, 0.0
    %v2442 = vmax.f32 %v2438, 0.0
    %v2443 = vpack.c.bf16 %v2441, %v2441
    %v2444 = vpack.c.bf16 %v2442, %v2442
    %s2445 = scalar_lea.vmem %s5, 1280
    %v2446 = vld [vmem:[%s2445] sm:$0xf]
    %v2447 = vld [vmem:[%s2445 + $0x4] sm:$0xf]
    %v2448 = vld [vmem:[%s2445 + $0x8] sm:$0xf]
    %v2449 = vld [vmem:[%s2445 + $0xc] sm:$0xf]
    %v2450 = vld [vmem:[%s2445 + $0x10] sm:$0xf]
    %v2451 = vld [vmem:[%s2445 + $0x14] sm:$0xf]
    %v2452 = vld [vmem:[%s2445 + $0x18] sm:$0xf]
    %v2453 = vld [vmem:[%s2445 + $0x1c] sm:$0xf]
    %v2454 = vld [vmem:[%s2445 + $0x20] sm:$0xf]
    %v2455 = vld [vmem:[%s2445 + $0x24] sm:$0xf]
    %v2456 = vld [vmem:[%s2445 + $0x28] sm:$0xf]
    %v2457 = vld [vmem:[%s2445 + $0x2c] sm:$0xf]
    %v2458 = vld [vmem:[%s2445 + $0x30] sm:$0xf]
    %v2459 = vld [vmem:[%s2445 + $0x34] sm:$0xf]
    %v2460 = vld [vmem:[%s2445 + $0x38] sm:$0xf]
    %v2461 = vld [vmem:[%s2445 + $0x3c] sm:$0xf]
    %v2462 = vld [vmem:[%s2445 + $0x40] sm:$0xf]
    %v2463 = vld [vmem:[%s2445 + $0x44] sm:$0xf]
    %v2464 = vld [vmem:[%s2445 + $0x48] sm:$0xf]
    %v2465 = vld [vmem:[%s2445 + $0x4c] sm:$0xf]
    %v2466 = vld [vmem:[%s2445 + $0x50] sm:$0xf]
    %v2467 = vld [vmem:[%s2445 + $0x54] sm:$0xf]
    %v2468 = vld [vmem:[%s2445 + $0x58] sm:$0xf]
    %v2469 = vld [vmem:[%s2445 + $0x5c] sm:$0xf]
    %v2470 = vld [vmem:[%s2445 + $0x60] sm:$0xf]
    %v2471 = vld [vmem:[%s2445 + $0x64] sm:$0xf]
    %v2472 = vld [vmem:[%s2445 + $0x68] sm:$0xf]
    %v2473 = vld [vmem:[%s2445 + $0x6c] sm:$0xf]
    %v2474 = vld [vmem:[%s2445 + $0x70] sm:$0xf]
    %v2475 = vld [vmem:[%s2445 + $0x74] sm:$0xf]
    %v2476 = vld [vmem:[%s2445 + $0x78] sm:$0xf]
    %v2477 = vld [vmem:[%s2445 + $0x7c] sm:$0xf]
    %v2510 = vunpack.c.l.b16 %v2446
    %v2511 = vunpack.c.l.b16 %v2447
    %v2512 = vunpack.c.l.b16 %v2448
    %v2513 = vunpack.c.l.b16 %v2449
    %v2514 = vunpack.c.l.b16 %v2450
    %v2515 = vunpack.c.l.b16 %v2451
    %v2516 = vunpack.c.l.b16 %v2452
    %v2517 = vunpack.c.l.b16 %v2453
    %v2518 = vunpack.c.l.b16 %v2454
    %v2519 = vunpack.c.l.b16 %v2455
    %v2520 = vunpack.c.l.b16 %v2456
    %v2521 = vunpack.c.l.b16 %v2457
    %v2522 = vunpack.c.l.b16 %v2458
    %v2523 = vunpack.c.l.b16 %v2459
    %v2524 = vunpack.c.l.b16 %v2460
    %v2525 = vunpack.c.l.b16 %v2461
    %v2526 = vunpack.c.l.b16 %v2462
    %v2527 = vunpack.c.l.b16 %v2463
    %v2528 = vunpack.c.l.b16 %v2464
    %v2529 = vunpack.c.l.b16 %v2465
    %v2530 = vunpack.c.l.b16 %v2466
    %v2531 = vunpack.c.l.b16 %v2467
    %v2532 = vunpack.c.l.b16 %v2468
    %v2533 = vunpack.c.l.b16 %v2469
    %v2534 = vunpack.c.l.b16 %v2470
    %v2535 = vunpack.c.l.b16 %v2471
    %v2536 = vunpack.c.l.b16 %v2472
    %v2537 = vunpack.c.l.b16 %v2473
    %v2538 = vunpack.c.l.b16 %v2474
    %v2539 = vunpack.c.l.b16 %v2475
    %v2540 = vunpack.c.l.b16 %v2476
    %v2541 = vunpack.c.l.b16 %v2477
    %v2542 = vpack.c.b16 %v2511, %v2510
    %v2543 = vpack.c.b16 %v2513, %v2512
    %v2544 = vpack.c.b16 %v2515, %v2514
    %v2545 = vpack.c.b16 %v2517, %v2516
    %v2546 = vpack.c.b16 %v2519, %v2518
    %v2547 = vpack.c.b16 %v2521, %v2520
    %v2548 = vpack.c.b16 %v2523, %v2522
    %v2549 = vpack.c.b16 %v2525, %v2524
    %v2550 = vpack.c.b16 %v2527, %v2526
    %v2551 = vpack.c.b16 %v2529, %v2528
    %v2552 = vpack.c.b16 %v2531, %v2530
    %v2553 = vpack.c.b16 %v2533, %v2532
    %v2554 = vpack.c.b16 %v2535, %v2534
    %v2555 = vpack.c.b16 %v2537, %v2536
    %v2556 = vpack.c.b16 %v2539, %v2538
    %v2557 = vpack.c.b16 %v2541, %v2540
    %2574 = vmatpush.bf16.msra.mxu0 %v2549
    %2575 = vmatpush.bf16.msra.mxu0 %v2548
    %2576 = vmatpush.bf16.msra.mxu0 %v2547
    %2577 = vmatpush.bf16.msra.mxu0 %v2546
    %2578 = vmatpush.bf16.msra.mxu0 %v2545
    %2579 = vmatpush.bf16.msra.mxu0 %v2544
    %2580 = vmatpush.bf16.msra.mxu0 %v2543
    %2581 = vmatpush.bf16.msra.mxu0 %v2542
    %2582 = vmatmul.bf16.gmra.mxu0 %v2443
    %v2583 = vpop.f32.mrf.mxu0
    %v2584 = vadd.f32 0.0, %v2583
    %v2585 = vpop.f32.mrf.mxu0
    %2586 = vdwg.mxu0
    %2587 = vmatpush.bf16.msra.mxu0 %v2557
    %2588 = vmatpush.bf16.msra.mxu0 %v2556
    %2589 = vmatpush.bf16.msra.mxu0 %v2555
    %2590 = vmatpush.bf16.msra.mxu0 %v2554
    %2591 = vmatpush.bf16.msra.mxu0 %v2553
    %2592 = vmatpush.bf16.msra.mxu0 %v2552
    %2593 = vmatpush.bf16.msra.mxu0 %v2551
    %2594 = vmatpush.bf16.msra.mxu0 %v2550
    %2595 = vmatmul.bf16.gmra.mxu0 %v2444
    %v2596 = vpop.f32.mrf.mxu0
    %v2597 = vadd.f32 %v2584, %v2596
    %v2598 = vpop.f32.mrf.mxu0
    %2599 = vdwg.mxu0
    %v2600 = vadd.f32 %v2380, %v2597
    %s2601 = scalar_lea.vmem %s4, 352
    %v2602 = vld [vmem:[%s2601] sm:$0xff]
    %v2603 = vld [vmem:[%s2601 + $0x8] sm:$0xff]
    %v2604 = vld [vmem:[%s2601 + $0x10] sm:$0xff]
    %v2605 = vld [vmem:[%s2601 + $0x18] sm:$0xff]
    %s2606 = scalar_lea.vmem %s3, 22
    %v2607 = vld [vmem:[%s2606] sm:$0x3]
    %v2609 = vperm.slane %v2607, 0
    %v2610 = vperm.slane %v2607, 1
    %v2617 = vunpack.c.l.b16 %v2602
    %v2618 = vunpack.c.h.b16 %v2602
    %v2619 = vunpack.c.l.b16 %v2603
    %v2620 = vunpack.c.h.b16 %v2603
    %v2621 = vunpack.c.l.b16 %v2604
    %v2622 = vunpack.c.h.b16 %v2604
    %v2623 = vunpack.c.l.b16 %v2605
    %v2624 = vunpack.c.h.b16 %v2605
    %v2625 = vpack.c.b16 %v2619, %v2617
    %v2626 = vpack.c.b16 %v2620, %v2618
    %v2627 = vpack.c.b16 %v2623, %v2621
    %v2628 = vpack.c.b16 %v2624, %v2622
    %2633 = vmatpush.bf16.msra.mxu0 0
    %2634 = vmatpush.bf16.msra.mxu0 0
    %2635 = vmatpush.bf16.msra.mxu0 0
    %2636 = vmatpush.bf16.msra.mxu0 0
    %2637 = vmatpush.bf16.msra.mxu0 0
    %2638 = vmatpush.bf16.msra.mxu0 0
    %2639 = vmatpush.bf16.msra.mxu0 %v2627
    %2640 = vmatpush.bf16.msra.mxu0 %v2625
    %2641 = vmatmul.bf16.gmra.mxu0 %v1979
    %v2642 = vpop.f32.mrf.mxu0
    %v2643 = vadd.f32 %v2609, %v2642
    %v2644 = vpop.f32.mrf.mxu0
    %2645 = vdwg.mxu0
    %2646 = vmatpush.bf16.msra.mxu0 0
    %2647 = vmatpush.bf16.msra.mxu0 0
    %2648 = vmatpush.bf16.msra.mxu0 0
    %2649 = vmatpush.bf16.msra.mxu0 0
    %2650 = vmatpush.bf16.msra.mxu0 0
    %2651 = vmatpush.bf16.msra.mxu0 0
    %2652 = vmatpush.bf16.msra.mxu0 %v2628
    %2653 = vmatpush.bf16.msra.mxu0 %v2626
    %2654 = vmatmul.bf16.gmra.mxu0 %v1979
    %v2655 = vpop.f32.mrf.mxu0
    %v2656 = vadd.f32 %v2610, %v2655
    %v2657 = vpop.f32.mrf.mxu0
    %2658 = vdwg.mxu0
    %v2659 = vmax.f32 %v2643, 0.0
    %v2660 = vmax.f32 %v2656, 0.0
    %v2661 = vpack.c.bf16 %v2659, %v2659
    %v2662 = vpack.c.bf16 %v2660, %v2660
    %s2663 = scalar_lea.vmem %s5, 1408
    %v2664 = vld [vmem:[%s2663] sm:$0xf]
    %v2665 = vld [vmem:[%s2663 + $0x4] sm:$0xf]
    %v2666 = vld [vmem:[%s2663 + $0x8] sm:$0xf]
    %v2667 = vld [vmem:[%s2663 + $0xc] sm:$0xf]
    %v2668 = vld [vmem:[%s2663 + $0x10] sm:$0xf]
    %v2669 = vld [vmem:[%s2663 + $0x14] sm:$0xf]
    %v2670 = vld [vmem:[%s2663 + $0x18] sm:$0xf]
    %v2671 = vld [vmem:[%s2663 + $0x1c] sm:$0xf]
    %v2672 = vld [vmem:[%s2663 + $0x20] sm:$0xf]
    %v2673 = vld [vmem:[%s2663 + $0x24] sm:$0xf]
    %v2674 = vld [vmem:[%s2663 + $0x28] sm:$0xf]
    %v2675 = vld [vmem:[%s2663 + $0x2c] sm:$0xf]
    %v2676 = vld [vmem:[%s2663 + $0x30] sm:$0xf]
    %v2677 = vld [vmem:[%s2663 + $0x34] sm:$0xf]
    %v2678 = vld [vmem:[%s2663 + $0x38] sm:$0xf]
    %v2679 = vld [vmem:[%s2663 + $0x3c] sm:$0xf]
    %v2680 = vld [vmem:[%s2663 + $0x40] sm:$0xf]
    %v2681 = vld [vmem:[%s2663 + $0x44] sm:$0xf]
    %v2682 = vld [vmem:[%s2663 + $0x48] sm:$0xf]
    %v2683 = vld [vmem:[%s2663 + $0x4c] sm:$0xf]
    %v2684 = vld [vmem:[%s2663 + $0x50] sm:$0xf]
    %v2685 = vld [vmem:[%s2663 + $0x54] sm:$0xf]
    %v2686 = vld [vmem:[%s2663 + $0x58] sm:$0xf]
    %v2687 = vld [vmem:[%s2663 + $0x5c] sm:$0xf]
    %v2688 = vld [vmem:[%s2663 + $0x60] sm:$0xf]
    %v2689 = vld [vmem:[%s2663 + $0x64] sm:$0xf]
    %v2690 = vld [vmem:[%s2663 + $0x68] sm:$0xf]
    %v2691 = vld [vmem:[%s2663 + $0x6c] sm:$0xf]
    %v2692 = vld [vmem:[%s2663 + $0x70] sm:$0xf]
    %v2693 = vld [vmem:[%s2663 + $0x74] sm:$0xf]
    %v2694 = vld [vmem:[%s2663 + $0x78] sm:$0xf]
    %v2695 = vld [vmem:[%s2663 + $0x7c] sm:$0xf]
    %v2728 = vunpack.c.l.b16 %v2664
    %v2729 = vunpack.c.l.b16 %v2665
    %v2730 = vunpack.c.l.b16 %v2666
    %v2731 = vunpack.c.l.b16 %v2667
    %v2732 = vunpack.c.l.b16 %v2668
    %v2733 = vunpack.c.l.b16 %v2669
    %v2734 = vunpack.c.l.b16 %v2670
    %v2735 = vunpack.c.l.b16 %v2671
    %v2736 = vunpack.c.l.b16 %v2672
    %v2737 = vunpack.c.l.b16 %v2673
    %v2738 = vunpack.c.l.b16 %v2674
    %v2739 = vunpack.c.l.b16 %v2675
    %v2740 = vunpack.c.l.b16 %v2676
    %v2741 = vunpack.c.l.b16 %v2677
    %v2742 = vunpack.c.l.b16 %v2678
    %v2743 = vunpack.c.l.b16 %v2679
    %v2744 = vunpack.c.l.b16 %v2680
    %v2745 = vunpack.c.l.b16 %v2681
    %v2746 = vunpack.c.l.b16 %v2682
    %v2747 = vunpack.c.l.b16 %v2683
    %v2748 = vunpack.c.l.b16 %v2684
    %v2749 = vunpack.c.l.b16 %v2685
    %v2750 = vunpack.c.l.b16 %v2686
    %v2751 = vunpack.c.l.b16 %v2687
    %v2752 = vunpack.c.l.b16 %v2688
    %v2753 = vunpack.c.l.b16 %v2689
    %v2754 = vunpack.c.l.b16 %v2690
    %v2755 = vunpack.c.l.b16 %v2691
    %v2756 = vunpack.c.l.b16 %v2692
    %v2757 = vunpack.c.l.b16 %v2693
    %v2758 = vunpack.c.l.b16 %v2694
    %v2759 = vunpack.c.l.b16 %v2695
    %v2760 = vpack.c.b16 %v2729, %v2728
    %v2761 = vpack.c.b16 %v2731, %v2730
    %v2762 = vpack.c.b16 %v2733, %v2732
    %v2763 = vpack.c.b16 %v2735, %v2734
    %v2764 = vpack.c.b16 %v2737, %v2736
    %v2765 = vpack.c.b16 %v2739, %v2738
    %v2766 = vpack.c.b16 %v2741, %v2740
    %v2767 = vpack.c.b16 %v2743, %v2742
    %v2768 = vpack.c.b16 %v2745, %v2744
    %v2769 = vpack.c.b16 %v2747, %v2746
    %v2770 = vpack.c.b16 %v2749, %v2748
    %v2771 = vpack.c.b16 %v2751, %v2750
    %v2772 = vpack.c.b16 %v2753, %v2752
    %v2773 = vpack.c.b16 %v2755, %v2754
    %v2774 = vpack.c.b16 %v2757, %v2756
    %v2775 = vpack.c.b16 %v2759, %v2758
    %2792 = vmatpush.bf16.msra.mxu0 %v2767
    %2793 = vmatpush.bf16.msra.mxu0 %v2766
    %2794 = vmatpush.bf16.msra.mxu0 %v2765
    %2795 = vmatpush.bf16.msra.mxu0 %v2764
    %2796 = vmatpush.bf16.msra.mxu0 %v2763
    %2797 = vmatpush.bf16.msra.mxu0 %v2762
    %2798 = vmatpush.bf16.msra.mxu0 %v2761
    %2799 = vmatpush.bf16.msra.mxu0 %v2760
    %2800 = vmatmul.bf16.gmra.mxu0 %v2661
    %v2801 = vpop.f32.mrf.mxu0
    %v2802 = vadd.f32 0.0, %v2801
    %v2803 = vpop.f32.mrf.mxu0
    %2804 = vdwg.mxu0
    %2805 = vmatpush.bf16.msra.mxu0 %v2775
    %2806 = vmatpush.bf16.msra.mxu0 %v2774
    %2807 = vmatpush.bf16.msra.mxu0 %v2773
    %2808 = vmatpush.bf16.msra.mxu0 %v2772
    %2809 = vmatpush.bf16.msra.mxu0 %v2771
    %2810 = vmatpush.bf16.msra.mxu0 %v2770
    %2811 = vmatpush.bf16.msra.mxu0 %v2769
    %2812 = vmatpush.bf16.msra.mxu0 %v2768
    %2813 = vmatmul.bf16.gmra.mxu0 %v2662
    %v2814 = vpop.f32.mrf.mxu0
    %v2815 = vadd.f32 %v2802, %v2814
    %v2816 = vpop.f32.mrf.mxu0
    %2817 = vdwg.mxu0
    %v2818 = vadd.f32 %v2600, %v2815
    %s2819 = scalar_lea.vmem %s4, 384
    %v2820 = vld [vmem:[%s2819] sm:$0xff]
    %v2821 = vld [vmem:[%s2819 + $0x8] sm:$0xff]
    %v2822 = vld [vmem:[%s2819 + $0x10] sm:$0xff]
    %v2823 = vld [vmem:[%s2819 + $0x18] sm:$0xff]
    %s2824 = scalar_lea.vmem %s3, 24
    %v2825 = vld [vmem:[%s2824] sm:$0x3]
    %v2827 = vperm.slane %v2825, 0
    %v2828 = vperm.slane %v2825, 1
    %v2835 = vunpack.c.l.b16 %v2820
    %v2836 = vunpack.c.h.b16 %v2820
    %v2837 = vunpack.c.l.b16 %v2821
    %v2838 = vunpack.c.h.b16 %v2821
    %v2839 = vunpack.c.l.b16 %v2822
    %v2840 = vunpack.c.h.b16 %v2822
    %v2841 = vunpack.c.l.b16 %v2823
    %v2842 = vunpack.c.h.b16 %v2823
    %v2843 = vpack.c.b16 %v2837, %v2835
    %v2844 = vpack.c.b16 %v2838, %v2836
    %v2845 = vpack.c.b16 %v2841, %v2839
    %v2846 = vpack.c.b16 %v2842, %v2840
    %2851 = vmatpush.bf16.msra.mxu0 0
    %2852 = vmatpush.bf16.msra.mxu0 0
    %2853 = vmatpush.bf16.msra.mxu0 0
    %2854 = vmatpush.bf16.msra.mxu0 0
    %2855 = vmatpush.bf16.msra.mxu0 0
    %2856 = vmatpush.bf16.msra.mxu0 0
    %2857 = vmatpush.bf16.msra.mxu0 %v2845
    %2858 = vmatpush.bf16.msra.mxu0 %v2843
    %2859 = vmatmul.bf16.gmra.mxu0 %v1979
    %v2860 = vpop.f32.mrf.mxu0
    %v2861 = vadd.f32 %v2827, %v2860
    %v2862 = vpop.f32.mrf.mxu0
    %2863 = vdwg.mxu0
    %2864 = vmatpush.bf16.msra.mxu0 0
    %2865 = vmatpush.bf16.msra.mxu0 0
    %2866 = vmatpush.bf16.msra.mxu0 0
    %2867 = vmatpush.bf16.msra.mxu0 0
    %2868 = vmatpush.bf16.msra.mxu0 0
    %2869 = vmatpush.bf16.msra.mxu0 0
    %2870 = vmatpush.bf16.msra.mxu0 %v2846
    %2871 = vmatpush.bf16.msra.mxu0 %v2844
    %2872 = vmatmul.bf16.gmra.mxu0 %v1979
    %v2873 = vpop.f32.mrf.mxu0
    %v2874 = vadd.f32 %v2828, %v2873
    %v2875 = vpop.f32.mrf.mxu0
    %2876 = vdwg.mxu0
    %v2877 = vmax.f32 %v2861, 0.0
    %v2878 = vmax.f32 %v2874, 0.0
    %v2879 = vpack.c.bf16 %v2877, %v2877
    %v2880 = vpack.c.bf16 %v2878, %v2878
    %s2881 = scalar_lea.vmem %s5, 1536
    %v2882 = vld [vmem:[%s2881] sm:$0xf]
    %v2883 = vld [vmem:[%s2881 + $0x4] sm:$0xf]
    %v2884 = vld [vmem:[%s2881 + $0x8] sm:$0xf]
    %v2885 = vld [vmem:[%s2881 + $0xc] sm:$0xf]
    %v2886 = vld [vmem:[%s2881 + $0x10] sm:$0xf]
    %v2887 = vld [vmem:[%s2881 + $0x14] sm:$0xf]
    %v2888 = vld [vmem:[%s2881 + $0x18] sm:$0xf]
    %v2889 = vld [vmem:[%s2881 + $0x1c] sm:$0xf]
    %v2890 = vld [vmem:[%s2881 + $0x20] sm:$0xf]
    %v2891 = vld [vmem:[%s2881 + $0x24] sm:$0xf]
    %v2892 = vld [vmem:[%s2881 + $0x28] sm:$0xf]
    %v2893 = vld [vmem:[%s2881 + $0x2c] sm:$0xf]
    %v2894 = vld [vmem:[%s2881 + $0x30] sm:$0xf]
    %v2895 = vld [vmem:[%s2881 + $0x34] sm:$0xf]
    %v2896 = vld [vmem:[%s2881 + $0x38] sm:$0xf]
    %v2897 = vld [vmem:[%s2881 + $0x3c] sm:$0xf]
    %v2898 = vld [vmem:[%s2881 + $0x40] sm:$0xf]
    %v2899 = vld [vmem:[%s2881 + $0x44] sm:$0xf]
    %v2900 = vld [vmem:[%s2881 + $0x48] sm:$0xf]
    %v2901 = vld [vmem:[%s2881 + $0x4c] sm:$0xf]
    %v2902 = vld [vmem:[%s2881 + $0x50] sm:$0xf]
    %v2903 = vld [vmem:[%s2881 + $0x54] sm:$0xf]
    %v2904 = vld [vmem:[%s2881 + $0x58] sm:$0xf]
    %v2905 = vld [vmem:[%s2881 + $0x5c] sm:$0xf]
    %v2906 = vld [vmem:[%s2881 + $0x60] sm:$0xf]
    %v2907 = vld [vmem:[%s2881 + $0x64] sm:$0xf]
    %v2908 = vld [vmem:[%s2881 + $0x68] sm:$0xf]
    %v2909 = vld [vmem:[%s2881 + $0x6c] sm:$0xf]
    %v2910 = vld [vmem:[%s2881 + $0x70] sm:$0xf]
    %v2911 = vld [vmem:[%s2881 + $0x74] sm:$0xf]
    %v2912 = vld [vmem:[%s2881 + $0x78] sm:$0xf]
    %v2913 = vld [vmem:[%s2881 + $0x7c] sm:$0xf]
    %v2946 = vunpack.c.l.b16 %v2882
    %v2947 = vunpack.c.l.b16 %v2883
    %v2948 = vunpack.c.l.b16 %v2884
    %v2949 = vunpack.c.l.b16 %v2885
    %v2950 = vunpack.c.l.b16 %v2886
    %v2951 = vunpack.c.l.b16 %v2887
    %v2952 = vunpack.c.l.b16 %v2888
    %v2953 = vunpack.c.l.b16 %v2889
    %v2954 = vunpack.c.l.b16 %v2890
    %v2955 = vunpack.c.l.b16 %v2891
    %v2956 = vunpack.c.l.b16 %v2892
    %v2957 = vunpack.c.l.b16 %v2893
    %v2958 = vunpack.c.l.b16 %v2894
    %v2959 = vunpack.c.l.b16 %v2895
    %v2960 = vunpack.c.l.b16 %v2896
    %v2961 = vunpack.c.l.b16 %v2897
    %v2962 = vunpack.c.l.b16 %v2898
    %v2963 = vunpack.c.l.b16 %v2899
    %v2964 = vunpack.c.l.b16 %v2900
    %v2965 = vunpack.c.l.b16 %v2901
    %v2966 = vunpack.c.l.b16 %v2902
    %v2967 = vunpack.c.l.b16 %v2903
    %v2968 = vunpack.c.l.b16 %v2904
    %v2969 = vunpack.c.l.b16 %v2905
    %v2970 = vunpack.c.l.b16 %v2906
    %v2971 = vunpack.c.l.b16 %v2907
    %v2972 = vunpack.c.l.b16 %v2908
    %v2973 = vunpack.c.l.b16 %v2909
    %v2974 = vunpack.c.l.b16 %v2910
    %v2975 = vunpack.c.l.b16 %v2911
    %v2976 = vunpack.c.l.b16 %v2912
    %v2977 = vunpack.c.l.b16 %v2913
    %v2978 = vpack.c.b16 %v2947, %v2946
    %v2979 = vpack.c.b16 %v2949, %v2948
    %v2980 = vpack.c.b16 %v2951, %v2950
    %v2981 = vpack.c.b16 %v2953, %v2952
    %v2982 = vpack.c.b16 %v2955, %v2954
    %v2983 = vpack.c.b16 %v2957, %v2956
    %v2984 = vpack.c.b16 %v2959, %v2958
    %v2985 = vpack.c.b16 %v2961, %v2960
    %v2986 = vpack.c.b16 %v2963, %v2962
    %v2987 = vpack.c.b16 %v2965, %v2964
    %v2988 = vpack.c.b16 %v2967, %v2966
    %v2989 = vpack.c.b16 %v2969, %v2968
    %v2990 = vpack.c.b16 %v2971, %v2970
    %v2991 = vpack.c.b16 %v2973, %v2972
    %v2992 = vpack.c.b16 %v2975, %v2974
    %v2993 = vpack.c.b16 %v2977, %v2976
    %3010 = vmatpush.bf16.msra.mxu0 %v2985
    %3011 = vmatpush.bf16.msra.mxu0 %v2984
    %3012 = vmatpush.bf16.msra.mxu0 %v2983
    %3013 = vmatpush.bf16.msra.mxu0 %v2982
    %3014 = vmatpush.bf16.msra.mxu0 %v2981
    %3015 = vmatpush.bf16.msra.mxu0 %v2980
    %3016 = vmatpush.bf16.msra.mxu0 %v2979
    %3017 = vmatpush.bf16.msra.mxu0 %v2978
    %3018 = vmatmul.bf16.gmra.mxu0 %v2879
    %v3019 = vpop.f32.mrf.mxu0
    %v3020 = vadd.f32 0.0, %v3019
    %v3021 = vpop.f32.mrf.mxu0
    %3022 = vdwg.mxu0
    %3023 = vmatpush.bf16.msra.mxu0 %v2993
    %3024 = vmatpush.bf16.msra.mxu0 %v2992
    %3025 = vmatpush.bf16.msra.mxu0 %v2991
    %3026 = vmatpush.bf16.msra.mxu0 %v2990
    %3027 = vmatpush.bf16.msra.mxu0 %v2989
    %3028 = vmatpush.bf16.msra.mxu0 %v2988
    %3029 = vmatpush.bf16.msra.mxu0 %v2987
    %3030 = vmatpush.bf16.msra.mxu0 %v2986
    %3031 = vmatmul.bf16.gmra.mxu0 %v2880
    %v3032 = vpop.f32.mrf.mxu0
    %v3033 = vadd.f32 %v3020, %v3032
    %v3034 = vpop.f32.mrf.mxu0
    %3035 = vdwg.mxu0
    %v3036 = vadd.f32 %v2818, %v3033
    %s3037 = scalar_lea.vmem %s4, 416
    %v3038 = vld [vmem:[%s3037] sm:$0xff]
    %v3039 = vld [vmem:[%s3037 + $0x8] sm:$0xff]
    %v3040 = vld [vmem:[%s3037 + $0x10] sm:$0xff]
    %v3041 = vld [vmem:[%s3037 + $0x18] sm:$0xff]
    %s3042 = scalar_lea.vmem %s3, 26
    %v3043 = vld [vmem:[%s3042] sm:$0x3]
    %v3045 = vperm.slane %v3043, 0
    %v3046 = vperm.slane %v3043, 1
    %v3053 = vunpack.c.l.b16 %v3038
    %v3054 = vunpack.c.h.b16 %v3038
    %v3055 = vunpack.c.l.b16 %v3039
    %v3056 = vunpack.c.h.b16 %v3039
    %v3057 = vunpack.c.l.b16 %v3040
    %v3058 = vunpack.c.h.b16 %v3040
    %v3059 = vunpack.c.l.b16 %v3041
    %v3060 = vunpack.c.h.b16 %v3041
    %v3061 = vpack.c.b16 %v3055, %v3053
    %v3062 = vpack.c.b16 %v3056, %v3054
    %v3063 = vpack.c.b16 %v3059, %v3057
    %v3064 = vpack.c.b16 %v3060, %v3058
    %3069 = vmatpush.bf16.msra.mxu0 0
    %3070 = vmatpush.bf16.msra.mxu0 0
    %3071 = vmatpush.bf16.msra.mxu0 0
    %3072 = vmatpush.bf16.msra.mxu0 0
    %3073 = vmatpush.bf16.msra.mxu0 0
    %3074 = vmatpush.bf16.msra.mxu0 0
    %3075 = vmatpush.bf16.msra.mxu0 %v3063
    %3076 = vmatpush.bf16.msra.mxu0 %v3061
    %3077 = vmatmul.bf16.gmra.mxu0 %v1979
    %v3078 = vpop.f32.mrf.mxu0
    %v3079 = vadd.f32 %v3045, %v3078
    %v3080 = vpop.f32.mrf.mxu0
    %3081 = vdwg.mxu0
    %3082 = vmatpush.bf16.msra.mxu0 0
    %3083 = vmatpush.bf16.msra.mxu0 0
    %3084 = vmatpush.bf16.msra.mxu0 0
    %3085 = vmatpush.bf16.msra.mxu0 0
    %3086 = vmatpush.bf16.msra.mxu0 0
    %3087 = vmatpush.bf16.msra.mxu0 0
    %3088 = vmatpush.bf16.msra.mxu0 %v3064
    %3089 = vmatpush.bf16.msra.mxu0 %v3062
    %3090 = vmatmul.bf16.gmra.mxu0 %v1979
    %v3091 = vpop.f32.mrf.mxu0
    %v3092 = vadd.f32 %v3046, %v3091
    %v3093 = vpop.f32.mrf.mxu0
    %3094 = vdwg.mxu0
    %v3095 = vmax.f32 %v3079, 0.0
    %v3096 = vmax.f32 %v3092, 0.0
    %v3097 = vpack.c.bf16 %v3095, %v3095
    %v3098 = vpack.c.bf16 %v3096, %v3096
    %s3099 = scalar_lea.vmem %s5, 1664
    %v3100 = vld [vmem:[%s3099] sm:$0xf]
    %v3101 = vld [vmem:[%s3099 + $0x4] sm:$0xf]
    %v3102 = vld [vmem:[%s3099 + $0x8] sm:$0xf]
    %v3103 = vld [vmem:[%s3099 + $0xc] sm:$0xf]
    %v3104 = vld [vmem:[%s3099 + $0x10] sm:$0xf]
    %v3105 = vld [vmem:[%s3099 + $0x14] sm:$0xf]
    %v3106 = vld [vmem:[%s3099 + $0x18] sm:$0xf]
    %v3107 = vld [vmem:[%s3099 + $0x1c] sm:$0xf]
    %v3108 = vld [vmem:[%s3099 + $0x20] sm:$0xf]
    %v3109 = vld [vmem:[%s3099 + $0x24] sm:$0xf]
    %v3110 = vld [vmem:[%s3099 + $0x28] sm:$0xf]
    %v3111 = vld [vmem:[%s3099 + $0x2c] sm:$0xf]
    %v3112 = vld [vmem:[%s3099 + $0x30] sm:$0xf]
    %v3113 = vld [vmem:[%s3099 + $0x34] sm:$0xf]
    %v3114 = vld [vmem:[%s3099 + $0x38] sm:$0xf]
    %v3115 = vld [vmem:[%s3099 + $0x3c] sm:$0xf]
    %v3116 = vld [vmem:[%s3099 + $0x40] sm:$0xf]
    %v3117 = vld [vmem:[%s3099 + $0x44] sm:$0xf]
    %v3118 = vld [vmem:[%s3099 + $0x48] sm:$0xf]
    %v3119 = vld [vmem:[%s3099 + $0x4c] sm:$0xf]
    %v3120 = vld [vmem:[%s3099 + $0x50] sm:$0xf]
    %v3121 = vld [vmem:[%s3099 + $0x54] sm:$0xf]
    %v3122 = vld [vmem:[%s3099 + $0x58] sm:$0xf]
    %v3123 = vld [vmem:[%s3099 + $0x5c] sm:$0xf]
    %v3124 = vld [vmem:[%s3099 + $0x60] sm:$0xf]
    %v3125 = vld [vmem:[%s3099 + $0x64] sm:$0xf]
    %v3126 = vld [vmem:[%s3099 + $0x68] sm:$0xf]
    %v3127 = vld [vmem:[%s3099 + $0x6c] sm:$0xf]
    %v3128 = vld [vmem:[%s3099 + $0x70] sm:$0xf]
    %v3129 = vld [vmem:[%s3099 + $0x74] sm:$0xf]
    %v3130 = vld [vmem:[%s3099 + $0x78] sm:$0xf]
    %v3131 = vld [vmem:[%s3099 + $0x7c] sm:$0xf]
    %v3164 = vunpack.c.l.b16 %v3100
    %v3165 = vunpack.c.l.b16 %v3101
    %v3166 = vunpack.c.l.b16 %v3102
    %v3167 = vunpack.c.l.b16 %v3103
    %v3168 = vunpack.c.l.b16 %v3104
    %v3169 = vunpack.c.l.b16 %v3105
    %v3170 = vunpack.c.l.b16 %v3106
    %v3171 = vunpack.c.l.b16 %v3107
    %v3172 = vunpack.c.l.b16 %v3108
    %v3173 = vunpack.c.l.b16 %v3109
    %v3174 = vunpack.c.l.b16 %v3110
    %v3175 = vunpack.c.l.b16 %v3111
    %v3176 = vunpack.c.l.b16 %v3112
    %v3177 = vunpack.c.l.b16 %v3113
    %v3178 = vunpack.c.l.b16 %v3114
    %v3179 = vunpack.c.l.b16 %v3115
    %v3180 = vunpack.c.l.b16 %v3116
    %v3181 = vunpack.c.l.b16 %v3117
    %v3182 = vunpack.c.l.b16 %v3118
    %v3183 = vunpack.c.l.b16 %v3119
    %v3184 = vunpack.c.l.b16 %v3120
    %v3185 = vunpack.c.l.b16 %v3121
    %v3186 = vunpack.c.l.b16 %v3122
    %v3187 = vunpack.c.l.b16 %v3123
    %v3188 = vunpack.c.l.b16 %v3124
    %v3189 = vunpack.c.l.b16 %v3125
    %v3190 = vunpack.c.l.b16 %v3126
    %v3191 = vunpack.c.l.b16 %v3127
    %v3192 = vunpack.c.l.b16 %v3128
    %v3193 = vunpack.c.l.b16 %v3129
    %v3194 = vunpack.c.l.b16 %v3130
    %v3195 = vunpack.c.l.b16 %v3131
    %v3196 = vpack.c.b16 %v3165, %v3164
    %v3197 = vpack.c.b16 %v3167, %v3166
    %v3198 = vpack.c.b16 %v3169, %v3168
    %v3199 = vpack.c.b16 %v3171, %v3170
    %v3200 = vpack.c.b16 %v3173, %v3172
    %v3201 = vpack.c.b16 %v3175, %v3174
    %v3202 = vpack.c.b16 %v3177, %v3176
    %v3203 = vpack.c.b16 %v3179, %v3178
    %v3204 = vpack.c.b16 %v3181, %v3180
    %v3205 = vpack.c.b16 %v3183, %v3182
    %v3206 = vpack.c.b16 %v3185, %v3184
    %v3207 = vpack.c.b16 %v3187, %v3186
    %v3208 = vpack.c.b16 %v3189, %v3188
    %v3209 = vpack.c.b16 %v3191, %v3190
    %v3210 = vpack.c.b16 %v3193, %v3192
    %v3211 = vpack.c.b16 %v3195, %v3194
    %3228 = vmatpush.bf16.msra.mxu0 %v3203
    %3229 = vmatpush.bf16.msra.mxu0 %v3202
    %3230 = vmatpush.bf16.msra.mxu0 %v3201
    %3231 = vmatpush.bf16.msra.mxu0 %v3200
    %3232 = vmatpush.bf16.msra.mxu0 %v3199
    %3233 = vmatpush.bf16.msra.mxu0 %v3198
    %3234 = vmatpush.bf16.msra.mxu0 %v3197
    %3235 = vmatpush.bf16.msra.mxu0 %v3196
    %3236 = vmatmul.bf16.gmra.mxu0 %v3097
    %v3237 = vpop.f32.mrf.mxu0
    %v3238 = vadd.f32 0.0, %v3237
    %v3239 = vpop.f32.mrf.mxu0
    %3240 = vdwg.mxu0
    %3241 = vmatpush.bf16.msra.mxu0 %v3211
    %3242 = vmatpush.bf16.msra.mxu0 %v3210
    %3243 = vmatpush.bf16.msra.mxu0 %v3209
    %3244 = vmatpush.bf16.msra.mxu0 %v3208
    %3245 = vmatpush.bf16.msra.mxu0 %v3207
    %3246 = vmatpush.bf16.msra.mxu0 %v3206
    %3247 = vmatpush.bf16.msra.mxu0 %v3205
    %3248 = vmatpush.bf16.msra.mxu0 %v3204
    %3249 = vmatmul.bf16.gmra.mxu0 %v3098
    %v3250 = vpop.f32.mrf.mxu0
    %v3251 = vadd.f32 %v3238, %v3250
    %v3252 = vpop.f32.mrf.mxu0
    %3253 = vdwg.mxu0
    %v3254 = vadd.f32 %v3036, %v3251
    %s3255 = scalar_lea.vmem %s4, 448
    %v3256 = vld [vmem:[%s3255] sm:$0xff]
    %v3257 = vld [vmem:[%s3255 + $0x8] sm:$0xff]
    %v3258 = vld [vmem:[%s3255 + $0x10] sm:$0xff]
    %v3259 = vld [vmem:[%s3255 + $0x18] sm:$0xff]
    %s3260 = scalar_lea.vmem %s3, 28
    %v3261 = vld [vmem:[%s3260] sm:$0x3]
    %v3263 = vperm.slane %v3261, 0
    %v3264 = vperm.slane %v3261, 1
    %v3271 = vunpack.c.l.b16 %v3256
    %v3272 = vunpack.c.h.b16 %v3256
    %v3273 = vunpack.c.l.b16 %v3257
    %v3274 = vunpack.c.h.b16 %v3257
    %v3275 = vunpack.c.l.b16 %v3258
    %v3276 = vunpack.c.h.b16 %v3258
    %v3277 = vunpack.c.l.b16 %v3259
    %v3278 = vunpack.c.h.b16 %v3259
    %v3279 = vpack.c.b16 %v3273, %v3271
    %v3280 = vpack.c.b16 %v3274, %v3272
    %v3281 = vpack.c.b16 %v3277, %v3275
    %v3282 = vpack.c.b16 %v3278, %v3276
    %3287 = vmatpush.bf16.msra.mxu0 0
    %3288 = vmatpush.bf16.msra.mxu0 0
    %3289 = vmatpush.bf16.msra.mxu0 0
    %3290 = vmatpush.bf16.msra.mxu0 0
    %3291 = vmatpush.bf16.msra.mxu0 0
    %3292 = vmatpush.bf16.msra.mxu0 0
    %3293 = vmatpush.bf16.msra.mxu0 %v3281
    %3294 = vmatpush.bf16.msra.mxu0 %v3279
    %3295 = vmatmul.bf16.gmra.mxu0 %v1979
    %v3296 = vpop.f32.mrf.mxu0
    %v3297 = vadd.f32 %v3263, %v3296
    %v3298 = vpop.f32.mrf.mxu0
    %3299 = vdwg.mxu0
    %3300 = vmatpush.bf16.msra.mxu0 0
    %3301 = vmatpush.bf16.msra.mxu0 0
    %3302 = vmatpush.bf16.msra.mxu0 0
    %3303 = vmatpush.bf16.msra.mxu0 0
    %3304 = vmatpush.bf16.msra.mxu0 0
    %3305 = vmatpush.bf16.msra.mxu0 0
    %3306 = vmatpush.bf16.msra.mxu0 %v3282
    %3307 = vmatpush.bf16.msra.mxu0 %v3280
    %3308 = vmatmul.bf16.gmra.mxu0 %v1979
    %v3309 = vpop.f32.mrf.mxu0
    %v3310 = vadd.f32 %v3264, %v3309
    %v3311 = vpop.f32.mrf.mxu0
    %3312 = vdwg.mxu0
    %v3313 = vmax.f32 %v3297, 0.0
    %v3314 = vmax.f32 %v3310, 0.0
    %v3315 = vpack.c.bf16 %v3313, %v3313
    %v3316 = vpack.c.bf16 %v3314, %v3314
    %s3317 = scalar_lea.vmem %s5, 1792
    %v3318 = vld [vmem:[%s3317] sm:$0xf]
    %v3319 = vld [vmem:[%s3317 + $0x4] sm:$0xf]
    %v3320 = vld [vmem:[%s3317 + $0x8] sm:$0xf]
    %v3321 = vld [vmem:[%s3317 + $0xc] sm:$0xf]
    %v3322 = vld [vmem:[%s3317 + $0x10] sm:$0xf]
    %v3323 = vld [vmem:[%s3317 + $0x14] sm:$0xf]
    %v3324 = vld [vmem:[%s3317 + $0x18] sm:$0xf]
    %v3325 = vld [vmem:[%s3317 + $0x1c] sm:$0xf]
    %v3326 = vld [vmem:[%s3317 + $0x20] sm:$0xf]
    %v3327 = vld [vmem:[%s3317 + $0x24] sm:$0xf]
    %v3328 = vld [vmem:[%s3317 + $0x28] sm:$0xf]
    %v3329 = vld [vmem:[%s3317 + $0x2c] sm:$0xf]
    %v3330 = vld [vmem:[%s3317 + $0x30] sm:$0xf]
    %v3331 = vld [vmem:[%s3317 + $0x34] sm:$0xf]
    %v3332 = vld [vmem:[%s3317 + $0x38] sm:$0xf]
    %v3333 = vld [vmem:[%s3317 + $0x3c] sm:$0xf]
    %v3334 = vld [vmem:[%s3317 + $0x40] sm:$0xf]
    %v3335 = vld [vmem:[%s3317 + $0x44] sm:$0xf]
    %v3336 = vld [vmem:[%s3317 + $0x48] sm:$0xf]
    %v3337 = vld [vmem:[%s3317 + $0x4c] sm:$0xf]
    %v3338 = vld [vmem:[%s3317 + $0x50] sm:$0xf]
    %v3339 = vld [vmem:[%s3317 + $0x54] sm:$0xf]
    %v3340 = vld [vmem:[%s3317 + $0x58] sm:$0xf]
    %v3341 = vld [vmem:[%s3317 + $0x5c] sm:$0xf]
    %v3342 = vld [vmem:[%s3317 + $0x60] sm:$0xf]
    %v3343 = vld [vmem:[%s3317 + $0x64] sm:$0xf]
    %v3344 = vld [vmem:[%s3317 + $0x68] sm:$0xf]
    %v3345 = vld [vmem:[%s3317 + $0x6c] sm:$0xf]
    %v3346 = vld [vmem:[%s3317 + $0x70] sm:$0xf]
    %v3347 = vld [vmem:[%s3317 + $0x74] sm:$0xf]
    %v3348 = vld [vmem:[%s3317 + $0x78] sm:$0xf]
    %v3349 = vld [vmem:[%s3317 + $0x7c] sm:$0xf]
    %v3382 = vunpack.c.l.b16 %v3318
    %v3383 = vunpack.c.l.b16 %v3319
    %v3384 = vunpack.c.l.b16 %v3320
    %v3385 = vunpack.c.l.b16 %v3321
    %v3386 = vunpack.c.l.b16 %v3322
    %v3387 = vunpack.c.l.b16 %v3323
    %v3388 = vunpack.c.l.b16 %v3324
    %v3389 = vunpack.c.l.b16 %v3325
    %v3390 = vunpack.c.l.b16 %v3326
    %v3391 = vunpack.c.l.b16 %v3327
    %v3392 = vunpack.c.l.b16 %v3328
    %v3393 = vunpack.c.l.b16 %v3329
    %v3394 = vunpack.c.l.b16 %v3330
    %v3395 = vunpack.c.l.b16 %v3331
    %v3396 = vunpack.c.l.b16 %v3332
    %v3397 = vunpack.c.l.b16 %v3333
    %v3398 = vunpack.c.l.b16 %v3334
    %v3399 = vunpack.c.l.b16 %v3335
    %v3400 = vunpack.c.l.b16 %v3336
    %v3401 = vunpack.c.l.b16 %v3337
    %v3402 = vunpack.c.l.b16 %v3338
    %v3403 = vunpack.c.l.b16 %v3339
    %v3404 = vunpack.c.l.b16 %v3340
    %v3405 = vunpack.c.l.b16 %v3341
    %v3406 = vunpack.c.l.b16 %v3342
    %v3407 = vunpack.c.l.b16 %v3343
    %v3408 = vunpack.c.l.b16 %v3344
    %v3409 = vunpack.c.l.b16 %v3345
    %v3410 = vunpack.c.l.b16 %v3346
    %v3411 = vunpack.c.l.b16 %v3347
    %v3412 = vunpack.c.l.b16 %v3348
    %v3413 = vunpack.c.l.b16 %v3349
    %v3414 = vpack.c.b16 %v3383, %v3382
    %v3415 = vpack.c.b16 %v3385, %v3384
    %v3416 = vpack.c.b16 %v3387, %v3386
    %v3417 = vpack.c.b16 %v3389, %v3388
    %v3418 = vpack.c.b16 %v3391, %v3390
    %v3419 = vpack.c.b16 %v3393, %v3392
    %v3420 = vpack.c.b16 %v3395, %v3394
    %v3421 = vpack.c.b16 %v3397, %v3396
    %v3422 = vpack.c.b16 %v3399, %v3398
    %v3423 = vpack.c.b16 %v3401, %v3400
    %v3424 = vpack.c.b16 %v3403, %v3402
    %v3425 = vpack.c.b16 %v3405, %v3404
    %v3426 = vpack.c.b16 %v3407, %v3406
    %v3427 = vpack.c.b16 %v3409, %v3408
    %v3428 = vpack.c.b16 %v3411, %v3410
    %v3429 = vpack.c.b16 %v3413, %v3412
    %3446 = vmatpush.bf16.msra.mxu0 %v3421
    %3447 = vmatpush.bf16.msra.mxu0 %v3420
    %3448 = vmatpush.bf16.msra.mxu0 %v3419
    %3449 = vmatpush.bf16.msra.mxu0 %v3418
    %3450 = vmatpush.bf16.msra.mxu0 %v3417
    %3451 = vmatpush.bf16.msra.mxu0 %v3416
    %3452 = vmatpush.bf16.msra.mxu0 %v3415
    %3453 = vmatpush.bf16.msra.mxu0 %v3414
    %3454 = vmatmul.bf16.gmra.mxu0 %v3315
    %v3455 = vpop.f32.mrf.mxu0
    %v3456 = vadd.f32 0.0, %v3455
    %v3457 = vpop.f32.mrf.mxu0
    %3458 = vdwg.mxu0
    %3459 = vmatpush.bf16.msra.mxu0 %v3429
    %3460 = vmatpush.bf16.msra.mxu0 %v3428
    %3461 = vmatpush.bf16.msra.mxu0 %v3427
    %3462 = vmatpush.bf16.msra.mxu0 %v3426
    %3463 = vmatpush.bf16.msra.mxu0 %v3425
    %3464 = vmatpush.bf16.msra.mxu0 %v3424
    %3465 = vmatpush.bf16.msra.mxu0 %v3423
    %3466 = vmatpush.bf16.msra.mxu0 %v3422
    %3467 = vmatmul.bf16.gmra.mxu0 %v3316
    %v3468 = vpop.f32.mrf.mxu0
    %v3469 = vadd.f32 %v3456, %v3468
    %v3470 = vpop.f32.mrf.mxu0
    %3471 = vdwg.mxu0
    %v3472 = vadd.f32 %v3254, %v3469
    %s3473 = scalar_lea.vmem %s4, 480
    %v3474 = vld [vmem:[%s3473] sm:$0xff]
    %v3475 = vld [vmem:[%s3473 + $0x8] sm:$0xff]
    %v3476 = vld [vmem:[%s3473 + $0x10] sm:$0xff]
    %v3477 = vld [vmem:[%s3473 + $0x18] sm:$0xff]
    %s3478 = scalar_lea.vmem %s3, 30
    %v3479 = vld [vmem:[%s3478] sm:$0x3]
    %v3481 = vperm.slane %v3479, 0
    %v3482 = vperm.slane %v3479, 1
    %v3489 = vunpack.c.l.b16 %v3474
    %v3490 = vunpack.c.h.b16 %v3474
    %v3491 = vunpack.c.l.b16 %v3475
    %v3492 = vunpack.c.h.b16 %v3475
    %v3493 = vunpack.c.l.b16 %v3476
    %v3494 = vunpack.c.h.b16 %v3476
    %v3495 = vunpack.c.l.b16 %v3477
    %v3496 = vunpack.c.h.b16 %v3477
    %v3497 = vpack.c.b16 %v3491, %v3489
    %v3498 = vpack.c.b16 %v3492, %v3490
    %v3499 = vpack.c.b16 %v3495, %v3493
    %v3500 = vpack.c.b16 %v3496, %v3494
    %3505 = vmatpush.bf16.msra.mxu0 0
    %3506 = vmatpush.bf16.msra.mxu0 0
    %3507 = vmatpush.bf16.msra.mxu0 0
    %3508 = vmatpush.bf16.msra.mxu0 0
    %3509 = vmatpush.bf16.msra.mxu0 0
    %3510 = vmatpush.bf16.msra.mxu0 0
    %3511 = vmatpush.bf16.msra.mxu0 %v3499
    %3512 = vmatpush.bf16.msra.mxu0 %v3497
    %3513 = vmatmul.bf16.gmra.mxu0 %v1979
    %v3514 = vpop.f32.mrf.mxu0
    %v3515 = vadd.f32 %v3481, %v3514
    %v3516 = vpop.f32.mrf.mxu0
    %3517 = vdwg.mxu0
    %3518 = vmatpush.bf16.msra.mxu0 0
    %3519 = vmatpush.bf16.msra.mxu0 0
    %3520 = vmatpush.bf16.msra.mxu0 0
    %3521 = vmatpush.bf16.msra.mxu0 0
    %3522 = vmatpush.bf16.msra.mxu0 0
    %3523 = vmatpush.bf16.msra.mxu0 0
    %3524 = vmatpush.bf16.msra.mxu0 %v3500
    %3525 = vmatpush.bf16.msra.mxu0 %v3498
    %3526 = vmatmul.bf16.gmra.mxu0 %v1979
    %v3527 = vpop.f32.mrf.mxu0
    %v3528 = vadd.f32 %v3482, %v3527
    %v3529 = vpop.f32.mrf.mxu0
    %3530 = vdwg.mxu0
    %v3531 = vmax.f32 %v3515, 0.0
    %v3532 = vmax.f32 %v3528, 0.0
    %v3533 = vpack.c.bf16 %v3531, %v3531
    %v3534 = vpack.c.bf16 %v3532, %v3532
    %s3535 = scalar_lea.vmem %s5, 1920
    %v3536 = vld [vmem:[%s3535] sm:$0xf]
    %v3537 = vld [vmem:[%s3535 + $0x4] sm:$0xf]
    %v3538 = vld [vmem:[%s3535 + $0x8] sm:$0xf]
    %v3539 = vld [vmem:[%s3535 + $0xc] sm:$0xf]
    %v3540 = vld [vmem:[%s3535 + $0x10] sm:$0xf]
    %v3541 = vld [vmem:[%s3535 + $0x14] sm:$0xf]
    %v3542 = vld [vmem:[%s3535 + $0x18] sm:$0xf]
    %v3543 = vld [vmem:[%s3535 + $0x1c] sm:$0xf]
    %v3544 = vld [vmem:[%s3535 + $0x20] sm:$0xf]
    %v3545 = vld [vmem:[%s3535 + $0x24] sm:$0xf]
    %v3546 = vld [vmem:[%s3535 + $0x28] sm:$0xf]
    %v3547 = vld [vmem:[%s3535 + $0x2c] sm:$0xf]
    %v3548 = vld [vmem:[%s3535 + $0x30] sm:$0xf]
    %v3549 = vld [vmem:[%s3535 + $0x34] sm:$0xf]
    %v3550 = vld [vmem:[%s3535 + $0x38] sm:$0xf]
    %v3551 = vld [vmem:[%s3535 + $0x3c] sm:$0xf]
    %v3552 = vld [vmem:[%s3535 + $0x40] sm:$0xf]
    %v3553 = vld [vmem:[%s3535 + $0x44] sm:$0xf]
    %v3554 = vld [vmem:[%s3535 + $0x48] sm:$0xf]
    %v3555 = vld [vmem:[%s3535 + $0x4c] sm:$0xf]
    %v3556 = vld [vmem:[%s3535 + $0x50] sm:$0xf]
    %v3557 = vld [vmem:[%s3535 + $0x54] sm:$0xf]
    %v3558 = vld [vmem:[%s3535 + $0x58] sm:$0xf]
    %v3559 = vld [vmem:[%s3535 + $0x5c] sm:$0xf]
    %v3560 = vld [vmem:[%s3535 + $0x60] sm:$0xf]
    %v3561 = vld [vmem:[%s3535 + $0x64] sm:$0xf]
    %v3562 = vld [vmem:[%s3535 + $0x68] sm:$0xf]
    %v3563 = vld [vmem:[%s3535 + $0x6c] sm:$0xf]
    %v3564 = vld [vmem:[%s3535 + $0x70] sm:$0xf]
    %v3565 = vld [vmem:[%s3535 + $0x74] sm:$0xf]
    %v3566 = vld [vmem:[%s3535 + $0x78] sm:$0xf]
    %v3567 = vld [vmem:[%s3535 + $0x7c] sm:$0xf]
    %v3600 = vunpack.c.l.b16 %v3536
    %v3601 = vunpack.c.l.b16 %v3537
    %v3602 = vunpack.c.l.b16 %v3538
    %v3603 = vunpack.c.l.b16 %v3539
    %v3604 = vunpack.c.l.b16 %v3540
    %v3605 = vunpack.c.l.b16 %v3541
    %v3606 = vunpack.c.l.b16 %v3542
    %v3607 = vunpack.c.l.b16 %v3543
    %v3608 = vunpack.c.l.b16 %v3544
    %v3609 = vunpack.c.l.b16 %v3545
    %v3610 = vunpack.c.l.b16 %v3546
    %v3611 = vunpack.c.l.b16 %v3547
    %v3612 = vunpack.c.l.b16 %v3548
    %v3613 = vunpack.c.l.b16 %v3549
    %v3614 = vunpack.c.l.b16 %v3550
    %v3615 = vunpack.c.l.b16 %v3551
    %v3616 = vunpack.c.l.b16 %v3552
    %v3617 = vunpack.c.l.b16 %v3553
    %v3618 = vunpack.c.l.b16 %v3554
    %v3619 = vunpack.c.l.b16 %v3555
    %v3620 = vunpack.c.l.b16 %v3556
    %v3621 = vunpack.c.l.b16 %v3557
    %v3622 = vunpack.c.l.b16 %v3558
    %v3623 = vunpack.c.l.b16 %v3559
    %v3624 = vunpack.c.l.b16 %v3560
    %v3625 = vunpack.c.l.b16 %v3561
    %v3626 = vunpack.c.l.b16 %v3562
    %v3627 = vunpack.c.l.b16 %v3563
    %v3628 = vunpack.c.l.b16 %v3564
    %v3629 = vunpack.c.l.b16 %v3565
    %v3630 = vunpack.c.l.b16 %v3566
    %v3631 = vunpack.c.l.b16 %v3567
    %v3632 = vpack.c.b16 %v3601, %v3600
    %v3633 = vpack.c.b16 %v3603, %v3602
    %v3634 = vpack.c.b16 %v3605, %v3604
    %v3635 = vpack.c.b16 %v3607, %v3606
    %v3636 = vpack.c.b16 %v3609, %v3608
    %v3637 = vpack.c.b16 %v3611, %v3610
    %v3638 = vpack.c.b16 %v3613, %v3612
    %v3639 = vpack.c.b16 %v3615, %v3614
    %v3640 = vpack.c.b16 %v3617, %v3616
    %v3641 = vpack.c.b16 %v3619, %v3618
    %v3642 = vpack.c.b16 %v3621, %v3620
    %v3643 = vpack.c.b16 %v3623, %v3622
    %v3644 = vpack.c.b16 %v3625, %v3624
    %v3645 = vpack.c.b16 %v3627, %v3626
    %v3646 = vpack.c.b16 %v3629, %v3628
    %v3647 = vpack.c.b16 %v3631, %v3630
    %3664 = vmatpush.bf16.msra.mxu0 %v3639
    %3665 = vmatpush.bf16.msra.mxu0 %v3638
    %3666 = vmatpush.bf16.msra.mxu0 %v3637
    %3667 = vmatpush.bf16.msra.mxu0 %v3636
    %3668 = vmatpush.bf16.msra.mxu0 %v3635
    %3669 = vmatpush.bf16.msra.mxu0 %v3634
    %3670 = vmatpush.bf16.msra.mxu0 %v3633
    %3671 = vmatpush.bf16.msra.mxu0 %v3632
    %3672 = vmatmul.bf16.gmra.mxu0 %v3533
    %v3673 = vpop.f32.mrf.mxu0
    %v3674 = vadd.f32 0.0, %v3673
    %v3675 = vpop.f32.mrf.mxu0
    %3676 = vdwg.mxu0
    %3677 = vmatpush.bf16.msra.mxu0 %v3647
    %3678 = vmatpush.bf16.msra.mxu0 %v3646
    %3679 = vmatpush.bf16.msra.mxu0 %v3645
    %3680 = vmatpush.bf16.msra.mxu0 %v3644
    %3681 = vmatpush.bf16.msra.mxu0 %v3643
    %3682 = vmatpush.bf16.msra.mxu0 %v3642
    %3683 = vmatpush.bf16.msra.mxu0 %v3641
    %3684 = vmatpush.bf16.msra.mxu0 %v3640
    %3685 = vmatmul.bf16.gmra.mxu0 %v3534
    %v3686 = vpop.f32.mrf.mxu0
    %v3687 = vadd.f32 %v3674, %v3686
    %v3688 = vpop.f32.mrf.mxu0
    %3689 = vdwg.mxu0
    %v3690 = vadd.f32 %v3472, %v3687
    %v3691 = vperm.slane %v27, 2
    %v3692 = vadd.f32 %v3690, %v3691
    %v3693 = vadd.f32 %v1944, %v3692
    %v3694 = vsel %vm60, %v3693, 0.0
    %3695 = vadd.xlane.f32.xlu0 %v3694
    %v3696 = vpop.xlane.xlu0 %3695
    %v3697 = vmul.f32 %v3696, %v94
    %v3698 = vsub.f32 %v3693, %v3697
    %v3699 = vmul.f32 %v3698, %v3698
    %v3700 = vsel %vm60, %v3699, 0.0
    %3701 = vadd.xlane.f32.xlu0 %v3700
    %v3702 = vpop.xlane.xlu0 %3701
    %v3703 = vmul.f32 %v3702, %v94
    %v3704 = vadd.f32 %v3703, 1e-05
    %v3705 = vrsqrt.pop %v3704
    %v3706 = vmul.f32 %v3705, %v3704
    %v3707 = vmul.f32 %v3706, %v3705
    %v3708 = vmul.f32 0.5, %v3707
    %v3709 = vsub.f32 1.5, %v3708
    %v3710 = vmul.f32 %v3705, %v3709
    %vm3711 = vweird.f32 %v3704
    %vm3712 = vweird.f32 %v3705
    %vm3713 = vmor %vm3711, %vm3712
    %v3714 = vsel %vm3713, %v3705, %v3710
    %v3715 = vmul.f32 %v3698, %v3714
    %v3716 = vperm.slane %v27, 3
    %v3717 = vmul.f32 %v3715, %v3716
    %v3718 = vperm.slane %v27, 4
    %v3719 = vadd.f32 %v3717, %v3718
    %v3720 = vld [vmem:[%s1 + $0x50] sm:$0xff]
    %v3721 = vld [vmem:[%s1 + $0x58] sm:$0xff]
    %v3722 = vld [vmem:[%s1 + $0x60] sm:$0xff]
    %v3723 = vld [vmem:[%s1 + $0x68] sm:$0xff]
    %v3724 = vperm.slane %v27, 5
    %v3726 = vsel %vm60, %v3719, 0
    %3728 = vmatpush.msra.mxu0 0.0
    %3729 = vmatpush.msra.mxu0 0.0
    %3730 = vmatpush.msra.mxu0 0.0
    %3731 = vmatpush.msra.mxu0 0.0
    %3732 = vmatpush.msra.mxu0 0.0
    %3733 = vmatpush.msra.mxu0 0.0
    %3734 = vmatpush.msra.mxu0 0.0
    %3735 = vmatpush.msra.mxu0 0.0
    %3736 = vmatpush.msra.mxu0 0.0
    %3737 = vmatpush.msra.mxu0 0.0
    %3738 = vmatpush.msra.mxu0 0.0
    %3739 = vmatpush.msra.mxu0 0.0
    %3740 = vmatpush.msra.mxu0 %v3723
    %3741 = vmatpush.msra.mxu0 %v3722
    %3742 = vmatpush.msra.mxu0 %v3721
    %3743 = vmatpush.msra.mxu0 %v3720
    %3744 = vmatmul.f32.gmra.mxu0 %v3726
    %v3745 = vpop.f32.mrf.mxu0
    %v3746 = vadd.f32 %v3724, %v3745
    %3747 = vdwg.mxu0
    %3748 = vst.msk [vmem:[#allocation2] sm:$0xff] %vm60, %v3746
    // Predicated region
    $region26: #{tpu_custom_call.1} parent=1 // pred_check
      _
    $region27: #{tpu_custom_call.1} parent=1 // pred_check_branch
      %3750 = sbr.rel (0) target = $region29
    $region28: #{tpu_custom_call.1} parent=1 // pred_region
      %3752 = vsyncadd [#allocation3], 0
      %s3754 = sshll.u32 [#allocation2], 4
      %s3755 = int_to_ptr.vmem [resolvable:$true] %s3754
      %s3756 = sshll.u32 %s6, 4
      %s3757 = int_to_ptr.hbm [resolvable:$true] %s3756
      %3759 = dma.vmem_to_hbm [thread:$0]  %s3755, 128, %s3757, [#allocation3]
    $region29: #{tpu_custom_call.1} parent=1 // pred_fallthru
      _
    // Predicated region
    $region30: #{tpu_custom_call.1} parent=1 // pred_check
      _
    $region31: #{tpu_custom_call.1} parent=1 // pred_check_branch
      %3761 = sbr.rel (0) target = $region33
    $region32: #{tpu_custom_call.1} parent=1 // pred_region
      %3763 = dma.done [#allocation3], 128
    $region33: #{tpu_custom_call.1} parent=1 // pred_fallthru
      _
    %3764 = vsyncpa [#allocation3], 1

// kernel: tpu_custom_call.1
$region0: #{tpu_custom_call.1}
  #allocation0 [shape = 'u32[]', space=smem, size = 0x4, offset = 0x4, fixed_abs, tag = 'smem constant byte address 0x4 - core index']
  #allocation1 [shape = 'u32[72,128]{1,0:T(1,128)}', space=vmem, size = 0x9000, scoped, tag = 'internal scratch']
  %s0 = inlined_call_operand.vmem [shape: f32[8,16], index: 0, kind: input, shape index: {}]
  %s1 = inlined_call_operand.vmem [shape: f32[112,32], index: 1, kind: input, shape index: {}]
  %s2 = inlined_call_operand.vmem [shape: f32[14,32], index: 2, kind: input, shape index: {}]
  %s3 = inlined_call_operand.vmem [shape: f32[16,1,256], index: 3, kind: input, shape index: {}]
  %s4 = inlined_call_operand.vmem [shape: bf16[16,32,256], index: 4, kind: input, shape index: {}]
  %s5 = inlined_call_operand.vmem [shape: bf16[16,256,32], index: 5, kind: input, shape index: {}]
  %s6 = inlined_call_operand.hbm [shape: f32[8,32], index: 6, kind: output, shape index: {}]
  %s7 = sld [smem:[#allocation0]]
  $region34: #{tpu_custom_call.1} parent=0
    _
  %s9 = ssub.s32 1, %s7
  %s10 = scalar_select 0, %s9, %s7
  $region1: #{tpu_custom_call.1} parent=0
    #allocation2 [shape = 'u8[4096]{0}', space=vmem, size = 0x1000, scoped, tag = 'output window, operand 0, single buffered']
    #allocation3 [shape = 's32[1]{0}', space=sflag, size = 0x4, scoped, tag = 'scoped memory for tpu_custom_call.1']
    %11 = vsyncpa [#allocation3], 0
    // Predicated region
    $region2: #{tpu_custom_call.1} parent=1 // pred_check
      _
    $region3: #{tpu_custom_call.1} parent=1 // pred_check_branch
      %13 = sbr.rel (0) target = $region5
    $region4: #{tpu_custom_call.1} parent=1 // pred_region
      _
    $region5: #{tpu_custom_call.1} parent=1 // pred_fallthru
      _
    // Predicated region
    $region6: #{tpu_custom_call.1} parent=1 // pred_check
      _
    $region7: #{tpu_custom_call.1} parent=1 // pred_check_branch
      %15 = sbr.rel (0) target = $region9
    $region8: #{tpu_custom_call.1} parent=1 // pred_region
      _
    $region9: #{tpu_custom_call.1} parent=1 // pred_fallthru
      _
    // Predicated region
    $region10: #{tpu_custom_call.1} parent=1 // pred_check
      _
    $region11: #{tpu_custom_call.1} parent=1 // pred_check_branch
      %17 = sbr.rel (0) target = $region13
    $region12: #{tpu_custom_call.1} parent=1 // pred_region
      _
    $region13: #{tpu_custom_call.1} parent=1 // pred_fallthru
      _
    // Predicated region
    $region14: #{tpu_custom_call.1} parent=1 // pred_check
      _
    $region15: #{tpu_custom_call.1} parent=1 // pred_check_branch
      %19 = sbr.rel (0) target = $region17
    $region16: #{tpu_custom_call.1} parent=1 // pred_region
      _
    $region17: #{tpu_custom_call.1} parent=1 // pred_fallthru
      _
    // Predicated region
    $region18: #{tpu_custom_call.1} parent=1 // pred_check
      _
    $region19: #{tpu_custom_call.1} parent=1 // pred_check_branch
      %21 = sbr.rel (0) target = $region21
    $region20: #{tpu_custom_call.1} parent=1 // pred_region
      _
    $region21: #{tpu_custom_call.1} parent=1 // pred_fallthru
      _
    // Predicated region
    $region22: #{tpu_custom_call.1} parent=1 // pred_check
      _
    $region23: #{tpu_custom_call.1} parent=1 // pred_check_branch
      %23 = sbr.rel (0) target = $region25
    $region24: #{tpu_custom_call.1} parent=1 // pred_region
      _
    $region25: #{tpu_custom_call.1} parent=1 // pred_fallthru
      _
    %v25 = vld [vmem:[%s0] sm:$0xff]
    %v26 = vld [vmem:[%s2] sm:$0xff]
    %v27 = vld [vmem:[%s2 + $0x8] sm:$0x3f]
    %v28 = vld [vmem:[%s1] sm:$0xff]
    %v29 = vld [vmem:[%s1 + $0x8] sm:$0xff]
    %v30 = vperm.slane %v26, 0
    %vm31 = vcmask 130048
    %v33 = vsel %vm31, %v25, 0
    %35 = vmatpush.msra.mxu0 0.0
    %36 = vmatpush.msra.mxu0 0.0
    %37 = vmatpush.msra.mxu0 0.0
    %38 = vmatpush.msra.mxu0 0.0
    %39 = vmatpush.msra.mxu0 0.0
    %40 = vmatpush.msra.mxu0 0.0
    %41 = vmatpush.msra.mxu0 0.0
    %42 = vmatpush.msra.mxu0 0.0
    %43 = vmatpush.msra.mxu0 0.0
    %44 = vmatpush.msra.mxu0 0.0
    %45 = vmatpush.msra.mxu0 0.0
    %46 = vmatpush.msra.mxu0 0.0
    %47 = vmatpush.msra.mxu0 0.0
    %48 = vmatpush.msra.mxu0 0.0
    %49 = vmatpush.msra.mxu0 %v29
    %50 = vmatpush.msra.mxu0 %v28
    %51 = vmatmul.f32.gmra.mxu0 %v33
    %v52 = vpop.f32.mrf.mxu0
    %v53 = vadd.f32 %v30, %v52
    %54 = vdwg.mxu0
    %v55 = vld [vmem:[%s1 + $0x10] sm:$0xff]
    %v56 = vld [vmem:[%s1 + $0x18] sm:$0xff]
    %v57 = vld [vmem:[%s1 + $0x20] sm:$0xff]
    %v58 = vld [vmem:[%s1 + $0x28] sm:$0xff]
    %v59 = vperm.slane %v26, 1
    %vm60 = vcmask 261120
    %v62 = vsel %vm60, %v53, 0
    %64 = vmatpush.msra.mxu0 0.0
    %65 = vmatpush.msra.mxu0 0.0
    %66 = vmatpush.msra.mxu0 0.0
    %67 = vmatpush.msra.mxu0 0.0
    %68 = vmatpush.msra.mxu0 0.0
    %69 = vmatpush.msra.mxu0 0.0
    %70 = vmatpush.msra.mxu0 0.0
    %71 = vmatpush.msra.mxu0 0.0
    %72 = vmatpush.msra.mxu0 0.0
    %73 = vmatpush.msra.mxu0 0.0
    %74 = vmatpush.msra.mxu0 0.0
    %75 = vmatpush.msra.mxu0 0.0
    %76 = vmatpush.msra.mxu0 %v58
    %77 = vmatpush.msra.mxu0 %v57
    %78 = vmatpush.msra.mxu0 %v56
    %79 = vmatpush.msra.mxu0 %v55
    %80 = vmatmul.f32.gmra.mxu0 %v62
    %v81 = vpop.f32.mrf.mxu0
    %v82 = vadd.f32 %v59, %v81
    %83 = vdwg.mxu0
    %v84 = vadd.f32 %v53, %v82
    %v85 = vsel %vm60, %v84, 0.0
    %86 = vadd.xlane.f32.xlu0 %v85
    %v87 = vpop.xlane.xlu0 %86
    %v88 = vrcp.pop 32.0
    %v89 = vmul.f32 32.0, %v88
    %v90 = vsub.f32 1.0, %v89
    %v91 = vmul.f32 %v88, %v90
    %v92 = vadd.f32 %v88, %v91
    %vm93 = vweird.f32 %v88
    %v94 = vsel %vm93, %v88, %v92
    %v95 = vmul.f32 %v87, %v94
    %v96 = vsub.f32 %v84, %v95
    %v97 = vmul.f32 %v96, %v96
    %v98 = vsel %vm60, %v97, 0.0
    %99 = vadd.xlane.f32.xlu0 %v98
    %v100 = vpop.xlane.xlu0 %99
    %v101 = vmul.f32 %v100, %v94
    %v102 = vadd.f32 %v101, 1e-05
    %v103 = vrsqrt.pop %v102
    %v104 = vmul.f32 %v103, %v102
    %v105 = vmul.f32 %v104, %v103
    %v106 = vmul.f32 0.5, %v105
    %v107 = vsub.f32 1.5, %v106
    %v108 = vmul.f32 %v103, %v107
    %vm109 = vweird.f32 %v102
    %vm110 = vweird.f32 %v103
    %vm111 = vmor %vm109, %vm110
    %v112 = vsel %vm111, %v103, %v108
    %v113 = vmul.f32 %v96, %v112
    %v114 = vperm.slane %v26, 2
    %v115 = vmul.f32 %v113, %v114
    %v116 = vperm.slane %v26, 3
    %v117 = vadd.f32 %v115, %v116
    %v118 = vpack.c.bf16 %v117, %v117
    %v119 = vld [vmem:[%s4] sm:$0xff]
    %v120 = vld [vmem:[%s4 + $0x8] sm:$0xff]
    %v121 = vld [vmem:[%s4 + $0x10] sm:$0xff]
    %v122 = vld [vmem:[%s4 + $0x18] sm:$0xff]
    %v123 = vld [vmem:[%s3] sm:$0x3]
    %v125 = vperm.slane %v123, 0
    %v126 = vperm.slane %v123, 1
    %v133 = vunpack.c.l.b16 %v119
    %v134 = vunpack.c.h.b16 %v119
    %v135 = vunpack.c.l.b16 %v120
    %v136 = vunpack.c.h.b16 %v120
    %v137 = vunpack.c.l.b16 %v121
    %v138 = vunpack.c.h.b16 %v121
    %v139 = vunpack.c.l.b16 %v122
    %v140 = vunpack.c.h.b16 %v122
    %v141 = vpack.c.b16 %v135, %v133
    %v142 = vpack.c.b16 %v136, %v134
    %v143 = vpack.c.b16 %v139, %v137
    %v144 = vpack.c.b16 %v140, %v138
    %v150 = vsel %vm60, %v118, 0
    %152 = vmatpush.bf16.msra.mxu0 0
    %153 = vmatpush.bf16.msra.mxu0 0
    %154 = vmatpush.bf16.msra.mxu0 0
    %155 = vmatpush.bf16.msra.mxu0 0
    %156 = vmatpush.bf16.msra.mxu0 0
    %157 = vmatpush.bf16.msra.mxu0 0
    %158 = vmatpush.bf16.msra.mxu0 %v143
    %159 = vmatpush.bf16.msra.mxu0 %v141
    %160 = vmatmul.bf16.gmra.mxu0 %v150
    %v161 = vpop.f32.mrf.mxu0
    %v162 = vadd.f32 %v125, %v161
    %v163 = vpop.f32.mrf.mxu0
    %164 = vdwg.mxu0
    %165 = vmatpush.bf16.msra.mxu0 0
    %166 = vmatpush.bf16.msra.mxu0 0
    %167 = vmatpush.bf16.msra.mxu0 0
    %168 = vmatpush.bf16.msra.mxu0 0
    %169 = vmatpush.bf16.msra.mxu0 0
    %170 = vmatpush.bf16.msra.mxu0 0
    %171 = vmatpush.bf16.msra.mxu0 %v144
    %172 = vmatpush.bf16.msra.mxu0 %v142
    %173 = vmatmul.bf16.gmra.mxu0 %v150
    %v174 = vpop.f32.mrf.mxu0
    %v175 = vadd.f32 %v126, %v174
    %v176 = vpop.f32.mrf.mxu0
    %177 = vdwg.mxu0
    %v178 = vmax.f32 %v162, 0.0
    %v179 = vmax.f32 %v175, 0.0
    %v180 = vpack.c.bf16 %v178, %v178
    %v181 = vpack.c.bf16 %v179, %v179
    %v182 = vld [vmem:[%s5] sm:$0xf]
    %v183 = vld [vmem:[%s5 + $0x4] sm:$0xf]
    %v184 = vld [vmem:[%s5 + $0x8] sm:$0xf]
    %v185 = vld [vmem:[%s5 + $0xc] sm:$0xf]
    %v186 = vld [vmem:[%s5 + $0x10] sm:$0xf]
    %v187 = vld [vmem:[%s5 + $0x14] sm:$0xf]
    %v188 = vld [vmem:[%s5 + $0x18] sm:$0xf]
    %v189 = vld [vmem:[%s5 + $0x1c] sm:$0xf]
    %v190 = vld [vmem:[%s5 + $0x20] sm:$0xf]
    %v191 = vld [vmem:[%s5 + $0x24] sm:$0xf]
    %v192 = vld [vmem:[%s5 + $0x28] sm:$0xf]
    %v193 = vld [vmem:[%s5 + $0x2c] sm:$0xf]
    %v194 = vld [vmem:[%s5 + $0x30] sm:$0xf]
    %v195 = vld [vmem:[%s5 + $0x34] sm:$0xf]
    %v196 = vld [vmem:[%s5 + $0x38] sm:$0xf]
    %v197 = vld [vmem:[%s5 + $0x3c] sm:$0xf]
    %v198 = vld [vmem:[%s5 + $0x40] sm:$0xf]
    %v199 = vld [vmem:[%s5 + $0x44] sm:$0xf]
    %v200 = vld [vmem:[%s5 + $0x48] sm:$0xf]
    %v201 = vld [vmem:[%s5 + $0x4c] sm:$0xf]
    %v202 = vld [vmem:[%s5 + $0x50] sm:$0xf]
    %v203 = vld [vmem:[%s5 + $0x54] sm:$0xf]
    %v204 = vld [vmem:[%s5 + $0x58] sm:$0xf]
    %v205 = vld [vmem:[%s5 + $0x5c] sm:$0xf]
    %v206 = vld [vmem:[%s5 + $0x60] sm:$0xf]
    %v207 = vld [vmem:[%s5 + $0x64] sm:$0xf]
    %v208 = vld [vmem:[%s5 + $0x68] sm:$0xf]
    %v209 = vld [vmem:[%s5 + $0x6c] sm:$0xf]
    %v210 = vld [vmem:[%s5 + $0x70] sm:$0xf]
    %v211 = vld [vmem:[%s5 + $0x74] sm:$0xf]
    %v212 = vld [vmem:[%s5 + $0x78] sm:$0xf]
    %v213 = vld [vmem:[%s5 + $0x7c] sm:$0xf]
    %s214 = scalar_lea.vmem %s4, 32
    %v215 = vld [vmem:[%s214] sm:$0xff]
    %v216 = vld [vmem:[%s214 + $0x8] sm:$0xff]
    %v217 = vld [vmem:[%s214 + $0x10] sm:$0xff]
    %v218 = vld [vmem:[%s214 + $0x18] sm:$0xff]
    %s219 = scalar_lea.vmem %s3, 2
    %v220 = vld [vmem:[%s219] sm:$0x3]
    %v222 = vperm.slane %v220, 0
    %v223 = vperm.slane %v220, 1
    %v230 = vunpack.c.l.b16 %v215
    %v231 = vunpack.c.h.b16 %v215
    %v232 = vunpack.c.l.b16 %v216
    %v233 = vunpack.c.h.b16 %v216
    %v234 = vunpack.c.l.b16 %v217
    %v235 = vunpack.c.h.b16 %v217
    %v236 = vunpack.c.l.b16 %v218
    %v237 = vunpack.c.h.b16 %v218
    %v238 = vpack.c.b16 %v232, %v230
    %v239 = vpack.c.b16 %v233, %v231
    %v240 = vpack.c.b16 %v236, %v234
    %v241 = vpack.c.b16 %v237, %v235
    %246 = vmatpush.bf16.msra.mxu0 0
    %247 = vmatpush.bf16.msra.mxu0 0
    %248 = vmatpush.bf16.msra.mxu0 0
    %249 = vmatpush.bf16.msra.mxu0 0
    %250 = vmatpush.bf16.msra.mxu0 0
    %251 = vmatpush.bf16.msra.mxu0 0
    %252 = vmatpush.bf16.msra.mxu0 %v240
    %253 = vmatpush.bf16.msra.mxu0 %v238
    %254 = vmatmul.bf16.gmra.mxu0 %v150
    %v255 = vpop.f32.mrf.mxu0
    %v256 = vadd.f32 %v222, %v255
    %v257 = vpop.f32.mrf.mxu0
    %258 = vdwg.mxu0
    %259 = vmatpush.bf16.msra.mxu0 0
    %260 = vmatpush.bf16.msra.mxu0 0
    %261 = vmatpush.bf16.msra.mxu0 0
    %262 = vmatpush.bf16.msra.mxu0 0
    %263 = vmatpush.bf16.msra.mxu0 0
    %264 = vmatpush.bf16.msra.mxu0 0
    %265 = vmatpush.bf16.msra.mxu0 %v241
    %266 = vmatpush.bf16.msra.mxu0 %v239
    %267 = vmatmul.bf16.gmra.mxu0 %v150
    %v268 = vpop.f32.mrf.mxu0
    %v269 = vadd.f32 %v223, %v268
    %v270 = vpop.f32.mrf.mxu0
    %271 = vdwg.mxu0
    %v272 = vmax.f32 %v256, 0.0
    %v273 = vmax.f32 %v269, 0.0
    %v274 = vpack.c.bf16 %v272, %v272
    %v275 = vpack.c.bf16 %v273, %v273
    %s276 = scalar_lea.vmem %s5, 128
    %v277 = vld [vmem:[%s276] sm:$0xf]
    %v278 = vld [vmem:[%s276 + $0x4] sm:$0xf]
    %v279 = vld [vmem:[%s276 + $0x8] sm:$0xf]
    %v280 = vld [vmem:[%s276 + $0xc] sm:$0xf]
    %v281 = vld [vmem:[%s276 + $0x10] sm:$0xf]
    %v282 = vld [vmem:[%s276 + $0x14] sm:$0xf]
    %v283 = vld [vmem:[%s276 + $0x18] sm:$0xf]
    %v284 = vld [vmem:[%s276 + $0x1c] sm:$0xf]
    %v285 = vld [vmem:[%s276 + $0x20] sm:$0xf]
    %v286 = vld [vmem:[%s276 + $0x24] sm:$0xf]
    %v287 = vld [vmem:[%s276 + $0x28] sm:$0xf]
    %v288 = vld [vmem:[%s276 + $0x2c] sm:$0xf]
    %v289 = vld [vmem:[%s276 + $0x30] sm:$0xf]
    %v290 = vld [vmem:[%s276 + $0x34] sm:$0xf]
    %v291 = vld [vmem:[%s276 + $0x38] sm:$0xf]
    %v292 = vld [vmem:[%s276 + $0x3c] sm:$0xf]
    %v293 = vld [vmem:[%s276 + $0x40] sm:$0xf]
    %v294 = vld [vmem:[%s276 + $0x44] sm:$0xf]
    %v295 = vld [vmem:[%s276 + $0x48] sm:$0xf]
    %v296 = vld [vmem:[%s276 + $0x4c] sm:$0xf]
    %v297 = vld [vmem:[%s276 + $0x50] sm:$0xf]
    %v298 = vld [vmem:[%s276 + $0x54] sm:$0xf]
    %v299 = vld [vmem:[%s276 + $0x58] sm:$0xf]
    %v300 = vld [vmem:[%s276 + $0x5c] sm:$0xf]
    %v301 = vld [vmem:[%s276 + $0x60] sm:$0xf]
    %v302 = vld [vmem:[%s276 + $0x64] sm:$0xf]
    %v303 = vld [vmem:[%s276 + $0x68] sm:$0xf]
    %v304 = vld [vmem:[%s276 + $0x6c] sm:$0xf]
    %v305 = vld [vmem:[%s276 + $0x70] sm:$0xf]
    %v306 = vld [vmem:[%s276 + $0x74] sm:$0xf]
    %v307 = vld [vmem:[%s276 + $0x78] sm:$0xf]
    %v308 = vld [vmem:[%s276 + $0x7c] sm:$0xf]
    %v341 = vunpack.c.l.b16 %v277
    %v342 = vunpack.c.l.b16 %v278
    %v343 = vunpack.c.l.b16 %v279
    %v344 = vunpack.c.l.b16 %v280
    %v345 = vunpack.c.l.b16 %v281
    %v346 = vunpack.c.l.b16 %v282
    %v347 = vunpack.c.l.b16 %v283
    %v348 = vunpack.c.l.b16 %v284
    %v349 = vunpack.c.l.b16 %v285
    %v350 = vunpack.c.l.b16 %v286
    %v351 = vunpack.c.l.b16 %v287
    %v352 = vunpack.c.l.b16 %v288
    %v353 = vunpack.c.l.b16 %v289
    %v354 = vunpack.c.l.b16 %v290
    %v355 = vunpack.c.l.b16 %v291
    %v356 = vunpack.c.l.b16 %v292
    %v357 = vunpack.c.l.b16 %v293
    %v358 = vunpack.c.l.b16 %v294
    %v359 = vunpack.c.l.b16 %v295
    %v360 = vunpack.c.l.b16 %v296
    %v361 = vunpack.c.l.b16 %v297
    %v362 = vunpack.c.l.b16 %v298
    %v363 = vunpack.c.l.b16 %v299
    %v364 = vunpack.c.l.b16 %v300
    %v365 = vunpack.c.l.b16 %v301
    %v366 = vunpack.c.l.b16 %v302
    %v367 = vunpack.c.l.b16 %v303
    %v368 = vunpack.c.l.b16 %v304
    %v369 = vunpack.c.l.b16 %v305
    %v370 = vunpack.c.l.b16 %v306
    %v371 = vunpack.c.l.b16 %v307
    %v372 = vunpack.c.l.b16 %v308
    %v373 = vpack.c.b16 %v342, %v341
    %v374 = vpack.c.b16 %v344, %v343
    %v375 = vpack.c.b16 %v346, %v345
    %v376 = vpack.c.b16 %v348, %v347
    %v377 = vpack.c.b16 %v350, %v349
    %v378 = vpack.c.b16 %v352, %v351
    %v379 = vpack.c.b16 %v354, %v353
    %v380 = vpack.c.b16 %v356, %v355
    %v381 = vpack.c.b16 %v358, %v357
    %v382 = vpack.c.b16 %v360, %v359
    %v383 = vpack.c.b16 %v362, %v361
    %v384 = vpack.c.b16 %v364, %v363
    %v385 = vpack.c.b16 %v366, %v365
    %v386 = vpack.c.b16 %v368, %v367
    %v387 = vpack.c.b16 %v370, %v369
    %v388 = vpack.c.b16 %v372, %v371
    %405 = vmatpush.bf16.msra.mxu0 %v380
    %406 = vmatpush.bf16.msra.mxu0 %v379
    %407 = vmatpush.bf16.msra.mxu0 %v378
    %408 = vmatpush.bf16.msra.mxu0 %v377
    %409 = vmatpush.bf16.msra.mxu0 %v376
    %410 = vmatpush.bf16.msra.mxu0 %v375
    %411 = vmatpush.bf16.msra.mxu0 %v374
    %412 = vmatpush.bf16.msra.mxu0 %v373
    %413 = vmatmul.bf16.gmra.mxu0 %v274
    %v414 = vpop.f32.mrf.mxu0
    %v415 = vadd.f32 0.0, %v414
    %v416 = vpop.f32.mrf.mxu0
    %417 = vdwg.mxu0
    %418 = vmatpush.bf16.msra.mxu0 %v388
    %419 = vmatpush.bf16.msra.mxu0 %v387
    %420 = vmatpush.bf16.msra.mxu0 %v386
    %421 = vmatpush.bf16.msra.mxu0 %v385
    %422 = vmatpush.bf16.msra.mxu0 %v384
    %423 = vmatpush.bf16.msra.mxu0 %v383
    %424 = vmatpush.bf16.msra.mxu0 %v382
    %425 = vmatpush.bf16.msra.mxu0 %v381
    %426 = vmatmul.bf16.gmra.mxu0 %v275
    %v427 = vpop.f32.mrf.mxu0
    %v428 = vadd.f32 %v415, %v427
    %v429 = vpop.f32.mrf.mxu0
    %430 = vdwg.mxu0
    %v463 = vunpack.c.l.b16 %v182
    %v464 = vunpack.c.l.b16 %v183
    %v465 = vunpack.c.l.b16 %v184
    %v466 = vunpack.c.l.b16 %v185
    %v467 = vunpack.c.l.b16 %v186
    %v468 = vunpack.c.l.b16 %v187
    %v469 = vunpack.c.l.b16 %v188
    %v470 = vunpack.c.l.b16 %v189
    %v471 = vunpack.c.l.b16 %v190
    %v472 = vunpack.c.l.b16 %v191
    %v473 = vunpack.c.l.b16 %v192
    %v474 = vunpack.c.l.b16 %v193
    %v475 = vunpack.c.l.b16 %v194
    %v476 = vunpack.c.l.b16 %v195
    %v477 = vunpack.c.l.b16 %v196
    %v478 = vunpack.c.l.b16 %v197
    %v479 = vunpack.c.l.b16 %v198
    %v480 = vunpack.c.l.b16 %v199
    %v481 = vunpack.c.l.b16 %v200
    %v482 = vunpack.c.l.b16 %v201
    %v483 = vunpack.c.l.b16 %v202
    %v484 = vunpack.c.l.b16 %v203
    %v485 = vunpack.c.l.b16 %v204
    %v486 = vunpack.c.l.b16 %v205
    %v487 = vunpack.c.l.b16 %v206
    %v488 = vunpack.c.l.b16 %v207
    %v489 = vunpack.c.l.b16 %v208
    %v490 = vunpack.c.l.b16 %v209
    %v491 = vunpack.c.l.b16 %v210
    %v492 = vunpack.c.l.b16 %v211
    %v493 = vunpack.c.l.b16 %v212
    %v494 = vunpack.c.l.b16 %v213
    %v495 = vpack.c.b16 %v464, %v463
    %v496 = vpack.c.b16 %v466, %v465
    %v497 = vpack.c.b16 %v468, %v467
    %v498 = vpack.c.b16 %v470, %v469
    %v499 = vpack.c.b16 %v472, %v471
    %v500 = vpack.c.b16 %v474, %v473
    %v501 = vpack.c.b16 %v476, %v475
    %v502 = vpack.c.b16 %v478, %v477
    %v503 = vpack.c.b16 %v480, %v479
    %v504 = vpack.c.b16 %v482, %v481
    %v505 = vpack.c.b16 %v484, %v483
    %v506 = vpack.c.b16 %v486, %v485
    %v507 = vpack.c.b16 %v488, %v487
    %v508 = vpack.c.b16 %v490, %v489
    %v509 = vpack.c.b16 %v492, %v491
    %v510 = vpack.c.b16 %v494, %v493
    %527 = vmatpush.bf16.msra.mxu0 %v502
    %528 = vmatpush.bf16.msra.mxu0 %v501
    %529 = vmatpush.bf16.msra.mxu0 %v500
    %530 = vmatpush.bf16.msra.mxu0 %v499
    %531 = vmatpush.bf16.msra.mxu0 %v498
    %532 = vmatpush.bf16.msra.mxu0 %v497
    %533 = vmatpush.bf16.msra.mxu0 %v496
    %534 = vmatpush.bf16.msra.mxu0 %v495
    %535 = vmatmul.bf16.gmra.mxu0 %v180
    %v536 = vpop.f32.mrf.mxu0
    %v537 = vadd.f32 %v428, %v536
    %v538 = vpop.f32.mrf.mxu0
    %539 = vdwg.mxu0
    %540 = vmatpush.bf16.msra.mxu0 %v510
    %541 = vmatpush.bf16.msra.mxu0 %v509
    %542 = vmatpush.bf16.msra.mxu0 %v508
    %543 = vmatpush.bf16.msra.mxu0 %v507
    %544 = vmatpush.bf16.msra.mxu0 %v506
    %545 = vmatpush.bf16.msra.mxu0 %v505
    %546 = vmatpush.bf16.msra.mxu0 %v504
    %547 = vmatpush.bf16.msra.mxu0 %v503
    %548 = vmatmul.bf16.gmra.mxu0 %v181
    %v549 = vpop.f32.mrf.mxu0
    %v550 = vadd.f32 %v537, %v549
    %v551 = vpop.f32.mrf.mxu0
    %552 = vdwg.mxu0
    %s553 = scalar_lea.vmem %s4, 64
    %v554 = vld [vmem:[%s553] sm:$0xff]
    %v555 = vld [vmem:[%s553 + $0x8] sm:$0xff]
    %v556 = vld [vmem:[%s553 + $0x10] sm:$0xff]
    %v557 = vld [vmem:[%s553 + $0x18] sm:$0xff]
    %s558 = scalar_lea.vmem %s3, 4
    %v559 = vld [vmem:[%s558] sm:$0x3]
    %v561 = vperm.slane %v559, 0
    %v562 = vperm.slane %v559, 1
    %v569 = vunpack.c.l.b16 %v554
    %v570 = vunpack.c.h.b16 %v554
    %v571 = vunpack.c.l.b16 %v555
    %v572 = vunpack.c.h.b16 %v555
    %v573 = vunpack.c.l.b16 %v556
    %v574 = vunpack.c.h.b16 %v556
    %v575 = vunpack.c.l.b16 %v557
    %v576 = vunpack.c.h.b16 %v557
    %v577 = vpack.c.b16 %v571, %v569
    %v578 = vpack.c.b16 %v572, %v570
    %v579 = vpack.c.b16 %v575, %v573
    %v580 = vpack.c.b16 %v576, %v574
    %585 = vmatpush.bf16.msra.mxu0 0
    %586 = vmatpush.bf16.msra.mxu0 0
    %587 = vmatpush.bf16.msra.mxu0 0
    %588 = vmatpush.bf16.msra.mxu0 0
    %589 = vmatpush.bf16.msra.mxu0 0
    %590 = vmatpush.bf16.msra.mxu0 0
    %591 = vmatpush.bf16.msra.mxu0 %v579
    %592 = vmatpush.bf16.msra.mxu0 %v577
    %593 = vmatmul.bf16.gmra.mxu0 %v150
    %v594 = vpop.f32.mrf.mxu0
    %v595 = vadd.f32 %v561, %v594
    %v596 = vpop.f32.mrf.mxu0
    %597 = vdwg.mxu0
    %598 = vmatpush.bf16.msra.mxu0 0
    %599 = vmatpush.bf16.msra.mxu0 0
    %600 = vmatpush.bf16.msra.mxu0 0
    %601 = vmatpush.bf16.msra.mxu0 0
    %602 = vmatpush.bf16.msra.mxu0 0
    %603 = vmatpush.bf16.msra.mxu0 0
    %604 = vmatpush.bf16.msra.mxu0 %v580
    %605 = vmatpush.bf16.msra.mxu0 %v578
    %606 = vmatmul.bf16.gmra.mxu0 %v150
    %v607 = vpop.f32.mrf.mxu0
    %v608 = vadd.f32 %v562, %v607
    %v609 = vpop.f32.mrf.mxu0
    %610 = vdwg.mxu0
    %v611 = vmax.f32 %v595, 0.0
    %v612 = vmax.f32 %v608, 0.0
    %v613 = vpack.c.bf16 %v611, %v611
    %v614 = vpack.c.bf16 %v612, %v612
    %s615 = scalar_lea.vmem %s5, 256
    %v616 = vld [vmem:[%s615] sm:$0xf]
    %v617 = vld [vmem:[%s615 + $0x4] sm:$0xf]
    %v618 = vld [vmem:[%s615 + $0x8] sm:$0xf]
    %v619 = vld [vmem:[%s615 + $0xc] sm:$0xf]
    %v620 = vld [vmem:[%s615 + $0x10] sm:$0xf]
    %v621 = vld [vmem:[%s615 + $0x14] sm:$0xf]
    %v622 = vld [vmem:[%s615 + $0x18] sm:$0xf]
    %v623 = vld [vmem:[%s615 + $0x1c] sm:$0xf]
    %v624 = vld [vmem:[%s615 + $0x20] sm:$0xf]
    %v625 = vld [vmem:[%s615 + $0x24] sm:$0xf]
    %v626 = vld [vmem:[%s615 + $0x28] sm:$0xf]
    %v627 = vld [vmem:[%s615 + $0x2c] sm:$0xf]
    %v628 = vld [vmem:[%s615 + $0x30] sm:$0xf]
    %v629 = vld [vmem:[%s615 + $0x34] sm:$0xf]
    %v630 = vld [vmem:[%s615 + $0x38] sm:$0xf]
    %v631 = vld [vmem:[%s615 + $0x3c] sm:$0xf]
    %v632 = vld [vmem:[%s615 + $0x40] sm:$0xf]
    %v633 = vld [vmem:[%s615 + $0x44] sm:$0xf]
    %v634 = vld [vmem:[%s615 + $0x48] sm:$0xf]
    %v635 = vld [vmem:[%s615 + $0x4c] sm:$0xf]
    %v636 = vld [vmem:[%s615 + $0x50] sm:$0xf]
    %v637 = vld [vmem:[%s615 + $0x54] sm:$0xf]
    %v638 = vld [vmem:[%s615 + $0x58] sm:$0xf]
    %v639 = vld [vmem:[%s615 + $0x5c] sm:$0xf]
    %v640 = vld [vmem:[%s615 + $0x60] sm:$0xf]
    %v641 = vld [vmem:[%s615 + $0x64] sm:$0xf]
    %v642 = vld [vmem:[%s615 + $0x68] sm:$0xf]
    %v643 = vld [vmem:[%s615 + $0x6c] sm:$0xf]
    %v644 = vld [vmem:[%s615 + $0x70] sm:$0xf]
    %v645 = vld [vmem:[%s615 + $0x74] sm:$0xf]
    %v646 = vld [vmem:[%s615 + $0x78] sm:$0xf]
    %v647 = vld [vmem:[%s615 + $0x7c] sm:$0xf]
    %v680 = vunpack.c.l.b16 %v616
    %v681 = vunpack.c.l.b16 %v617
    %v682 = vunpack.c.l.b16 %v618
    %v683 = vunpack.c.l.b16 %v619
    %v684 = vunpack.c.l.b16 %v620
    %v685 = vunpack.c.l.b16 %v621
    %v686 = vunpack.c.l.b16 %v622
    %v687 = vunpack.c.l.b16 %v623
    %v688 = vunpack.c.l.b16 %v624
    %v689 = vunpack.c.l.b16 %v625
    %v690 = vunpack.c.l.b16 %v626
    %v691 = vunpack.c.l.b16 %v627
    %v692 = vunpack.c.l.b16 %v628
    %v693 = vunpack.c.l.b16 %v629
    %v694 = vunpack.c.l.b16 %v630
    %v695 = vunpack.c.l.b16 %v631
    %v696 = vunpack.c.l.b16 %v632
    %v697 = vunpack.c.l.b16 %v633
    %v698 = vunpack.c.l.b16 %v634
    %v699 = vunpack.c.l.b16 %v635
    %v700 = vunpack.c.l.b16 %v636
    %v701 = vunpack.c.l.b16 %v637
    %v702 = vunpack.c.l.b16 %v638
    %v703 = vunpack.c.l.b16 %v639
    %v704 = vunpack.c.l.b16 %v640
    %v705 = vunpack.c.l.b16 %v641
    %v706 = vunpack.c.l.b16 %v642
    %v707 = vunpack.c.l.b16 %v643
    %v708 = vunpack.c.l.b16 %v644
    %v709 = vunpack.c.l.b16 %v645
    %v710 = vunpack.c.l.b16 %v646
    %v711 = vunpack.c.l.b16 %v647
    %v712 = vpack.c.b16 %v681, %v680
    %v713 = vpack.c.b16 %v683, %v682
    %v714 = vpack.c.b16 %v685, %v684
    %v715 = vpack.c.b16 %v687, %v686
    %v716 = vpack.c.b16 %v689, %v688
    %v717 = vpack.c.b16 %v691, %v690
    %v718 = vpack.c.b16 %v693, %v692
    %v719 = vpack.c.b16 %v695, %v694
    %v720 = vpack.c.b16 %v697, %v696
    %v721 = vpack.c.b16 %v699, %v698
    %v722 = vpack.c.b16 %v701, %v700
    %v723 = vpack.c.b16 %v703, %v702
    %v724 = vpack.c.b16 %v705, %v704
    %v725 = vpack.c.b16 %v707, %v706
    %v726 = vpack.c.b16 %v709, %v708
    %v727 = vpack.c.b16 %v711, %v710
    %744 = vmatpush.bf16.msra.mxu0 %v719
    %745 = vmatpush.bf16.msra.mxu0 %v718
    %746 = vmatpush.bf16.msra.mxu0 %v717
    %747 = vmatpush.bf16.msra.mxu0 %v716
    %748 = vmatpush.bf16.msra.mxu0 %v715
    %749 = vmatpush.bf16.msra.mxu0 %v714
    %750 = vmatpush.bf16.msra.mxu0 %v713
    %751 = vmatpush.bf16.msra.mxu0 %v712
    %752 = vmatmul.bf16.gmra.mxu0 %v613
    %v753 = vpop.f32.mrf.mxu0
    %v754 = vadd.f32 0.0, %v753
    %v755 = vpop.f32.mrf.mxu0
    %756 = vdwg.mxu0
    %757 = vmatpush.bf16.msra.mxu0 %v727
    %758 = vmatpush.bf16.msra.mxu0 %v726
    %759 = vmatpush.bf16.msra.mxu0 %v725
    %760 = vmatpush.bf16.msra.mxu0 %v724
    %761 = vmatpush.bf16.msra.mxu0 %v723
    %762 = vmatpush.bf16.msra.mxu0 %v722
    %763 = vmatpush.bf16.msra.mxu0 %v721
    %764 = vmatpush.bf16.msra.mxu0 %v720
    %765 = vmatmul.bf16.gmra.mxu0 %v614
    %v766 = vpop.f32.mrf.mxu0
    %v767 = vadd.f32 %v754, %v766
    %v768 = vpop.f32.mrf.mxu0
    %769 = vdwg.mxu0
    %v770 = vadd.f32 %v550, %v767
    %s771 = scalar_lea.vmem %s4, 96
    %v772 = vld [vmem:[%s771] sm:$0xff]
    %v773 = vld [vmem:[%s771 + $0x8] sm:$0xff]
    %v774 = vld [vmem:[%s771 + $0x10] sm:$0xff]
    %v775 = vld [vmem:[%s771 + $0x18] sm:$0xff]
    %s776 = scalar_lea.vmem %s3, 6
    %v777 = vld [vmem:[%s776] sm:$0x3]
    %v779 = vperm.slane %v777, 0
    %v780 = vperm.slane %v777, 1
    %v787 = vunpack.c.l.b16 %v772
    %v788 = vunpack.c.h.b16 %v772
    %v789 = vunpack.c.l.b16 %v773
    %v790 = vunpack.c.h.b16 %v773
    %v791 = vunpack.c.l.b16 %v774
    %v792 = vunpack.c.h.b16 %v774
    %v793 = vunpack.c.l.b16 %v775
    %v794 = vunpack.c.h.b16 %v775
    %v795 = vpack.c.b16 %v789, %v787
    %v796 = vpack.c.b16 %v790, %v788
    %v797 = vpack.c.b16 %v793, %v791
    %v798 = vpack.c.b16 %v794, %v792
    %803 = vmatpush.bf16.msra.mxu0 0
    %804 = vmatpush.bf16.msra.mxu0 0
    %805 = vmatpush.bf16.msra.mxu0 0
    %806 = vmatpush.bf16.msra.mxu0 0
    %807 = vmatpush.bf16.msra.mxu0 0
    %808 = vmatpush.bf16.msra.mxu0 0
    %809 = vmatpush.bf16.msra.mxu0 %v797
    %810 = vmatpush.bf16.msra.mxu0 %v795
    %811 = vmatmul.bf16.gmra.mxu0 %v150
    %v812 = vpop.f32.mrf.mxu0
    %v813 = vadd.f32 %v779, %v812
    %v814 = vpop.f32.mrf.mxu0
    %815 = vdwg.mxu0
    %816 = vmatpush.bf16.msra.mxu0 0
    %817 = vmatpush.bf16.msra.mxu0 0
    %818 = vmatpush.bf16.msra.mxu0 0
    %819 = vmatpush.bf16.msra.mxu0 0
    %820 = vmatpush.bf16.msra.mxu0 0
    %821 = vmatpush.bf16.msra.mxu0 0
    %822 = vmatpush.bf16.msra.mxu0 %v798
    %823 = vmatpush.bf16.msra.mxu0 %v796
    %824 = vmatmul.bf16.gmra.mxu0 %v150
    %v825 = vpop.f32.mrf.mxu0
    %v826 = vadd.f32 %v780, %v825
    %v827 = vpop.f32.mrf.mxu0
    %828 = vdwg.mxu0
    %v829 = vmax.f32 %v813, 0.0
    %v830 = vmax.f32 %v826, 0.0
    %v831 = vpack.c.bf16 %v829, %v829
    %v832 = vpack.c.bf16 %v830, %v830
    %s833 = scalar_lea.vmem %s5, 384
    %v834 = vld [vmem:[%s833] sm:$0xf]
    %v835 = vld [vmem:[%s833 + $0x4] sm:$0xf]
    %v836 = vld [vmem:[%s833 + $0x8] sm:$0xf]
    %v837 = vld [vmem:[%s833 + $0xc] sm:$0xf]
    %v838 = vld [vmem:[%s833 + $0x10] sm:$0xf]
    %v839 = vld [vmem:[%s833 + $0x14] sm:$0xf]
    %v840 = vld [vmem:[%s833 + $0x18] sm:$0xf]
    %v841 = vld [vmem:[%s833 + $0x1c] sm:$0xf]
    %v842 = vld [vmem:[%s833 + $0x20] sm:$0xf]
    %v843 = vld [vmem:[%s833 + $0x24] sm:$0xf]
    %v844 = vld [vmem:[%s833 + $0x28] sm:$0xf]
    %v845 = vld [vmem:[%s833 + $0x2c] sm:$0xf]
    %v846 = vld [vmem:[%s833 + $0x30] sm:$0xf]
    %v847 = vld [vmem:[%s833 + $0x34] sm:$0xf]
    %v848 = vld [vmem:[%s833 + $0x38] sm:$0xf]
    %v849 = vld [vmem:[%s833 + $0x3c] sm:$0xf]
    %v850 = vld [vmem:[%s833 + $0x40] sm:$0xf]
    %v851 = vld [vmem:[%s833 + $0x44] sm:$0xf]
    %v852 = vld [vmem:[%s833 + $0x48] sm:$0xf]
    %v853 = vld [vmem:[%s833 + $0x4c] sm:$0xf]
    %v854 = vld [vmem:[%s833 + $0x50] sm:$0xf]
    %v855 = vld [vmem:[%s833 + $0x54] sm:$0xf]
    %v856 = vld [vmem:[%s833 + $0x58] sm:$0xf]
    %v857 = vld [vmem:[%s833 + $0x5c] sm:$0xf]
    %v858 = vld [vmem:[%s833 + $0x60] sm:$0xf]
    %v859 = vld [vmem:[%s833 + $0x64] sm:$0xf]
    %v860 = vld [vmem:[%s833 + $0x68] sm:$0xf]
    %v861 = vld [vmem:[%s833 + $0x6c] sm:$0xf]
    %v862 = vld [vmem:[%s833 + $0x70] sm:$0xf]
    %v863 = vld [vmem:[%s833 + $0x74] sm:$0xf]
    %v864 = vld [vmem:[%s833 + $0x78] sm:$0xf]
    %v865 = vld [vmem:[%s833 + $0x7c] sm:$0xf]
    %v898 = vunpack.c.l.b16 %v834
    %v899 = vunpack.c.l.b16 %v835
    %v900 = vunpack.c.l.b16 %v836
    %v901 = vunpack.c.l.b16 %v837
    %v902 = vunpack.c.l.b16 %v838
    %v903 = vunpack.c.l.b16 %v839
    %v904 = vunpack.c.l.b16 %v840
    %v905 = vunpack.c.l.b16 %v841
    %v906 = vunpack.c.l.b16 %v842
    %v907 = vunpack.c.l.b16 %v843
    %v908 = vunpack.c.l.b16 %v844
    %v909 = vunpack.c.l.b16 %v845
    %v910 = vunpack.c.l.b16 %v846
    %v911 = vunpack.c.l.b16 %v847
    %v912 = vunpack.c.l.b16 %v848
    %v913 = vunpack.c.l.b16 %v849
    %v914 = vunpack.c.l.b16 %v850
    %v915 = vunpack.c.l.b16 %v851
    %v916 = vunpack.c.l.b16 %v852
    %v917 = vunpack.c.l.b16 %v853
    %v918 = vunpack.c.l.b16 %v854
    %v919 = vunpack.c.l.b16 %v855
    %v920 = vunpack.c.l.b16 %v856
    %v921 = vunpack.c.l.b16 %v857
    %v922 = vunpack.c.l.b16 %v858
    %v923 = vunpack.c.l.b16 %v859
    %v924 = vunpack.c.l.b16 %v860
    %v925 = vunpack.c.l.b16 %v861
    %v926 = vunpack.c.l.b16 %v862
    %v927 = vunpack.c.l.b16 %v863
    %v928 = vunpack.c.l.b16 %v864
    %v929 = vunpack.c.l.b16 %v865
    %v930 = vpack.c.b16 %v899, %v898
    %v931 = vpack.c.b16 %v901, %v900
    %v932 = vpack.c.b16 %v903, %v902
    %v933 = vpack.c.b16 %v905, %v904
    %v934 = vpack.c.b16 %v907, %v906
    %v935 = vpack.c.b16 %v909, %v908
    %v936 = vpack.c.b16 %v911, %v910
    %v937 = vpack.c.b16 %v913, %v912
    %v938 = vpack.c.b16 %v915, %v914
    %v939 = vpack.c.b16 %v917, %v916
    %v940 = vpack.c.b16 %v919, %v918
    %v941 = vpack.c.b16 %v921, %v920
    %v942 = vpack.c.b16 %v923, %v922
    %v943 = vpack.c.b16 %v925, %v924
    %v944 = vpack.c.b16 %v927, %v926
    %v945 = vpack.c.b16 %v929, %v928
    %962 = vmatpush.bf16.msra.mxu0 %v937
    %963 = vmatpush.bf16.msra.mxu0 %v936
    %964 = vmatpush.bf16.msra.mxu0 %v935
    %965 = vmatpush.bf16.msra.mxu0 %v934
    %966 = vmatpush.bf16.msra.mxu0 %v933
    %967 = vmatpush.bf16.msra.mxu0 %v932
    %968 = vmatpush.bf16.msra.mxu0 %v931
    %969 = vmatpush.bf16.msra.mxu0 %v930
    %970 = vmatmul.bf16.gmra.mxu0 %v831
    %v971 = vpop.f32.mrf.mxu0
    %v972 = vadd.f32 0.0, %v971
    %v973 = vpop.f32.mrf.mxu0
    %974 = vdwg.mxu0
    %975 = vmatpush.bf16.msra.mxu0 %v945
    %976 = vmatpush.bf16.msra.mxu0 %v944
    %977 = vmatpush.bf16.msra.mxu0 %v943
    %978 = vmatpush.bf16.msra.mxu0 %v942
    %979 = vmatpush.bf16.msra.mxu0 %v941
    %980 = vmatpush.bf16.msra.mxu0 %v940
    %981 = vmatpush.bf16.msra.mxu0 %v939
    %982 = vmatpush.bf16.msra.mxu0 %v938
    %983 = vmatmul.bf16.gmra.mxu0 %v832
    %v984 = vpop.f32.mrf.mxu0
    %v985 = vadd.f32 %v972, %v984
    %v986 = vpop.f32.mrf.mxu0
    %987 = vdwg.mxu0
    %v988 = vadd.f32 %v770, %v985
    %s989 = scalar_lea.vmem %s4, 128
    %v990 = vld [vmem:[%s989] sm:$0xff]
    %v991 = vld [vmem:[%s989 + $0x8] sm:$0xff]
    %v992 = vld [vmem:[%s989 + $0x10] sm:$0xff]
    %v993 = vld [vmem:[%s989 + $0x18] sm:$0xff]
    %s994 = scalar_lea.vmem %s3, 8
    %v995 = vld [vmem:[%s994] sm:$0x3]
    %v997 = vperm.slane %v995, 0
    %v998 = vperm.slane %v995, 1
    %v1005 = vunpack.c.l.b16 %v990
    %v1006 = vunpack.c.h.b16 %v990
    %v1007 = vunpack.c.l.b16 %v991
    %v1008 = vunpack.c.h.b16 %v991
    %v1009 = vunpack.c.l.b16 %v992
    %v1010 = vunpack.c.h.b16 %v992
    %v1011 = vunpack.c.l.b16 %v993
    %v1012 = vunpack.c.h.b16 %v993
    %v1013 = vpack.c.b16 %v1007, %v1005
    %v1014 = vpack.c.b16 %v1008, %v1006
    %v1015 = vpack.c.b16 %v1011, %v1009
    %v1016 = vpack.c.b16 %v1012, %v1010
    %1021 = vmatpush.bf16.msra.mxu0 0
    %1022 = vmatpush.bf16.msra.mxu0 0
    %1023 = vmatpush.bf16.msra.mxu0 0
    %1024 = vmatpush.bf16.msra.mxu0 0
    %1025 = vmatpush.bf16.msra.mxu0 0
    %1026 = vmatpush.bf16.msra.mxu0 0
    %1027 = vmatpush.bf16.msra.mxu0 %v1015
    %1028 = vmatpush.bf16.msra.mxu0 %v1013
    %1029 = vmatmul.bf16.gmra.mxu0 %v150
    %v1030 = vpop.f32.mrf.mxu0
    %v1031 = vadd.f32 %v997, %v1030
    %v1032 = vpop.f32.mrf.mxu0
    %1033 = vdwg.mxu0
    %1034 = vmatpush.bf16.msra.mxu0 0
    %1035 = vmatpush.bf16.msra.mxu0 0
    %1036 = vmatpush.bf16.msra.mxu0 0
    %1037 = vmatpush.bf16.msra.mxu0 0
    %1038 = vmatpush.bf16.msra.mxu0 0
    %1039 = vmatpush.bf16.msra.mxu0 0
    %1040 = vmatpush.bf16.msra.mxu0 %v1016
    %1041 = vmatpush.bf16.msra.mxu0 %v1014
    %1042 = vmatmul.bf16.gmra.mxu0 %v150
    %v1043 = vpop.f32.mrf.mxu0
    %v1044 = vadd.f32 %v998, %v1043
    %v1045 = vpop.f32.mrf.mxu0
    %1046 = vdwg.mxu0
    %v1047 = vmax.f32 %v1031, 0.0
    %v1048 = vmax.f32 %v1044, 0.0
    %v1049 = vpack.c.bf16 %v1047, %v1047
    %v1050 = vpack.c.bf16 %v1048, %v1048
    %s1051 = scalar_lea.vmem %s5, 512
    %v1052 = vld [vmem:[%s1051] sm:$0xf]
    %v1053 = vld [vmem:[%s1051 + $0x4] sm:$0xf]
    %v1054 = vld [vmem:[%s1051 + $0x8] sm:$0xf]
    %v1055 = vld [vmem:[%s1051 + $0xc] sm:$0xf]
    %v1056 = vld [vmem:[%s1051 + $0x10] sm:$0xf]
    %v1057 = vld [vmem:[%s1051 + $0x14] sm:$0xf]
    %v1058 = vld [vmem:[%s1051 + $0x18] sm:$0xf]
    %v1059 = vld [vmem:[%s1051 + $0x1c] sm:$0xf]
    %v1060 = vld [vmem:[%s1051 + $0x20] sm:$0xf]
    %v1061 = vld [vmem:[%s1051 + $0x24] sm:$0xf]
    %v1062 = vld [vmem:[%s1051 + $0x28] sm:$0xf]
    %v1063 = vld [vmem:[%s1051 + $0x2c] sm:$0xf]
    %v1064 = vld [vmem:[%s1051 + $0x30] sm:$0xf]
    %v1065 = vld [vmem:[%s1051 + $0x34] sm:$0xf]
    %v1066 = vld [vmem:[%s1051 + $0x38] sm:$0xf]
    %v1067 = vld [vmem:[%s1051 + $0x3c] sm:$0xf]
    %v1068 = vld [vmem:[%s1051 + $0x40] sm:$0xf]
    %v1069 = vld [vmem:[%s1051 + $0x44] sm:$0xf]
    %v1070 = vld [vmem:[%s1051 + $0x48] sm:$0xf]
    %v1071 = vld [vmem:[%s1051 + $0x4c] sm:$0xf]
    %v1072 = vld [vmem:[%s1051 + $0x50] sm:$0xf]
    %v1073 = vld [vmem:[%s1051 + $0x54] sm:$0xf]
    %v1074 = vld [vmem:[%s1051 + $0x58] sm:$0xf]
    %v1075 = vld [vmem:[%s1051 + $0x5c] sm:$0xf]
    %v1076 = vld [vmem:[%s1051 + $0x60] sm:$0xf]
    %v1077 = vld [vmem:[%s1051 + $0x64] sm:$0xf]
    %v1078 = vld [vmem:[%s1051 + $0x68] sm:$0xf]
    %v1079 = vld [vmem:[%s1051 + $0x6c] sm:$0xf]
    %v1080 = vld [vmem:[%s1051 + $0x70] sm:$0xf]
    %v1081 = vld [vmem:[%s1051 + $0x74] sm:$0xf]
    %v1082 = vld [vmem:[%s1051 + $0x78] sm:$0xf]
    %v1083 = vld [vmem:[%s1051 + $0x7c] sm:$0xf]
    %v1116 = vunpack.c.l.b16 %v1052
    %v1117 = vunpack.c.l.b16 %v1053
    %v1118 = vunpack.c.l.b16 %v1054
    %v1119 = vunpack.c.l.b16 %v1055
    %v1120 = vunpack.c.l.b16 %v1056
    %v1121 = vunpack.c.l.b16 %v1057
    %v1122 = vunpack.c.l.b16 %v1058
    %v1123 = vunpack.c.l.b16 %v1059
    %v1124 = vunpack.c.l.b16 %v1060
    %v1125 = vunpack.c.l.b16 %v1061
    %v1126 = vunpack.c.l.b16 %v1062
    %v1127 = vunpack.c.l.b16 %v1063
    %v1128 = vunpack.c.l.b16 %v1064
    %v1129 = vunpack.c.l.b16 %v1065
    %v1130 = vunpack.c.l.b16 %v1066
    %v1131 = vunpack.c.l.b16 %v1067
    %v1132 = vunpack.c.l.b16 %v1068
    %v1133 = vunpack.c.l.b16 %v1069
    %v1134 = vunpack.c.l.b16 %v1070
    %v1135 = vunpack.c.l.b16 %v1071
    %v1136 = vunpack.c.l.b16 %v1072
    %v1137 = vunpack.c.l.b16 %v1073
    %v1138 = vunpack.c.l.b16 %v1074
    %v1139 = vunpack.c.l.b16 %v1075
    %v1140 = vunpack.c.l.b16 %v1076
    %v1141 = vunpack.c.l.b16 %v1077
    %v1142 = vunpack.c.l.b16 %v1078
    %v1143 = vunpack.c.l.b16 %v1079
    %v1144 = vunpack.c.l.b16 %v1080
    %v1145 = vunpack.c.l.b16 %v1081
    %v1146 = vunpack.c.l.b16 %v1082
    %v1147 = vunpack.c.l.b16 %v1083
    %v1148 = vpack.c.b16 %v1117, %v1116
    %v1149 = vpack.c.b16 %v1119, %v1118
    %v1150 = vpack.c.b16 %v1121, %v1120
    %v1151 = vpack.c.b16 %v1123, %v1122
    %v1152 = vpack.c.b16 %v1125, %v1124
    %v1153 = vpack.c.b16 %v1127, %v1126
    %v1154 = vpack.c.b16 %v1129, %v1128
    %v1155 = vpack.c.b16 %v1131, %v1130
    %v1156 = vpack.c.b16 %v1133, %v1132
    %v1157 = vpack.c.b16 %v1135, %v1134
    %v1158 = vpack.c.b16 %v1137, %v1136
    %v1159 = vpack.c.b16 %v1139, %v1138
    %v1160 = vpack.c.b16 %v1141, %v1140
    %v1161 = vpack.c.b16 %v1143, %v1142
    %v1162 = vpack.c.b16 %v1145, %v1144
    %v1163 = vpack.c.b16 %v1147, %v1146
    %1180 = vmatpush.bf16.msra.mxu0 %v1155
    %1181 = vmatpush.bf16.msra.mxu0 %v1154
    %1182 = vmatpush.bf16.msra.mxu0 %v1153
    %1183 = vmatpush.bf16.msra.mxu0 %v1152
    %1184 = vmatpush.bf16.msra.mxu0 %v1151
    %1185 = vmatpush.bf16.msra.mxu0 %v1150
    %1186 = vmatpush.bf16.msra.mxu0 %v1149
    %1187 = vmatpush.bf16.msra.mxu0 %v1148
    %1188 = vmatmul.bf16.gmra.mxu0 %v1049
    %v1189 = vpop.f32.mrf.mxu0
    %v1190 = vadd.f32 0.0, %v1189
    %v1191 = vpop.f32.mrf.mxu0
    %1192 = vdwg.mxu0
    %1193 = vmatpush.bf16.msra.mxu0 %v1163
    %1194 = vmatpush.bf16.msra.mxu0 %v1162
    %1195 = vmatpush.bf16.msra.mxu0 %v1161
    %1196 = vmatpush.bf16.msra.mxu0 %v1160
    %1197 = vmatpush.bf16.msra.mxu0 %v1159
    %1198 = vmatpush.bf16.msra.mxu0 %v1158
    %1199 = vmatpush.bf16.msra.mxu0 %v1157
    %1200 = vmatpush.bf16.msra.mxu0 %v1156
    %1201 = vmatmul.bf16.gmra.mxu0 %v1050
    %v1202 = vpop.f32.mrf.mxu0
    %v1203 = vadd.f32 %v1190, %v1202
    %v1204 = vpop.f32.mrf.mxu0
    %1205 = vdwg.mxu0
    %v1206 = vadd.f32 %v988, %v1203
    %s1207 = scalar_lea.vmem %s4, 160
    %v1208 = vld [vmem:[%s1207] sm:$0xff]
    %v1209 = vld [vmem:[%s1207 + $0x8] sm:$0xff]
    %v1210 = vld [vmem:[%s1207 + $0x10] sm:$0xff]
    %v1211 = vld [vmem:[%s1207 + $0x18] sm:$0xff]
    %s1212 = scalar_lea.vmem %s3, 10
    %v1213 = vld [vmem:[%s1212] sm:$0x3]
    %v1215 = vperm.slane %v1213, 0
    %v1216 = vperm.slane %v1213, 1
    %v1223 = vunpack.c.l.b16 %v1208
    %v1224 = vunpack.c.h.b16 %v1208
    %v1225 = vunpack.c.l.b16 %v1209
    %v1226 = vunpack.c.h.b16 %v1209
    %v1227 = vunpack.c.l.b16 %v1210
    %v1228 = vunpack.c.h.b16 %v1210
    %v1229 = vunpack.c.l.b16 %v1211
    %v1230 = vunpack.c.h.b16 %v1211
    %v1231 = vpack.c.b16 %v1225, %v1223
    %v1232 = vpack.c.b16 %v1226, %v1224
    %v1233 = vpack.c.b16 %v1229, %v1227
    %v1234 = vpack.c.b16 %v1230, %v1228
    %1239 = vmatpush.bf16.msra.mxu0 0
    %1240 = vmatpush.bf16.msra.mxu0 0
    %1241 = vmatpush.bf16.msra.mxu0 0
    %1242 = vmatpush.bf16.msra.mxu0 0
    %1243 = vmatpush.bf16.msra.mxu0 0
    %1244 = vmatpush.bf16.msra.mxu0 0
    %1245 = vmatpush.bf16.msra.mxu0 %v1233
    %1246 = vmatpush.bf16.msra.mxu0 %v1231
    %1247 = vmatmul.bf16.gmra.mxu0 %v150
    %v1248 = vpop.f32.mrf.mxu0
    %v1249 = vadd.f32 %v1215, %v1248
    %v1250 = vpop.f32.mrf.mxu0
    %1251 = vdwg.mxu0
    %1252 = vmatpush.bf16.msra.mxu0 0
    %1253 = vmatpush.bf16.msra.mxu0 0
    %1254 = vmatpush.bf16.msra.mxu0 0
    %1255 = vmatpush.bf16.msra.mxu0 0
    %1256 = vmatpush.bf16.msra.mxu0 0
    %1257 = vmatpush.bf16.msra.mxu0 0
    %1258 = vmatpush.bf16.msra.mxu0 %v1234
    %1259 = vmatpush.bf16.msra.mxu0 %v1232
    %1260 = vmatmul.bf16.gmra.mxu0 %v150
    %v1261 = vpop.f32.mrf.mxu0
    %v1262 = vadd.f32 %v1216, %v1261
    %v1263 = vpop.f32.mrf.mxu0
    %1264 = vdwg.mxu0
    %v1265 = vmax.f32 %v1249, 0.0
    %v1266 = vmax.f32 %v1262, 0.0
    %v1267 = vpack.c.bf16 %v1265, %v1265
    %v1268 = vpack.c.bf16 %v1266, %v1266
    %s1269 = scalar_lea.vmem %s5, 640
    %v1270 = vld [vmem:[%s1269] sm:$0xf]
    %v1271 = vld [vmem:[%s1269 + $0x4] sm:$0xf]
    %v1272 = vld [vmem:[%s1269 + $0x8] sm:$0xf]
    %v1273 = vld [vmem:[%s1269 + $0xc] sm:$0xf]
    %v1274 = vld [vmem:[%s1269 + $0x10] sm:$0xf]
    %v1275 = vld [vmem:[%s1269 + $0x14] sm:$0xf]
    %v1276 = vld [vmem:[%s1269 + $0x18] sm:$0xf]
    %v1277 = vld [vmem:[%s1269 + $0x1c] sm:$0xf]
    %v1278 = vld [vmem:[%s1269 + $0x20] sm:$0xf]
    %v1279 = vld [vmem:[%s1269 + $0x24] sm:$0xf]
    %v1280 = vld [vmem:[%s1269 + $0x28] sm:$0xf]
    %v1281 = vld [vmem:[%s1269 + $0x2c] sm:$0xf]
    %v1282 = vld [vmem:[%s1269 + $0x30] sm:$0xf]
    %v1283 = vld [vmem:[%s1269 + $0x34] sm:$0xf]
    %v1284 = vld [vmem:[%s1269 + $0x38] sm:$0xf]
    %v1285 = vld [vmem:[%s1269 + $0x3c] sm:$0xf]
    %v1286 = vld [vmem:[%s1269 + $0x40] sm:$0xf]
    %v1287 = vld [vmem:[%s1269 + $0x44] sm:$0xf]
    %v1288 = vld [vmem:[%s1269 + $0x48] sm:$0xf]
    %v1289 = vld [vmem:[%s1269 + $0x4c] sm:$0xf]
    %v1290 = vld [vmem:[%s1269 + $0x50] sm:$0xf]
    %v1291 = vld [vmem:[%s1269 + $0x54] sm:$0xf]
    %v1292 = vld [vmem:[%s1269 + $0x58] sm:$0xf]
    %v1293 = vld [vmem:[%s1269 + $0x5c] sm:$0xf]
    %v1294 = vld [vmem:[%s1269 + $0x60] sm:$0xf]
    %v1295 = vld [vmem:[%s1269 + $0x64] sm:$0xf]
    %v1296 = vld [vmem:[%s1269 + $0x68] sm:$0xf]
    %v1297 = vld [vmem:[%s1269 + $0x6c] sm:$0xf]
    %v1298 = vld [vmem:[%s1269 + $0x70] sm:$0xf]
    %v1299 = vld [vmem:[%s1269 + $0x74] sm:$0xf]
    %v1300 = vld [vmem:[%s1269 + $0x78] sm:$0xf]
    %v1301 = vld [vmem:[%s1269 + $0x7c] sm:$0xf]
    %v1334 = vunpack.c.l.b16 %v1270
    %v1335 = vunpack.c.l.b16 %v1271
    %v1336 = vunpack.c.l.b16 %v1272
    %v1337 = vunpack.c.l.b16 %v1273
    %v1338 = vunpack.c.l.b16 %v1274
    %v1339 = vunpack.c.l.b16 %v1275
    %v1340 = vunpack.c.l.b16 %v1276
    %v1341 = vunpack.c.l.b16 %v1277
    %v1342 = vunpack.c.l.b16 %v1278
    %v1343 = vunpack.c.l.b16 %v1279
    %v1344 = vunpack.c.l.b16 %v1280
    %v1345 = vunpack.c.l.b16 %v1281
    %v1346 = vunpack.c.l.b16 %v1282
    %v1347 = vunpack.c.l.b16 %v1283
    %v1348 = vunpack.c.l.b16 %v1284
    %v1349 = vunpack.c.l.b16 %v1285
    %v1350 = vunpack.c.l.b16 %v1286
    %v1351 = vunpack.c.l.b16 %v1287
    %v1352 = vunpack.c.l.b16 %v1288
    %v1353 = vunpack.c.l.b16 %v1289
    %v1354 = vunpack.c.l.b16 %v1290
    %v1355 = vunpack.c.l.b16 %v1291
    %v1356 = vunpack.c.l.b16 %v1292
    %v1357 = vunpack.c.l.b16 %v1293
    %v1358 = vunpack.c.l.b16 %v1294
    %v1359 = vunpack.c.l.b16 %v1295
    %v1360 = vunpack.c.l.b16 %v1296
    %v1361 = vunpack.c.l.b16 %v1297
    %v1362 = vunpack.c.l.b16 %v1298
    %v1363 = vunpack.c.l.b16 %v1299
    %v1364 = vunpack.c.l.b16 %v1300
    %v1365 = vunpack.c.l.b16 %v1301
    %v1366 = vpack.c.b16 %v1335, %v1334
    %v1367 = vpack.c.b16 %v1337, %v1336
    %v1368 = vpack.c.b16 %v1339, %v1338
    %v1369 = vpack.c.b16 %v1341, %v1340
    %v1370 = vpack.c.b16 %v1343, %v1342
    %v1371 = vpack.c.b16 %v1345, %v1344
    %v1372 = vpack.c.b16 %v1347, %v1346
    %v1373 = vpack.c.b16 %v1349, %v1348
    %v1374 = vpack.c.b16 %v1351, %v1350
    %v1375 = vpack.c.b16 %v1353, %v1352
    %v1376 = vpack.c.b16 %v1355, %v1354
    %v1377 = vpack.c.b16 %v1357, %v1356
    %v1378 = vpack.c.b16 %v1359, %v1358
    %v1379 = vpack.c.b16 %v1361, %v1360
    %v1380 = vpack.c.b16 %v1363, %v1362
    %v1381 = vpack.c.b16 %v1365, %v1364
    %1398 = vmatpush.bf16.msra.mxu0 %v1373
    %1399 = vmatpush.bf16.msra.mxu0 %v1372
    %1400 = vmatpush.bf16.msra.mxu0 %v1371
    %1401 = vmatpush.bf16.msra.mxu0 %v1370
    %1402 = vmatpush.bf16.msra.mxu0 %v1369
    %1403 = vmatpush.bf16.msra.mxu0 %v1368
    %1404 = vmatpush.bf16.msra.mxu0 %v1367
    %1405 = vmatpush.bf16.msra.mxu0 %v1366
    %1406 = vmatmul.bf16.gmra.mxu0 %v1267
    %v1407 = vpop.f32.mrf.mxu0
    %v1408 = vadd.f32 0.0, %v1407
    %v1409 = vpop.f32.mrf.mxu0
    %1410 = vdwg.mxu0
    %1411 = vmatpush.bf16.msra.mxu0 %v1381
    %1412 = vmatpush.bf16.msra.mxu0 %v1380
    %1413 = vmatpush.bf16.msra.mxu0 %v1379
    %1414 = vmatpush.bf16.msra.mxu0 %v1378
    %1415 = vmatpush.bf16.msra.mxu0 %v1377
    %1416 = vmatpush.bf16.msra.mxu0 %v1376
    %1417 = vmatpush.bf16.msra.mxu0 %v1375
    %1418 = vmatpush.bf16.msra.mxu0 %v1374
    %1419 = vmatmul.bf16.gmra.mxu0 %v1268
    %v1420 = vpop.f32.mrf.mxu0
    %v1421 = vadd.f32 %v1408, %v1420
    %v1422 = vpop.f32.mrf.mxu0
    %1423 = vdwg.mxu0
    %v1424 = vadd.f32 %v1206, %v1421
    %s1425 = scalar_lea.vmem %s4, 192
    %v1426 = vld [vmem:[%s1425] sm:$0xff]
    %v1427 = vld [vmem:[%s1425 + $0x8] sm:$0xff]
    %v1428 = vld [vmem:[%s1425 + $0x10] sm:$0xff]
    %v1429 = vld [vmem:[%s1425 + $0x18] sm:$0xff]
    %s1430 = scalar_lea.vmem %s3, 12
    %v1431 = vld [vmem:[%s1430] sm:$0x3]
    %v1433 = vperm.slane %v1431, 0
    %v1434 = vperm.slane %v1431, 1
    %v1441 = vunpack.c.l.b16 %v1426
    %v1442 = vunpack.c.h.b16 %v1426
    %v1443 = vunpack.c.l.b16 %v1427
    %v1444 = vunpack.c.h.b16 %v1427
    %v1445 = vunpack.c.l.b16 %v1428
    %v1446 = vunpack.c.h.b16 %v1428
    %v1447 = vunpack.c.l.b16 %v1429
    %v1448 = vunpack.c.h.b16 %v1429
    %v1449 = vpack.c.b16 %v1443, %v1441
    %v1450 = vpack.c.b16 %v1444, %v1442
    %v1451 = vpack.c.b16 %v1447, %v1445
    %v1452 = vpack.c.b16 %v1448, %v1446
    %1457 = vmatpush.bf16.msra.mxu0 0
    %1458 = vmatpush.bf16.msra.mxu0 0
    %1459 = vmatpush.bf16.msra.mxu0 0
    %1460 = vmatpush.bf16.msra.mxu0 0
    %1461 = vmatpush.bf16.msra.mxu0 0
    %1462 = vmatpush.bf16.msra.mxu0 0
    %1463 = vmatpush.bf16.msra.mxu0 %v1451
    %1464 = vmatpush.bf16.msra.mxu0 %v1449
    %1465 = vmatmul.bf16.gmra.mxu0 %v150
    %v1466 = vpop.f32.mrf.mxu0
    %v1467 = vadd.f32 %v1433, %v1466
    %v1468 = vpop.f32.mrf.mxu0
    %1469 = vdwg.mxu0
    %1470 = vmatpush.bf16.msra.mxu0 0
    %1471 = vmatpush.bf16.msra.mxu0 0
    %1472 = vmatpush.bf16.msra.mxu0 0
    %1473 = vmatpush.bf16.msra.mxu0 0
    %1474 = vmatpush.bf16.msra.mxu0 0
    %1475 = vmatpush.bf16.msra.mxu0 0
    %1476 = vmatpush.bf16.msra.mxu0 %v1452
    %1477 = vmatpush.bf16.msra.mxu0 %v1450
    %1478 = vmatmul.bf16.gmra.mxu0 %v150
    %v1479 = vpop.f32.mrf.mxu0
    %v1480 = vadd.f32 %v1434, %v1479
    %v1481 = vpop.f32.mrf.mxu0
    %1482 = vdwg.mxu0
    %v1483 = vmax.f32 %v1467, 0.0
    %v1484 = vmax.f32 %v1480, 0.0
    %v1485 = vpack.c.bf16 %v1483, %v1483
    %v1486 = vpack.c.bf16 %v1484, %v1484
    %s1487 = scalar_lea.vmem %s5, 768
    %v1488 = vld [vmem:[%s1487] sm:$0xf]
    %v1489 = vld [vmem:[%s1487 + $0x4] sm:$0xf]
    %v1490 = vld [vmem:[%s1487 + $0x8] sm:$0xf]
    %v1491 = vld [vmem:[%s1487 + $0xc] sm:$0xf]
    %v1492 = vld [vmem:[%s1487 + $0x10] sm:$0xf]
    %v1493 = vld [vmem:[%s1487 + $0x14] sm:$0xf]
    %v1494 = vld [vmem:[%s1487 + $0x18] sm:$0xf]
    %v1495 = vld [vmem:[%s1487 + $0x1c] sm:$0xf]
    %v1496 = vld [vmem:[%s1487 + $0x20] sm:$0xf]
    %v1497 = vld [vmem:[%s1487 + $0x24] sm:$0xf]
    %v1498 = vld [vmem:[%s1487 + $0x28] sm:$0xf]
    %v1499 = vld [vmem:[%s1487 + $0x2c] sm:$0xf]
    %v1500 = vld [vmem:[%s1487 + $0x30] sm:$0xf]
    %v1501 = vld [vmem:[%s1487 + $0x34] sm:$0xf]
    %v1502 = vld [vmem:[%s1487 + $0x38] sm:$0xf]
    %v1503 = vld [vmem:[%s1487 + $0x3c] sm:$0xf]
    %v1504 = vld [vmem:[%s1487 + $0x40] sm:$0xf]
    %v1505 = vld [vmem:[%s1487 + $0x44] sm:$0xf]
    %v1506 = vld [vmem:[%s1487 + $0x48] sm:$0xf]
    %v1507 = vld [vmem:[%s1487 + $0x4c] sm:$0xf]
    %v1508 = vld [vmem:[%s1487 + $0x50] sm:$0xf]
    %v1509 = vld [vmem:[%s1487 + $0x54] sm:$0xf]
    %v1510 = vld [vmem:[%s1487 + $0x58] sm:$0xf]
    %v1511 = vld [vmem:[%s1487 + $0x5c] sm:$0xf]
    %v1512 = vld [vmem:[%s1487 + $0x60] sm:$0xf]
    %v1513 = vld [vmem:[%s1487 + $0x64] sm:$0xf]
    %v1514 = vld [vmem:[%s1487 + $0x68] sm:$0xf]
    %v1515 = vld [vmem:[%s1487 + $0x6c] sm:$0xf]
    %v1516 = vld [vmem:[%s1487 + $0x70] sm:$0xf]
    %v1517 = vld [vmem:[%s1487 + $0x74] sm:$0xf]
    %v1518 = vld [vmem:[%s1487 + $0x78] sm:$0xf]
    %v1519 = vld [vmem:[%s1487 + $0x7c] sm:$0xf]
    %v1552 = vunpack.c.l.b16 %v1488
    %v1553 = vunpack.c.l.b16 %v1489
    %v1554 = vunpack.c.l.b16 %v1490
    %v1555 = vunpack.c.l.b16 %v1491
    %v1556 = vunpack.c.l.b16 %v1492
    %v1557 = vunpack.c.l.b16 %v1493
    %v1558 = vunpack.c.l.b16 %v1494
    %v1559 = vunpack.c.l.b16 %v1495
    %v1560 = vunpack.c.l.b16 %v1496
    %v1561 = vunpack.c.l.b16 %v1497
    %v1562 = vunpack.c.l.b16 %v1498
    %v1563 = vunpack.c.l.b16 %v1499
    %v1564 = vunpack.c.l.b16 %v1500
    %v1565 = vunpack.c.l.b16 %v1501
    %v1566 = vunpack.c.l.b16 %v1502
    %v1567 = vunpack.c.l.b16 %v1503
    %v1568 = vunpack.c.l.b16 %v1504
    %v1569 = vunpack.c.l.b16 %v1505
    %v1570 = vunpack.c.l.b16 %v1506
    %v1571 = vunpack.c.l.b16 %v1507
    %v1572 = vunpack.c.l.b16 %v1508
    %v1573 = vunpack.c.l.b16 %v1509
    %v1574 = vunpack.c.l.b16 %v1510
    %v1575 = vunpack.c.l.b16 %v1511
    %v1576 = vunpack.c.l.b16 %v1512
    %v1577 = vunpack.c.l.b16 %v1513
    %v1578 = vunpack.c.l.b16 %v1514
    %v1579 = vunpack.c.l.b16 %v1515
    %v1580 = vunpack.c.l.b16 %v1516
    %v1581 = vunpack.c.l.b16 %v1517
    %v1582 = vunpack.c.l.b16 %v1518
    %v1583 = vunpack.c.l.b16 %v1519
    %v1584 = vpack.c.b16 %v1553, %v1552
    %v1585 = vpack.c.b16 %v1555, %v1554
    %v1586 = vpack.c.b16 %v1557, %v1556
    %v1587 = vpack.c.b16 %v1559, %v1558
    %v1588 = vpack.c.b16 %v1561, %v1560
    %v1589 = vpack.c.b16 %v1563, %v1562
    %v1590 = vpack.c.b16 %v1565, %v1564
    %v1591 = vpack.c.b16 %v1567, %v1566
    %v1592 = vpack.c.b16 %v1569, %v1568
    %v1593 = vpack.c.b16 %v1571, %v1570
    %v1594 = vpack.c.b16 %v1573, %v1572
    %v1595 = vpack.c.b16 %v1575, %v1574
    %v1596 = vpack.c.b16 %v1577, %v1576
    %v1597 = vpack.c.b16 %v1579, %v1578
    %v1598 = vpack.c.b16 %v1581, %v1580
    %v1599 = vpack.c.b16 %v1583, %v1582
    %1616 = vmatpush.bf16.msra.mxu0 %v1591
    %1617 = vmatpush.bf16.msra.mxu0 %v1590
    %1618 = vmatpush.bf16.msra.mxu0 %v1589
    %1619 = vmatpush.bf16.msra.mxu0 %v1588
    %1620 = vmatpush.bf16.msra.mxu0 %v1587
    %1621 = vmatpush.bf16.msra.mxu0 %v1586
    %1622 = vmatpush.bf16.msra.mxu0 %v1585
    %1623 = vmatpush.bf16.msra.mxu0 %v1584
    %1624 = vmatmul.bf16.gmra.mxu0 %v1485
    %v1625 = vpop.f32.mrf.mxu0
    %v1626 = vadd.f32 0.0, %v1625
    %v1627 = vpop.f32.mrf.mxu0
    %1628 = vdwg.mxu0
    %1629 = vmatpush.bf16.msra.mxu0 %v1599
    %1630 = vmatpush.bf16.msra.mxu0 %v1598
    %1631 = vmatpush.bf16.msra.mxu0 %v1597
    %1632 = vmatpush.bf16.msra.mxu0 %v1596
    %1633 = vmatpush.bf16.msra.mxu0 %v1595
    %1634 = vmatpush.bf16.msra.mxu0 %v1594
    %1635 = vmatpush.bf16.msra.mxu0 %v1593
    %1636 = vmatpush.bf16.msra.mxu0 %v1592
    %1637 = vmatmul.bf16.gmra.mxu0 %v1486
    %v1638 = vpop.f32.mrf.mxu0
    %v1639 = vadd.f32 %v1626, %v1638
    %v1640 = vpop.f32.mrf.mxu0
    %1641 = vdwg.mxu0
    %v1642 = vadd.f32 %v1424, %v1639
    %s1643 = scalar_lea.vmem %s4, 224
    %v1644 = vld [vmem:[%s1643] sm:$0xff]
    %v1645 = vld [vmem:[%s1643 + $0x8] sm:$0xff]
    %v1646 = vld [vmem:[%s1643 + $0x10] sm:$0xff]
    %v1647 = vld [vmem:[%s1643 + $0x18] sm:$0xff]
    %s1648 = scalar_lea.vmem %s3, 14
    %v1649 = vld [vmem:[%s1648] sm:$0x3]
    %v1651 = vperm.slane %v1649, 0
    %v1652 = vperm.slane %v1649, 1
    %v1659 = vunpack.c.l.b16 %v1644
    %v1660 = vunpack.c.h.b16 %v1644
    %v1661 = vunpack.c.l.b16 %v1645
    %v1662 = vunpack.c.h.b16 %v1645
    %v1663 = vunpack.c.l.b16 %v1646
    %v1664 = vunpack.c.h.b16 %v1646
    %v1665 = vunpack.c.l.b16 %v1647
    %v1666 = vunpack.c.h.b16 %v1647
    %v1667 = vpack.c.b16 %v1661, %v1659
    %v1668 = vpack.c.b16 %v1662, %v1660
    %v1669 = vpack.c.b16 %v1665, %v1663
    %v1670 = vpack.c.b16 %v1666, %v1664
    %1675 = vmatpush.bf16.msra.mxu0 0
    %1676 = vmatpush.bf16.msra.mxu0 0
    %1677 = vmatpush.bf16.msra.mxu0 0
    %1678 = vmatpush.bf16.msra.mxu0 0
    %1679 = vmatpush.bf16.msra.mxu0 0
    %1680 = vmatpush.bf16.msra.mxu0 0
    %1681 = vmatpush.bf16.msra.mxu0 %v1669
    %1682 = vmatpush.bf16.msra.mxu0 %v1667
    %1683 = vmatmul.bf16.gmra.mxu0 %v150
    %v1684 = vpop.f32.mrf.mxu0
    %v1685 = vadd.f32 %v1651, %v1684
    %v1686 = vpop.f32.mrf.mxu0
    %1687 = vdwg.mxu0
    %1688 = vmatpush.bf16.msra.mxu0 0
    %1689 = vmatpush.bf16.msra.mxu0 0
    %1690 = vmatpush.bf16.msra.mxu0 0
    %1691 = vmatpush.bf16.msra.mxu0 0
    %1692 = vmatpush.bf16.msra.mxu0 0
    %1693 = vmatpush.bf16.msra.mxu0 0
    %1694 = vmatpush.bf16.msra.mxu0 %v1670
    %1695 = vmatpush.bf16.msra.mxu0 %v1668
    %1696 = vmatmul.bf16.gmra.mxu0 %v150
    %v1697 = vpop.f32.mrf.mxu0
    %v1698 = vadd.f32 %v1652, %v1697
    %v1699 = vpop.f32.mrf.mxu0
    %1700 = vdwg.mxu0
    %v1701 = vmax.f32 %v1685, 0.0
    %v1702 = vmax.f32 %v1698, 0.0
    %v1703 = vpack.c.bf16 %v1701, %v1701
    %v1704 = vpack.c.bf16 %v1702, %v1702
    %s1705 = scalar_lea.vmem %s5, 896
    %v1706 = vld [vmem:[%s1705] sm:$0xf]
    %v1707 = vld [vmem:[%s1705 + $0x4] sm:$0xf]
    %v1708 = vld [vmem:[%s1705 + $0x8] sm:$0xf]
    %v1709 = vld [vmem:[%s1705 + $0xc] sm:$0xf]
    %v1710 = vld [vmem:[%s1705 + $0x10] sm:$0xf]
    %v1711 = vld [vmem:[%s1705 + $0x14] sm:$0xf]
    %v1712 = vld [vmem:[%s1705 + $0x18] sm:$0xf]
    %v1713 = vld [vmem:[%s1705 + $0x1c] sm:$0xf]
    %v1714 = vld [vmem:[%s1705 + $0x20] sm:$0xf]
    %v1715 = vld [vmem:[%s1705 + $0x24] sm:$0xf]
    %v1716 = vld [vmem:[%s1705 + $0x28] sm:$0xf]
    %v1717 = vld [vmem:[%s1705 + $0x2c] sm:$0xf]
    %v1718 = vld [vmem:[%s1705 + $0x30] sm:$0xf]
    %v1719 = vld [vmem:[%s1705 + $0x34] sm:$0xf]
    %v1720 = vld [vmem:[%s1705 + $0x38] sm:$0xf]
    %v1721 = vld [vmem:[%s1705 + $0x3c] sm:$0xf]
    %v1722 = vld [vmem:[%s1705 + $0x40] sm:$0xf]
    %v1723 = vld [vmem:[%s1705 + $0x44] sm:$0xf]
    %v1724 = vld [vmem:[%s1705 + $0x48] sm:$0xf]
    %v1725 = vld [vmem:[%s1705 + $0x4c] sm:$0xf]
    %v1726 = vld [vmem:[%s1705 + $0x50] sm:$0xf]
    %v1727 = vld [vmem:[%s1705 + $0x54] sm:$0xf]
    %v1728 = vld [vmem:[%s1705 + $0x58] sm:$0xf]
    %v1729 = vld [vmem:[%s1705 + $0x5c] sm:$0xf]
    %v1730 = vld [vmem:[%s1705 + $0x60] sm:$0xf]
    %v1731 = vld [vmem:[%s1705 + $0x64] sm:$0xf]
    %v1732 = vld [vmem:[%s1705 + $0x68] sm:$0xf]
    %v1733 = vld [vmem:[%s1705 + $0x6c] sm:$0xf]
    %v1734 = vld [vmem:[%s1705 + $0x70] sm:$0xf]
    %v1735 = vld [vmem:[%s1705 + $0x74] sm:$0xf]
    %v1736 = vld [vmem:[%s1705 + $0x78] sm:$0xf]
    %v1737 = vld [vmem:[%s1705 + $0x7c] sm:$0xf]
    %v1770 = vunpack.c.l.b16 %v1706
    %v1771 = vunpack.c.l.b16 %v1707
    %v1772 = vunpack.c.l.b16 %v1708
    %v1773 = vunpack.c.l.b16 %v1709
    %v1774 = vunpack.c.l.b16 %v1710
    %v1775 = vunpack.c.l.b16 %v1711
    %v1776 = vunpack.c.l.b16 %v1712
    %v1777 = vunpack.c.l.b16 %v1713
    %v1778 = vunpack.c.l.b16 %v1714
    %v1779 = vunpack.c.l.b16 %v1715
    %v1780 = vunpack.c.l.b16 %v1716
    %v1781 = vunpack.c.l.b16 %v1717
    %v1782 = vunpack.c.l.b16 %v1718
    %v1783 = vunpack.c.l.b16 %v1719
    %v1784 = vunpack.c.l.b16 %v1720
    %v1785 = vunpack.c.l.b16 %v1721
    %v1786 = vunpack.c.l.b16 %v1722
    %v1787 = vunpack.c.l.b16 %v1723
    %v1788 = vunpack.c.l.b16 %v1724
    %v1789 = vunpack.c.l.b16 %v1725
    %v1790 = vunpack.c.l.b16 %v1726
    %v1791 = vunpack.c.l.b16 %v1727
    %v1792 = vunpack.c.l.b16 %v1728
    %v1793 = vunpack.c.l.b16 %v1729
    %v1794 = vunpack.c.l.b16 %v1730
    %v1795 = vunpack.c.l.b16 %v1731
    %v1796 = vunpack.c.l.b16 %v1732
    %v1797 = vunpack.c.l.b16 %v1733
    %v1798 = vunpack.c.l.b16 %v1734
    %v1799 = vunpack.c.l.b16 %v1735
    %v1800 = vunpack.c.l.b16 %v1736
    %v1801 = vunpack.c.l.b16 %v1737
    %v1802 = vpack.c.b16 %v1771, %v1770
    %v1803 = vpack.c.b16 %v1773, %v1772
    %v1804 = vpack.c.b16 %v1775, %v1774
    %v1805 = vpack.c.b16 %v1777, %v1776
    %v1806 = vpack.c.b16 %v1779, %v1778
    %v1807 = vpack.c.b16 %v1781, %v1780
    %v1808 = vpack.c.b16 %v1783, %v1782
    %v1809 = vpack.c.b16 %v1785, %v1784
    %v1810 = vpack.c.b16 %v1787, %v1786
    %v1811 = vpack.c.b16 %v1789, %v1788
    %v1812 = vpack.c.b16 %v1791, %v1790
    %v1813 = vpack.c.b16 %v1793, %v1792
    %v1814 = vpack.c.b16 %v1795, %v1794
    %v1815 = vpack.c.b16 %v1797, %v1796
    %v1816 = vpack.c.b16 %v1799, %v1798
    %v1817 = vpack.c.b16 %v1801, %v1800
    %1834 = vmatpush.bf16.msra.mxu0 %v1809
    %1835 = vmatpush.bf16.msra.mxu0 %v1808
    %1836 = vmatpush.bf16.msra.mxu0 %v1807
    %1837 = vmatpush.bf16.msra.mxu0 %v1806
    %1838 = vmatpush.bf16.msra.mxu0 %v1805
    %1839 = vmatpush.bf16.msra.mxu0 %v1804
    %1840 = vmatpush.bf16.msra.mxu0 %v1803
    %1841 = vmatpush.bf16.msra.mxu0 %v1802
    %1842 = vmatmul.bf16.gmra.mxu0 %v1703
    %v1843 = vpop.f32.mrf.mxu0
    %v1844 = vadd.f32 0.0, %v1843
    %v1845 = vpop.f32.mrf.mxu0
    %1846 = vdwg.mxu0
    %1847 = vmatpush.bf16.msra.mxu0 %v1817
    %1848 = vmatpush.bf16.msra.mxu0 %v1816
    %1849 = vmatpush.bf16.msra.mxu0 %v1815
    %1850 = vmatpush.bf16.msra.mxu0 %v1814
    %1851 = vmatpush.bf16.msra.mxu0 %v1813
    %1852 = vmatpush.bf16.msra.mxu0 %v1812
    %1853 = vmatpush.bf16.msra.mxu0 %v1811
    %1854 = vmatpush.bf16.msra.mxu0 %v1810
    %1855 = vmatmul.bf16.gmra.mxu0 %v1704
    %v1856 = vpop.f32.mrf.mxu0
    %v1857 = vadd.f32 %v1844, %v1856
    %v1858 = vpop.f32.mrf.mxu0
    %1859 = vdwg.mxu0
    %v1860 = vadd.f32 %v1642, %v1857
    %v1861 = vperm.slane %v26, 4
    %v1862 = vadd.f32 %v1860, %v1861
    %v1863 = vadd.f32 %v117, %v1862
    %v1864 = vsel %vm60, %v1863, 0.0
    %1865 = vadd.xlane.f32.xlu0 %v1864
    %v1866 = vpop.xlane.xlu0 %1865
    %v1867 = vmul.f32 %v1866, %v94
    %v1868 = vsub.f32 %v1863, %v1867
    %v1869 = vmul.f32 %v1868, %v1868
    %v1870 = vsel %vm60, %v1869, 0.0
    %1871 = vadd.xlane.f32.xlu0 %v1870
    %v1872 = vpop.xlane.xlu0 %1871
    %v1873 = vmul.f32 %v1872, %v94
    %v1874 = vadd.f32 %v1873, 1e-05
    %v1875 = vrsqrt.pop %v1874
    %v1876 = vmul.f32 %v1875, %v1874
    %v1877 = vmul.f32 %v1876, %v1875
    %v1878 = vmul.f32 0.5, %v1877
    %v1879 = vsub.f32 1.5, %v1878
    %v1880 = vmul.f32 %v1875, %v1879
    %vm1881 = vweird.f32 %v1874
    %vm1882 = vweird.f32 %v1875
    %vm1883 = vmor %vm1881, %vm1882
    %v1884 = vsel %vm1883, %v1875, %v1880
    %v1885 = vmul.f32 %v1868, %v1884
    %v1886 = vperm.slane %v26, 5
    %v1887 = vmul.f32 %v1885, %v1886
    %v1888 = vperm.slane %v26, 6
    %v1889 = vadd.f32 %v1887, %v1888
    %v1890 = vld [vmem:[%s1 + $0x30] sm:$0xff]
    %v1891 = vld [vmem:[%s1 + $0x38] sm:$0xff]
    %v1892 = vld [vmem:[%s1 + $0x40] sm:$0xff]
    %v1893 = vld [vmem:[%s1 + $0x48] sm:$0xff]
    %v1894 = vperm.slane %v26, 7
    %v1896 = vsel %vm60, %v1889, 0
    %1898 = vmatpush.msra.mxu0 0.0
    %1899 = vmatpush.msra.mxu0 0.0
    %1900 = vmatpush.msra.mxu0 0.0
    %1901 = vmatpush.msra.mxu0 0.0
    %1902 = vmatpush.msra.mxu0 0.0
    %1903 = vmatpush.msra.mxu0 0.0
    %1904 = vmatpush.msra.mxu0 0.0
    %1905 = vmatpush.msra.mxu0 0.0
    %1906 = vmatpush.msra.mxu0 0.0
    %1907 = vmatpush.msra.mxu0 0.0
    %1908 = vmatpush.msra.mxu0 0.0
    %1909 = vmatpush.msra.mxu0 0.0
    %1910 = vmatpush.msra.mxu0 %v1893
    %1911 = vmatpush.msra.mxu0 %v1892
    %1912 = vmatpush.msra.mxu0 %v1891
    %1913 = vmatpush.msra.mxu0 %v1890
    %1914 = vmatmul.f32.gmra.mxu0 %v1896
    %v1915 = vpop.f32.mrf.mxu0
    %v1916 = vadd.f32 %v1894, %v1915
    %1917 = vdwg.mxu0
    %v1918 = vadd.f32 %v1889, %v1916
    %v1919 = vsel %vm60, %v1918, 0.0
    %1920 = vadd.xlane.f32.xlu0 %v1919
    %v1921 = vpop.xlane.xlu0 %1920
    %v1922 = vmul.f32 %v1921, %v94
    %v1923 = vsub.f32 %v1918, %v1922
    %v1924 = vmul.f32 %v1923, %v1923
    %v1925 = vsel %vm60, %v1924, 0.0
    %1926 = vadd.xlane.f32.xlu0 %v1925
    %v1927 = vpop.xlane.xlu0 %1926
    %v1928 = vmul.f32 %v1927, %v94
    %v1929 = vadd.f32 %v1928, 1e-05
    %v1930 = vrsqrt.pop %v1929
    %v1931 = vmul.f32 %v1930, %v1929
    %v1932 = vmul.f32 %v1931, %v1930
    %v1933 = vmul.f32 0.5, %v1932
    %v1934 = vsub.f32 1.5, %v1933
    %v1935 = vmul.f32 %v1930, %v1934
    %vm1936 = vweird.f32 %v1929
    %vm1937 = vweird.f32 %v1930
    %vm1938 = vmor %vm1936, %vm1937
    %v1939 = vsel %vm1938, %v1930, %v1935
    %v1940 = vmul.f32 %v1923, %v1939
    %v1941 = vperm.slane %v27, 0
    %v1942 = vmul.f32 %v1940, %v1941
    %v1943 = vperm.slane %v27, 1
    %v1944 = vadd.f32 %v1942, %v1943
    %v1945 = vpack.c.bf16 %v1944, %v1944
    %s1946 = scalar_lea.vmem %s4, 256
    %v1947 = vld [vmem:[%s1946] sm:$0xff]
    %v1948 = vld [vmem:[%s1946 + $0x8] sm:$0xff]
    %v1949 = vld [vmem:[%s1946 + $0x10] sm:$0xff]
    %v1950 = vld [vmem:[%s1946 + $0x18] sm:$0xff]
    %s1951 = scalar_lea.vmem %s3, 16
    %v1952 = vld [vmem:[%s1951] sm:$0x3]
    %v1954 = vperm.slane %v1952, 0
    %v1955 = vperm.slane %v1952, 1
    %v1962 = vunpack.c.l.b16 %v1947
    %v1963 = vunpack.c.h.b16 %v1947
    %v1964 = vunpack.c.l.b16 %v1948
    %v1965 = vunpack.c.h.b16 %v1948
    %v1966 = vunpack.c.l.b16 %v1949
    %v1967 = vunpack.c.h.b16 %v1949
    %v1968 = vunpack.c.l.b16 %v1950
    %v1969 = vunpack.c.h.b16 %v1950
    %v1970 = vpack.c.b16 %v1964, %v1962
    %v1971 = vpack.c.b16 %v1965, %v1963
    %v1972 = vpack.c.b16 %v1968, %v1966
    %v1973 = vpack.c.b16 %v1969, %v1967
    %v1979 = vsel %vm60, %v1945, 0
    %1981 = vmatpush.bf16.msra.mxu0 0
    %1982 = vmatpush.bf16.msra.mxu0 0
    %1983 = vmatpush.bf16.msra.mxu0 0
    %1984 = vmatpush.bf16.msra.mxu0 0
    %1985 = vmatpush.bf16.msra.mxu0 0
    %1986 = vmatpush.bf16.msra.mxu0 0
    %1987 = vmatpush.bf16.msra.mxu0 %v1972
    %1988 = vmatpush.bf16.msra.mxu0 %v1970
    %1989 = vmatmul.bf16.gmra.mxu0 %v1979
    %v1990 = vpop.f32.mrf.mxu0
    %v1991 = vadd.f32 %v1954, %v1990
    %v1992 = vpop.f32.mrf.mxu0
    %1993 = vdwg.mxu0
    %1994 = vmatpush.bf16.msra.mxu0 0
    %1995 = vmatpush.bf16.msra.mxu0 0
    %1996 = vmatpush.bf16.msra.mxu0 0
    %1997 = vmatpush.bf16.msra.mxu0 0
    %1998 = vmatpush.bf16.msra.mxu0 0
    %1999 = vmatpush.bf16.msra.mxu0 0
    %2000 = vmatpush.bf16.msra.mxu0 %v1973
    %2001 = vmatpush.bf16.msra.mxu0 %v1971
    %2002 = vmatmul.bf16.gmra.mxu0 %v1979
    %v2003 = vpop.f32.mrf.mxu0
    %v2004 = vadd.f32 %v1955, %v2003
    %v2005 = vpop.f32.mrf.mxu0
    %2006 = vdwg.mxu0
    %v2007 = vmax.f32 %v1991, 0.0
    %v2008 = vmax.f32 %v2004, 0.0
    %v2009 = vpack.c.bf16 %v2007, %v2007
    %v2010 = vpack.c.bf16 %v2008, %v2008
    %s2011 = scalar_lea.vmem %s5, 1024
    %v2012 = vld [vmem:[%s2011] sm:$0xf]
    %v2013 = vld [vmem:[%s2011 + $0x4] sm:$0xf]
    %v2014 = vld [vmem:[%s2011 + $0x8] sm:$0xf]
    %v2015 = vld [vmem:[%s2011 + $0xc] sm:$0xf]
    %v2016 = vld [vmem:[%s2011 + $0x10] sm:$0xf]
    %v2017 = vld [vmem:[%s2011 + $0x14] sm:$0xf]
    %v2018 = vld [vmem:[%s2011 + $0x18] sm:$0xf]
    %v2019 = vld [vmem:[%s2011 + $0x1c] sm:$0xf]
    %v2020 = vld [vmem:[%s2011 + $0x20] sm:$0xf]
    %v2021 = vld [vmem:[%s2011 + $0x24] sm:$0xf]
    %v2022 = vld [vmem:[%s2011 + $0x28] sm:$0xf]
    %v2023 = vld [vmem:[%s2011 + $0x2c] sm:$0xf]
    %v2024 = vld [vmem:[%s2011 + $0x30] sm:$0xf]
    %v2025 = vld [vmem:[%s2011 + $0x34] sm:$0xf]
    %v2026 = vld [vmem:[%s2011 + $0x38] sm:$0xf]
    %v2027 = vld [vmem:[%s2011 + $0x3c] sm:$0xf]
    %v2028 = vld [vmem:[%s2011 + $0x40] sm:$0xf]
    %v2029 = vld [vmem:[%s2011 + $0x44] sm:$0xf]
    %v2030 = vld [vmem:[%s2011 + $0x48] sm:$0xf]
    %v2031 = vld [vmem:[%s2011 + $0x4c] sm:$0xf]
    %v2032 = vld [vmem:[%s2011 + $0x50] sm:$0xf]
    %v2033 = vld [vmem:[%s2011 + $0x54] sm:$0xf]
    %v2034 = vld [vmem:[%s2011 + $0x58] sm:$0xf]
    %v2035 = vld [vmem:[%s2011 + $0x5c] sm:$0xf]
    %v2036 = vld [vmem:[%s2011 + $0x60] sm:$0xf]
    %v2037 = vld [vmem:[%s2011 + $0x64] sm:$0xf]
    %v2038 = vld [vmem:[%s2011 + $0x68] sm:$0xf]
    %v2039 = vld [vmem:[%s2011 + $0x6c] sm:$0xf]
    %v2040 = vld [vmem:[%s2011 + $0x70] sm:$0xf]
    %v2041 = vld [vmem:[%s2011 + $0x74] sm:$0xf]
    %v2042 = vld [vmem:[%s2011 + $0x78] sm:$0xf]
    %v2043 = vld [vmem:[%s2011 + $0x7c] sm:$0xf]
    %s2044 = scalar_lea.vmem %s4, 288
    %v2045 = vld [vmem:[%s2044] sm:$0xff]
    %v2046 = vld [vmem:[%s2044 + $0x8] sm:$0xff]
    %v2047 = vld [vmem:[%s2044 + $0x10] sm:$0xff]
    %v2048 = vld [vmem:[%s2044 + $0x18] sm:$0xff]
    %s2049 = scalar_lea.vmem %s3, 18
    %v2050 = vld [vmem:[%s2049] sm:$0x3]
    %v2052 = vperm.slane %v2050, 0
    %v2053 = vperm.slane %v2050, 1
    %v2060 = vunpack.c.l.b16 %v2045
    %v2061 = vunpack.c.h.b16 %v2045
    %v2062 = vunpack.c.l.b16 %v2046
    %v2063 = vunpack.c.h.b16 %v2046
    %v2064 = vunpack.c.l.b16 %v2047
    %v2065 = vunpack.c.h.b16 %v2047
    %v2066 = vunpack.c.l.b16 %v2048
    %v2067 = vunpack.c.h.b16 %v2048
    %v2068 = vpack.c.b16 %v2062, %v2060
    %v2069 = vpack.c.b16 %v2063, %v2061
    %v2070 = vpack.c.b16 %v2066, %v2064
    %v2071 = vpack.c.b16 %v2067, %v2065
    %2076 = vmatpush.bf16.msra.mxu0 0
    %2077 = vmatpush.bf16.msra.mxu0 0
    %2078 = vmatpush.bf16.msra.mxu0 0
    %2079 = vmatpush.bf16.msra.mxu0 0
    %2080 = vmatpush.bf16.msra.mxu0 0
    %2081 = vmatpush.bf16.msra.mxu0 0
    %2082 = vmatpush.bf16.msra.mxu0 %v2070
    %2083 = vmatpush.bf16.msra.mxu0 %v2068
    %2084 = vmatmul.bf16.gmra.mxu0 %v1979
    %v2085 = vpop.f32.mrf.mxu0
    %v2086 = vadd.f32 %v2052, %v2085
    %v2087 = vpop.f32.mrf.mxu0
    %2088 = vdwg.mxu0
    %2089 = vmatpush.bf16.msra.mxu0 0
    %2090 = vmatpush.bf16.msra.mxu0 0
    %2091 = vmatpush.bf16.msra.mxu0 0
    %2092 = vmatpush.bf16.msra.mxu0 0
    %2093 = vmatpush.bf16.msra.mxu0 0
    %2094 = vmatpush.bf16.msra.mxu0 0
    %2095 = vmatpush.bf16.msra.mxu0 %v2071
    %2096 = vmatpush.bf16.msra.mxu0 %v2069
    %2097 = vmatmul.bf16.gmra.mxu0 %v1979
    %v2098 = vpop.f32.mrf.mxu0
    %v2099 = vadd.f32 %v2053, %v2098
    %v2100 = vpop.f32.mrf.mxu0
    %2101 = vdwg.mxu0
    %v2102 = vmax.f32 %v2086, 0.0
    %v2103 = vmax.f32 %v2099, 0.0
    %v2104 = vpack.c.bf16 %v2102, %v2102
    %v2105 = vpack.c.bf16 %v2103, %v2103
    %s2106 = scalar_lea.vmem %s5, 1152
    %v2107 = vld [vmem:[%s2106] sm:$0xf]
    %v2108 = vld [vmem:[%s2106 + $0x4] sm:$0xf]
    %v2109 = vld [vmem:[%s2106 + $0x8] sm:$0xf]
    %v2110 = vld [vmem:[%s2106 + $0xc] sm:$0xf]
    %v2111 = vld [vmem:[%s2106 + $0x10] sm:$0xf]
    %v2112 = vld [vmem:[%s2106 + $0x14] sm:$0xf]
    %v2113 = vld [vmem:[%s2106 + $0x18] sm:$0xf]
    %v2114 = vld [vmem:[%s2106 + $0x1c] sm:$0xf]
    %v2115 = vld [vmem:[%s2106 + $0x20] sm:$0xf]
    %v2116 = vld [vmem:[%s2106 + $0x24] sm:$0xf]
    %v2117 = vld [vmem:[%s2106 + $0x28] sm:$0xf]
    %v2118 = vld [vmem:[%s2106 + $0x2c] sm:$0xf]
    %v2119 = vld [vmem:[%s2106 + $0x30] sm:$0xf]
    %v2120 = vld [vmem:[%s2106 + $0x34] sm:$0xf]
    %v2121 = vld [vmem:[%s2106 + $0x38] sm:$0xf]
    %v2122 = vld [vmem:[%s2106 + $0x3c] sm:$0xf]
    %v2123 = vld [vmem:[%s2106 + $0x40] sm:$0xf]
    %v2124 = vld [vmem:[%s2106 + $0x44] sm:$0xf]
    %v2125 = vld [vmem:[%s2106 + $0x48] sm:$0xf]
    %v2126 = vld [vmem:[%s2106 + $0x4c] sm:$0xf]
    %v2127 = vld [vmem:[%s2106 + $0x50] sm:$0xf]
    %v2128 = vld [vmem:[%s2106 + $0x54] sm:$0xf]
    %v2129 = vld [vmem:[%s2106 + $0x58] sm:$0xf]
    %v2130 = vld [vmem:[%s2106 + $0x5c] sm:$0xf]
    %v2131 = vld [vmem:[%s2106 + $0x60] sm:$0xf]
    %v2132 = vld [vmem:[%s2106 + $0x64] sm:$0xf]
    %v2133 = vld [vmem:[%s2106 + $0x68] sm:$0xf]
    %v2134 = vld [vmem:[%s2106 + $0x6c] sm:$0xf]
    %v2135 = vld [vmem:[%s2106 + $0x70] sm:$0xf]
    %v2136 = vld [vmem:[%s2106 + $0x74] sm:$0xf]
    %v2137 = vld [vmem:[%s2106 + $0x78] sm:$0xf]
    %v2138 = vld [vmem:[%s2106 + $0x7c] sm:$0xf]
    %v2171 = vunpack.c.l.b16 %v2107
    %v2172 = vunpack.c.l.b16 %v2108
    %v2173 = vunpack.c.l.b16 %v2109
    %v2174 = vunpack.c.l.b16 %v2110
    %v2175 = vunpack.c.l.b16 %v2111
    %v2176 = vunpack.c.l.b16 %v2112
    %v2177 = vunpack.c.l.b16 %v2113
    %v2178 = vunpack.c.l.b16 %v2114
    %v2179 = vunpack.c.l.b16 %v2115
    %v2180 = vunpack.c.l.b16 %v2116
    %v2181 = vunpack.c.l.b16 %v2117
    %v2182 = vunpack.c.l.b16 %v2118
    %v2183 = vunpack.c.l.b16 %v2119
    %v2184 = vunpack.c.l.b16 %v2120
    %v2185 = vunpack.c.l.b16 %v2121
    %v2186 = vunpack.c.l.b16 %v2122
    %v2187 = vunpack.c.l.b16 %v2123
    %v2188 = vunpack.c.l.b16 %v2124
    %v2189 = vunpack.c.l.b16 %v2125
    %v2190 = vunpack.c.l.b16 %v2126
    %v2191 = vunpack.c.l.b16 %v2127
    %v2192 = vunpack.c.l.b16 %v2128
    %v2193 = vunpack.c.l.b16 %v2129
    %v2194 = vunpack.c.l.b16 %v2130
    %v2195 = vunpack.c.l.b16 %v2131
    %v2196 = vunpack.c.l.b16 %v2132
    %v2197 = vunpack.c.l.b16 %v2133
    %v2198 = vunpack.c.l.b16 %v2134
    %v2199 = vunpack.c.l.b16 %v2135
    %v2200 = vunpack.c.l.b16 %v2136
    %v2201 = vunpack.c.l.b16 %v2137
    %v2202 = vunpack.c.l.b16 %v2138
    %v2203 = vpack.c.b16 %v2172, %v2171
    %v2204 = vpack.c.b16 %v2174, %v2173
    %v2205 = vpack.c.b16 %v2176, %v2175
    %v2206 = vpack.c.b16 %v2178, %v2177
    %v2207 = vpack.c.b16 %v2180, %v2179
    %v2208 = vpack.c.b16 %v2182, %v2181
    %v2209 = vpack.c.b16 %v2184, %v2183
    %v2210 = vpack.c.b16 %v2186, %v2185
    %v2211 = vpack.c.b16 %v2188, %v2187
    %v2212 = vpack.c.b16 %v2190, %v2189
    %v2213 = vpack.c.b16 %v2192, %v2191
    %v2214 = vpack.c.b16 %v2194, %v2193
    %v2215 = vpack.c.b16 %v2196, %v2195
    %v2216 = vpack.c.b16 %v2198, %v2197
    %v2217 = vpack.c.b16 %v2200, %v2199
    %v2218 = vpack.c.b16 %v2202, %v2201
    %2235 = vmatpush.bf16.msra.mxu0 %v2210
    %2236 = vmatpush.bf16.msra.mxu0 %v2209
    %2237 = vmatpush.bf16.msra.mxu0 %v2208
    %2238 = vmatpush.bf16.msra.mxu0 %v2207
    %2239 = vmatpush.bf16.msra.mxu0 %v2206
    %2240 = vmatpush.bf16.msra.mxu0 %v2205
    %2241 = vmatpush.bf16.msra.mxu0 %v2204
    %2242 = vmatpush.bf16.msra.mxu0 %v2203
    %2243 = vmatmul.bf16.gmra.mxu0 %v2104
    %v2244 = vpop.f32.mrf.mxu0
    %v2245 = vadd.f32 0.0, %v2244
    %v2246 = vpop.f32.mrf.mxu0
    %2247 = vdwg.mxu0
    %2248 = vmatpush.bf16.msra.mxu0 %v2218
    %2249 = vmatpush.bf16.msra.mxu0 %v2217
    %2250 = vmatpush.bf16.msra.mxu0 %v2216
    %2251 = vmatpush.bf16.msra.mxu0 %v2215
    %2252 = vmatpush.bf16.msra.mxu0 %v2214
    %2253 = vmatpush.bf16.msra.mxu0 %v2213
    %2254 = vmatpush.bf16.msra.mxu0 %v2212
    %2255 = vmatpush.bf16.msra.mxu0 %v2211
    %2256 = vmatmul.bf16.gmra.mxu0 %v2105
    %v2257 = vpop.f32.mrf.mxu0
    %v2258 = vadd.f32 %v2245, %v2257
    %v2259 = vpop.f32.mrf.mxu0
    %2260 = vdwg.mxu0
    %v2293 = vunpack.c.l.b16 %v2012
    %v2294 = vunpack.c.l.b16 %v2013
    %v2295 = vunpack.c.l.b16 %v2014
    %v2296 = vunpack.c.l.b16 %v2015
    %v2297 = vunpack.c.l.b16 %v2016
    %v2298 = vunpack.c.l.b16 %v2017
    %v2299 = vunpack.c.l.b16 %v2018
    %v2300 = vunpack.c.l.b16 %v2019
    %v2301 = vunpack.c.l.b16 %v2020
    %v2302 = vunpack.c.l.b16 %v2021
    %v2303 = vunpack.c.l.b16 %v2022
    %v2304 = vunpack.c.l.b16 %v2023
    %v2305 = vunpack.c.l.b16 %v2024
    %v2306 = vunpack.c.l.b16 %v2025
    %v2307 = vunpack.c.l.b16 %v2026
    %v2308 = vunpack.c.l.b16 %v2027
    %v2309 = vunpack.c.l.b16 %v2028
    %v2310 = vunpack.c.l.b16 %v2029
    %v2311 = vunpack.c.l.b16 %v2030
    %v2312 = vunpack.c.l.b16 %v2031
    %v2313 = vunpack.c.l.b16 %v2032
    %v2314 = vunpack.c.l.b16 %v2033
    %v2315 = vunpack.c.l.b16 %v2034
    %v2316 = vunpack.c.l.b16 %v2035
    %v2317 = vunpack.c.l.b16 %v2036
    %v2318 = vunpack.c.l.b16 %v2037
    %v2319 = vunpack.c.l.b16 %v2038
    %v2320 = vunpack.c.l.b16 %v2039
    %v2321 = vunpack.c.l.b16 %v2040
    %v2322 = vunpack.c.l.b16 %v2041
    %v2323 = vunpack.c.l.b16 %v2042
    %v2324 = vunpack.c.l.b16 %v2043
    %v2325 = vpack.c.b16 %v2294, %v2293
    %v2326 = vpack.c.b16 %v2296, %v2295
    %v2327 = vpack.c.b16 %v2298, %v2297
    %v2328 = vpack.c.b16 %v2300, %v2299
    %v2329 = vpack.c.b16 %v2302, %v2301
    %v2330 = vpack.c.b16 %v2304, %v2303
    %v2331 = vpack.c.b16 %v2306, %v2305
    %v2332 = vpack.c.b16 %v2308, %v2307
    %v2333 = vpack.c.b16 %v2310, %v2309
    %v2334 = vpack.c.b16 %v2312, %v2311
    %v2335 = vpack.c.b16 %v2314, %v2313
    %v2336 = vpack.c.b16 %v2316, %v2315
    %v2337 = vpack.c.b16 %v2318, %v2317
    %v2338 = vpack.c.b16 %v2320, %v2319
    %v2339 = vpack.c.b16 %v2322, %v2321
    %v2340 = vpack.c.b16 %v2324, %v2323
    %2357 = vmatpush.bf16.msra.mxu0 %v2332
    %2358 = vmatpush.bf16.msra.mxu0 %v2331
    %2359 = vmatpush.bf16.msra.mxu0 %v2330
    %2360 = vmatpush.bf16.msra.mxu0 %v2329
    %2361 = vmatpush.bf16.msra.mxu0 %v2328
    %2362 = vmatpush.bf16.msra.mxu0 %v2327
    %2363 = vmatpush.bf16.msra.mxu0 %v2326
    %2364 = vmatpush.bf16.msra.mxu0 %v2325
    %2365 = vmatmul.bf16.gmra.mxu0 %v2009
    %v2366 = vpop.f32.mrf.mxu0
    %v2367 = vadd.f32 %v2258, %v2366
    %v2368 = vpop.f32.mrf.mxu0
    %2369 = vdwg.mxu0
    %2370 = vmatpush.bf16.msra.mxu0 %v2340
    %2371 = vmatpush.bf16.msra.mxu0 %v2339
    %2372 = vmatpush.bf16.msra.mxu0 %v2338
    %2373 = vmatpush.bf16.msra.mxu0 %v2337
    %2374 = vmatpush.bf16.msra.mxu0 %v2336
    %2375 = vmatpush.bf16.msra.mxu0 %v2335
    %2376 = vmatpush.bf16.msra.mxu0 %v2334
    %2377 = vmatpush.bf16.msra.mxu0 %v2333
    %2378 = vmatmul.bf16.gmra.mxu0 %v2010
    %v2379 = vpop.f32.mrf.mxu0
    %v2380 = vadd.f32 %v2367, %v2379
    %v2381 = vpop.f32.mrf.mxu0
    %2382 = vdwg.mxu0
    %s2383 = scalar_lea.vmem %s4, 320
    %v2384 = vld [vmem:[%s2383] sm:$0xff]
    %v2385 = vld [vmem:[%s2383 + $0x8] sm:$0xff]
    %v2386 = vld [vmem:[%s2383 + $0x10] sm:$0xff]
    %v2387 = vld [vmem:[%s2383 + $0x18] sm:$0xff]
    %s2388 = scalar_lea.vmem %s3, 20
    %v2389 = vld [vmem:[%s2388] sm:$0x3]
    %v2391 = vperm.slane %v2389, 0
    %v2392 = vperm.slane %v2389, 1
    %v2399 = vunpack.c.l.b16 %v2384
    %v2400 = vunpack.c.h.b16 %v2384
    %v2401 = vunpack.c.l.b16 %v2385
    %v2402 = vunpack.c.h.b16 %v2385
    %v2403 = vunpack.c.l.b16 %v2386
    %v2404 = vunpack.c.h.b16 %v2386
    %v2405 = vunpack.c.l.b16 %v2387
    %v2406 = vunpack.c.h.b16 %v2387
    %v2407 = vpack.c.b16 %v2401, %v2399
    %v2408 = vpack.c.b16 %v2402, %v2400
    %v2409 = vpack.c.b16 %v2405, %v2403
    %v2410 = vpack.c.b16 %v2406, %v2404
    %2415 = vmatpush.bf16.msra.mxu0 0
    %2416 = vmatpush.bf16.msra.mxu0 0
    %2417 = vmatpush.bf16.msra.mxu0 0
    %2418 = vmatpush.bf16.msra.mxu0 0
    %2419 = vmatpush.bf16.msra.mxu0 0
    %2420 = vmatpush.bf16.msra.mxu0 0
    %2421 = vmatpush.bf16.msra.mxu0 %v2409
    %2422 = vmatpush.bf16.msra.mxu0 %v2407
    %2423 = vmatmul.bf16.gmra.mxu0 %v1979
    %v2424 = vpop.f32.mrf.mxu0
    %v2425 = vadd.f32 %v2391, %v2424
    %v2426 = vpop.f32.mrf.mxu0
    %2427 = vdwg.mxu0
    %2428 = vmatpush.bf16.msra.mxu0 0
    %2429 = vmatpush.bf16.msra.mxu0 0
    %2430 = vmatpush.bf16.msra.mxu0 0
    %2431 = vmatpush.bf16.msra.mxu0 0
    %2432 = vmatpush.bf16.msra.mxu0 0
    %2433 = vmatpush.bf16.msra.mxu0 0
    %2434 = vmatpush.bf16.msra.mxu0 %v2410
    %2435 = vmatpush.bf16.msra.mxu0 %v2408
    %2436 = vmatmul.bf16.gmra.mxu0 %v1979
    %v2437 = vpop.f32.mrf.mxu0
    %v2438 = vadd.f32 %v2392, %v2437
    %v2439 = vpop.f32.mrf.mxu0
    %2440 = vdwg.mxu0
    %v2441 = vmax.f32 %v2425, 0.0
    %v2442 = vmax.f32 %v2438, 0.0
    %v2443 = vpack.c.bf16 %v2441, %v2441
    %v2444 = vpack.c.bf16 %v2442, %v2442
    %s2445 = scalar_lea.vmem %s5, 1280
    %v2446 = vld [vmem:[%s2445] sm:$0xf]
    %v2447 = vld [vmem:[%s2445 + $0x4] sm:$0xf]
    %v2448 = vld [vmem:[%s2445 + $0x8] sm:$0xf]
    %v2449 = vld [vmem:[%s2445 + $0xc] sm:$0xf]
    %v2450 = vld [vmem:[%s2445 + $0x10] sm:$0xf]
    %v2451 = vld [vmem:[%s2445 + $0x14] sm:$0xf]
    %v2452 = vld [vmem:[%s2445 + $0x18] sm:$0xf]
    %v2453 = vld [vmem:[%s2445 + $0x1c] sm:$0xf]
    %v2454 = vld [vmem:[%s2445 + $0x20] sm:$0xf]
    %v2455 = vld [vmem:[%s2445 + $0x24] sm:$0xf]
    %v2456 = vld [vmem:[%s2445 + $0x28] sm:$0xf]
    %v2457 = vld [vmem:[%s2445 + $0x2c] sm:$0xf]
    %v2458 = vld [vmem:[%s2445 + $0x30] sm:$0xf]
    %v2459 = vld [vmem:[%s2445 + $0x34] sm:$0xf]
    %v2460 = vld [vmem:[%s2445 + $0x38] sm:$0xf]
    %v2461 = vld [vmem:[%s2445 + $0x3c] sm:$0xf]
    %v2462 = vld [vmem:[%s2445 + $0x40] sm:$0xf]
    %v2463 = vld [vmem:[%s2445 + $0x44] sm:$0xf]
    %v2464 = vld [vmem:[%s2445 + $0x48] sm:$0xf]
    %v2465 = vld [vmem:[%s2445 + $0x4c] sm:$0xf]
    %v2466 = vld [vmem:[%s2445 + $0x50] sm:$0xf]
    %v2467 = vld [vmem:[%s2445 + $0x54] sm:$0xf]
    %v2468 = vld [vmem:[%s2445 + $0x58] sm:$0xf]
    %v2469 = vld [vmem:[%s2445 + $0x5c] sm:$0xf]
    %v2470 = vld [vmem:[%s2445 + $0x60] sm:$0xf]
    %v2471 = vld [vmem:[%s2445 + $0x64] sm:$0xf]
    %v2472 = vld [vmem:[%s2445 + $0x68] sm:$0xf]
    %v2473 = vld [vmem:[%s2445 + $0x6c] sm:$0xf]
    %v2474 = vld [vmem:[%s2445 + $0x70] sm:$0xf]
    %v2475 = vld [vmem:[%s2445 + $0x74] sm:$0xf]
    %v2476 = vld [vmem:[%s2445 + $0x78] sm:$0xf]
    %v2477 = vld [vmem:[%s2445 + $0x7c] sm:$0xf]
    %v2510 = vunpack.c.l.b16 %v2446
    %v2511 = vunpack.c.l.b16 %v2447
    %v2512 = vunpack.c.l.b16 %v2448
    %v2513 = vunpack.c.l.b16 %v2449
    %v2514 = vunpack.c.l.b16 %v2450
    %v2515 = vunpack.c.l.b16 %v2451
    %v2516 = vunpack.c.l.b16 %v2452
    %v2517 = vunpack.c.l.b16 %v2453
    %v2518 = vunpack.c.l.b16 %v2454
    %v2519 = vunpack.c.l.b16 %v2455
    %v2520 = vunpack.c.l.b16 %v2456
    %v2521 = vunpack.c.l.b16 %v2457
    %v2522 = vunpack.c.l.b16 %v2458
    %v2523 = vunpack.c.l.b16 %v2459
    %v2524 = vunpack.c.l.b16 %v2460
    %v2525 = vunpack.c.l.b16 %v2461
    %v2526 = vunpack.c.l.b16 %v2462
    %v2527 = vunpack.c.l.b16 %v2463
    %v2528 = vunpack.c.l.b16 %v2464
    %v2529 = vunpack.c.l.b16 %v2465
    %v2530 = vunpack.c.l.b16 %v2466
    %v2531 = vunpack.c.l.b16 %v2467
    %v2532 = vunpack.c.l.b16 %v2468
    %v2533 = vunpack.c.l.b16 %v2469
    %v2534 = vunpack.c.l.b16 %v2470
    %v2535 = vunpack.c.l.b16 %v2471
    %v2536 = vunpack.c.l.b16 %v2472
    %v2537 = vunpack.c.l.b16 %v2473
    %v2538 = vunpack.c.l.b16 %v2474
    %v2539 = vunpack.c.l.b16 %v2475
    %v2540 = vunpack.c.l.b16 %v2476
    %v2541 = vunpack.c.l.b16 %v2477
    %v2542 = vpack.c.b16 %v2511, %v2510
    %v2543 = vpack.c.b16 %v2513, %v2512
    %v2544 = vpack.c.b16 %v2515, %v2514
    %v2545 = vpack.c.b16 %v2517, %v2516
    %v2546 = vpack.c.b16 %v2519, %v2518
    %v2547 = vpack.c.b16 %v2521, %v2520
    %v2548 = vpack.c.b16 %v2523, %v2522
    %v2549 = vpack.c.b16 %v2525, %v2524
    %v2550 = vpack.c.b16 %v2527, %v2526
    %v2551 = vpack.c.b16 %v2529, %v2528
    %v2552 = vpack.c.b16 %v2531, %v2530
    %v2553 = vpack.c.b16 %v2533, %v2532
    %v2554 = vpack.c.b16 %v2535, %v2534
    %v2555 = vpack.c.b16 %v2537, %v2536
    %v2556 = vpack.c.b16 %v2539, %v2538
    %v2557 = vpack.c.b16 %v2541, %v2540
    %2574 = vmatpush.bf16.msra.mxu0 %v2549
    %2575 = vmatpush.bf16.msra.mxu0 %v2548
    %2576 = vmatpush.bf16.msra.mxu0 %v2547
    %2577 = vmatpush.bf16.msra.mxu0 %v2546
    %2578 = vmatpush.bf16.msra.mxu0 %v2545
    %2579 = vmatpush.bf16.msra.mxu0 %v2544
    %2580 = vmatpush.bf16.msra.mxu0 %v2543
    %2581 = vmatpush.bf16.msra.mxu0 %v2542
    %2582 = vmatmul.bf16.gmra.mxu0 %v2443
    %v2583 = vpop.f32.mrf.mxu0
    %v2584 = vadd.f32 0.0, %v2583
    %v2585 = vpop.f32.mrf.mxu0
    %2586 = vdwg.mxu0
    %2587 = vmatpush.bf16.msra.mxu0 %v2557
    %2588 = vmatpush.bf16.msra.mxu0 %v2556
    %2589 = vmatpush.bf16.msra.mxu0 %v2555
    %2590 = vmatpush.bf16.msra.mxu0 %v2554
    %2591 = vmatpush.bf16.msra.mxu0 %v2553
    %2592 = vmatpush.bf16.msra.mxu0 %v2552
    %2593 = vmatpush.bf16.msra.mxu0 %v2551
    %2594 = vmatpush.bf16.msra.mxu0 %v2550
    %2595 = vmatmul.bf16.gmra.mxu0 %v2444
    %v2596 = vpop.f32.mrf.mxu0
    %v2597 = vadd.f32 %v2584, %v2596
    %v2598 = vpop.f32.mrf.mxu0
    %2599 = vdwg.mxu0
    %v2600 = vadd.f32 %v2380, %v2597
    %s2601 = scalar_lea.vmem %s4, 352
    %v2602 = vld [vmem:[%s2601] sm:$0xff]
    %v2603 = vld [vmem:[%s2601 + $0x8] sm:$0xff]
    %v2604 = vld [vmem:[%s2601 + $0x10] sm:$0xff]
    %v2605 = vld [vmem:[%s2601 + $0x18] sm:$0xff]
    %s2606 = scalar_lea.vmem %s3, 22
    %v2607 = vld [vmem:[%s2606] sm:$0x3]
    %v2609 = vperm.slane %v2607, 0
    %v2610 = vperm.slane %v2607, 1
    %v2617 = vunpack.c.l.b16 %v2602
    %v2618 = vunpack.c.h.b16 %v2602
    %v2619 = vunpack.c.l.b16 %v2603
    %v2620 = vunpack.c.h.b16 %v2603
    %v2621 = vunpack.c.l.b16 %v2604
    %v2622 = vunpack.c.h.b16 %v2604
    %v2623 = vunpack.c.l.b16 %v2605
    %v2624 = vunpack.c.h.b16 %v2605
    %v2625 = vpack.c.b16 %v2619, %v2617
    %v2626 = vpack.c.b16 %v2620, %v2618
    %v2627 = vpack.c.b16 %v2623, %v2621
    %v2628 = vpack.c.b16 %v2624, %v2622
    %2633 = vmatpush.bf16.msra.mxu0 0
    %2634 = vmatpush.bf16.msra.mxu0 0
    %2635 = vmatpush.bf16.msra.mxu0 0
    %2636 = vmatpush.bf16.msra.mxu0 0
    %2637 = vmatpush.bf16.msra.mxu0 0
    %2638 = vmatpush.bf16.msra.mxu0 0
    %2639 = vmatpush.bf16.msra.mxu0 %v2627
    %2640 = vmatpush.bf16.msra.mxu0 %v2625
    %2641 = vmatmul.bf16.gmra.mxu0 %v1979
    %v2642 = vpop.f32.mrf.mxu0
    %v2643 = vadd.f32 %v2609, %v2642
    %v2644 = vpop.f32.mrf.mxu0
    %2645 = vdwg.mxu0
    %2646 = vmatpush.bf16.msra.mxu0 0
    %2647 = vmatpush.bf16.msra.mxu0 0
    %2648 = vmatpush.bf16.msra.mxu0 0
    %2649 = vmatpush.bf16.msra.mxu0 0
    %2650 = vmatpush.bf16.msra.mxu0 0
    %2651 = vmatpush.bf16.msra.mxu0 0
    %2652 = vmatpush.bf16.msra.mxu0 %v2628
    %2653 = vmatpush.bf16.msra.mxu0 %v2626
    %2654 = vmatmul.bf16.gmra.mxu0 %v1979
    %v2655 = vpop.f32.mrf.mxu0
    %v2656 = vadd.f32 %v2610, %v2655
    %v2657 = vpop.f32.mrf.mxu0
    %2658 = vdwg.mxu0
    %v2659 = vmax.f32 %v2643, 0.0
    %v2660 = vmax.f32 %v2656, 0.0
    %v2661 = vpack.c.bf16 %v2659, %v2659
    %v2662 = vpack.c.bf16 %v2660, %v2660
    %s2663 = scalar_lea.vmem %s5, 1408
    %v2664 = vld [vmem:[%s2663] sm:$0xf]
    %v2665 = vld [vmem:[%s2663 + $0x4] sm:$0xf]
    %v2666 = vld [vmem:[%s2663 + $0x8] sm:$0xf]
    %v2667 = vld [vmem:[%s2663 + $0xc] sm:$0xf]
    %v2668 = vld [vmem:[%s2663 + $0x10] sm:$0xf]
    %v2669 = vld [vmem:[%s2663 + $0x14] sm:$0xf]
    %v2670 = vld [vmem:[%s2663 + $0x18] sm:$0xf]
    %v2671 = vld [vmem:[%s2663 + $0x1c] sm:$0xf]
    %v2672 = vld [vmem:[%s2663 + $0x20] sm:$0xf]
    %v2673 = vld [vmem:[%s2663 + $0x24] sm:$0xf]
    %v2674 = vld [vmem:[%s2663 + $0x28] sm:$0xf]
    %v2675 = vld [vmem:[%s2663 + $0x2c] sm:$0xf]
    %v2676 = vld [vmem:[%s2663 + $0x30] sm:$0xf]
    %v2677 = vld [vmem:[%s2663 + $0x34] sm:$0xf]
    %v2678 = vld [vmem:[%s2663 + $0x38] sm:$0xf]
    %v2679 = vld [vmem:[%s2663 + $0x3c] sm:$0xf]
    %v2680 = vld [vmem:[%s2663 + $0x40] sm:$0xf]
    %v2681 = vld [vmem:[%s2663 + $0x44] sm:$0xf]
    %v2682 = vld [vmem:[%s2663 + $0x48] sm:$0xf]
    %v2683 = vld [vmem:[%s2663 + $0x4c] sm:$0xf]
    %v2684 = vld [vmem:[%s2663 + $0x50] sm:$0xf]
    %v2685 = vld [vmem:[%s2663 + $0x54] sm:$0xf]
    %v2686 = vld [vmem:[%s2663 + $0x58] sm:$0xf]
    %v2687 = vld [vmem:[%s2663 + $0x5c] sm:$0xf]
    %v2688 = vld [vmem:[%s2663 + $0x60] sm:$0xf]
    %v2689 = vld [vmem:[%s2663 + $0x64] sm:$0xf]
    %v2690 = vld [vmem:[%s2663 + $0x68] sm:$0xf]
    %v2691 = vld [vmem:[%s2663 + $0x6c] sm:$0xf]
    %v2692 = vld [vmem:[%s2663 + $0x70] sm:$0xf]
    %v2693 = vld [vmem:[%s2663 + $0x74] sm:$0xf]
    %v2694 = vld [vmem:[%s2663 + $0x78] sm:$0xf]
    %v2695 = vld [vmem:[%s2663 + $0x7c] sm:$0xf]
    %v2728 = vunpack.c.l.b16 %v2664
    %v2729 = vunpack.c.l.b16 %v2665
    %v2730 = vunpack.c.l.b16 %v2666
    %v2731 = vunpack.c.l.b16 %v2667
    %v2732 = vunpack.c.l.b16 %v2668
    %v2733 = vunpack.c.l.b16 %v2669
    %v2734 = vunpack.c.l.b16 %v2670
    %v2735 = vunpack.c.l.b16 %v2671
    %v2736 = vunpack.c.l.b16 %v2672
    %v2737 = vunpack.c.l.b16 %v2673
    %v2738 = vunpack.c.l.b16 %v2674
    %v2739 = vunpack.c.l.b16 %v2675
    %v2740 = vunpack.c.l.b16 %v2676
    %v2741 = vunpack.c.l.b16 %v2677
    %v2742 = vunpack.c.l.b16 %v2678
    %v2743 = vunpack.c.l.b16 %v2679
    %v2744 = vunpack.c.l.b16 %v2680
    %v2745 = vunpack.c.l.b16 %v2681
    %v2746 = vunpack.c.l.b16 %v2682
    %v2747 = vunpack.c.l.b16 %v2683
    %v2748 = vunpack.c.l.b16 %v2684
    %v2749 = vunpack.c.l.b16 %v2685
    %v2750 = vunpack.c.l.b16 %v2686
    %v2751 = vunpack.c.l.b16 %v2687
    %v2752 = vunpack.c.l.b16 %v2688
    %v2753 = vunpack.c.l.b16 %v2689
    %v2754 = vunpack.c.l.b16 %v2690
    %v2755 = vunpack.c.l.b16 %v2691
    %v2756 = vunpack.c.l.b16 %v2692
    %v2757 = vunpack.c.l.b16 %v2693
    %v2758 = vunpack.c.l.b16 %v2694
    %v2759 = vunpack.c.l.b16 %v2695
    %v2760 = vpack.c.b16 %v2729, %v2728
    %v2761 = vpack.c.b16 %v2731, %v2730
    %v2762 = vpack.c.b16 %v2733, %v2732
    %v2763 = vpack.c.b16 %v2735, %v2734
    %v2764 = vpack.c.b16 %v2737, %v2736
    %v2765 = vpack.c.b16 %v2739, %v2738
    %v2766 = vpack.c.b16 %v2741, %v2740
    %v2767 = vpack.c.b16 %v2743, %v2742
    %v2768 = vpack.c.b16 %v2745, %v2744
    %v2769 = vpack.c.b16 %v2747, %v2746
    %v2770 = vpack.c.b16 %v2749, %v2748
    %v2771 = vpack.c.b16 %v2751, %v2750
    %v2772 = vpack.c.b16 %v2753, %v2752
    %v2773 = vpack.c.b16 %v2755, %v2754
    %v2774 = vpack.c.b16 %v2757, %v2756
    %v2775 = vpack.c.b16 %v2759, %v2758
    %2792 = vmatpush.bf16.msra.mxu0 %v2767
    %2793 = vmatpush.bf16.msra.mxu0 %v2766
    %2794 = vmatpush.bf16.msra.mxu0 %v2765
    %2795 = vmatpush.bf16.msra.mxu0 %v2764
    %2796 = vmatpush.bf16.msra.mxu0 %v2763
    %2797 = vmatpush.bf16.msra.mxu0 %v2762
    %2798 = vmatpush.bf16.msra.mxu0 %v2761
    %2799 = vmatpush.bf16.msra.mxu0 %v2760
    %2800 = vmatmul.bf16.gmra.mxu0 %v2661
    %v2801 = vpop.f32.mrf.mxu0
    %v2802 = vadd.f32 0.0, %v2801
    %v2803 = vpop.f32.mrf.mxu0
    %2804 = vdwg.mxu0
    %2805 = vmatpush.bf16.msra.mxu0 %v2775
    %2806 = vmatpush.bf16.msra.mxu0 %v2774
    %2807 = vmatpush.bf16.msra.mxu0 %v2773
    %2808 = vmatpush.bf16.msra.mxu0 %v2772
    %2809 = vmatpush.bf16.msra.mxu0 %v2771
    %2810 = vmatpush.bf16.msra.mxu0 %v2770
    %2811 = vmatpush.bf16.msra.mxu0 %v2769
    %2812 = vmatpush.bf16.msra.mxu0 %v2768
    %2813 = vmatmul.bf16.gmra.mxu0 %v2662
    %v2814 = vpop.f32.mrf.mxu0
    %v2815 = vadd.f32 %v2802, %v2814
    %v2816 = vpop.f32.mrf.mxu0
    %2817 = vdwg.mxu0
    %v2818 = vadd.f32 %v2600, %v2815
    %s2819 = scalar_lea.vmem %s4, 384
    %v2820 = vld [vmem:[%s2819] sm:$0xff]
    %v2821 = vld [vmem:[%s2819 + $0x8] sm:$0xff]
    %v2822 = vld [vmem:[%s2819 + $0x10] sm:$0xff]
    %v2823 = vld [vmem:[%s2819 + $0x18] sm:$0xff]
    %s2824 = scalar_lea.vmem %s3, 24
    %v2825 = vld [vmem:[%s2824] sm:$0x3]
    %v2827 = vperm.slane %v2825, 0
    %v2828 = vperm.slane %v2825, 1
    %v2835 = vunpack.c.l.b16 %v2820
    %v2836 = vunpack.c.h.b16 %v2820
    %v2837 = vunpack.c.l.b16 %v2821
    %v2838 = vunpack.c.h.b16 %v2821
    %v2839 = vunpack.c.l.b16 %v2822
    %v2840 = vunpack.c.h.b16 %v2822
    %v2841 = vunpack.c.l.b16 %v2823
    %v2842 = vunpack.c.h.b16 %v2823
    %v2843 = vpack.c.b16 %v2837, %v2835
    %v2844 = vpack.c.b16 %v2838, %v2836
    %v2845 = vpack.c.b16 %v2841, %v2839
    %v2846 = vpack.c.b16 %v2842, %v2840
    %2851 = vmatpush.bf16.msra.mxu0 0
    %2852 = vmatpush.bf16.msra.mxu0 0
    %2853 = vmatpush.bf16.msra.mxu0 0
    %2854 = vmatpush.bf16.msra.mxu0 0
    %2855 = vmatpush.bf16.msra.mxu0 0
    %2856 = vmatpush.bf16.msra.mxu0 0
    %2857 = vmatpush.bf16.msra.mxu0 %v2845
    %2858 = vmatpush.bf16.msra.mxu0 %v2843
    %2859 = vmatmul.bf16.gmra.mxu0 %v1979
    %v2860 = vpop.f32.mrf.mxu0
    %v2861 = vadd.f32 %v2827, %v2860
    %v2862 = vpop.f32.mrf.mxu0
    %2863 = vdwg.mxu0
    %2864 = vmatpush.bf16.msra.mxu0 0
    %2865 = vmatpush.bf16.msra.mxu0 0
    %2866 = vmatpush.bf16.msra.mxu0 0
    %2867 = vmatpush.bf16.msra.mxu0 0
    %2868 = vmatpush.bf16.msra.mxu0 0
    %2869 = vmatpush.bf16.msra.mxu0 0
    %2870 = vmatpush.bf16.msra.mxu0 %v2846
    %2871 = vmatpush.bf16.msra.mxu0 %v2844
    %2872 = vmatmul.bf16.gmra.mxu0 %v1979
    %v2873 = vpop.f32.mrf.mxu0
    %v2874 = vadd.f32 %v2828, %v2873
    %v2875 = vpop.f32.mrf.mxu0
    %2876 = vdwg.mxu0
    %v2877 = vmax.f32 %v2861, 0.0
    %v2878 = vmax.f32 %v2874, 0.0
    %v2879 = vpack.c.bf16 %v2877, %v2877
    %v2880 = vpack.c.bf16 %v2878, %v2878
    %s2881 = scalar_lea.vmem %s5, 1536
    %v2882 = vld [vmem:[%s2881] sm:$0xf]
    %v2883 = vld [vmem:[%s2881 + $0x4] sm:$0xf]
    %v2884 = vld [vmem:[%s2881 + $0x8] sm:$0xf]
    %v2885 = vld [vmem:[%s2881 + $0xc] sm:$0xf]
    %v2886 = vld [vmem:[%s2881 + $0x10] sm:$0xf]
    %v2887 = vld [vmem:[%s2881 + $0x14] sm:$0xf]
    %v2888 = vld [vmem:[%s2881 + $0x18] sm:$0xf]
    %v2889 = vld [vmem:[%s2881 + $0x1c] sm:$0xf]
    %v2890 = vld [vmem:[%s2881 + $0x20] sm:$0xf]
    %v2891 = vld [vmem:[%s2881 + $0x24] sm:$0xf]
    %v2892 = vld [vmem:[%s2881 + $0x28] sm:$0xf]
    %v2893 = vld [vmem:[%s2881 + $0x2c] sm:$0xf]
    %v2894 = vld [vmem:[%s2881 + $0x30] sm:$0xf]
    %v2895 = vld [vmem:[%s2881 + $0x34] sm:$0xf]
    %v2896 = vld [vmem:[%s2881 + $0x38] sm:$0xf]
    %v2897 = vld [vmem:[%s2881 + $0x3c] sm:$0xf]
    %v2898 = vld [vmem:[%s2881 + $0x40] sm:$0xf]
    %v2899 = vld [vmem:[%s2881 + $0x44] sm:$0xf]
    %v2900 = vld [vmem:[%s2881 + $0x48] sm:$0xf]
    %v2901 = vld [vmem:[%s2881 + $0x4c] sm:$0xf]
    %v2902 = vld [vmem:[%s2881 + $0x50] sm:$0xf]
    %v2903 = vld [vmem:[%s2881 + $0x54] sm:$0xf]
    %v2904 = vld [vmem:[%s2881 + $0x58] sm:$0xf]
    %v2905 = vld [vmem:[%s2881 + $0x5c] sm:$0xf]
    %v2906 = vld [vmem:[%s2881 + $0x60] sm:$0xf]
    %v2907 = vld [vmem:[%s2881 + $0x64] sm:$0xf]
    %v2908 = vld [vmem:[%s2881 + $0x68] sm:$0xf]
    %v2909 = vld [vmem:[%s2881 + $0x6c] sm:$0xf]
    %v2910 = vld [vmem:[%s2881 + $0x70] sm:$0xf]
    %v2911 = vld [vmem:[%s2881 + $0x74] sm:$0xf]
    %v2912 = vld [vmem:[%s2881 + $0x78] sm:$0xf]
    %v2913 = vld [vmem:[%s2881 + $0x7c] sm:$0xf]
    %v2946 = vunpack.c.l.b16 %v2882
    %v2947 = vunpack.c.l.b16 %v2883
    %v2948 = vunpack.c.l.b16 %v2884
    %v2949 = vunpack.c.l.b16 %v2885
    %v2950 = vunpack.c.l.b16 %v2886
    %v2951 = vunpack.c.l.b16 %v2887
    %v2952 = vunpack.c.l.b16 %v2888
    %v2953 = vunpack.c.l.b16 %v2889
    %v2954 = vunpack.c.l.b16 %v2890
    %v2955 = vunpack.c.l.b16 %v2891
    %v2956 = vunpack.c.l.b16 %v2892
    %v2957 = vunpack.c.l.b16 %v2893
    %v2958 = vunpack.c.l.b16 %v2894
    %v2959 = vunpack.c.l.b16 %v2895
    %v2960 = vunpack.c.l.b16 %v2896
    %v2961 = vunpack.c.l.b16 %v2897
    %v2962 = vunpack.c.l.b16 %v2898
    %v2963 = vunpack.c.l.b16 %v2899
    %v2964 = vunpack.c.l.b16 %v2900
    %v2965 = vunpack.c.l.b16 %v2901
    %v2966 = vunpack.c.l.b16 %v2902
    %v2967 = vunpack.c.l.b16 %v2903
    %v2968 = vunpack.c.l.b16 %v2904
    %v2969 = vunpack.c.l.b16 %v2905
    %v2970 = vunpack.c.l.b16 %v2906
    %v2971 = vunpack.c.l.b16 %v2907
    %v2972 = vunpack.c.l.b16 %v2908
    %v2973 = vunpack.c.l.b16 %v2909
    %v2974 = vunpack.c.l.b16 %v2910
    %v2975 = vunpack.c.l.b16 %v2911
    %v2976 = vunpack.c.l.b16 %v2912
    %v2977 = vunpack.c.l.b16 %v2913
    %v2978 = vpack.c.b16 %v2947, %v2946
    %v2979 = vpack.c.b16 %v2949, %v2948
    %v2980 = vpack.c.b16 %v2951, %v2950
    %v2981 = vpack.c.b16 %v2953, %v2952
    %v2982 = vpack.c.b16 %v2955, %v2954
    %v2983 = vpack.c.b16 %v2957, %v2956
    %v2984 = vpack.c.b16 %v2959, %v2958
    %v2985 = vpack.c.b16 %v2961, %v2960
    %v2986 = vpack.c.b16 %v2963, %v2962
    %v2987 = vpack.c.b16 %v2965, %v2964
    %v2988 = vpack.c.b16 %v2967, %v2966
    %v2989 = vpack.c.b16 %v2969, %v2968
    %v2990 = vpack.c.b16 %v2971, %v2970
    %v2991 = vpack.c.b16 %v2973, %v2972
    %v2992 = vpack.c.b16 %v2975, %v2974
    %v2993 = vpack.c.b16 %v2977, %v2976
    %3010 = vmatpush.bf16.msra.mxu0 %v2985
    %3011 = vmatpush.bf16.msra.mxu0 %v2984
    %3012 = vmatpush.bf16.msra.mxu0 %v2983
    %3013 = vmatpush.bf16.msra.mxu0 %v2982
    %3014 = vmatpush.bf16.msra.mxu0 %v2981
    %3015 = vmatpush.bf16.msra.mxu0 %v2980
    %3016 = vmatpush.bf16.msra.mxu0 %v2979
    %3017 = vmatpush.bf16.msra.mxu0 %v2978
    %3018 = vmatmul.bf16.gmra.mxu0 %v2879
    %v3019 = vpop.f32.mrf.mxu0
    %v3020 = vadd.f32 0.0, %v3019
    %v3021 = vpop.f32.mrf.mxu0
    %3022 = vdwg.mxu0
    %3023 = vmatpush.bf16.msra.mxu0 %v2993
    %3024 = vmatpush.bf16.msra.mxu0 %v2992
    %3025 = vmatpush.bf16.msra.mxu0 %v2991
    %3026 = vmatpush.bf16.msra.mxu0 %v2990
    %3027 = vmatpush.bf16.msra.mxu0 %v2989
    %3028 = vmatpush.bf16.msra.mxu0 %v2988
    %3029 = vmatpush.bf16.msra.mxu0 %v2987
    %3030 = vmatpush.bf16.msra.mxu0 %v2986
    %3031 = vmatmul.bf16.gmra.mxu0 %v2880
    %v3032 = vpop.f32.mrf.mxu0
    %v3033 = vadd.f32 %v3020, %v3032
    %v3034 = vpop.f32.mrf.mxu0
    %3035 = vdwg.mxu0
    %v3036 = vadd.f32 %v2818, %v3033
    %s3037 = scalar_lea.vmem %s4, 416
    %v3038 = vld [vmem:[%s3037] sm:$0xff]
    %v3039 = vld [vmem:[%s3037 + $0x8] sm:$0xff]
    %v3040 = vld [vmem:[%s3037 + $0x10] sm:$0xff]
    %v3041 = vld [vmem:[%s3037 + $0x18] sm:$0xff]
    %s3042 = scalar_lea.vmem %s3, 26
    %v3043 = vld [vmem:[%s3042] sm:$0x3]
    %v3045 = vperm.slane %v3043, 0
    %v3046 = vperm.slane %v3043, 1
    %v3053 = vunpack.c.l.b16 %v3038
    %v3054 = vunpack.c.h.b16 %v3038
    %v3055 = vunpack.c.l.b16 %v3039
    %v3056 = vunpack.c.h.b16 %v3039
    %v3057 = vunpack.c.l.b16 %v3040
    %v3058 = vunpack.c.h.b16 %v3040
    %v3059 = vunpack.c.l.b16 %v3041
    %v3060 = vunpack.c.h.b16 %v3041
    %v3061 = vpack.c.b16 %v3055, %v3053
    %v3062 = vpack.c.b16 %v3056, %v3054
    %v3063 = vpack.c.b16 %v3059, %v3057
    %v3064 = vpack.c.b16 %v3060, %v3058
    %3069 = vmatpush.bf16.msra.mxu0 0
    %3070 = vmatpush.bf16.msra.mxu0 0
    %3071 = vmatpush.bf16.msra.mxu0 0
    %3072 = vmatpush.bf16.msra.mxu0 0
    %3073 = vmatpush.bf16.msra.mxu0 0
    %3074 = vmatpush.bf16.msra.mxu0 0
    %3075 = vmatpush.bf16.msra.mxu0 %v3063
    %3076 = vmatpush.bf16.msra.mxu0 %v3061
    %3077 = vmatmul.bf16.gmra.mxu0 %v1979
    %v3078 = vpop.f32.mrf.mxu0
    %v3079 = vadd.f32 %v3045, %v3078
    %v3080 = vpop.f32.mrf.mxu0
    %3081 = vdwg.mxu0
    %3082 = vmatpush.bf16.msra.mxu0 0
    %3083 = vmatpush.bf16.msra.mxu0 0
    %3084 = vmatpush.bf16.msra.mxu0 0
    %3085 = vmatpush.bf16.msra.mxu0 0
    %3086 = vmatpush.bf16.msra.mxu0 0
    %3087 = vmatpush.bf16.msra.mxu0 0
    %3088 = vmatpush.bf16.msra.mxu0 %v3064
    %3089 = vmatpush.bf16.msra.mxu0 %v3062
    %3090 = vmatmul.bf16.gmra.mxu0 %v1979
    %v3091 = vpop.f32.mrf.mxu0
    %v3092 = vadd.f32 %v3046, %v3091
    %v3093 = vpop.f32.mrf.mxu0
    %3094 = vdwg.mxu0
    %v3095 = vmax.f32 %v3079, 0.0
    %v3096 = vmax.f32 %v3092, 0.0
    %v3097 = vpack.c.bf16 %v3095, %v3095
    %v3098 = vpack.c.bf16 %v3096, %v3096
    %s3099 = scalar_lea.vmem %s5, 1664
    %v3100 = vld [vmem:[%s3099] sm:$0xf]
    %v3101 = vld [vmem:[%s3099 + $0x4] sm:$0xf]
    %v3102 = vld [vmem:[%s3099 + $0x8] sm:$0xf]
    %v3103 = vld [vmem:[%s3099 + $0xc] sm:$0xf]
    %v3104 = vld [vmem:[%s3099 + $0x10] sm:$0xf]
    %v3105 = vld [vmem:[%s3099 + $0x14] sm:$0xf]
    %v3106 = vld [vmem:[%s3099 + $0x18] sm:$0xf]
    %v3107 = vld [vmem:[%s3099 + $0x1c] sm:$0xf]
    %v3108 = vld [vmem:[%s3099 + $0x20] sm:$0xf]
    %v3109 = vld [vmem:[%s3099 + $0x24] sm:$0xf]
    %v3110 = vld [vmem:[%s3099 + $0x28] sm:$0xf]
    %v3111 = vld [vmem:[%s3099 + $0x2c] sm:$0xf]
    %v3112 = vld [vmem:[%s3099 + $0x30] sm:$0xf]
    %v3113 = vld [vmem:[%s3099 + $0x34] sm:$0xf]
    %v3114 = vld [vmem:[%s3099 + $0x38] sm:$0xf]
    %v3115 = vld [vmem:[%s3099 + $0x3c] sm:$0xf]
    %v3116 = vld [vmem:[%s3099 + $0x40] sm:$0xf]
    %v3117 = vld [vmem:[%s3099 + $0x44] sm:$0xf]
    %v3118 = vld [vmem:[%s3099 + $0x48] sm:$0xf]
    %v3119 = vld [vmem:[%s3099 + $0x4c] sm:$0xf]
    %v3120 = vld [vmem:[%s3099 + $0x50] sm:$0xf]
    %v3121 = vld [vmem:[%s3099 + $0x54] sm:$0xf]
    %v3122 = vld [vmem:[%s3099 + $0x58] sm:$0xf]
    %v3123 = vld [vmem:[%s3099 + $0x5c] sm:$0xf]
    %v3124 = vld [vmem:[%s3099 + $0x60] sm:$0xf]
    %v3125 = vld [vmem:[%s3099 + $0x64] sm:$0xf]
    %v3126 = vld [vmem:[%s3099 + $0x68] sm:$0xf]
    %v3127 = vld [vmem:[%s3099 + $0x6c] sm:$0xf]
    %v3128 = vld [vmem:[%s3099 + $0x70] sm:$0xf]
    %v3129 = vld [vmem:[%s3099 + $0x74] sm:$0xf]
    %v3130 = vld [vmem:[%s3099 + $0x78] sm:$0xf]
    %v3131 = vld [vmem:[%s3099 + $0x7c] sm:$0xf]
    %v3164 = vunpack.c.l.b16 %v3100
    %v3165 = vunpack.c.l.b16 %v3101
    %v3166 = vunpack.c.l.b16 %v3102
    %v3167 = vunpack.c.l.b16 %v3103
    %v3168 = vunpack.c.l.b16 %v3104
    %v3169 = vunpack.c.l.b16 %v3105
    %v3170 = vunpack.c.l.b16 %v3106
    %v3171 = vunpack.c.l.b16 %v3107
    %v3172 = vunpack.c.l.b16 %v3108
    %v3173 = vunpack.c.l.b16 %v3109
    %v3174 = vunpack.c.l.b16 %v3110
    %v3175 = vunpack.c.l.b16 %v3111
    %v3176 = vunpack.c.l.b16 %v3112
    %v3177 = vunpack.c.l.b16 %v3113
    %v3178 = vunpack.c.l.b16 %v3114
    %v3179 = vunpack.c.l.b16 %v3115
    %v3180 = vunpack.c.l.b16 %v3116
    %v3181 = vunpack.c.l.b16 %v3117
    %v3182 = vunpack.c.l.b16 %v3118
    %v3183 = vunpack.c.l.b16 %v3119
    %v3184 = vunpack.c.l.b16 %v3120
    %v3185 = vunpack.c.l.b16 %v3121
    %v3186 = vunpack.c.l.b16 %v3122
    %v3187 = vunpack.c.l.b16 %v3123
    %v3188 = vunpack.c.l.b16 %v3124
    %v3189 = vunpack.c.l.b16 %v3125
    %v3190 = vunpack.c.l.b16 %v3126
    %v3191 = vunpack.c.l.b16 %v3127
    %v3192 = vunpack.c.l.b16 %v3128
    %v3193 = vunpack.c.l.b16 %v3129
    %v3194 = vunpack.c.l.b16 %v3130
    %v3195 = vunpack.c.l.b16 %v3131
    %v3196 = vpack.c.b16 %v3165, %v3164
    %v3197 = vpack.c.b16 %v3167, %v3166
    %v3198 = vpack.c.b16 %v3169, %v3168
    %v3199 = vpack.c.b16 %v3171, %v3170
    %v3200 = vpack.c.b16 %v3173, %v3172
    %v3201 = vpack.c.b16 %v3175, %v3174
    %v3202 = vpack.c.b16 %v3177, %v3176
    %v3203 = vpack.c.b16 %v3179, %v3178
    %v3204 = vpack.c.b16 %v3181, %v3180
    %v3205 = vpack.c.b16 %v3183, %v3182
    %v3206 = vpack.c.b16 %v3185, %v3184
    %v3207 = vpack.c.b16 %v3187, %v3186
    %v3208 = vpack.c.b16 %v3189, %v3188
    %v3209 = vpack.c.b16 %v3191, %v3190
    %v3210 = vpack.c.b16 %v3193, %v3192
    %v3211 = vpack.c.b16 %v3195, %v3194
    %3228 = vmatpush.bf16.msra.mxu0 %v3203
    %3229 = vmatpush.bf16.msra.mxu0 %v3202
    %3230 = vmatpush.bf16.msra.mxu0 %v3201
    %3231 = vmatpush.bf16.msra.mxu0 %v3200
    %3232 = vmatpush.bf16.msra.mxu0 %v3199
    %3233 = vmatpush.bf16.msra.mxu0 %v3198
    %3234 = vmatpush.bf16.msra.mxu0 %v3197
    %3235 = vmatpush.bf16.msra.mxu0 %v3196
    %3236 = vmatmul.bf16.gmra.mxu0 %v3097
    %v3237 = vpop.f32.mrf.mxu0
    %v3238 = vadd.f32 0.0, %v3237
    %v3239 = vpop.f32.mrf.mxu0
    %3240 = vdwg.mxu0
    %3241 = vmatpush.bf16.msra.mxu0 %v3211
    %3242 = vmatpush.bf16.msra.mxu0 %v3210
    %3243 = vmatpush.bf16.msra.mxu0 %v3209
    %3244 = vmatpush.bf16.msra.mxu0 %v3208
    %3245 = vmatpush.bf16.msra.mxu0 %v3207
    %3246 = vmatpush.bf16.msra.mxu0 %v3206
    %3247 = vmatpush.bf16.msra.mxu0 %v3205
    %3248 = vmatpush.bf16.msra.mxu0 %v3204
    %3249 = vmatmul.bf16.gmra.mxu0 %v3098
    %v3250 = vpop.f32.mrf.mxu0
    %v3251 = vadd.f32 %v3238, %v3250
    %v3252 = vpop.f32.mrf.mxu0
    %3253 = vdwg.mxu0
    %v3254 = vadd.f32 %v3036, %v3251
    %s3255 = scalar_lea.vmem %s4, 448
    %v3256 = vld [vmem:[%s3255] sm:$0xff]
    %v3257 = vld [vmem:[%s3255 + $0x8] sm:$0xff]
    %v3258 = vld [vmem:[%s3255 + $0x10] sm:$0xff]
    %v3259 = vld [vmem:[%s3255 + $0x18] sm:$0xff]
    %s3260 = scalar_lea.vmem %s3, 28
    %v3261 = vld [vmem:[%s3260] sm:$0x3]
    %v3263 = vperm.slane %v3261, 0
    %v3264 = vperm.slane %v3261, 1
    %v3271 = vunpack.c.l.b16 %v3256
    %v3272 = vunpack.c.h.b16 %v3256
    %v3273 = vunpack.c.l.b16 %v3257
    %v3274 = vunpack.c.h.b16 %v3257
    %v3275 = vunpack.c.l.b16 %v3258
    %v3276 = vunpack.c.h.b16 %v3258
    %v3277 = vunpack.c.l.b16 %v3259
    %v3278 = vunpack.c.h.b16 %v3259
    %v3279 = vpack.c.b16 %v3273, %v3271
    %v3280 = vpack.c.b16 %v3274, %v3272
    %v3281 = vpack.c.b16 %v3277, %v3275
    %v3282 = vpack.c.b16 %v3278, %v3276
    %3287 = vmatpush.bf16.msra.mxu0 0
    %3288 = vmatpush.bf16.msra.mxu0 0
    %3289 = vmatpush.bf16.msra.mxu0 0
    %3290 = vmatpush.bf16.msra.mxu0 0
    %3291 = vmatpush.bf16.msra.mxu0 0
    %3292 = vmatpush.bf16.msra.mxu0 0
    %3293 = vmatpush.bf16.msra.mxu0 %v3281
    %3294 = vmatpush.bf16.msra.mxu0 %v3279
    %3295 = vmatmul.bf16.gmra.mxu0 %v1979
    %v3296 = vpop.f32.mrf.mxu0
    %v3297 = vadd.f32 %v3263, %v3296
    %v3298 = vpop.f32.mrf.mxu0
    %3299 = vdwg.mxu0
    %3300 = vmatpush.bf16.msra.mxu0 0
    %3301 = vmatpush.bf16.msra.mxu0 0
    %3302 = vmatpush.bf16.msra.mxu0 0
    %3303 = vmatpush.bf16.msra.mxu0 0
    %3304 = vmatpush.bf16.msra.mxu0 0
    %3305 = vmatpush.bf16.msra.mxu0 0
    %3306 = vmatpush.bf16.msra.mxu0 %v3282
    %3307 = vmatpush.bf16.msra.mxu0 %v3280
    %3308 = vmatmul.bf16.gmra.mxu0 %v1979
    %v3309 = vpop.f32.mrf.mxu0
    %v3310 = vadd.f32 %v3264, %v3309
    %v3311 = vpop.f32.mrf.mxu0
    %3312 = vdwg.mxu0
    %v3313 = vmax.f32 %v3297, 0.0
    %v3314 = vmax.f32 %v3310, 0.0
    %v3315 = vpack.c.bf16 %v3313, %v3313
    %v3316 = vpack.c.bf16 %v3314, %v3314
    %s3317 = scalar_lea.vmem %s5, 1792
    %v3318 = vld [vmem:[%s3317] sm:$0xf]
    %v3319 = vld [vmem:[%s3317 + $0x4] sm:$0xf]
    %v3320 = vld [vmem:[%s3317 + $0x8] sm:$0xf]
    %v3321 = vld [vmem:[%s3317 + $0xc] sm:$0xf]
    %v3322 = vld [vmem:[%s3317 + $0x10] sm:$0xf]
    %v3323 = vld [vmem:[%s3317 + $0x14] sm:$0xf]
    %v3324 = vld [vmem:[%s3317 + $0x18] sm:$0xf]
    %v3325 = vld [vmem:[%s3317 + $0x1c] sm:$0xf]
    %v3326 = vld [vmem:[%s3317 + $0x20] sm:$0xf]
    %v3327 = vld [vmem:[%s3317 + $0x24] sm:$0xf]
    %v3328 = vld [vmem:[%s3317 + $0x28] sm:$0xf]
    %v3329 = vld [vmem:[%s3317 + $0x2c] sm:$0xf]
    %v3330 = vld [vmem:[%s3317 + $0x30] sm:$0xf]
    %v3331 = vld [vmem:[%s3317 + $0x34] sm:$0xf]
    %v3332 = vld [vmem:[%s3317 + $0x38] sm:$0xf]
    %v3333 = vld [vmem:[%s3317 + $0x3c] sm:$0xf]
    %v3334 = vld [vmem:[%s3317 + $0x40] sm:$0xf]
    %v3335 = vld [vmem:[%s3317 + $0x44] sm:$0xf]
    %v3336 = vld [vmem:[%s3317 + $0x48] sm:$0xf]
    %v3337 = vld [vmem:[%s3317 + $0x4c] sm:$0xf]
    %v3338 = vld [vmem:[%s3317 + $0x50] sm:$0xf]
    %v3339 = vld [vmem:[%s3317 + $0x54] sm:$0xf]
    %v3340 = vld [vmem:[%s3317 + $0x58] sm:$0xf]
    %v3341 = vld [vmem:[%s3317 + $0x5c] sm:$0xf]
    %v3342 = vld [vmem:[%s3317 + $0x60] sm:$0xf]
    %v3343 = vld [vmem:[%s3317 + $0x64] sm:$0xf]
    %v3344 = vld [vmem:[%s3317 + $0x68] sm:$0xf]
    %v3345 = vld [vmem:[%s3317 + $0x6c] sm:$0xf]
    %v3346 = vld [vmem:[%s3317 + $0x70] sm:$0xf]
    %v3347 = vld [vmem:[%s3317 + $0x74] sm:$0xf]
    %v3348 = vld [vmem:[%s3317 + $0x78] sm:$0xf]
    %v3349 = vld [vmem:[%s3317 + $0x7c] sm:$0xf]
    %v3382 = vunpack.c.l.b16 %v3318
    %v3383 = vunpack.c.l.b16 %v3319
    %v3384 = vunpack.c.l.b16 %v3320
    %v3385 = vunpack.c.l.b16 %v3321
    %v3386 = vunpack.c.l.b16 %v3322
    %v3387 = vunpack.c.l.b16 %v3323
    %v3388 = vunpack.c.l.b16 %v3324
    %v3389 = vunpack.c.l.b16 %v3325
    %v3390 = vunpack.c.l.b16 %v3326
    %v3391 = vunpack.c.l.b16 %v3327
    %v3392 = vunpack.c.l.b16 %v3328
    %v3393 = vunpack.c.l.b16 %v3329
    %v3394 = vunpack.c.l.b16 %v3330
    %v3395 = vunpack.c.l.b16 %v3331
    %v3396 = vunpack.c.l.b16 %v3332
    %v3397 = vunpack.c.l.b16 %v3333
    %v3398 = vunpack.c.l.b16 %v3334
    %v3399 = vunpack.c.l.b16 %v3335
    %v3400 = vunpack.c.l.b16 %v3336
    %v3401 = vunpack.c.l.b16 %v3337
    %v3402 = vunpack.c.l.b16 %v3338
    %v3403 = vunpack.c.l.b16 %v3339
    %v3404 = vunpack.c.l.b16 %v3340
    %v3405 = vunpack.c.l.b16 %v3341
    %v3406 = vunpack.c.l.b16 %v3342
    %v3407 = vunpack.c.l.b16 %v3343
    %v3408 = vunpack.c.l.b16 %v3344
    %v3409 = vunpack.c.l.b16 %v3345
    %v3410 = vunpack.c.l.b16 %v3346
    %v3411 = vunpack.c.l.b16 %v3347
    %v3412 = vunpack.c.l.b16 %v3348
    %v3413 = vunpack.c.l.b16 %v3349
    %v3414 = vpack.c.b16 %v3383, %v3382
    %v3415 = vpack.c.b16 %v3385, %v3384
    %v3416 = vpack.c.b16 %v3387, %v3386
    %v3417 = vpack.c.b16 %v3389, %v3388
    %v3418 = vpack.c.b16 %v3391, %v3390
    %v3419 = vpack.c.b16 %v3393, %v3392
    %v3420 = vpack.c.b16 %v3395, %v3394
    %v3421 = vpack.c.b16 %v3397, %v3396
    %v3422 = vpack.c.b16 %v3399, %v3398
    %v3423 = vpack.c.b16 %v3401, %v3400
    %v3424 = vpack.c.b16 %v3403, %v3402
    %v3425 = vpack.c.b16 %v3405, %v3404
    %v3426 = vpack.c.b16 %v3407, %v3406
    %v3427 = vpack.c.b16 %v3409, %v3408
    %v3428 = vpack.c.b16 %v3411, %v3410
    %v3429 = vpack.c.b16 %v3413, %v3412
    %3446 = vmatpush.bf16.msra.mxu0 %v3421
    %3447 = vmatpush.bf16.msra.mxu0 %v3420
    %3448 = vmatpush.bf16.msra.mxu0 %v3419
    %3449 = vmatpush.bf16.msra.mxu0 %v3418
    %3450 = vmatpush.bf16.msra.mxu0 %v3417
    %3451 = vmatpush.bf16.msra.mxu0 %v3416
    %3452 = vmatpush.bf16.msra.mxu0 %v3415
    %3453 = vmatpush.bf16.msra.mxu0 %v3414
    %3454 = vmatmul.bf16.gmra.mxu0 %v3315
    %v3455 = vpop.f32.mrf.mxu0
    %v3456 = vadd.f32 0.0, %v3455
    %v3457 = vpop.f32.mrf.mxu0
    %3458 = vdwg.mxu0
    %3459 = vmatpush.bf16.msra.mxu0 %v3429
    %3460 = vmatpush.bf16.msra.mxu0 %v3428
    %3461 = vmatpush.bf16.msra.mxu0 %v3427
    %3462 = vmatpush.bf16.msra.mxu0 %v3426
    %3463 = vmatpush.bf16.msra.mxu0 %v3425
    %3464 = vmatpush.bf16.msra.mxu0 %v3424
    %3465 = vmatpush.bf16.msra.mxu0 %v3423
    %3466 = vmatpush.bf16.msra.mxu0 %v3422
    %3467 = vmatmul.bf16.gmra.mxu0 %v3316
    %v3468 = vpop.f32.mrf.mxu0
    %v3469 = vadd.f32 %v3456, %v3468
    %v3470 = vpop.f32.mrf.mxu0
    %3471 = vdwg.mxu0
    %v3472 = vadd.f32 %v3254, %v3469
    %s3473 = scalar_lea.vmem %s4, 480
    %v3474 = vld [vmem:[%s3473] sm:$0xff]
    %v3475 = vld [vmem:[%s3473 + $0x8] sm:$0xff]
    %v3476 = vld [vmem:[%s3473 + $0x10] sm:$0xff]
    %v3477 = vld [vmem:[%s3473 + $0x18] sm:$0xff]
    %s3478 = scalar_lea.vmem %s3, 30
    %v3479 = vld [vmem:[%s3478] sm:$0x3]
    %v3481 = vperm.slane %v3479, 0
    %v3482 = vperm.slane %v3479, 1
    %v3489 = vunpack.c.l.b16 %v3474
    %v3490 = vunpack.c.h.b16 %v3474
    %v3491 = vunpack.c.l.b16 %v3475
    %v3492 = vunpack.c.h.b16 %v3475
    %v3493 = vunpack.c.l.b16 %v3476
    %v3494 = vunpack.c.h.b16 %v3476
    %v3495 = vunpack.c.l.b16 %v3477
    %v3496 = vunpack.c.h.b16 %v3477
    %v3497 = vpack.c.b16 %v3491, %v3489
    %v3498 = vpack.c.b16 %v3492, %v3490
    %v3499 = vpack.c.b16 %v3495, %v3493
    %v3500 = vpack.c.b16 %v3496, %v3494
    %3505 = vmatpush.bf16.msra.mxu0 0
    %3506 = vmatpush.bf16.msra.mxu0 0
    %3507 = vmatpush.bf16.msra.mxu0 0
    %3508 = vmatpush.bf16.msra.mxu0 0
    %3509 = vmatpush.bf16.msra.mxu0 0
    %3510 = vmatpush.bf16.msra.mxu0 0
    %3511 = vmatpush.bf16.msra.mxu0 %v3499
    %3512 = vmatpush.bf16.msra.mxu0 %v3497
    %3513 = vmatmul.bf16.gmra.mxu0 %v1979
    %v3514 = vpop.f32.mrf.mxu0
    %v3515 = vadd.f32 %v3481, %v3514
    %v3516 = vpop.f32.mrf.mxu0
    %3517 = vdwg.mxu0
    %3518 = vmatpush.bf16.msra.mxu0 0
    %3519 = vmatpush.bf16.msra.mxu0 0
    %3520 = vmatpush.bf16.msra.mxu0 0
    %3521 = vmatpush.bf16.msra.mxu0 0
    %3522 = vmatpush.bf16.msra.mxu0 0
    %3523 = vmatpush.bf16.msra.mxu0 0
    %3524 = vmatpush.bf16.msra.mxu0 %v3500
    %3525 = vmatpush.bf16.msra.mxu0 %v3498
    %3526 = vmatmul.bf16.gmra.mxu0 %v1979
    %v3527 = vpop.f32.mrf.mxu0
    %v3528 = vadd.f32 %v3482, %v3527
    %v3529 = vpop.f32.mrf.mxu0
    %3530 = vdwg.mxu0
    %v3531 = vmax.f32 %v3515, 0.0
    %v3532 = vmax.f32 %v3528, 0.0
    %v3533 = vpack.c.bf16 %v3531, %v3531
    %v3534 = vpack.c.bf16 %v3532, %v3532
    %s3535 = scalar_lea.vmem %s5, 1920
    %v3536 = vld [vmem:[%s3535] sm:$0xf]
    %v3537 = vld [vmem:[%s3535 + $0x4] sm:$0xf]
    %v3538 = vld [vmem:[%s3535 + $0x8] sm:$0xf]
    %v3539 = vld [vmem:[%s3535 + $0xc] sm:$0xf]
    %v3540 = vld [vmem:[%s3535 + $0x10] sm:$0xf]
    %v3541 = vld [vmem:[%s3535 + $0x14] sm:$0xf]
    %v3542 = vld [vmem:[%s3535 + $0x18] sm:$0xf]
    %v3543 = vld [vmem:[%s3535 + $0x1c] sm:$0xf]
    %v3544 = vld [vmem:[%s3535 + $0x20] sm:$0xf]
    %v3545 = vld [vmem:[%s3535 + $0x24] sm:$0xf]
    %v3546 = vld [vmem:[%s3535 + $0x28] sm:$0xf]
    %v3547 = vld [vmem:[%s3535 + $0x2c] sm:$0xf]
    %v3548 = vld [vmem:[%s3535 + $0x30] sm:$0xf]
    %v3549 = vld [vmem:[%s3535 + $0x34] sm:$0xf]
    %v3550 = vld [vmem:[%s3535 + $0x38] sm:$0xf]
    %v3551 = vld [vmem:[%s3535 + $0x3c] sm:$0xf]
    %v3552 = vld [vmem:[%s3535 + $0x40] sm:$0xf]
    %v3553 = vld [vmem:[%s3535 + $0x44] sm:$0xf]
    %v3554 = vld [vmem:[%s3535 + $0x48] sm:$0xf]
    %v3555 = vld [vmem:[%s3535 + $0x4c] sm:$0xf]
    %v3556 = vld [vmem:[%s3535 + $0x50] sm:$0xf]
    %v3557 = vld [vmem:[%s3535 + $0x54] sm:$0xf]
    %v3558 = vld [vmem:[%s3535 + $0x58] sm:$0xf]
    %v3559 = vld [vmem:[%s3535 + $0x5c] sm:$0xf]
    %v3560 = vld [vmem:[%s3535 + $0x60] sm:$0xf]
    %v3561 = vld [vmem:[%s3535 + $0x64] sm:$0xf]
    %v3562 = vld [vmem:[%s3535 + $0x68] sm:$0xf]
    %v3563 = vld [vmem:[%s3535 + $0x6c] sm:$0xf]
    %v3564 = vld [vmem:[%s3535 + $0x70] sm:$0xf]
    %v3565 = vld [vmem:[%s3535 + $0x74] sm:$0xf]
    %v3566 = vld [vmem:[%s3535 + $0x78] sm:$0xf]
    %v3567 = vld [vmem:[%s3535 + $0x7c] sm:$0xf]
    %v3600 = vunpack.c.l.b16 %v3536
    %v3601 = vunpack.c.l.b16 %v3537
    %v3602 = vunpack.c.l.b16 %v3538
    %v3603 = vunpack.c.l.b16 %v3539
    %v3604 = vunpack.c.l.b16 %v3540
    %v3605 = vunpack.c.l.b16 %v3541
    %v3606 = vunpack.c.l.b16 %v3542
    %v3607 = vunpack.c.l.b16 %v3543
    %v3608 = vunpack.c.l.b16 %v3544
    %v3609 = vunpack.c.l.b16 %v3545
    %v3610 = vunpack.c.l.b16 %v3546
    %v3611 = vunpack.c.l.b16 %v3547
    %v3612 = vunpack.c.l.b16 %v3548
    %v3613 = vunpack.c.l.b16 %v3549
    %v3614 = vunpack.c.l.b16 %v3550
    %v3615 = vunpack.c.l.b16 %v3551
    %v3616 = vunpack.c.l.b16 %v3552
    %v3617 = vunpack.c.l.b16 %v3553
    %v3618 = vunpack.c.l.b16 %v3554
    %v3619 = vunpack.c.l.b16 %v3555
    %v3620 = vunpack.c.l.b16 %v3556
    %v3621 = vunpack.c.l.b16 %v3557
    %v3622 = vunpack.c.l.b16 %v3558
    %v3623 = vunpack.c.l.b16 %v3559
    %v3624 = vunpack.c.l.b16 %v3560
    %v3625 = vunpack.c.l.b16 %v3561
    %v3626 = vunpack.c.l.b16 %v3562
    %v3627 = vunpack.c.l.b16 %v3563
    %v3628 = vunpack.c.l.b16 %v3564
    %v3629 = vunpack.c.l.b16 %v3565
    %v3630 = vunpack.c.l.b16 %v3566
    %v3631 = vunpack.c.l.b16 %v3567
    %v3632 = vpack.c.b16 %v3601, %v3600
    %v3633 = vpack.c.b16 %v3603, %v3602
    %v3634 = vpack.c.b16 %v3605, %v3604
    %v3635 = vpack.c.b16 %v3607, %v3606
    %v3636 = vpack.c.b16 %v3609, %v3608
    %v3637 = vpack.c.b16 %v3611, %v3610
    %v3638 = vpack.c.b16 %v3613, %v3612
    %v3639 = vpack.c.b16 %v3615, %v3614
    %v3640 = vpack.c.b16 %v3617, %v3616
    %v3641 = vpack.c.b16 %v3619, %v3618
    %v3642 = vpack.c.b16 %v3621, %v3620
    %v3643 = vpack.c.b16 %v3623, %v3622
    %v3644 = vpack.c.b16 %v3625, %v3624
    %v3645 = vpack.c.b16 %v3627, %v3626
    %v3646 = vpack.c.b16 %v3629, %v3628
    %v3647 = vpack.c.b16 %v3631, %v3630
    %3664 = vmatpush.bf16.msra.mxu0 %v3639
    %3665 = vmatpush.bf16.msra.mxu0 %v3638
    %3666 = vmatpush.bf16.msra.mxu0 %v3637
    %3667 = vmatpush.bf16.msra.mxu0 %v3636
    %3668 = vmatpush.bf16.msra.mxu0 %v3635
    %3669 = vmatpush.bf16.msra.mxu0 %v3634
    %3670 = vmatpush.bf16.msra.mxu0 %v3633
    %3671 = vmatpush.bf16.msra.mxu0 %v3632
    %3672 = vmatmul.bf16.gmra.mxu0 %v3533
    %v3673 = vpop.f32.mrf.mxu0
    %v3674 = vadd.f32 0.0, %v3673
    %v3675 = vpop.f32.mrf.mxu0
    %3676 = vdwg.mxu0
    %3677 = vmatpush.bf16.msra.mxu0 %v3647
    %3678 = vmatpush.bf16.msra.mxu0 %v3646
    %3679 = vmatpush.bf16.msra.mxu0 %v3645
    %3680 = vmatpush.bf16.msra.mxu0 %v3644
    %3681 = vmatpush.bf16.msra.mxu0 %v3643
    %3682 = vmatpush.bf16.msra.mxu0 %v3642
    %3683 = vmatpush.bf16.msra.mxu0 %v3641
    %3684 = vmatpush.bf16.msra.mxu0 %v3640
    %3685 = vmatmul.bf16.gmra.mxu0 %v3534
    %v3686 = vpop.f32.mrf.mxu0
    %v3687 = vadd.f32 %v3674, %v3686
    %v3688 = vpop.f32.mrf.mxu0
    %3689 = vdwg.mxu0
    %v3690 = vadd.f32 %v3472, %v3687
    %v3691 = vperm.slane %v27, 2
    %v3692 = vadd.f32 %v3690, %v3691
    %v3693 = vadd.f32 %v1944, %v3692
    %v3694 = vsel %vm60, %v3693, 0.0
    %3695 = vadd.xlane.f32.xlu0 %v3694
    %v3696 = vpop.xlane.xlu0 %3695
    %v3697 = vmul.f32 %v3696, %v94
    %v3698 = vsub.f32 %v3693, %v3697
    %v3699 = vmul.f32 %v3698, %v3698
    %v3700 = vsel %vm60, %v3699, 0.0
    %3701 = vadd.xlane.f32.xlu0 %v3700
    %v3702 = vpop.xlane.xlu0 %3701
    %v3703 = vmul.f32 %v3702, %v94
    %v3704 = vadd.f32 %v3703, 1e-05
    %v3705 = vrsqrt.pop %v3704
    %v3706 = vmul.f32 %v3705, %v3704
    %v3707 = vmul.f32 %v3706, %v3705
    %v3708 = vmul.f32 0.5, %v3707
    %v3709 = vsub.f32 1.5, %v3708
    %v3710 = vmul.f32 %v3705, %v3709
    %vm3711 = vweird.f32 %v3704
    %vm3712 = vweird.f32 %v3705
    %vm3713 = vmor %vm3711, %vm3712
    %v3714 = vsel %vm3713, %v3705, %v3710
    %v3715 = vmul.f32 %v3698, %v3714
    %v3716 = vperm.slane %v27, 3
    %v3717 = vmul.f32 %v3715, %v3716
    %v3718 = vperm.slane %v27, 4
    %v3719 = vadd.f32 %v3717, %v3718
    %v3720 = vld [vmem:[%s1 + $0x50] sm:$0xff]
    %v3721 = vld [vmem:[%s1 + $0x58] sm:$0xff]
    %v3722 = vld [vmem:[%s1 + $0x60] sm:$0xff]
    %v3723 = vld [vmem:[%s1 + $0x68] sm:$0xff]
    %v3724 = vperm.slane %v27, 5
    %v3726 = vsel %vm60, %v3719, 0
    %3728 = vmatpush.msra.mxu0 0.0
    %3729 = vmatpush.msra.mxu0 0.0
    %3730 = vmatpush.msra.mxu0 0.0
    %3731 = vmatpush.msra.mxu0 0.0
    %3732 = vmatpush.msra.mxu0 0.0
    %3733 = vmatpush.msra.mxu0 0.0
    %3734 = vmatpush.msra.mxu0 0.0
    %3735 = vmatpush.msra.mxu0 0.0
    %3736 = vmatpush.msra.mxu0 0.0
    %3737 = vmatpush.msra.mxu0 0.0
    %3738 = vmatpush.msra.mxu0 0.0
    %3739 = vmatpush.msra.mxu0 0.0
    %3740 = vmatpush.msra.mxu0 %v3723
    %3741 = vmatpush.msra.mxu0 %v3722
    %3742 = vmatpush.msra.mxu0 %v3721
    %3743 = vmatpush.msra.mxu0 %v3720
    %3744 = vmatmul.f32.gmra.mxu0 %v3726
    %v3745 = vpop.f32.mrf.mxu0
    %v3746 = vadd.f32 %v3724, %v3745
    %3747 = vdwg.mxu0
    %3748 = vst.msk [vmem:[#allocation2] sm:$0xff] %vm60, %v3746
    // Predicated region
    $region26: #{tpu_custom_call.1} parent=1 // pred_check
      _
    $region27: #{tpu_custom_call.1} parent=1 // pred_check_branch
      %3750 = sbr.rel (0) target = $region29
    $region28: #{tpu_custom_call.1} parent=1 // pred_region
      %3752 = vsyncadd [#allocation3], 0
      %s3754 = sshll.u32 [#allocation2], 4
      %s3755 = int_to_ptr.vmem [resolvable:$true] %s3754
      %s3756 = sshll.u32 %s6, 4
      %s3757 = int_to_ptr.hbm [resolvable:$true] %s3756
      %3759 = dma.vmem_to_hbm [thread:$0]  %s3755, 128, %s3757, [#allocation3]
    $region29: #{tpu_custom_call.1} parent=1 // pred_fallthru
      _
    // Predicated region
    $region30: #{tpu_custom_call.1} parent=1 // pred_check
      _
    $region31: #{tpu_custom_call.1} parent=1 // pred_check_branch
      %3761 = sbr.rel (0) target = $region33
    $region32: #{tpu_custom_call.1} parent=1 // pred_region
      %3763 = dma.done [#allocation3], 128
    $region33: #{tpu_custom_call.1} parent=1 // pred_fallthru
      _
    %3764 = vsyncpa [#allocation3], 1

</llo_original>
